<compile_context>
chip_gen: v7x
topology: tpu7x:2x2x1
jax: 0.10.0
libtpu: 0.0.40
codegen_flags: <defaults>
</compile_context>

<pallas_src>
import functools

import jax
import jax.numpy as jnp
from jax.experimental import pallas as pl
from jax.experimental.pallas import tpu as pltpu

LN_EPS = 1e-5
# Single-buffer constant weight BlockSpecs only once they are big enough to matter (ViT scale);
# tiny weight sets gain nothing and default double-buffering of them is free.
_SINGLE_BUFFER_WEIGHT_BYTES = 4 * 1024 * 1024


# ----------------------------------------------------------------------------
# Helpers
# ----------------------------------------------------------------------------
def _round_up(x, m):
    return (x + m - 1) // m * m


def _device_core_count():
    try:
        n = getattr(jax.devices()[0], "num_cores", None)
        return max(int(n), 1) if n else 1
    except Exception:
        return 1


def _vmem_limit_bytes():
    try:
        cap = int(pltpu.get_tpu_info().vmem_capacity_bytes)
    except Exception:
        cap = 64 * 1024 * 1024            # conservative default (v7x per-TC VMEM)
    return min(cap * 3 // 4, 96 * 1024 * 1024)


def _pick_row_blocks(bb_total, n_pad, d, hd_mlp, num_heads, vmem_limit):
    """VMEM-budget-driven row-block count (replaces the old hard-coded 2-way split)."""
    # dominant fp32 in-kernel intermediates per sequence of n_pad tokens
    per_seq = 4 * n_pad * (7 * d + hd_mlp)            # x / LN / qkv(3D) / attn / out / mlp hidden
    per_seq += 4 * 2 * num_heads * n_pad * n_pad      # logits + probs
    budget = max(vmem_limit // 2, 1 << 20)            # headroom for weights + slab double-buffers
    g = max(1, -(-(bb_total * per_seq) // budget))
    cores = _device_core_count()
    if cores > 1 and bb_total % cores == 0:            # only multi-TC chips (v7x) want a split
        g = max(g, cores)
    g = min(g, bb_total)
    while bb_total % g:
        g += 1
    return g


def _layernorm(x, gamma, beta):
    mu = jnp.mean(x, axis=-1, keepdims=True)
    var = jnp.mean((x - mu) ** 2, axis=-1, keepdims=True)
    return (x - mu) * jax.lax.rsqrt(var + LN_EPS) * gamma + beta


def _erf(x):
    # Abramowitz & Stegun 7.1.26, |err| <= 1.5e-7: exp + polynomial only (no lax.erf lowering).
    a1, a2, a3, a4, a5 = 0.254829592, -0.284496736, 1.421413741, -1.453152027, 1.061405429
    ax = jnp.abs(x)
    t = 1.0 / (1.0 + 0.3275911 * ax)
    poly = ((((a5 * t + a4) * t + a3) * t + a2) * t + a1) * t
    y = 1.0 - poly * jnp.exp(-ax * ax)
    return jnp.where(x >= 0.0, y, -y)


def _gelu_exact(x):
    # torch nn.GELU() default (erf form), accurate to ~1e-7.
    return 0.5 * x * (1.0 + _erf(x * 0.7071067811865476))


def _mha(xn, bb, n_pad, n_real, wqkv_t, wproj_t, bproj, *, num_heads, scale, mm_dtype):
    """Multi-head self-attention over `bb` sequences of n_pad (>= n_real) tokens.

    xn: fp32 (bb*n_pad, D).  Weights are pre-transposed + pre-cast to mm_dtype in the wrapper.
    Key positions >= n_real are masked out of the softmax (stats in fp32).
    Returns fp32 (bb*n_pad, D) = proj(attn(xn)) + bproj.
    """
    R, D = xn.shape
    hd = D // num_heads

    # QKV for the whole slab in one MXU matmul (fp32 accumulation).
    qkv = jnp.dot(xn.astype(mm_dtype), wqkv_t, preferred_element_type=jnp.float32)    # (R, 3D)

    def heads_to_batch(col0):
        # Head-major batch (num_heads*bb, n_pad, hd) built from lane slices, row-dim reshapes
        # and an axis-0 concat only — all layout-cheap on TPU (n_pad is a multiple of 8).
        parts = [qkv[:, col0 + h * hd: col0 + (h + 1) * hd].reshape(bb, n_pad, hd)
                 for h in range(num_heads)]
        return parts[0] if num_heads == 1 else jnp.concatenate(parts, axis=0)

    q = heads_to_batch(0)
    k = heads_to_batch(D)
    v = heads_to_batch(2 * D)

    # One batched logits einsum over all heads and sequences.
    logits = jnp.einsum("bnd,bmd->bnm", q.astype(mm_dtype), k.astype(mm_dtype),
                        preferred_element_type=jnp.float32) * scale
    if n_real != n_pad:
        # Key-padding bias: built ONCE (hoisted out of any per-head work), broadcast over batch.
        key_idx = jax.lax.broadcasted_iota(jnp.int32, (1, 1, n_pad), 2)
        logits = logits + jnp.where(key_idx < n_real, 0.0, -1e30)
    logits = logits - jnp.max(logits, axis=-1, keepdims=True)
    p = jnp.exp(logits)
    p = p * pl.reciprocal(jnp.sum(p, axis=-1, keepdims=True), approx=True)   # EUP slot

    ho = jnp.einsum("bnm,bmd->bnd", p.astype(mm_dtype), v.astype(mm_dtype),
                    preferred_element_type=jnp.float32)                       # (H*bb, n_pad, hd)

    # Fold heads back into the lane axis (torch's head concat) -> ONE K=D-deep projection matmul.
    cols = [ho[h * bb:(h + 1) * bb].reshape(R, hd) for h in range(num_heads)]
    ho2 = cols[0] if num_heads == 1 else jnp.concatenate(cols, axis=-1)       # (R, D)
    return jnp.dot(ho2.astype(mm_dtype), wproj_t, preferred_element_type=jnp.float32) + bproj


# ----------------------------------------------------------------------------
# Kernels
# ----------------------------------------------------------------------------
def _temporal_kernel(xt_ref, g_ref, b_ref, wqkv_ref, wproj_ref, bproj_ref, wfc_ref, bfc_ref,
                     o_ref, *, bb, n_pad, n_real, num_heads, scale, mm_dtype):
    """Fused: temporal LayerNorm + temporal MHA + proj + temporal_fc, on one row-block."""
    xt = xt_ref[...].astype(jnp.float32)                                      # (bb*n_pad, D)
    xn = _layernorm(xt, g_ref[...], b_ref[...])
    attn = _mha(xn, bb, n_pad, n_real, wqkv_ref[...], wproj_ref[...], bproj_ref[...],
                num_heads=num_heads, scale=scale, mm_dtype=mm_dtype)
    # temporal_fc is per-token, so it commutes with the '(b hw) t <-> (b t) hw' rearrange and
    # is fused here (saves a kernel launch and an HBM round trip).
    y = jnp.dot(attn.astype(mm_dtype), wfc_ref[...], preferred_element_type=jnp.float32) \
        + bfc_ref[...]
    o_ref[...] = y.astype(o_ref.dtype)


def _spatial_mlp_kernel(x_ref, dt_ref, g1_ref, b1_ref, wqkv_ref, wproj_ref, bproj_ref,
                        g2_ref, b2_ref, w1_ref, bf1_ref, w2_ref, bf2_ref, o_ref,
                        *, bb, n_pad, n_real, num_heads, scale, mm_dtype):
    """Fused: temporal-residual add + LN1 + spatial MHA + residual + LN2 + MLP + residual."""
    x = x_ref[...].astype(jnp.float32) + dt_ref[...].astype(jnp.float32)      # fp32 residual path
    xn = _layernorm(x, g1_ref[...], b1_ref[...])
    x = x + _mha(xn, bb, n_pad, n_real, wqkv_ref[...], wproj_ref[...], bproj_ref[...],
                 num_heads=num_heads, scale=scale, mm_dtype=mm_dtype)
    xn2 = _layernorm(x, g2_ref[...], b2_ref[...])
    h = jnp.dot(xn2.astype(mm_dtype), w1_ref[...], preferred_element_type=jnp.float32) \
        + bf1_ref[...]
    h = _gelu_exact(h)
    y = jnp.dot(h.astype(mm_dtype), w2_ref[...], preferred_element_type=jnp.float32) \
        + bf2_ref[...]
    o_ref[...] = (x + y).astype(o_ref.dtype)


# ----------------------------------------------------------------------------
# Pallas wrappers
# ----------------------------------------------------------------------------
def _const_spec(shape, single_buffer=False):
    index_map = lambda *_: (0,) * len(shape)
    if single_buffer:
        # Single VMEM copy for constant-index weights (instead of the default double buffer).
        return pl.BlockSpec(shape, index_map, pipeline_mode=pl.Buffered(1))
    return pl.BlockSpec(shape, index_map)


def _temporal_pallas(xt2, bb_total, n_pad, n_real, p, *, num_heads, mm_dtype):
    R, D = xt2.shape
    scale = (D // num_heads) ** -0.5

    # Weights pre-transposed + pre-cast ONCE in XLA -> no in-kernel transposes / per-read casts.
    wqkv_t = p["t_wqkv"].T.astype(mm_dtype)        # (D, 3D)
    wproj_t = p["t_wproj"].T.astype(mm_dtype)      # (D, D)
    wfc_t = p["t_fc_w"].T.astype(mm_dtype)         # (D, D)
    wbytes = (wqkv_t.size + wproj_t.size + wfc_t.size) * jnp.dtype(mm_dtype).itemsize
    single = bool(wbytes >= _SINGLE_BUFFER_WEIGHT_BYTES)

    vmem_limit = _vmem_limit_bytes()
    g = _pick_row_blocks(bb_total, n_pad, D, 0, num_heads, vmem_limit)
    rows_blk = (bb_total // g) * n_pad

    kernel = functools.partial(_temporal_kernel, bb=bb_total // g, n_pad=n_pad, n_real=n_real,
                               num_heads=num_heads, scale=scale, mm_dtype=mm_dtype)
    return pl.pallas_call(
        kernel,
        # dt is an internal intermediate -> keep it in mm_dtype to halve its HBM round trip.
        out_shape=jax.ShapeDtypeStruct((R, D), mm_dtype),
        grid=(g,),
        in_specs=[
            pl.BlockSpec((rows_blk, D), lambda i: (i, 0)),
            _const_spec((1, D)), _const_spec((1, D)),
            _const_spec((D, 3 * D), single), _const_spec((D, D), single), _const_spec((1, D)),
            _const_spec((D, D), single), _const_spec((1, D)),
        ],
        out_specs=pl.BlockSpec((rows_blk, D), lambda i: (i, 0)),
        compiler_params=pltpu.CompilerParams(dimension_semantics=("parallel",),
                                             vmem_limit_bytes=vmem_limit),
    )(xt2,
      p["t_ln_g"].reshape(1, D), p["t_ln_b"].reshape(1, D),
      wqkv_t, wproj_t, p["t_bproj"].reshape(1, D),
      wfc_t, p["t_fc_b"].reshape(1, D))


def _spatial_mlp_pallas(x2, dt2, bb_total, n_pad, n_real, p, *, num_heads, mm_dtype, out_dtype):
    R, D = x2.shape
    Hd = p["fc1_w"].shape[0]
    scale = (D // num_heads) ** -0.5

    wqkv_t = p["s_wqkv"].T.astype(mm_dtype)        # (D, 3D)
    wproj_t = p["s_wproj"].T.astype(mm_dtype)      # (D, D)
    w1_t = p["fc1_w"].T.astype(mm_dtype)           # (D, Hd)
    w2_t = p["fc2_w"].T.astype(mm_dtype)           # (Hd, D)
    wbytes = (wqkv_t.size + wproj_t.size + w1_t.size + w2_t.size) * jnp.dtype(mm_dtype).itemsize
    single = bool(wbytes >= _SINGLE_BUFFER_WEIGHT_BYTES)

    vmem_limit = _vmem_limit_bytes()
    g = _pick_row_blocks(bb_total, n_pad, D, Hd, num_heads, vmem_limit)
    rows_blk = (bb_total // g) * n_pad

    kernel = functools.partial(_spatial_mlp_kernel, bb=bb_total // g, n_pad=n_pad, n_real=n_real,
                               num_heads=num_heads, scale=scale, mm_dtype=mm_dtype)
    return pl.pallas_call(
        kernel,
        out_shape=jax.ShapeDtypeStruct((R, D), out_dtype),
        grid=(g,),
        in_specs=[
            pl.BlockSpec((rows_blk, D), lambda i: (i, 0)),
            pl.BlockSpec((rows_blk, D), lambda i: (i, 0)),
            _const_spec((1, D)), _const_spec((1, D)),
            _const_spec((D, 3 * D), single), _const_spec((D, D), single), _const_spec((1, D)),
            _const_spec((1, D)), _const_spec((1, D)),
            _const_spec((D, Hd), single), _const_spec((1, Hd)),
            _const_spec((Hd, D), single), _const_spec((1, D)),
        ],
        out_specs=pl.BlockSpec((rows_blk, D), lambda i: (i, 0)),
        compiler_params=pltpu.CompilerParams(dimension_semantics=("parallel",),
                                             vmem_limit_bytes=vmem_limit),
    )(x2, dt2,
      p["ln1_g"].reshape(1, D), p["ln1_b"].reshape(1, D),
      wqkv_t, wproj_t, p["s_bproj"].reshape(1, D),
      p["ln2_g"].reshape(1, D), p["ln2_b"].reshape(1, D),
      w1_t, p["fc1_b"].reshape(1, Hd),
      w2_t, p["fc2_b"].reshape(1, D))


# ----------------------------------------------------------------------------
# FactorizedAttentionBlock forward (divided_space_time)
# ----------------------------------------------------------------------------
def factorized_attention_block(x, B, T, W, params, *, num_heads, mm_dtype=jnp.bfloat16):
    """x: (B*T, 1 + H*W, dim).  Returns the same shape/dtype.

    mm_dtype is the MXU-operand / HBM-slab dtype (bf16 production default, fp32 for a tight
    correctness check).  LayerNorm / softmax statistics and residuals are always fp32.
    """
    BT, N, D = x.shape
    assert BT == B * T
    HW = N - 1
    out_dtype = x.dtype

    # ---------- temporal attention over the time axis (+ temporal_fc, fused) ----------
    # Token axis padded to a multiple of 8: all in-kernel 2D<->3D reshapes happen on fp32
    # intermediates, so sublane-8 alignment is sufficient (activation slabs themselves are
    # never reshaped inside the kernels).
    Tp = _round_up(T, 8)
    xt = x[:, 1:, :].astype(mm_dtype).reshape(B, T, HW, D).transpose(0, 2, 1, 3)   # (B, HW, T, D)
    xt = jnp.pad(xt, ((0, 0), (0, 0), (0, Tp - T), (0, 0)))
    dt2 = _temporal_pallas(xt.reshape(B * HW * Tp, D), B * HW, Tp, T, params,
                           num_heads=num_heads, mm_dtype=mm_dtype)                 # (B*HW*Tp, D)

    # ---------- temporal residual + spatial attention + MLP (single fused kernel) ----------
    Np = _round_up(N, 8)
    dt = dt2.reshape(B, HW, Tp, D)[:, :, :T, :].transpose(0, 2, 1, 3).reshape(BT, HW, D)
    dtp = jnp.pad(dt, ((0, 0), (1, Np - N), (0, 0)))        # zero delta at cls + padded tokens
    xp = jnp.pad(x.astype(mm_dtype), ((0, 0), (0, Np - N), (0, 0)))
    out2 = _spatial_mlp_pallas(xp.reshape(BT * Np, D), dtp.reshape(BT * Np, D), BT, Np, N,
                               params, num_heads=num_heads, mm_dtype=mm_dtype,
                               out_dtype=out_dtype)
    return out2.reshape(BT, Np, D)[:, :N, :]


# ----------------------------------------------------------------------------
# Pure-JAX reference (for correctness check; exact softmax / exact erf-GELU)
# ----------------------------------------------------------------------------
def _ref_attention(x, g, b, wqkv, wproj, bproj, num_heads):
    BB, N, D = x.shape
    hd = D // num_heads
    xn = _layernorm(x, g, b)
    qkv = (xn @ wqkv.T).reshape(BB, N, 3, num_heads, hd).transpose(2, 0, 3, 1, 4)
    q, k, v = qkv[0], qkv[1], qkv[2]
    attn = jax.nn.softmax((q @ jnp.swapaxes(k, -2, -1)) * hd ** -0.5, axis=-1)
    out = (attn @ v).transpose(0, 2, 1, 3).reshape(BB, N, D)
    return out @ wproj.T + bproj


def _ref_block(x, B, T, W, p, num_heads):
    BT, N, D = x.shape
    HW = N - 1
    xt = x[:, 1:, :].reshape(B, T, HW, D).transpose(0, 2, 1, 3).reshape(B * HW, T, D)
    xt = _ref_attention(xt, p["t_ln_g"], p["t_ln_b"], p["t_wqkv"], p["t_wproj"], p["t_bproj"],
                        num_heads)
    xt = xt.reshape(B, HW, T, D).transpose(0, 2, 1, 3).reshape(B * T, HW, D)
    xt = xt @ p["t_fc_w"].T + p["t_fc_b"]
    x = x.at[:, 1:, :].add(xt)
    x = x + _ref_attention(x, p["ln1_g"], p["ln1_b"], p["s_wqkv"], p["s_wproj"], p["s_bproj"],
                           num_heads)
    xn = _layernorm(x, p["ln2_g"], p["ln2_b"])
    h = jax.nn.gelu(xn @ p["fc1_w"].T + p["fc1_b"], approximate=False)
    return x + (h @ p["fc2_w"].T + p["fc2_b"])


# ----------------------------------------------------------------------------
# Main
# ----------------------------------------------------------------------------
if __name__ == "__main__":
    dim = 32
    num_heads = 2
    mlp_ratio = 1.5
    mlp_hidden = int(dim * mlp_ratio)          # 48

    B, T, H, W = 2, 2, 4, 4
    HW = H * W
    N = 1 + HW                                  # 17 tokens (cls + spatial)
    BT = B * T

    key = jax.random.PRNGKey(0)
    ks = jax.random.split(key, 12)

    def rnd(k, shape):
        return (0.02 * jax.random.normal(k, shape)).astype(jnp.float32)

    params = {
        # spatial branch
        "ln1_g": jnp.ones((dim,), jnp.float32), "ln1_b": jnp.zeros((dim,), jnp.float32),
        "s_wqkv": rnd(ks[0], (3 * dim, dim)),                       # qkv_bias=False
        "s_wproj": rnd(ks[1], (dim, dim)), "s_bproj": rnd(ks[2], (dim,)),
        # temporal branch
        "t_ln_g": jnp.ones((dim,), jnp.float32), "t_ln_b": jnp.zeros((dim,), jnp.float32),
        "t_wqkv": rnd(ks[3], (3 * dim, dim)),
        "t_wproj": rnd(ks[4], (dim, dim)), "t_bproj": rnd(ks[5], (dim,)),
        # temporal_fc is zero-initialized by the module's __init__ (nn.init.constant_(..., 0))
        "t_fc_w": jnp.zeros((dim, dim), jnp.float32), "t_fc_b": jnp.zeros((dim,), jnp.float32),
        # MLP branch
        "ln2_g": jnp.ones((dim,), jnp.float32), "ln2_b": jnp.zeros((dim,), jnp.float32),
        "fc1_w": rnd(ks[6], (mlp_hidden, dim)), "fc1_b": rnd(ks[7], (mlp_hidden,)),
        "fc2_w": rnd(ks[8], (dim, mlp_hidden)), "fc2_b": rnd(ks[9], (dim,)),
    }

    x = jax.random.normal(ks[10], (BT, N, dim), dtype=jnp.float32)

    # Production path: bf16 matmul operands / slabs, fp32 stats + accumulation.
    fwd_bf16 = jax.jit(functools.partial(factorized_attention_block, num_heads=num_heads),
                       static_argnums=(1, 2, 3))
    out_bf16 = jax.block_until_ready(fwd_bf16(x, B, T, W, params))

    # fp32 path for a tighter check (still uses the approximate EUP reciprocal -> ~1e-4 level).
    fwd_f32 = jax.jit(functools.partial(factorized_attention_block, num_heads=num_heads,
                                        mm_dtype=jnp.float32),
                      static_argnums=(1, 2, 3))
    out_f32 = jax.block_until_ready(fwd_f32(x, B, T, W, params))

    ref = _ref_block(x, B, T, W, params, num_heads)
    assert out_bf16.shape == (BT, N, dim) and out_f32.shape == (BT, N, dim)
    assert jnp.allclose(out_f32, ref, atol=2e-3, rtol=2e-3), "fp32-path mismatch vs reference"
    assert jnp.allclose(out_bf16, ref, atol=2e-2, rtol=2e-2), "bf16-path mismatch vs reference"

    print("KERNEL_OK")
</pallas_src>

<mosaic_0001>
module attributes {stable_mosaic.version = 11 : i64} {
  func.func @_temporal_kernel(%arg0: i32, %arg1: memref<256x32xbf16, #tpu.memory_space<vmem>>, %arg2: memref<1x32xf32, #tpu.memory_space<vmem>>, %arg3: memref<1x32xf32, #tpu.memory_space<vmem>>, %arg4: memref<32x96xbf16, #tpu.memory_space<vmem>>, %arg5: memref<32x32xbf16, #tpu.memory_space<vmem>>, %arg6: memref<1x32xf32, #tpu.memory_space<vmem>>, %arg7: memref<32x32xbf16, #tpu.memory_space<vmem>>, %arg8: memref<1x32xf32, #tpu.memory_space<vmem>>, %arg9: memref<256x32xbf16, #tpu.memory_space<vmem>>) attributes {dimension_semantics = [#tpu.dimension_semantics<parallel>], iteration_bounds = array<i64: 1>, scalar_prefetch = 0 : i64, scratch_operands = 0 : i64, tpu.core_type = #tpu.core_type<tc>, window_params = [{transform_indices = @transform_0, window_bounds = array<i64: 256, 32>}, {pipeline_mode = #tpu.pipeline_mode<synchronous>, transform_indices = @transform_1, window_bounds = array<i64: 1, 32>}, {pipeline_mode = #tpu.pipeline_mode<synchronous>, transform_indices = @transform_2, window_bounds = array<i64: 1, 32>}, {pipeline_mode = #tpu.pipeline_mode<synchronous>, transform_indices = @transform_3, window_bounds = array<i64: 32, 96>}, {pipeline_mode = #tpu.pipeline_mode<synchronous>, transform_indices = @transform_4, window_bounds = array<i64: 32, 32>}, {pipeline_mode = #tpu.pipeline_mode<synchronous>, transform_indices = @transform_5, window_bounds = array<i64: 1, 32>}, {pipeline_mode = #tpu.pipeline_mode<synchronous>, transform_indices = @transform_6, window_bounds = array<i64: 32, 32>}, {pipeline_mode = #tpu.pipeline_mode<synchronous>, transform_indices = @transform_7, window_bounds = array<i64: 1, 32>}, {transform_indices = @transform_8, window_bounds = array<i64: 256, 32>}]} {
    %c0 = arith.constant 0 : index
    %c0_0 = arith.constant 0 : index
    %0 = vector.load %arg1[%c0, %c0_0] : memref<256x32xbf16, #tpu.memory_space<vmem>>, vector<256x32xbf16>
    %1 = arith.extf %0 : vector<256x32xbf16> to vector<256x32xf32>
    %c0_1 = arith.constant 0 : index
    %c0_2 = arith.constant 0 : index
    %2 = vector.load %arg2[%c0_1, %c0_2] : memref<1x32xf32, #tpu.memory_space<vmem>>, vector<1x32xf32>
    %c0_3 = arith.constant 0 : index
    %c0_4 = arith.constant 0 : index
    %3 = vector.load %arg3[%c0_3, %c0_4] : memref<1x32xf32, #tpu.memory_space<vmem>>, vector<1x32xf32>
    %cst = arith.constant dense<0.000000e+00> : vector<256xf32>
    %4 = vector.multi_reduction <add>, %1, %cst [1] : vector<256x32xf32> to vector<256xf32>
    %5 = vector.shape_cast %4 : vector<256xf32> to vector<256x1xf32>
    %cst_5 = arith.constant 3.200000e+01 : f32
    %6 = vector.broadcast %cst_5 : f32 to vector<256x1xf32>
    %7 = arith.divf %5, %6 : vector<256x1xf32>
    %8 = vector.broadcast %7 : vector<256x1xf32> to vector<256x32xf32>
    %9 = arith.subf %1, %8 : vector<256x32xf32>
    %10 = arith.mulf %9, %9 : vector<256x32xf32>
    %cst_6 = arith.constant dense<0.000000e+00> : vector<256xf32>
    %11 = vector.multi_reduction <add>, %10, %cst_6 [1] : vector<256x32xf32> to vector<256xf32>
    %12 = vector.shape_cast %11 : vector<256xf32> to vector<256x1xf32>
    %cst_7 = arith.constant 3.200000e+01 : f32
    %13 = vector.broadcast %cst_7 : f32 to vector<256x1xf32>
    %14 = arith.divf %12, %13 : vector<256x1xf32>
    %15 = vector.broadcast %7 : vector<256x1xf32> to vector<256x32xf32>
    %16 = arith.subf %1, %15 : vector<256x32xf32>
    %cst_8 = arith.constant 9.99999974E-6 : f32
    %17 = vector.broadcast %cst_8 : f32 to vector<256x1xf32>
    %18 = arith.addf %14, %17 : vector<256x1xf32>
    %19 = math.rsqrt %18 : vector<256x1xf32>
    %20 = vector.broadcast %19 : vector<256x1xf32> to vector<256x32xf32>
    %21 = arith.mulf %16, %20 : vector<256x32xf32>
    %22 = vector.broadcast %2 : vector<1x32xf32> to vector<256x32xf32>
    %23 = arith.mulf %21, %22 : vector<256x32xf32>
    %24 = vector.broadcast %3 : vector<1x32xf32> to vector<256x32xf32>
    %25 = arith.addf %23, %24 : vector<256x32xf32>
    %c0_9 = arith.constant 0 : index
    %c0_10 = arith.constant 0 : index
    %26 = vector.load %arg4[%c0_9, %c0_10] : memref<32x96xbf16, #tpu.memory_space<vmem>>, vector<32x96xbf16>
    %c0_11 = arith.constant 0 : index
    %c0_12 = arith.constant 0 : index
    %27 = vector.load %arg5[%c0_11, %c0_12] : memref<32x32xbf16, #tpu.memory_space<vmem>>, vector<32x32xbf16>
    %c0_13 = arith.constant 0 : index
    %c0_14 = arith.constant 0 : index
    %28 = vector.load %arg6[%c0_13, %c0_14] : memref<1x32xf32, #tpu.memory_space<vmem>>, vector<1x32xf32>
    %29 = arith.truncf %25 : vector<256x32xf32> to vector<256x32xbf16>
    %cst_15 = arith.constant dense<0.000000e+00> : vector<256x96xf32>
    %30 = tpu.matmul %29, %26, %cst_15 {dimension_numbers = #tpu.dot_dimension_numbers<[1], [0], [0], [1], [0, 0, 1, 1], [], []>} : vector<256x32xbf16>, vector<32x96xbf16>, vector<256x96xf32> -> vector<256x96xf32>
    %31 = vector.extract_strided_slice %30 {offsets = [0, 0], sizes = [256, 16], strides = [1, 1]} : vector<256x96xf32> to vector<256x16xf32>
    %32 = vector.shape_cast %31 : vector<256x16xf32> to vector<32x8x16xf32>
    %33 = vector.extract_strided_slice %30 {offsets = [0, 16], sizes = [256, 16], strides = [1, 1]} : vector<256x96xf32> to vector<256x16xf32>
    %34 = vector.shape_cast %33 : vector<256x16xf32> to vector<32x8x16xf32>
    %35 = tpu.concatenate %32, %34 in 0 : vector<32x8x16xf32>, vector<32x8x16xf32> -> vector<64x8x16xf32>
    %36 = vector.extract_strided_slice %30 {offsets = [0, 32], sizes = [256, 16], strides = [1, 1]} : vector<256x96xf32> to vector<256x16xf32>
    %37 = vector.shape_cast %36 : vector<256x16xf32> to vector<32x8x16xf32>
    %38 = vector.extract_strided_slice %30 {offsets = [0, 48], sizes = [256, 16], strides = [1, 1]} : vector<256x96xf32> to vector<256x16xf32>
    %39 = vector.shape_cast %38 : vector<256x16xf32> to vector<32x8x16xf32>
    %40 = tpu.concatenate %37, %39 in 0 : vector<32x8x16xf32>, vector<32x8x16xf32> -> vector<64x8x16xf32>
    %41 = vector.extract_strided_slice %30 {offsets = [0, 64], sizes = [256, 16], strides = [1, 1]} : vector<256x96xf32> to vector<256x16xf32>
    %42 = vector.shape_cast %41 : vector<256x16xf32> to vector<32x8x16xf32>
    %43 = vector.extract_strided_slice %30 {offsets = [0, 80], sizes = [256, 16], strides = [1, 1]} : vector<256x96xf32> to vector<256x16xf32>
    %44 = vector.shape_cast %43 : vector<256x16xf32> to vector<32x8x16xf32>
    %45 = tpu.concatenate %42, %44 in 0 : vector<32x8x16xf32>, vector<32x8x16xf32> -> vector<64x8x16xf32>
    %46 = arith.truncf %35 : vector<64x8x16xf32> to vector<64x8x16xbf16>
    %47 = arith.truncf %40 : vector<64x8x16xf32> to vector<64x8x16xbf16>
    "tpu.trace_start"() <{level = 10 : i32, message = "bnd,bmd->bnm"}> : () -> ()
    %cst_16 = arith.constant dense<0.000000e+00> : vector<64x8x8xf32>
    %48 = tpu.matmul %46, %47, %cst_16 {dimension_numbers = #tpu.dot_dimension_numbers<[2], [2], [1], [1], [0, 0, 0, 1, 1, 1], [0], [0]>} : vector<64x8x16xbf16>, vector<64x8x16xbf16>, vector<64x8x8xf32> -> vector<64x8x8xf32>
    "tpu.trace_stop"() : () -> ()
    %cst_17 = arith.constant 2.500000e-01 : f32
    %49 = vector.broadcast %cst_17 : f32 to vector<64x8x8xf32>
    %50 = arith.mulf %48, %49 : vector<64x8x8xf32>
    %51 = tpu.iota {dimensions = array<i32: 2>} : vector<1x1x8xi32>
    %c2_i32 = arith.constant 2 : i32
    %52 = vector.broadcast %c2_i32 : i32 to vector<1x1x8xi32>
    %53 = arith.cmpi slt, %51, %52 : vector<1x1x8xi32>
    %cst_18 = arith.constant 0.000000e+00 : f32
    %cst_19 = arith.constant -1.000000e+30 : f32
    %54 = vector.broadcast %cst_18 : f32 to vector<1x1x8xf32>
    %55 = vector.broadcast %cst_19 : f32 to vector<1x1x8xf32>
    %56 = arith.select %53, %54, %55 : vector<1x1x8xi1>, vector<1x1x8xf32>
    %57 = vector.broadcast %56 : vector<1x1x8xf32> to vector<64x8x8xf32>
    %58 = arith.addf %50, %57 : vector<64x8x8xf32>
    %cst_20 = arith.constant dense<0xFF800000> : vector<64x8xf32>
    %59 = vector.multi_reduction <maximumf>, %58, %cst_20 [2] : vector<64x8x8xf32> to vector<64x8xf32>
    %60 = vector.shape_cast %59 : vector<64x8xf32> to vector<64x8x1xf32>
    %61 = vector.broadcast %60 : vector<64x8x1xf32> to vector<64x8x8xf32>
    %62 = arith.subf %58, %61 : vector<64x8x8xf32>
    %63 = math.exp %62 : vector<64x8x8xf32>
    %cst_21 = arith.constant dense<0.000000e+00> : vector<64x8xf32>
    %64 = vector.multi_reduction <add>, %63, %cst_21 [2] : vector<64x8x8xf32> to vector<64x8xf32>
    %65 = vector.shape_cast %64 : vector<64x8xf32> to vector<64x8x1xf32>
    %66 = tpu.reciprocal %65 {approx = true} : vector<64x8x1xf32> -> vector<64x8x1xf32>
    %67 = vector.broadcast %66 : vector<64x8x1xf32> to vector<64x8x8xf32>
    %68 = arith.mulf %63, %67 : vector<64x8x8xf32>
    %69 = arith.truncf %68 : vector<64x8x8xf32> to vector<64x8x8xbf16>
    %70 = arith.truncf %45 : vector<64x8x16xf32> to vector<64x8x16xbf16>
    "tpu.trace_start"() <{level = 10 : i32, message = "bnm,bmd->bnd"}> : () -> ()
    %cst_22 = arith.constant dense<0.000000e+00> : vector<64x8x16xf32>
    %71 = tpu.matmul %69, %70, %cst_22 {dimension_numbers = #tpu.dot_dimension_numbers<[2], [1], [1], [2], [0, 0, 0, 1, 1, 2], [0], [0]>} : vector<64x8x8xbf16>, vector<64x8x16xbf16>, vector<64x8x16xf32> -> vector<64x8x16xf32>
    "tpu.trace_stop"() : () -> ()
    %72 = vector.extract_strided_slice %71 {offsets = [0, 0, 0], sizes = [32, 8, 16], strides = [1, 1, 1]} : vector<64x8x16xf32> to vector<32x8x16xf32>
    %73 = vector.shape_cast %72 : vector<32x8x16xf32> to vector<256x16xf32>
    %74 = vector.extract_strided_slice %71 {offsets = [32, 0, 0], sizes = [32, 8, 16], strides = [1, 1, 1]} : vector<64x8x16xf32> to vector<32x8x16xf32>
    %75 = vector.shape_cast %74 : vector<32x8x16xf32> to vector<256x16xf32>
    %76 = tpu.concatenate %73, %75 in 1 : vector<256x16xf32>, vector<256x16xf32> -> vector<256x32xf32>
    %77 = arith.truncf %76 : vector<256x32xf32> to vector<256x32xbf16>
    %cst_23 = arith.constant dense<0.000000e+00> : vector<256x32xf32>
    %78 = tpu.matmul %77, %27, %cst_23 {dimension_numbers = #tpu.dot_dimension_numbers<[1], [0], [0], [1], [0, 0, 1, 1], [], []>} : vector<256x32xbf16>, vector<32x32xbf16>, vector<256x32xf32> -> vector<256x32xf32>
    %79 = vector.broadcast %28 : vector<1x32xf32> to vector<256x32xf32>
    %80 = arith.addf %78, %79 : vector<256x32xf32>
    %81 = arith.truncf %80 : vector<256x32xf32> to vector<256x32xbf16>
    %c0_24 = arith.constant 0 : index
    %c0_25 = arith.constant 0 : index
    %82 = vector.load %arg7[%c0_24, %c0_25] : memref<32x32xbf16, #tpu.memory_space<vmem>>, vector<32x32xbf16>
    %cst_26 = arith.constant dense<0.000000e+00> : vector<256x32xf32>
    %83 = tpu.matmul %81, %82, %cst_26 {dimension_numbers = #tpu.dot_dimension_numbers<[1], [0], [0], [1], [0, 0, 1, 1], [], []>} : vector<256x32xbf16>, vector<32x32xbf16>, vector<256x32xf32> -> vector<256x32xf32>
    %c0_27 = arith.constant 0 : index
    %c0_28 = arith.constant 0 : index
    %84 = vector.load %arg8[%c0_27, %c0_28] : memref<1x32xf32, #tpu.memory_space<vmem>>, vector<1x32xf32>
    %85 = vector.broadcast %84 : vector<1x32xf32> to vector<256x32xf32>
    %86 = arith.addf %83, %85 : vector<256x32xf32>
    %87 = arith.truncf %86 : vector<256x32xf32> to vector<256x32xbf16>
    %c0_29 = arith.constant 0 : index
    %c0_30 = arith.constant 0 : index
    %88 = vector.load %arg9[%c0_29, %c0_30] : memref<256x32xbf16, #tpu.memory_space<vmem>>, vector<256x32xbf16>
    tpu.vector_store %arg9[%c0_29, %c0_30], %87 {strides = array<i32>} : memref<256x32xbf16, #tpu.memory_space<vmem>>, vector<256x32xbf16>,
    return
  }
  func.func @transform_0(%arg0: i32) -> (i32, i32) {
    %c0_i32 = arith.constant 0 : i32
    %c0_i32_0 = arith.constant 0 : i32
    return %arg0, %c0_i32 : i32, i32
  }
  func.func @transform_1(%arg0: i32) -> (i32, i32) {
    %c0_i32 = arith.constant 0 : i32
    %c0_i32_0 = arith.constant 0 : i32
    %c0_i32_1 = arith.constant 0 : i32
    return %c0_i32, %c0_i32_0 : i32, i32
  }
  func.func @transform_2(%arg0: i32) -> (i32, i32) {
    %c0_i32 = arith.constant 0 : i32
    %c0_i32_0 = arith.constant 0 : i32
    %c0_i32_1 = arith.constant 0 : i32
    return %c0_i32, %c0_i32_0 : i32, i32
  }
  func.func @transform_3(%arg0: i32) -> (i32, i32) {
    %c0_i32 = arith.constant 0 : i32
    %c0_i32_0 = arith.constant 0 : i32
    %c0_i32_1 = arith.constant 0 : i32
    return %c0_i32, %c0_i32_0 : i32, i32
  }
  func.func @transform_4(%arg0: i32) -> (i32, i32) {
    %c0_i32 = arith.constant 0 : i32
    %c0_i32_0 = arith.constant 0 : i32
    %c0_i32_1 = arith.constant 0 : i32
    return %c0_i32, %c0_i32_0 : i32, i32
  }
  func.func @transform_5(%arg0: i32) -> (i32, i32) {
    %c0_i32 = arith.constant 0 : i32
    %c0_i32_0 = arith.constant 0 : i32
    %c0_i32_1 = arith.constant 0 : i32
    return %c0_i32, %c0_i32_0 : i32, i32
  }
  func.func @transform_6(%arg0: i32) -> (i32, i32) {
    %c0_i32 = arith.constant 0 : i32
    %c0_i32_0 = arith.constant 0 : i32
    %c0_i32_1 = arith.constant 0 : i32
    return %c0_i32, %c0_i32_0 : i32, i32
  }
  func.func @transform_7(%arg0: i32) -> (i32, i32) {
    %c0_i32 = arith.constant 0 : i32
    %c0_i32_0 = arith.constant 0 : i32
    %c0_i32_1 = arith.constant 0 : i32
    return %c0_i32, %c0_i32_0 : i32, i32
  }
  func.func @transform_8(%arg0: i32) -> (i32, i32) {
    %c0_i32 = arith.constant 0 : i32
    %c0_i32_0 = arith.constant 0 : i32
    return %arg0, %c0_i32 : i32, i32
  }
}

module attributes {stable_mosaic.version = 11 : i64} {
  func.func @_spatial_mlp_kernel(%arg0: i32, %arg1: memref<96x32xbf16, #tpu.memory_space<vmem>>, %arg2: memref<96x32xbf16, #tpu.memory_space<vmem>>, %arg3: memref<1x32xf32, #tpu.memory_space<vmem>>, %arg4: memref<1x32xf32, #tpu.memory_space<vmem>>, %arg5: memref<32x96xbf16, #tpu.memory_space<vmem>>, %arg6: memref<32x32xbf16, #tpu.memory_space<vmem>>, %arg7: memref<1x32xf32, #tpu.memory_space<vmem>>, %arg8: memref<1x32xf32, #tpu.memory_space<vmem>>, %arg9: memref<1x32xf32, #tpu.memory_space<vmem>>, %arg10: memref<32x48xbf16, #tpu.memory_space<vmem>>, %arg11: memref<1x48xf32, #tpu.memory_space<vmem>>, %arg12: memref<48x32xbf16, #tpu.memory_space<vmem>>, %arg13: memref<1x32xf32, #tpu.memory_space<vmem>>, %arg14: memref<96x32xf32, #tpu.memory_space<vmem>>) attributes {dimension_semantics = [#tpu.dimension_semantics<parallel>], iteration_bounds = array<i64: 1>, scalar_prefetch = 0 : i64, scratch_operands = 0 : i64, tpu.core_type = #tpu.core_type<tc>, window_params = [{transform_indices = @transform_0, window_bounds = array<i64: 96, 32>}, {transform_indices = @transform_1, window_bounds = array<i64: 96, 32>}, {pipeline_mode = #tpu.pipeline_mode<synchronous>, transform_indices = @transform_2, window_bounds = array<i64: 1, 32>}, {pipeline_mode = #tpu.pipeline_mode<synchronous>, transform_indices = @transform_3, window_bounds = array<i64: 1, 32>}, {pipeline_mode = #tpu.pipeline_mode<synchronous>, transform_indices = @transform_4, window_bounds = array<i64: 32, 96>}, {pipeline_mode = #tpu.pipeline_mode<synchronous>, transform_indices = @transform_5, window_bounds = array<i64: 32, 32>}, {pipeline_mode = #tpu.pipeline_mode<synchronous>, transform_indices = @transform_6, window_bounds = array<i64: 1, 32>}, {pipeline_mode = #tpu.pipeline_mode<synchronous>, transform_indices = @transform_7, window_bounds = array<i64: 1, 32>}, {pipeline_mode = #tpu.pipeline_mode<synchronous>, transform_indices = @transform_8, window_bounds = array<i64: 1, 32>}, {pipeline_mode = #tpu.pipeline_mode<synchronous>, transform_indices = @transform_9, window_bounds = array<i64: 32, 48>}, {pipeline_mode = #tpu.pipeline_mode<synchronous>, transform_indices = @transform_10, window_bounds = array<i64: 1, 48>}, {pipeline_mode = #tpu.pipeline_mode<synchronous>, transform_indices = @transform_11, window_bounds = array<i64: 48, 32>}, {pipeline_mode = #tpu.pipeline_mode<synchronous>, transform_indices = @transform_12, window_bounds = array<i64: 1, 32>}, {transform_indices = @transform_13, window_bounds = array<i64: 96, 32>}]} {
    %c0 = arith.constant 0 : index
    %c0_0 = arith.constant 0 : index
    %0 = vector.load %arg1[%c0, %c0_0] : memref<96x32xbf16, #tpu.memory_space<vmem>>, vector<96x32xbf16>
    %1 = arith.extf %0 : vector<96x32xbf16> to vector<96x32xf32>
    %c0_1 = arith.constant 0 : index
    %c0_2 = arith.constant 0 : index
    %2 = vector.load %arg2[%c0_1, %c0_2] : memref<96x32xbf16, #tpu.memory_space<vmem>>, vector<96x32xbf16>
    %3 = arith.extf %2 : vector<96x32xbf16> to vector<96x32xf32>
    %4 = arith.addf %1, %3 : vector<96x32xf32>
    %c0_3 = arith.constant 0 : index
    %c0_4 = arith.constant 0 : index
    %5 = vector.load %arg3[%c0_3, %c0_4] : memref<1x32xf32, #tpu.memory_space<vmem>>, vector<1x32xf32>
    %c0_5 = arith.constant 0 : index
    %c0_6 = arith.constant 0 : index
    %6 = vector.load %arg4[%c0_5, %c0_6] : memref<1x32xf32, #tpu.memory_space<vmem>>, vector<1x32xf32>
    %cst = arith.constant dense<0.000000e+00> : vector<96xf32>
    %7 = vector.multi_reduction <add>, %4, %cst [1] : vector<96x32xf32> to vector<96xf32>
    %8 = vector.shape_cast %7 : vector<96xf32> to vector<96x1xf32>
    %cst_7 = arith.constant 3.200000e+01 : f32
    %9 = vector.broadcast %cst_7 : f32 to vector<96x1xf32>
    %10 = arith.divf %8, %9 : vector<96x1xf32>
    %11 = vector.broadcast %10 : vector<96x1xf32> to vector<96x32xf32>
    %12 = arith.subf %4, %11 : vector<96x32xf32>
    %13 = arith.mulf %12, %12 : vector<96x32xf32>
    %cst_8 = arith.constant dense<0.000000e+00> : vector<96xf32>
    %14 = vector.multi_reduction <add>, %13, %cst_8 [1] : vector<96x32xf32> to vector<96xf32>
    %15 = vector.shape_cast %14 : vector<96xf32> to vector<96x1xf32>
    %cst_9 = arith.constant 3.200000e+01 : f32
    %16 = vector.broadcast %cst_9 : f32 to vector<96x1xf32>
    %17 = arith.divf %15, %16 : vector<96x1xf32>
    %18 = vector.broadcast %10 : vector<96x1xf32> to vector<96x32xf32>
    %19 = arith.subf %4, %18 : vector<96x32xf32>
    %cst_10 = arith.constant 9.99999974E-6 : f32
    %20 = vector.broadcast %cst_10 : f32 to vector<96x1xf32>
    %21 = arith.addf %17, %20 : vector<96x1xf32>
    %22 = math.rsqrt %21 : vector<96x1xf32>
    %23 = vector.broadcast %22 : vector<96x1xf32> to vector<96x32xf32>
    %24 = arith.mulf %19, %23 : vector<96x32xf32>
    %25 = vector.broadcast %5 : vector<1x32xf32> to vector<96x32xf32>
    %26 = arith.mulf %24, %25 : vector<96x32xf32>
    %27 = vector.broadcast %6 : vector<1x32xf32> to vector<96x32xf32>
    %28 = arith.addf %26, %27 : vector<96x32xf32>
    %c0_11 = arith.constant 0 : index
    %c0_12 = arith.constant 0 : index
    %29 = vector.load %arg5[%c0_11, %c0_12] : memref<32x96xbf16, #tpu.memory_space<vmem>>, vector<32x96xbf16>
    %c0_13 = arith.constant 0 : index
    %c0_14 = arith.constant 0 : index
    %30 = vector.load %arg6[%c0_13, %c0_14] : memref<32x32xbf16, #tpu.memory_space<vmem>>, vector<32x32xbf16>
    %c0_15 = arith.constant 0 : index
    %c0_16 = arith.constant 0 : index
    %31 = vector.load %arg7[%c0_15, %c0_16] : memref<1x32xf32, #tpu.memory_space<vmem>>, vector<1x32xf32>
    %32 = arith.truncf %28 : vector<96x32xf32> to vector<96x32xbf16>
    %cst_17 = arith.constant dense<0.000000e+00> : vector<96x96xf32>
    %33 = tpu.matmul %32, %29, %cst_17 {dimension_numbers = #tpu.dot_dimension_numbers<[1], [0], [0], [1], [0, 0, 1, 1], [], []>} : vector<96x32xbf16>, vector<32x96xbf16>, vector<96x96xf32> -> vector<96x96xf32>
    %34 = vector.extract_strided_slice %33 {offsets = [0, 0], sizes = [96, 16], strides = [1, 1]} : vector<96x96xf32> to vector<96x16xf32>
    %35 = vector.shape_cast %34 : vector<96x16xf32> to vector<4x24x16xf32>
    %36 = vector.extract_strided_slice %33 {offsets = [0, 16], sizes = [96, 16], strides = [1, 1]} : vector<96x96xf32> to vector<96x16xf32>
    %37 = vector.shape_cast %36 : vector<96x16xf32> to vector<4x24x16xf32>
    %38 = tpu.concatenate %35, %37 in 0 : vector<4x24x16xf32>, vector<4x24x16xf32> -> vector<8x24x16xf32>
    %39 = vector.extract_strided_slice %33 {offsets = [0, 32], sizes = [96, 16], strides = [1, 1]} : vector<96x96xf32> to vector<96x16xf32>
    %40 = vector.shape_cast %39 : vector<96x16xf32> to vector<4x24x16xf32>
    %41 = vector.extract_strided_slice %33 {offsets = [0, 48], sizes = [96, 16], strides = [1, 1]} : vector<96x96xf32> to vector<96x16xf32>
    %42 = vector.shape_cast %41 : vector<96x16xf32> to vector<4x24x16xf32>
    %43 = tpu.concatenate %40, %42 in 0 : vector<4x24x16xf32>, vector<4x24x16xf32> -> vector<8x24x16xf32>
    %44 = vector.extract_strided_slice %33 {offsets = [0, 64], sizes = [96, 16], strides = [1, 1]} : vector<96x96xf32> to vector<96x16xf32>
    %45 = vector.shape_cast %44 : vector<96x16xf32> to vector<4x24x16xf32>
    %46 = vector.extract_strided_slice %33 {offsets = [0, 80], sizes = [96, 16], strides = [1, 1]} : vector<96x96xf32> to vector<96x16xf32>
    %47 = vector.shape_cast %46 : vector<96x16xf32> to vector<4x24x16xf32>
    %48 = tpu.concatenate %45, %47 in 0 : vector<4x24x16xf32>, vector<4x24x16xf32> -> vector<8x24x16xf32>
    %49 = arith.truncf %38 : vector<8x24x16xf32> to vector<8x24x16xbf16>
    %50 = arith.truncf %43 : vector<8x24x16xf32> to vector<8x24x16xbf16>
    "tpu.trace_start"() <{level = 10 : i32, message = "bnd,bmd->bnm"}> : () -> ()
    %cst_18 = arith.constant dense<0.000000e+00> : vector<8x24x24xf32>
    %51 = tpu.matmul %49, %50, %cst_18 {dimension_numbers = #tpu.dot_dimension_numbers<[2], [2], [1], [1], [0, 0, 0, 1, 1, 1], [0], [0]>} : vector<8x24x16xbf16>, vector<8x24x16xbf16>, vector<8x24x24xf32> -> vector<8x24x24xf32>
    "tpu.trace_stop"() : () -> ()
    %cst_19 = arith.constant 2.500000e-01 : f32
    %52 = vector.broadcast %cst_19 : f32 to vector<8x24x24xf32>
    %53 = arith.mulf %51, %52 : vector<8x24x24xf32>
    %54 = tpu.iota {dimensions = array<i32: 2>} : vector<1x1x24xi32>
    %c17_i32 = arith.constant 17 : i32
    %55 = vector.broadcast %c17_i32 : i32 to vector<1x1x24xi32>
    %56 = arith.cmpi slt, %54, %55 : vector<1x1x24xi32>
    %cst_20 = arith.constant 0.000000e+00 : f32
    %cst_21 = arith.constant -1.000000e+30 : f32
    %57 = vector.broadcast %cst_20 : f32 to vector<1x1x24xf32>
    %58 = vector.broadcast %cst_21 : f32 to vector<1x1x24xf32>
    %59 = arith.select %56, %57, %58 : vector<1x1x24xi1>, vector<1x1x24xf32>
    %60 = vector.broadcast %59 : vector<1x1x24xf32> to vector<8x24x24xf32>
    %61 = arith.addf %53, %60 : vector<8x24x24xf32>
    %cst_22 = arith.constant dense<0xFF800000> : vector<8x24xf32>
    %62 = vector.multi_reduction <maximumf>, %61, %cst_22 [2] : vector<8x24x24xf32> to vector<8x24xf32>
    %63 = vector.shape_cast %62 : vector<8x24xf32> to vector<8x24x1xf32>
    %64 = vector.broadcast %63 : vector<8x24x1xf32> to vector<8x24x24xf32>
    %65 = arith.subf %61, %64 : vector<8x24x24xf32>
    %66 = math.exp %65 : vector<8x24x24xf32>
    %cst_23 = arith.constant dense<0.000000e+00> : vector<8x24xf32>
    %67 = vector.multi_reduction <add>, %66, %cst_23 [2] : vector<8x24x24xf32> to vector<8x24xf32>
    %68 = vector.shape_cast %67 : vector<8x24xf32> to vector<8x24x1xf32>
    %69 = tpu.reciprocal %68 {approx = true} : vector<8x24x1xf32> -> vector<8x24x1xf32>
    %70 = vector.broadcast %69 : vector<8x24x1xf32> to vector<8x24x24xf32>
    %71 = arith.mulf %66, %70 : vector<8x24x24xf32>
    %72 = arith.truncf %71 : vector<8x24x24xf32> to vector<8x24x24xbf16>
    %73 = arith.truncf %48 : vector<8x24x16xf32> to vector<8x24x16xbf16>
    "tpu.trace_start"() <{level = 10 : i32, message = "bnm,bmd->bnd"}> : () -> ()
    %cst_24 = arith.constant dense<0.000000e+00> : vector<8x24x16xf32>
    %74 = tpu.matmul %72, %73, %cst_24 {dimension_numbers = #tpu.dot_dimension_numbers<[2], [1], [1], [2], [0, 0, 0, 1, 1, 2], [0], [0]>} : vector<8x24x24xbf16>, vector<8x24x16xbf16>, vector<8x24x16xf32> -> vector<8x24x16xf32>
    "tpu.trace_stop"() : () -> ()
    %75 = vector.extract_strided_slice %74 {offsets = [0, 0, 0], sizes = [4, 24, 16], strides = [1, 1, 1]} : vector<8x24x16xf32> to vector<4x24x16xf32>
    %76 = vector.shape_cast %75 : vector<4x24x16xf32> to vector<96x16xf32>
    %77 = vector.extract_strided_slice %74 {offsets = [4, 0, 0], sizes = [4, 24, 16], strides = [1, 1, 1]} : vector<8x24x16xf32> to vector<4x24x16xf32>
    %78 = vector.shape_cast %77 : vector<4x24x16xf32> to vector<96x16xf32>
    %79 = tpu.concatenate %76, %78 in 1 : vector<96x16xf32>, vector<96x16xf32> -> vector<96x32xf32>
    %80 = arith.truncf %79 : vector<96x32xf32> to vector<96x32xbf16>
    %cst_25 = arith.constant dense<0.000000e+00> : vector<96x32xf32>
    %81 = tpu.matmul %80, %30, %cst_25 {dimension_numbers = #tpu.dot_dimension_numbers<[1], [0], [0], [1], [0, 0, 1, 1], [], []>} : vector<96x32xbf16>, vector<32x32xbf16>, vector<96x32xf32> -> vector<96x32xf32>
    %82 = vector.broadcast %31 : vector<1x32xf32> to vector<96x32xf32>
    %83 = arith.addf %81, %82 : vector<96x32xf32>
    %84 = arith.addf %4, %83 : vector<96x32xf32>
    %c0_26 = arith.constant 0 : index
    %c0_27 = arith.constant 0 : index
    %85 = vector.load %arg8[%c0_26, %c0_27] : memref<1x32xf32, #tpu.memory_space<vmem>>, vector<1x32xf32>
    %c0_28 = arith.constant 0 : index
    %c0_29 = arith.constant 0 : index
    %86 = vector.load %arg9[%c0_28, %c0_29] : memref<1x32xf32, #tpu.memory_space<vmem>>, vector<1x32xf32>
    %cst_30 = arith.constant dense<0.000000e+00> : vector<96xf32>
    %87 = vector.multi_reduction <add>, %84, %cst_30 [1] : vector<96x32xf32> to vector<96xf32>
    %88 = vector.shape_cast %87 : vector<96xf32> to vector<96x1xf32>
    %cst_31 = arith.constant 3.200000e+01 : f32
    %89 = vector.broadcast %cst_31 : f32 to vector<96x1xf32>
    %90 = arith.divf %88, %89 : vector<96x1xf32>
    %91 = vector.broadcast %90 : vector<96x1xf32> to vector<96x32xf32>
    %92 = arith.subf %84, %91 : vector<96x32xf32>
    %93 = arith.mulf %92, %92 : vector<96x32xf32>
    %cst_32 = arith.constant dense<0.000000e+00> : vector<96xf32>
    %94 = vector.multi_reduction <add>, %93, %cst_32 [1] : vector<96x32xf32> to vector<96xf32>
    %95 = vector.shape_cast %94 : vector<96xf32> to vector<96x1xf32>
    %cst_33 = arith.constant 3.200000e+01 : f32
    %96 = vector.broadcast %cst_33 : f32 to vector<96x1xf32>
    %97 = arith.divf %95, %96 : vector<96x1xf32>
    %98 = vector.broadcast %90 : vector<96x1xf32> to vector<96x32xf32>
    %99 = arith.subf %84, %98 : vector<96x32xf32>
    %cst_34 = arith.constant 9.99999974E-6 : f32
    %100 = vector.broadcast %cst_34 : f32 to vector<96x1xf32>
    %101 = arith.addf %97, %100 : vector<96x1xf32>
    %102 = math.rsqrt %101 : vector<96x1xf32>
    %103 = vector.broadcast %102 : vector<96x1xf32> to vector<96x32xf32>
    %104 = arith.mulf %99, %103 : vector<96x32xf32>
    %105 = vector.broadcast %85 : vector<1x32xf32> to vector<96x32xf32>
    %106 = arith.mulf %104, %105 : vector<96x32xf32>
    %107 = vector.broadcast %86 : vector<1x32xf32> to vector<96x32xf32>
    %108 = arith.addf %106, %107 : vector<96x32xf32>
    %109 = arith.truncf %108 : vector<96x32xf32> to vector<96x32xbf16>
    %c0_35 = arith.constant 0 : index
    %c0_36 = arith.constant 0 : index
    %110 = vector.load %arg10[%c0_35, %c0_36] : memref<32x48xbf16, #tpu.memory_space<vmem>>, vector<32x48xbf16>
    %cst_37 = arith.constant dense<0.000000e+00> : vector<96x48xf32>
    %111 = tpu.matmul %109, %110, %cst_37 {dimension_numbers = #tpu.dot_dimension_numbers<[1], [0], [0], [1], [0, 0, 1, 1], [], []>} : vector<96x32xbf16>, vector<32x48xbf16>, vector<96x48xf32> -> vector<96x48xf32>
    %c0_38 = arith.constant 0 : index
    %c0_39 = arith.constant 0 : index
    %112 = vector.load %arg11[%c0_38, %c0_39] : memref<1x48xf32, #tpu.memory_space<vmem>>, vector<1x48xf32>
    %113 = vector.broadcast %112 : vector<1x48xf32> to vector<96x48xf32>
    %114 = arith.addf %111, %113 : vector<96x48xf32>
    %cst_40 = arith.constant 5.000000e-01 : f32
    %115 = vector.broadcast %cst_40 : f32 to vector<96x48xf32>
    %116 = arith.mulf %115, %114 : vector<96x48xf32>
    %cst_41 = arith.constant 0.707106769 : f32
    %117 = vector.broadcast %cst_41 : f32 to vector<96x48xf32>
    %118 = arith.mulf %114, %117 : vector<96x48xf32>
    %119 = math.absf %118 : vector<96x48xf32>
    %cst_42 = arith.constant 0.327591091 : f32
    %120 = vector.broadcast %cst_42 : f32 to vector<96x48xf32>
    %121 = arith.mulf %120, %119 : vector<96x48xf32>
    %cst_43 = arith.constant 1.000000e+00 : f32
    %122 = vector.broadcast %cst_43 : f32 to vector<96x48xf32>
    %123 = arith.addf %122, %121 : vector<96x48xf32>
    %cst_44 = arith.constant 1.000000e+00 : f32
    %124 = vector.broadcast %cst_44 : f32 to vector<96x48xf32>
    %125 = arith.divf %124, %123 : vector<96x48xf32>
    %cst_45 = arith.constant 1.06140542 : f32
    %126 = vector.broadcast %cst_45 : f32 to vector<96x48xf32>
    %127 = arith.mulf %126, %125 : vector<96x48xf32>
    %cst_46 = arith.constant -1.45315206 : f32
    %128 = vector.broadcast %cst_46 : f32 to vector<96x48xf32>
    %129 = arith.addf %127, %128 : vector<96x48xf32>
    %130 = arith.mulf %129, %125 : vector<96x48xf32>
    %cst_47 = arith.constant 1.42141378 : f32
    %131 = vector.broadcast %cst_47 : f32 to vector<96x48xf32>
    %132 = arith.addf %130, %131 : vector<96x48xf32>
    %133 = arith.mulf %132, %125 : vector<96x48xf32>
    %cst_48 = arith.constant -0.284496725 : f32
    %134 = vector.broadcast %cst_48 : f32 to vector<96x48xf32>
    %135 = arith.addf %133, %134 : vector<96x48xf32>
    %136 = arith.mulf %135, %125 : vector<96x48xf32>
    %cst_49 = arith.constant 0.254829586 : f32
    %137 = vector.broadcast %cst_49 : f32 to vector<96x48xf32>
    %138 = arith.addf %136, %137 : vector<96x48xf32>
    %139 = arith.mulf %138, %125 : vector<96x48xf32>
    %cst_50 = arith.constant 0.000000e+00 : f32
    %140 = vector.broadcast %cst_50 : f32 to vector<96x48xf32>
    %141 = arith.subf %140, %119 : vector<96x48xf32>
    %142 = arith.mulf %141, %119 : vector<96x48xf32>
    %143 = math.exp %142 : vector<96x48xf32>
    %144 = arith.mulf %139, %143 : vector<96x48xf32>
    %cst_51 = arith.constant 1.000000e+00 : f32
    %145 = vector.broadcast %cst_51 : f32 to vector<96x48xf32>
    %146 = arith.subf %145, %144 : vector<96x48xf32>
    %cst_52 = arith.constant 0.000000e+00 : f32
    %147 = vector.broadcast %cst_52 : f32 to vector<96x48xf32>
    %148 = arith.cmpf oge, %118, %147 : vector<96x48xf32>
    %cst_53 = arith.constant 0.000000e+00 : f32
    %149 = vector.broadcast %cst_53 : f32 to vector<96x48xf32>
    %150 = arith.subf %149, %146 : vector<96x48xf32>
    %151 = arith.select %148, %146, %150 : vector<96x48xi1>, vector<96x48xf32>
    %cst_54 = arith.constant 1.000000e+00 : f32
    %152 = vector.broadcast %cst_54 : f32 to vector<96x48xf32>
    %153 = arith.addf %152, %151 : vector<96x48xf32>
    %154 = arith.mulf %116, %153 : vector<96x48xf32>
    %155 = arith.truncf %154 : vector<96x48xf32> to vector<96x48xbf16>
    %c0_55 = arith.constant 0 : index
    %c0_56 = arith.constant 0 : index
    %156 = vector.load %arg12[%c0_55, %c0_56] : memref<48x32xbf16, #tpu.memory_space<vmem>>, vector<48x32xbf16>
    %cst_57 = arith.constant dense<0.000000e+00> : vector<96x32xf32>
    %157 = tpu.matmul %155, %156, %cst_57 {dimension_numbers = #tpu.dot_dimension_numbers<[1], [0], [0], [1], [0, 0, 1, 1], [], []>} : vector<96x48xbf16>, vector<48x32xbf16>, vector<96x32xf32> -> vector<96x32xf32>
    %c0_58 = arith.constant 0 : index
    %c0_59 = arith.constant 0 : index
    %158 = vector.load %arg13[%c0_58, %c0_59] : memref<1x32xf32, #tpu.memory_space<vmem>>, vector<1x32xf32>
    %159 = vector.broadcast %158 : vector<1x32xf32> to vector<96x32xf32>
    %160 = arith.addf %157, %159 : vector<96x32xf32>
    %161 = arith.addf %84, %160 : vector<96x32xf32>
    %c0_60 = arith.constant 0 : index
    %c0_61 = arith.constant 0 : index
    %162 = vector.load %arg14[%c0_60, %c0_61] : memref<96x32xf32, #tpu.memory_space<vmem>>, vector<96x32xf32>
    tpu.vector_store %arg14[%c0_60, %c0_61], %161 {strides = array<i32>} : memref<96x32xf32, #tpu.memory_space<vmem>>, vector<96x32xf32>,
    return
  }
  func.func @transform_0(%arg0: i32) -> (i32, i32) {
    %c0_i32 = arith.constant 0 : i32
    %c0_i32_0 = arith.constant 0 : i32
    return %arg0, %c0_i32 : i32, i32
  }
  func.func @transform_1(%arg0: i32) -> (i32, i32) {
    %c0_i32 = arith.constant 0 : i32
    %c0_i32_0 = arith.constant 0 : i32
    return %arg0, %c0_i32 : i32, i32
  }
  func.func @transform_2(%arg0: i32) -> (i32, i32) {
    %c0_i32 = arith.constant 0 : i32
    %c0_i32_0 = arith.constant 0 : i32
    %c0_i32_1 = arith.constant 0 : i32
    return %c0_i32, %c0_i32_0 : i32, i32
  }
  func.func @transform_3(%arg0: i32) -> (i32, i32) {
    %c0_i32 = arith.constant 0 : i32
    %c0_i32_0 = arith.constant 0 : i32
    %c0_i32_1 = arith.constant 0 : i32
    return %c0_i32, %c0_i32_0 : i32, i32
  }
  func.func @transform_4(%arg0: i32) -> (i32, i32) {
    %c0_i32 = arith.constant 0 : i32
    %c0_i32_0 = arith.constant 0 : i32
    %c0_i32_1 = arith.constant 0 : i32
    return %c0_i32, %c0_i32_0 : i32, i32
  }
  func.func @transform_5(%arg0: i32) -> (i32, i32) {
    %c0_i32 = arith.constant 0 : i32
    %c0_i32_0 = arith.constant 0 : i32
    %c0_i32_1 = arith.constant 0 : i32
    return %c0_i32, %c0_i32_0 : i32, i32
  }
  func.func @transform_6(%arg0: i32) -> (i32, i32) {
    %c0_i32 = arith.constant 0 : i32
    %c0_i32_0 = arith.constant 0 : i32
    %c0_i32_1 = arith.constant 0 : i32
    return %c0_i32, %c0_i32_0 : i32, i32
  }
  func.func @transform_7(%arg0: i32) -> (i32, i32) {
    %c0_i32 = arith.constant 0 : i32
    %c0_i32_0 = arith.constant 0 : i32
    %c0_i32_1 = arith.constant 0 : i32
    return %c0_i32, %c0_i32_0 : i32, i32
  }
  func.func @transform_8(%arg0: i32) -> (i32, i32) {
    %c0_i32 = arith.constant 0 : i32
    %c0_i32_0 = arith.constant 0 : i32
    %c0_i32_1 = arith.constant 0 : i32
    return %c0_i32, %c0_i32_0 : i32, i32
  }
  func.func @transform_9(%arg0: i32) -> (i32, i32) {
    %c0_i32 = arith.constant 0 : i32
    %c0_i32_0 = arith.constant 0 : i32
    %c0_i32_1 = arith.constant 0 : i32
    return %c0_i32, %c0_i32_0 : i32, i32
  }
  func.func @transform_10(%arg0: i32) -> (i32, i32) {
    %c0_i32 = arith.constant 0 : i32
    %c0_i32_0 = arith.constant 0 : i32
    %c0_i32_1 = arith.constant 0 : i32
    return %c0_i32, %c0_i32_0 : i32, i32
  }
  func.func @transform_11(%arg0: i32) -> (i32, i32) {
    %c0_i32 = arith.constant 0 : i32
    %c0_i32_0 = arith.constant 0 : i32
    %c0_i32_1 = arith.constant 0 : i32
    return %c0_i32, %c0_i32_0 : i32, i32
  }
  func.func @transform_12(%arg0: i32) -> (i32, i32) {
    %c0_i32 = arith.constant 0 : i32
    %c0_i32_0 = arith.constant 0 : i32
    %c0_i32_1 = arith.constant 0 : i32
    return %c0_i32, %c0_i32_0 : i32, i32
  }
  func.func @transform_13(%arg0: i32) -> (i32, i32) {
    %c0_i32 = arith.constant 0 : i32
    %c0_i32_0 = arith.constant 0 : i32
    return %arg0, %c0_i32 : i32, i32
  }
}

</mosaic_0001>

<llo_original>
// kernel: factorized_attention_block.3
$region0: #{factorized_attention_block.3}
  #allocation0 [shape = 'u32[]', space=smem, size = 0x4, offset = 0x4, fixed_abs, tag = 'smem constant byte address 0x4 - core index']
  #allocation1 [shape = 'u32[144,128]{1,0:T(1,128)}', space=vmem, size = 0x12000, scoped, tag = 'internal scratch']
  %s0 = inlined_call_operand.vmem [shape: bf16[96,32], index: 0, kind: input, shape index: {}]
  %s1 = inlined_call_operand.vmem [shape: bf16[96,32], index: 1, kind: input, shape index: {}]
  %s2 = inlined_call_operand.vmem [shape: f32[1,32], index: 2, kind: input, shape index: {}]
  %s3 = inlined_call_operand.vmem [shape: f32[1,32], index: 3, kind: input, shape index: {}]
  %s4 = inlined_call_operand.vmem [shape: bf16[32,96], index: 4, kind: input, shape index: {}]
  %s5 = inlined_call_operand.vmem [shape: bf16[32,32], index: 5, kind: input, shape index: {}]
  %s6 = inlined_call_operand.vmem [shape: f32[1,32], index: 6, kind: input, shape index: {}]
  %s7 = inlined_call_operand.vmem [shape: f32[1,32], index: 7, kind: input, shape index: {}]
  %s8 = inlined_call_operand.vmem [shape: f32[1,32], index: 8, kind: input, shape index: {}]
  %s9 = inlined_call_operand.vmem [shape: bf16[32,48], index: 9, kind: input, shape index: {}]
  %s10 = inlined_call_operand.vmem [shape: f32[1,48], index: 10, kind: input, shape index: {}]
  %s11 = inlined_call_operand.vmem [shape: bf16[48,32], index: 11, kind: input, shape index: {}]
  %s12 = inlined_call_operand.vmem [shape: f32[1,32], index: 12, kind: input, shape index: {}]
  %s13 = inlined_call_operand.vmem [shape: f32[96,32], index: 13, kind: output, shape index: {}]
  %s14 = sld [smem:[#allocation0]]
  $region62: #{factorized_attention_block.3} parent=0
    _
  %s16 = ssub.s32 1, %s14
  %s17 = scalar_select 0, %s16, %s14
  // Predicated region
  $region2: #{factorized_attention_block.3} parent=0 // pred_check
    _
  $region3: #{factorized_attention_block.3} parent=0 // pred_check_branch
    %19 = sbr.rel (0) target = $region5
  $region4: #{factorized_attention_block.3} parent=0 // pred_region
    _
  $region5: #{factorized_attention_block.3} parent=0 // pred_fallthru
    _
  // Predicated region
  $region6: #{factorized_attention_block.3} parent=0 // pred_check
    _
  $region7: #{factorized_attention_block.3} parent=0 // pred_check_branch
    %21 = sbr.rel (0) target = $region9
  $region8: #{factorized_attention_block.3} parent=0 // pred_region
    _
  $region9: #{factorized_attention_block.3} parent=0 // pred_fallthru
    _
  // Predicated region
  $region10: #{factorized_attention_block.3} parent=0 // pred_check
    _
  $region11: #{factorized_attention_block.3} parent=0 // pred_check_branch
    %23 = sbr.rel (0) target = $region13
  $region12: #{factorized_attention_block.3} parent=0 // pred_region
    _
  $region13: #{factorized_attention_block.3} parent=0 // pred_fallthru
    _
  // Predicated region
  $region14: #{factorized_attention_block.3} parent=0 // pred_check
    _
  $region15: #{factorized_attention_block.3} parent=0 // pred_check_branch
    %25 = sbr.rel (0) target = $region17
  $region16: #{factorized_attention_block.3} parent=0 // pred_region
    _
  $region17: #{factorized_attention_block.3} parent=0 // pred_fallthru
    _
  // Predicated region
  $region18: #{factorized_attention_block.3} parent=0 // pred_check
    _
  $region19: #{factorized_attention_block.3} parent=0 // pred_check_branch
    %27 = sbr.rel (0) target = $region21
  $region20: #{factorized_attention_block.3} parent=0 // pred_region
    _
  $region21: #{factorized_attention_block.3} parent=0 // pred_fallthru
    _
  // Predicated region
  $region22: #{factorized_attention_block.3} parent=0 // pred_check
    _
  $region23: #{factorized_attention_block.3} parent=0 // pred_check_branch
    %29 = sbr.rel (0) target = $region25
  $region24: #{factorized_attention_block.3} parent=0 // pred_region
    _
  $region25: #{factorized_attention_block.3} parent=0 // pred_fallthru
    _
  // Predicated region
  $region26: #{factorized_attention_block.3} parent=0 // pred_check
    _
  $region27: #{factorized_attention_block.3} parent=0 // pred_check_branch
    %31 = sbr.rel (0) target = $region29
  $region28: #{factorized_attention_block.3} parent=0 // pred_region
    _
  $region29: #{factorized_attention_block.3} parent=0 // pred_fallthru
    _
  // Predicated region
  $region30: #{factorized_attention_block.3} parent=0 // pred_check
    _
  $region31: #{factorized_attention_block.3} parent=0 // pred_check_branch
    %33 = sbr.rel (0) target = $region33
  $region32: #{factorized_attention_block.3} parent=0 // pred_region
    _
  $region33: #{factorized_attention_block.3} parent=0 // pred_fallthru
    _
  // Predicated region
  $region34: #{factorized_attention_block.3} parent=0 // pred_check
    _
  $region35: #{factorized_attention_block.3} parent=0 // pred_check_branch
    %35 = sbr.rel (0) target = $region37
  $region36: #{factorized_attention_block.3} parent=0 // pred_region
    _
  $region37: #{factorized_attention_block.3} parent=0 // pred_fallthru
    _
  // Predicated region
  $region38: #{factorized_attention_block.3} parent=0 // pred_check
    _
  $region39: #{factorized_attention_block.3} parent=0 // pred_check_branch
    %37 = sbr.rel (0) target = $region41
  $region40: #{factorized_attention_block.3} parent=0 // pred_region
    _
  $region41: #{factorized_attention_block.3} parent=0 // pred_fallthru
    _
  // Predicated region
  $region42: #{factorized_attention_block.3} parent=0 // pred_check
    _
  $region43: #{factorized_attention_block.3} parent=0 // pred_check_branch
    %39 = sbr.rel (0) target = $region45
  $region44: #{factorized_attention_block.3} parent=0 // pred_region
    _
  $region45: #{factorized_attention_block.3} parent=0 // pred_fallthru
    _
  // Predicated region
  $region46: #{factorized_attention_block.3} parent=0 // pred_check
    _
  $region47: #{factorized_attention_block.3} parent=0 // pred_check_branch
    %41 = sbr.rel (0) target = $region49
  $region48: #{factorized_attention_block.3} parent=0 // pred_region
    _
  $region49: #{factorized_attention_block.3} parent=0 // pred_fallthru
    _
  // Predicated region
  $region50: #{factorized_attention_block.3} parent=0 // pred_check
    _
  $region51: #{factorized_attention_block.3} parent=0 // pred_check_branch
    %43 = sbr.rel (0) target = $region53
  $region52: #{factorized_attention_block.3} parent=0 // pred_region
    _
  $region53: #{factorized_attention_block.3} parent=0 // pred_fallthru
    _
  %v45 = vld [vmem:[%s0] sm:$0xf]
  %v46 = vld [vmem:[%s0 + $0x4] sm:$0xf]
  %v47 = vld [vmem:[%s0 + $0x8] sm:$0xf]
  %v48 = vld [vmem:[%s0 + $0xc] sm:$0xf]
  %v49 = vld [vmem:[%s0 + $0x10] sm:$0xf]
  %v50 = vld [vmem:[%s0 + $0x14] sm:$0xf]
  %v51 = vld [vmem:[%s0 + $0x18] sm:$0xf]
  %v52 = vld [vmem:[%s0 + $0x1c] sm:$0xf]
  %v53 = vld [vmem:[%s0 + $0x20] sm:$0xf]
  %v54 = vld [vmem:[%s0 + $0x24] sm:$0xf]
  %v55 = vld [vmem:[%s0 + $0x28] sm:$0xf]
  %v56 = vld [vmem:[%s0 + $0x2c] sm:$0xf]
  %v57 = vunpack.c.l.bf16 %v45
  %v58 = vunpack.c.l.bf16 %v46
  %v59 = vunpack.c.l.bf16 %v47
  %v60 = vunpack.c.l.bf16 %v48
  %v61 = vunpack.c.l.bf16 %v49
  %v62 = vunpack.c.l.bf16 %v50
  %v63 = vunpack.c.l.bf16 %v51
  %v64 = vunpack.c.l.bf16 %v52
  %v65 = vunpack.c.l.bf16 %v53
  %v66 = vunpack.c.l.bf16 %v54
  %v67 = vunpack.c.l.bf16 %v55
  %v68 = vunpack.c.l.bf16 %v56
  %v69 = vld [vmem:[%s1] sm:$0xf]
  %v70 = vld [vmem:[%s1 + $0x4] sm:$0xf]
  %v71 = vld [vmem:[%s1 + $0x8] sm:$0xf]
  %v72 = vld [vmem:[%s1 + $0xc] sm:$0xf]
  %v73 = vld [vmem:[%s1 + $0x10] sm:$0xf]
  %v74 = vld [vmem:[%s1 + $0x14] sm:$0xf]
  %v75 = vld [vmem:[%s1 + $0x18] sm:$0xf]
  %v76 = vld [vmem:[%s1 + $0x1c] sm:$0xf]
  %v77 = vld [vmem:[%s1 + $0x20] sm:$0xf]
  %v78 = vld [vmem:[%s1 + $0x24] sm:$0xf]
  %v79 = vld [vmem:[%s1 + $0x28] sm:$0xf]
  %v80 = vld [vmem:[%s1 + $0x2c] sm:$0xf]
  %v81 = vunpack.c.l.bf16 %v69
  %v82 = vunpack.c.l.bf16 %v70
  %v83 = vunpack.c.l.bf16 %v71
  %v84 = vunpack.c.l.bf16 %v72
  %v85 = vunpack.c.l.bf16 %v73
  %v86 = vunpack.c.l.bf16 %v74
  %v87 = vunpack.c.l.bf16 %v75
  %v88 = vunpack.c.l.bf16 %v76
  %v89 = vunpack.c.l.bf16 %v77
  %v90 = vunpack.c.l.bf16 %v78
  %v91 = vunpack.c.l.bf16 %v79
  %v92 = vunpack.c.l.bf16 %v80
  %v93 = vadd.f32 %v57, %v81
  %v94 = vadd.f32 %v58, %v82
  %v95 = vadd.f32 %v59, %v83
  %v96 = vadd.f32 %v60, %v84
  %v97 = vadd.f32 %v61, %v85
  %v98 = vadd.f32 %v62, %v86
  %v99 = vadd.f32 %v63, %v87
  %v100 = vadd.f32 %v64, %v88
  %v101 = vadd.f32 %v65, %v89
  %v102 = vadd.f32 %v66, %v90
  %v103 = vadd.f32 %v67, %v91
  %v104 = vadd.f32 %v68, %v92
  %v105 = vld [vmem:[%s2] sm:$0x1]
  %v106 = vld [vmem:[%s3] sm:$0x1]
  %vm107 = vcmask 261120
  %v108 = vsel %vm107, %v93, 0.0
  %109 = vadd.xlane.f32.xlu0 %v108
  %v110 = vpop.xlane.xlu0 %109
  %v111 = vsel %vm107, %v94, 0.0
  %112 = vadd.xlane.f32.xlu0 %v111
  %v113 = vpop.xlane.xlu0 %112
  %v114 = vsel %vm107, %v95, 0.0
  %115 = vadd.xlane.f32.xlu0 %v114
  %v116 = vpop.xlane.xlu0 %115
  %v117 = vsel %vm107, %v96, 0.0
  %118 = vadd.xlane.f32.xlu0 %v117
  %v119 = vpop.xlane.xlu0 %118
  %v120 = vsel %vm107, %v97, 0.0
  %121 = vadd.xlane.f32.xlu0 %v120
  %v122 = vpop.xlane.xlu0 %121
  %v123 = vsel %vm107, %v98, 0.0
  %124 = vadd.xlane.f32.xlu0 %v123
  %v125 = vpop.xlane.xlu0 %124
  %v126 = vsel %vm107, %v99, 0.0
  %127 = vadd.xlane.f32.xlu0 %v126
  %v128 = vpop.xlane.xlu0 %127
  %v129 = vsel %vm107, %v100, 0.0
  %130 = vadd.xlane.f32.xlu0 %v129
  %v131 = vpop.xlane.xlu0 %130
  %v132 = vsel %vm107, %v101, 0.0
  %133 = vadd.xlane.f32.xlu0 %v132
  %v134 = vpop.xlane.xlu0 %133
  %v135 = vsel %vm107, %v102, 0.0
  %136 = vadd.xlane.f32.xlu0 %v135
  %v137 = vpop.xlane.xlu0 %136
  %v138 = vsel %vm107, %v103, 0.0
  %139 = vadd.xlane.f32.xlu0 %v138
  %v140 = vpop.xlane.xlu0 %139
  %v141 = vsel %vm107, %v104, 0.0
  %142 = vadd.xlane.f32.xlu0 %v141
  %v143 = vpop.xlane.xlu0 %142
  %v144 = vrcp.pop 32.0
  %v145 = vmul.f32 %v110, %v144
  %v146 = vmul.f32 %v113, %v144
  %v147 = vmul.f32 %v116, %v144
  %v148 = vmul.f32 %v119, %v144
  %v149 = vmul.f32 %v122, %v144
  %v150 = vmul.f32 %v125, %v144
  %v151 = vmul.f32 %v128, %v144
  %v152 = vmul.f32 %v131, %v144
  %v153 = vmul.f32 %v134, %v144
  %v154 = vmul.f32 %v137, %v144
  %v155 = vmul.f32 %v140, %v144
  %v156 = vmul.f32 %v143, %v144
  %v157 = vsub.f32 %v93, %v145
  %v158 = vsub.f32 %v94, %v146
  %v159 = vsub.f32 %v95, %v147
  %v160 = vsub.f32 %v96, %v148
  %v161 = vsub.f32 %v97, %v149
  %v162 = vsub.f32 %v98, %v150
  %v163 = vsub.f32 %v99, %v151
  %v164 = vsub.f32 %v100, %v152
  %v165 = vsub.f32 %v101, %v153
  %v166 = vsub.f32 %v102, %v154
  %v167 = vsub.f32 %v103, %v155
  %v168 = vsub.f32 %v104, %v156
  %v169 = vmul.f32 %v157, %v157
  %v170 = vmul.f32 %v158, %v158
  %v171 = vmul.f32 %v159, %v159
  %v172 = vmul.f32 %v160, %v160
  %v173 = vmul.f32 %v161, %v161
  %v174 = vmul.f32 %v162, %v162
  %v175 = vmul.f32 %v163, %v163
  %v176 = vmul.f32 %v164, %v164
  %v177 = vmul.f32 %v165, %v165
  %v178 = vmul.f32 %v166, %v166
  %v179 = vmul.f32 %v167, %v167
  %v180 = vmul.f32 %v168, %v168
  %v181 = vsel %vm107, %v169, 0.0
  %182 = vadd.xlane.f32.xlu0 %v181
  %v183 = vpop.xlane.xlu0 %182
  %v184 = vsel %vm107, %v170, 0.0
  %185 = vadd.xlane.f32.xlu0 %v184
  %v186 = vpop.xlane.xlu0 %185
  %v187 = vsel %vm107, %v171, 0.0
  %188 = vadd.xlane.f32.xlu0 %v187
  %v189 = vpop.xlane.xlu0 %188
  %v190 = vsel %vm107, %v172, 0.0
  %191 = vadd.xlane.f32.xlu0 %v190
  %v192 = vpop.xlane.xlu0 %191
  %v193 = vsel %vm107, %v173, 0.0
  %194 = vadd.xlane.f32.xlu0 %v193
  %v195 = vpop.xlane.xlu0 %194
  %v196 = vsel %vm107, %v174, 0.0
  %197 = vadd.xlane.f32.xlu0 %v196
  %v198 = vpop.xlane.xlu0 %197
  %v199 = vsel %vm107, %v175, 0.0
  %200 = vadd.xlane.f32.xlu0 %v199
  %v201 = vpop.xlane.xlu0 %200
  %v202 = vsel %vm107, %v176, 0.0
  %203 = vadd.xlane.f32.xlu0 %v202
  %v204 = vpop.xlane.xlu0 %203
  %v205 = vsel %vm107, %v177, 0.0
  %206 = vadd.xlane.f32.xlu0 %v205
  %v207 = vpop.xlane.xlu0 %206
  %v208 = vsel %vm107, %v178, 0.0
  %209 = vadd.xlane.f32.xlu0 %v208
  %v210 = vpop.xlane.xlu0 %209
  %v211 = vsel %vm107, %v179, 0.0
  %212 = vadd.xlane.f32.xlu0 %v211
  %v213 = vpop.xlane.xlu0 %212
  %v214 = vsel %vm107, %v180, 0.0
  %215 = vadd.xlane.f32.xlu0 %v214
  %v216 = vpop.xlane.xlu0 %215
  %v217 = vmul.f32 %v183, %v144
  %v218 = vmul.f32 %v186, %v144
  %v219 = vmul.f32 %v189, %v144
  %v220 = vmul.f32 %v192, %v144
  %v221 = vmul.f32 %v195, %v144
  %v222 = vmul.f32 %v198, %v144
  %v223 = vmul.f32 %v201, %v144
  %v224 = vmul.f32 %v204, %v144
  %v225 = vmul.f32 %v207, %v144
  %v226 = vmul.f32 %v210, %v144
  %v227 = vmul.f32 %v213, %v144
  %v228 = vmul.f32 %v216, %v144
  %v229 = vadd.f32 %v217, 1e-05
  %v230 = vadd.f32 %v218, 1e-05
  %v231 = vadd.f32 %v219, 1e-05
  %v232 = vadd.f32 %v220, 1e-05
  %v233 = vadd.f32 %v221, 1e-05
  %v234 = vadd.f32 %v222, 1e-05
  %v235 = vadd.f32 %v223, 1e-05
  %v236 = vadd.f32 %v224, 1e-05
  %v237 = vadd.f32 %v225, 1e-05
  %v238 = vadd.f32 %v226, 1e-05
  %v239 = vadd.f32 %v227, 1e-05
  %v240 = vadd.f32 %v228, 1e-05
  %v241 = vrsqrt.pop %v229
  %v242 = vrsqrt.pop %v230
  %v243 = vrsqrt.pop %v231
  %v244 = vrsqrt.pop %v232
  %v245 = vrsqrt.pop %v233
  %v246 = vrsqrt.pop %v234
  %v247 = vrsqrt.pop %v235
  %v248 = vrsqrt.pop %v236
  %v249 = vrsqrt.pop %v237
  %v250 = vrsqrt.pop %v238
  %v251 = vrsqrt.pop %v239
  %v252 = vrsqrt.pop %v240
  %v253 = vmul.f32 %v157, %v241
  %v254 = vmul.f32 %v158, %v242
  %v255 = vmul.f32 %v159, %v243
  %v256 = vmul.f32 %v160, %v244
  %v257 = vmul.f32 %v161, %v245
  %v258 = vmul.f32 %v162, %v246
  %v259 = vmul.f32 %v163, %v247
  %v260 = vmul.f32 %v164, %v248
  %v261 = vmul.f32 %v165, %v249
  %v262 = vmul.f32 %v166, %v250
  %v263 = vmul.f32 %v167, %v251
  %v264 = vmul.f32 %v168, %v252
  %v266 = vlaneseq
  %v267 = vshrl.u32 %v266, 7
  %v268 = vsub.s32 0, %v267
  %v269 = vrot.slane %v105, %v268
  %v271 = vmul.f32 %v253, %v269
  %v272 = vmul.f32 %v254, %v269
  %v273 = vmul.f32 %v255, %v269
  %v274 = vmul.f32 %v256, %v269
  %v275 = vmul.f32 %v257, %v269
  %v276 = vmul.f32 %v258, %v269
  %v277 = vmul.f32 %v259, %v269
  %v278 = vmul.f32 %v260, %v269
  %v279 = vmul.f32 %v261, %v269
  %v280 = vmul.f32 %v262, %v269
  %v281 = vmul.f32 %v263, %v269
  %v282 = vmul.f32 %v264, %v269
  %v284 = vlaneseq
  %v285 = vshrl.u32 %v284, 7
  %v286 = vsub.s32 0, %v285
  %v287 = vrot.slane %v106, %v286
  %v289 = vadd.f32 %v271, %v287
  %v290 = vadd.f32 %v272, %v287
  %v291 = vadd.f32 %v273, %v287
  %v292 = vadd.f32 %v274, %v287
  %v293 = vadd.f32 %v275, %v287
  %v294 = vadd.f32 %v276, %v287
  %v295 = vadd.f32 %v277, %v287
  %v296 = vadd.f32 %v278, %v287
  %v297 = vadd.f32 %v279, %v287
  %v298 = vadd.f32 %v280, %v287
  %v299 = vadd.f32 %v281, %v287
  %v300 = vadd.f32 %v282, %v287
  %v301 = vld [vmem:[%s4] sm:$0xf]
  %v302 = vld [vmem:[%s4 + $0x4] sm:$0xf]
  %v303 = vld [vmem:[%s4 + $0x8] sm:$0xf]
  %v304 = vld [vmem:[%s4 + $0xc] sm:$0xf]
  %v305 = vld [vmem:[%s5] sm:$0xf]
  %v306 = vld [vmem:[%s5 + $0x4] sm:$0xf]
  %v307 = vld [vmem:[%s5 + $0x8] sm:$0xf]
  %v308 = vld [vmem:[%s5 + $0xc] sm:$0xf]
  %v309 = vld [vmem:[%s6] sm:$0x1]
  %v310 = vpack.c.bf16 %v290, %v289
  %v311 = vpack.c.bf16 %v292, %v291
  %v312 = vpack.c.bf16 %v294, %v293
  %v313 = vpack.c.bf16 %v296, %v295
  %v314 = vpack.c.bf16 %v298, %v297
  %v315 = vpack.c.bf16 %v300, %v299
  %v320 = vunpack.c.l.b16 %v301
  %v321 = vunpack.c.l.b16 %v302
  %v322 = vunpack.c.l.b16 %v303
  %v323 = vunpack.c.l.b16 %v304
  %v324 = vpack.c.b16 %v321, %v320
  %v325 = vpack.c.b16 %v323, %v322
  %v329 = vsel %vm107, %v310, 0
  %v332 = vsel %vm107, %v311, 0
  %v335 = vsel %vm107, %v312, 0
  %v338 = vsel %vm107, %v313, 0
  %v341 = vsel %vm107, %v314, 0
  %v344 = vsel %vm107, %v315, 0
  %346 = vmatprep.subr.bf16.mxu0 0
  %347 = vmatpush1.bf16.msra.mxu0 %v324
  %348 = vmatprep.subr.bf16.mxu0 0
  %349 = vmatpush1.bf16.msra.mxu0 %v325
  %350 = vmatprep.subr.bf16.mxu0 0
  %351 = vmatpush1.bf16.msra.mxu0 0
  %352 = vmatprep.subr.bf16.mxu0 0
  %353 = vmatpush1.bf16.msra.mxu0 0
  %354 = vmatprep.subr.bf16.mxu0 0
  %355 = vmatpush1.bf16.msra.mxu0 0
  %356 = vmatprep.subr.bf16.mxu0 0
  %357 = vmatpush1.bf16.msra.mxu0 0
  %358 = vmatprep.subr.bf16.mxu0 0
  %359 = vmatpush1.bf16.msra.mxu0 0
  %360 = vmatprep.subr.bf16.mxu0 0
  %361 = vmatpush1.bf16.msra.mxu0 0
  %362 = vmatprep.subr.bf16.mxu0 0
  %363 = vmatpush1.bf16.msra.mxu0 0
  %364 = vmatprep.subr.bf16.mxu0 0
  %365 = vmatpush1.bf16.msra.mxu0 0
  %366 = vmatprep.subr.bf16.mxu0 0
  %367 = vmatpush1.bf16.msra.mxu0 0
  %368 = vmatprep.subr.bf16.mxu0 0
  %369 = vmatpush1.bf16.msra.mxu0 0
  %370 = vmatprep.subr.bf16.mxu0 0
  %371 = vmatpush1.bf16.msra.mxu0 0
  %372 = vmatprep.subr.bf16.mxu0 0
  %373 = vmatpush1.bf16.msra.mxu0 0
  %374 = vmatprep.subr.bf16.mxu0 0
  %375 = vmatpush1.bf16.msra.mxu0 0
  %376 = vmatprep.subr.bf16.mxu0 0
  %377 = vmatpush1.bf16.msra.mxu0 0
  %378 = vmatprep.mubr.bf16.mxu0 0
  %379 = vmatmul.mubr.bf16.gmra.mrb[0].mxu0 %v329
  %v380 = vpop.f32.mrb[0].mxu0
  %v381 = vadd.f32 0.0, %v380
  %v382 = vpop.f32.mrb[0].mxu0
  %v383 = vpop.f32.mrb[0].mxu0
  %v384 = vadd.f32 0.0, %v383
  %v385 = vpop.f32.mrb[0].mxu0
  %386 = vmatprep.mubr.bf16.mxu0 0
  %387 = vmatmul.mubr.bf16.gmra.mrb[0].mxu0 %v332
  %v388 = vpop.f32.mrb[0].mxu0
  %v389 = vadd.f32 0.0, %v388
  %v390 = vpop.f32.mrb[0].mxu0
  %v391 = vpop.f32.mrb[0].mxu0
  %v392 = vadd.f32 0.0, %v391
  %v393 = vpop.f32.mrb[0].mxu0
  %394 = vmatprep.mubr.bf16.mxu0 0
  %395 = vmatmul.mubr.bf16.gmra.mrb[0].mxu0 %v335
  %v396 = vpop.f32.mrb[0].mxu0
  %v397 = vadd.f32 0.0, %v396
  %v398 = vpop.f32.mrb[0].mxu0
  %v399 = vpop.f32.mrb[0].mxu0
  %v400 = vadd.f32 0.0, %v399
  %v401 = vpop.f32.mrb[0].mxu0
  %402 = vmatprep.mubr.bf16.mxu0 0
  %403 = vmatmul.mubr.bf16.gmra.mrb[0].mxu0 %v338
  %v404 = vpop.f32.mrb[0].mxu0
  %v405 = vadd.f32 0.0, %v404
  %v406 = vpop.f32.mrb[0].mxu0
  %v407 = vpop.f32.mrb[0].mxu0
  %v408 = vadd.f32 0.0, %v407
  %v409 = vpop.f32.mrb[0].mxu0
  %410 = vmatprep.mubr.bf16.mxu0 0
  %411 = vmatmul.mubr.bf16.gmra.mrb[0].mxu0 %v341
  %v412 = vpop.f32.mrb[0].mxu0
  %v413 = vadd.f32 0.0, %v412
  %v414 = vpop.f32.mrb[0].mxu0
  %v415 = vpop.f32.mrb[0].mxu0
  %v416 = vadd.f32 0.0, %v415
  %v417 = vpop.f32.mrb[0].mxu0
  %418 = vmatprep.mubr.bf16.mxu0 0
  %419 = vmatmul.mubr.bf16.gmra.mrb[0].mxu0 %v344
  %v420 = vpop.f32.mrb[0].mxu0
  %v421 = vadd.f32 0.0, %v420
  %v422 = vpop.f32.mrb[0].mxu0
  %v423 = vpop.f32.mrb[0].mxu0
  %v424 = vadd.f32 0.0, %v423
  %v425 = vpop.f32.mrb[0].mxu0
  %426 = vdwg.mxu0
  %439 = vrot.lane.b32.xlu0 %v381, 112
  %v440 = vpop.permute.xlu0 %439
  %441 = vrot.lane.b32.xlu0 %v384, 112
  %v442 = vpop.permute.xlu0 %441
  %443 = vrot.lane.b32.xlu0 %v389, 112
  %v444 = vpop.permute.xlu0 %443
  %445 = vrot.lane.b32.xlu0 %v392, 112
  %v446 = vpop.permute.xlu0 %445
  %447 = vrot.lane.b32.xlu0 %v397, 112
  %v448 = vpop.permute.xlu0 %447
  %449 = vrot.lane.b32.xlu0 %v400, 112
  %v450 = vpop.permute.xlu0 %449
  %451 = vrot.lane.b32.xlu0 %v405, 112
  %v452 = vpop.permute.xlu0 %451
  %453 = vrot.lane.b32.xlu0 %v408, 112
  %v454 = vpop.permute.xlu0 %453
  %455 = vrot.lane.b32.xlu0 %v413, 112
  %v456 = vpop.permute.xlu0 %455
  %457 = vrot.lane.b32.xlu0 %v416, 112
  %v458 = vpop.permute.xlu0 %457
  %459 = vrot.lane.b32.xlu0 %v421, 112
  %v460 = vpop.permute.xlu0 %459
  %461 = vrot.lane.b32.xlu0 %v424, 112
  %v462 = vpop.permute.xlu0 %461
  %v475 = vpack.c.bf16 %v384, %v381
  %v476 = vpack.c.bf16 %v389, %v389
  %v477 = vpack.c.bf16 %v397, %v392
  %v478 = vpack.c.bf16 %v400, %v400
  %v479 = vpack.c.bf16 %v408, %v405
  %v480 = vpack.c.bf16 %v413, %v413
  %v481 = vpack.c.bf16 %v421, %v416
  %v482 = vpack.c.bf16 %v424, %v424
  %v483 = vpack.c.bf16 %v442, %v440
  %v484 = vpack.c.bf16 %v444, %v444
  %v485 = vpack.c.bf16 %v448, %v446
  %v486 = vpack.c.bf16 %v450, %v450
  %v487 = vpack.c.bf16 %v454, %v452
  %v488 = vpack.c.bf16 %v456, %v456
  %v489 = vpack.c.bf16 %v460, %v458
  %v490 = vpack.c.bf16 %v462, %v462
  %493 = vrot.lane.b32.xlu0 %v475, 96
  %v494 = vpop.permute.xlu0 %493
  %495 = vrot.lane.b32.xlu0 %v476, 96
  %v496 = vpop.permute.xlu0 %495
  %vm497 = vcmask 130048
  %v499 = vsel %vm497, %v475, 0
  %v502 = vsel %vm497, %v476, 0
  %v505 = vsel %vm497, %v494, 0
  %v508 = vsel %vm497, %v496, 0
  %510 = vmatprep.subr.bf16.mxu0 0
  %511 = vmatpush1.bf16.xpose.msra.mxu0 %v505
  %512 = vmatprep.subr.bf16.mxu0 0
  %513 = vmatpush1.bf16.xpose.msra.mxu0 %v508
  %514 = vmatprep.subr.bf16.mxu0 0
  %515 = vmatpush1.bf16.xpose.msra.mxu0 0
  %516 = vmatprep.subr.bf16.mxu0 0
  %517 = vmatpush1.bf16.xpose.msra.mxu0 0
  %518 = vmatprep.subr.bf16.mxu0 0
  %519 = vmatpush1.bf16.xpose.msra.mxu0 0
  %520 = vmatprep.subr.bf16.mxu0 0
  %521 = vmatpush1.bf16.xpose.msra.mxu0 0
  %522 = vmatprep.subr.bf16.mxu0 0
  %523 = vmatpush1.bf16.xpose.msra.mxu0 0
  %524 = vmatprep.subr.bf16.mxu0 0
  %525 = vmatpush1.bf16.xpose.msra.mxu0 0
  %526 = vmatprep.subr.bf16.mxu0 0
  %527 = vmatpush1.bf16.xpose.msra.mxu0 0
  %528 = vmatprep.subr.bf16.mxu0 0
  %529 = vmatpush1.bf16.xpose.msra.mxu0 0
  %530 = vmatprep.subr.bf16.mxu0 0
  %531 = vmatpush1.bf16.xpose.msra.mxu0 0
  %532 = vmatprep.subr.bf16.mxu0 0
  %533 = vmatpush1.bf16.xpose.msra.mxu0 0
  %534 = vmatprep.subr.bf16.mxu0 0
  %535 = vmatpush1.bf16.xpose.msra.mxu0 0
  %536 = vmatprep.subr.bf16.mxu0 0
  %537 = vmatpush1.bf16.xpose.msra.mxu0 0
  %538 = vmatprep.subr.bf16.mxu0 0
  %539 = vmatpush1.bf16.xpose.msra.mxu0 0
  %540 = vmatprep.subr.bf16.mxu0 0
  %541 = vmatpush1.bf16.xpose.msra.mxu0 0
  %542 = vmatprep.mubr.bf16.mxu0 0
  %543 = vmatmul.mubr.bf16.gmra.mrb[0].mxu0 %v499
  %v544 = vpop.f32.mrb[0].mxu0
  %v545 = vadd.f32 0.0, %v544
  %v546 = vpop.f32.mrb[0].mxu0
  %v547 = vpop.f32.mrb[0].mxu0
  %v548 = vadd.f32 0.0, %v547
  %v549 = vpop.f32.mrb[0].mxu0
  %550 = vmatprep.mubr.bf16.mxu0 0
  %551 = vmatmul.mubr.bf16.gmra.mrb[0].mxu0 %v502
  %v552 = vpop.f32.mrb[0].mxu0
  %v553 = vadd.f32 0.0, %v552
  %v554 = vpop.f32.mrb[0].mxu0
  %v555 = vpop.f32.mrb[0].mxu0
  %v556 = vpop.f32.mrb[0].mxu0
  %557 = vdwg.mxu0
  %560 = vrot.lane.b32.xlu0 %v477, 96
  %v561 = vpop.permute.xlu0 %560
  %562 = vrot.lane.b32.xlu0 %v478, 96
  %v563 = vpop.permute.xlu0 %562
  %v565 = vsel %vm497, %v477, 0
  %v568 = vsel %vm497, %v478, 0
  %v571 = vsel %vm497, %v561, 0
  %v574 = vsel %vm497, %v563, 0
  %576 = vmatprep.subr.bf16.mxu0 0
  %577 = vmatpush1.bf16.xpose.msra.mxu0 %v571
  %578 = vmatprep.subr.bf16.mxu0 0
  %579 = vmatpush1.bf16.xpose.msra.mxu0 %v574
  %580 = vmatprep.subr.bf16.mxu0 0
  %581 = vmatpush1.bf16.xpose.msra.mxu0 0
  %582 = vmatprep.subr.bf16.mxu0 0
  %583 = vmatpush1.bf16.xpose.msra.mxu0 0
  %584 = vmatprep.subr.bf16.mxu0 0
  %585 = vmatpush1.bf16.xpose.msra.mxu0 0
  %586 = vmatprep.subr.bf16.mxu0 0
  %587 = vmatpush1.bf16.xpose.msra.mxu0 0
  %588 = vmatprep.subr.bf16.mxu0 0
  %589 = vmatpush1.bf16.xpose.msra.mxu0 0
  %590 = vmatprep.subr.bf16.mxu0 0
  %591 = vmatpush1.bf16.xpose.msra.mxu0 0
  %592 = vmatprep.subr.bf16.mxu0 0
  %593 = vmatpush1.bf16.xpose.msra.mxu0 0
  %594 = vmatprep.subr.bf16.mxu0 0
  %595 = vmatpush1.bf16.xpose.msra.mxu0 0
  %596 = vmatprep.subr.bf16.mxu0 0
  %597 = vmatpush1.bf16.xpose.msra.mxu0 0
  %598 = vmatprep.subr.bf16.mxu0 0
  %599 = vmatpush1.bf16.xpose.msra.mxu0 0
  %600 = vmatprep.subr.bf16.mxu0 0
  %601 = vmatpush1.bf16.xpose.msra.mxu0 0
  %602 = vmatprep.subr.bf16.mxu0 0
  %603 = vmatpush1.bf16.xpose.msra.mxu0 0
  %604 = vmatprep.subr.bf16.mxu0 0
  %605 = vmatpush1.bf16.xpose.msra.mxu0 0
  %606 = vmatprep.subr.bf16.mxu0 0
  %607 = vmatpush1.bf16.xpose.msra.mxu0 0
  %608 = vmatprep.mubr.bf16.mxu0 0
  %609 = vmatmul.mubr.bf16.gmra.mrb[0].mxu0 %v565
  %v610 = vpop.f32.mrb[0].mxu0
  %v611 = vadd.f32 0.0, %v610
  %v612 = vpop.f32.mrb[0].mxu0
  %v613 = vpop.f32.mrb[0].mxu0
  %v614 = vadd.f32 0.0, %v613
  %v615 = vpop.f32.mrb[0].mxu0
  %616 = vmatprep.mubr.bf16.mxu0 0
  %617 = vmatmul.mubr.bf16.gmra.mrb[0].mxu0 %v568
  %v618 = vpop.f32.mrb[0].mxu0
  %v619 = vadd.f32 0.0, %v618
  %v620 = vpop.f32.mrb[0].mxu0
  %v621 = vpop.f32.mrb[0].mxu0
  %v622 = vpop.f32.mrb[0].mxu0
  %623 = vdwg.mxu0
  %626 = vrot.lane.b32.xlu0 %v479, 96
  %v627 = vpop.permute.xlu0 %626
  %628 = vrot.lane.b32.xlu0 %v480, 96
  %v629 = vpop.permute.xlu0 %628
  %v631 = vsel %vm497, %v479, 0
  %v634 = vsel %vm497, %v480, 0
  %v637 = vsel %vm497, %v627, 0
  %v640 = vsel %vm497, %v629, 0
  %642 = vmatprep.subr.bf16.mxu0 0
  %643 = vmatpush1.bf16.xpose.msra.mxu0 %v637
  %644 = vmatprep.subr.bf16.mxu0 0
  %645 = vmatpush1.bf16.xpose.msra.mxu0 %v640
  %646 = vmatprep.subr.bf16.mxu0 0
  %647 = vmatpush1.bf16.xpose.msra.mxu0 0
  %648 = vmatprep.subr.bf16.mxu0 0
  %649 = vmatpush1.bf16.xpose.msra.mxu0 0
  %650 = vmatprep.subr.bf16.mxu0 0
  %651 = vmatpush1.bf16.xpose.msra.mxu0 0
  %652 = vmatprep.subr.bf16.mxu0 0
  %653 = vmatpush1.bf16.xpose.msra.mxu0 0
  %654 = vmatprep.subr.bf16.mxu0 0
  %655 = vmatpush1.bf16.xpose.msra.mxu0 0
  %656 = vmatprep.subr.bf16.mxu0 0
  %657 = vmatpush1.bf16.xpose.msra.mxu0 0
  %658 = vmatprep.subr.bf16.mxu0 0
  %659 = vmatpush1.bf16.xpose.msra.mxu0 0
  %660 = vmatprep.subr.bf16.mxu0 0
  %661 = vmatpush1.bf16.xpose.msra.mxu0 0
  %662 = vmatprep.subr.bf16.mxu0 0
  %663 = vmatpush1.bf16.xpose.msra.mxu0 0
  %664 = vmatprep.subr.bf16.mxu0 0
  %665 = vmatpush1.bf16.xpose.msra.mxu0 0
  %666 = vmatprep.subr.bf16.mxu0 0
  %667 = vmatpush1.bf16.xpose.msra.mxu0 0
  %668 = vmatprep.subr.bf16.mxu0 0
  %669 = vmatpush1.bf16.xpose.msra.mxu0 0
  %670 = vmatprep.subr.bf16.mxu0 0
  %671 = vmatpush1.bf16.xpose.msra.mxu0 0
  %672 = vmatprep.subr.bf16.mxu0 0
  %673 = vmatpush1.bf16.xpose.msra.mxu0 0
  %674 = vmatprep.mubr.bf16.mxu0 0
  %675 = vmatmul.mubr.bf16.gmra.mrb[0].mxu0 %v631
  %v676 = vpop.f32.mrb[0].mxu0
  %v677 = vadd.f32 0.0, %v676
  %v678 = vpop.f32.mrb[0].mxu0
  %v679 = vpop.f32.mrb[0].mxu0
  %v680 = vadd.f32 0.0, %v679
  %v681 = vpop.f32.mrb[0].mxu0
  %682 = vmatprep.mubr.bf16.mxu0 0
  %683 = vmatmul.mubr.bf16.gmra.mrb[0].mxu0 %v634
  %v684 = vpop.f32.mrb[0].mxu0
  %v685 = vadd.f32 0.0, %v684
  %v686 = vpop.f32.mrb[0].mxu0
  %v687 = vpop.f32.mrb[0].mxu0
  %v688 = vpop.f32.mrb[0].mxu0
  %689 = vdwg.mxu0
  %692 = vrot.lane.b32.xlu0 %v481, 96
  %v693 = vpop.permute.xlu0 %692
  %694 = vrot.lane.b32.xlu0 %v482, 96
  %v695 = vpop.permute.xlu0 %694
  %v697 = vsel %vm497, %v481, 0
  %v700 = vsel %vm497, %v482, 0
  %v703 = vsel %vm497, %v693, 0
  %v706 = vsel %vm497, %v695, 0
  %708 = vmatprep.subr.bf16.mxu0 0
  %709 = vmatpush1.bf16.xpose.msra.mxu0 %v703
  %710 = vmatprep.subr.bf16.mxu0 0
  %711 = vmatpush1.bf16.xpose.msra.mxu0 %v706
  %712 = vmatprep.subr.bf16.mxu0 0
  %713 = vmatpush1.bf16.xpose.msra.mxu0 0
  %714 = vmatprep.subr.bf16.mxu0 0
  %715 = vmatpush1.bf16.xpose.msra.mxu0 0
  %716 = vmatprep.subr.bf16.mxu0 0
  %717 = vmatpush1.bf16.xpose.msra.mxu0 0
  %718 = vmatprep.subr.bf16.mxu0 0
  %719 = vmatpush1.bf16.xpose.msra.mxu0 0
  %720 = vmatprep.subr.bf16.mxu0 0
  %721 = vmatpush1.bf16.xpose.msra.mxu0 0
  %722 = vmatprep.subr.bf16.mxu0 0
  %723 = vmatpush1.bf16.xpose.msra.mxu0 0
  %724 = vmatprep.subr.bf16.mxu0 0
  %725 = vmatpush1.bf16.xpose.msra.mxu0 0
  %726 = vmatprep.subr.bf16.mxu0 0
  %727 = vmatpush1.bf16.xpose.msra.mxu0 0
  %728 = vmatprep.subr.bf16.mxu0 0
  %729 = vmatpush1.bf16.xpose.msra.mxu0 0
  %730 = vmatprep.subr.bf16.mxu0 0
  %731 = vmatpush1.bf16.xpose.msra.mxu0 0
  %732 = vmatprep.subr.bf16.mxu0 0
  %733 = vmatpush1.bf16.xpose.msra.mxu0 0
  %734 = vmatprep.subr.bf16.mxu0 0
  %735 = vmatpush1.bf16.xpose.msra.mxu0 0
  %736 = vmatprep.subr.bf16.mxu0 0
  %737 = vmatpush1.bf16.xpose.msra.mxu0 0
  %738 = vmatprep.subr.bf16.mxu0 0
  %739 = vmatpush1.bf16.xpose.msra.mxu0 0
  %740 = vmatprep.mubr.bf16.mxu0 0
  %741 = vmatmul.mubr.bf16.gmra.mrb[0].mxu0 %v697
  %v742 = vpop.f32.mrb[0].mxu0
  %v743 = vadd.f32 0.0, %v742
  %v744 = vpop.f32.mrb[0].mxu0
  %v745 = vpop.f32.mrb[0].mxu0
  %v746 = vadd.f32 0.0, %v745
  %v747 = vpop.f32.mrb[0].mxu0
  %748 = vmatprep.mubr.bf16.mxu0 0
  %749 = vmatmul.mubr.bf16.gmra.mrb[0].mxu0 %v700
  %v750 = vpop.f32.mrb[0].mxu0
  %v751 = vadd.f32 0.0, %v750
  %v752 = vpop.f32.mrb[0].mxu0
  %v753 = vpop.f32.mrb[0].mxu0
  %v754 = vpop.f32.mrb[0].mxu0
  %755 = vdwg.mxu0
  %758 = vrot.lane.b32.xlu0 %v483, 96
  %v759 = vpop.permute.xlu0 %758
  %760 = vrot.lane.b32.xlu0 %v484, 96
  %v761 = vpop.permute.xlu0 %760
  %v763 = vsel %vm497, %v483, 0
  %v766 = vsel %vm497, %v484, 0
  %v769 = vsel %vm497, %v759, 0
  %v772 = vsel %vm497, %v761, 0
  %774 = vmatprep.subr.bf16.mxu0 0
  %775 = vmatpush1.bf16.xpose.msra.mxu0 %v769
  %776 = vmatprep.subr.bf16.mxu0 0
  %777 = vmatpush1.bf16.xpose.msra.mxu0 %v772
  %778 = vmatprep.subr.bf16.mxu0 0
  %779 = vmatpush1.bf16.xpose.msra.mxu0 0
  %780 = vmatprep.subr.bf16.mxu0 0
  %781 = vmatpush1.bf16.xpose.msra.mxu0 0
  %782 = vmatprep.subr.bf16.mxu0 0
  %783 = vmatpush1.bf16.xpose.msra.mxu0 0
  %784 = vmatprep.subr.bf16.mxu0 0
  %785 = vmatpush1.bf16.xpose.msra.mxu0 0
  %786 = vmatprep.subr.bf16.mxu0 0
  %787 = vmatpush1.bf16.xpose.msra.mxu0 0
  %788 = vmatprep.subr.bf16.mxu0 0
  %789 = vmatpush1.bf16.xpose.msra.mxu0 0
  %790 = vmatprep.subr.bf16.mxu0 0
  %791 = vmatpush1.bf16.xpose.msra.mxu0 0
  %792 = vmatprep.subr.bf16.mxu0 0
  %793 = vmatpush1.bf16.xpose.msra.mxu0 0
  %794 = vmatprep.subr.bf16.mxu0 0
  %795 = vmatpush1.bf16.xpose.msra.mxu0 0
  %796 = vmatprep.subr.bf16.mxu0 0
  %797 = vmatpush1.bf16.xpose.msra.mxu0 0
  %798 = vmatprep.subr.bf16.mxu0 0
  %799 = vmatpush1.bf16.xpose.msra.mxu0 0
  %800 = vmatprep.subr.bf16.mxu0 0
  %801 = vmatpush1.bf16.xpose.msra.mxu0 0
  %802 = vmatprep.subr.bf16.mxu0 0
  %803 = vmatpush1.bf16.xpose.msra.mxu0 0
  %804 = vmatprep.subr.bf16.mxu0 0
  %805 = vmatpush1.bf16.xpose.msra.mxu0 0
  %806 = vmatprep.mubr.bf16.mxu0 0
  %807 = vmatmul.mubr.bf16.gmra.mrb[0].mxu0 %v763
  %v808 = vpop.f32.mrb[0].mxu0
  %v809 = vadd.f32 0.0, %v808
  %v810 = vpop.f32.mrb[0].mxu0
  %v811 = vpop.f32.mrb[0].mxu0
  %v812 = vadd.f32 0.0, %v811
  %v813 = vpop.f32.mrb[0].mxu0
  %814 = vmatprep.mubr.bf16.mxu0 0
  %815 = vmatmul.mubr.bf16.gmra.mrb[0].mxu0 %v766
  %v816 = vpop.f32.mrb[0].mxu0
  %v817 = vadd.f32 0.0, %v816
  %v818 = vpop.f32.mrb[0].mxu0
  %v819 = vpop.f32.mrb[0].mxu0
  %v820 = vpop.f32.mrb[0].mxu0
  %821 = vdwg.mxu0
  %824 = vrot.lane.b32.xlu0 %v485, 96
  %v825 = vpop.permute.xlu0 %824
  %826 = vrot.lane.b32.xlu0 %v486, 96
  %v827 = vpop.permute.xlu0 %826
  %v829 = vsel %vm497, %v485, 0
  %v832 = vsel %vm497, %v486, 0
  %v835 = vsel %vm497, %v825, 0
  %v838 = vsel %vm497, %v827, 0
  %840 = vmatprep.subr.bf16.mxu0 0
  %841 = vmatpush1.bf16.xpose.msra.mxu0 %v835
  %842 = vmatprep.subr.bf16.mxu0 0
  %843 = vmatpush1.bf16.xpose.msra.mxu0 %v838
  %844 = vmatprep.subr.bf16.mxu0 0
  %845 = vmatpush1.bf16.xpose.msra.mxu0 0
  %846 = vmatprep.subr.bf16.mxu0 0
  %847 = vmatpush1.bf16.xpose.msra.mxu0 0
  %848 = vmatprep.subr.bf16.mxu0 0
  %849 = vmatpush1.bf16.xpose.msra.mxu0 0
  %850 = vmatprep.subr.bf16.mxu0 0
  %851 = vmatpush1.bf16.xpose.msra.mxu0 0
  %852 = vmatprep.subr.bf16.mxu0 0
  %853 = vmatpush1.bf16.xpose.msra.mxu0 0
  %854 = vmatprep.subr.bf16.mxu0 0
  %855 = vmatpush1.bf16.xpose.msra.mxu0 0
  %856 = vmatprep.subr.bf16.mxu0 0
  %857 = vmatpush1.bf16.xpose.msra.mxu0 0
  %858 = vmatprep.subr.bf16.mxu0 0
  %859 = vmatpush1.bf16.xpose.msra.mxu0 0
  %860 = vmatprep.subr.bf16.mxu0 0
  %861 = vmatpush1.bf16.xpose.msra.mxu0 0
  %862 = vmatprep.subr.bf16.mxu0 0
  %863 = vmatpush1.bf16.xpose.msra.mxu0 0
  %864 = vmatprep.subr.bf16.mxu0 0
  %865 = vmatpush1.bf16.xpose.msra.mxu0 0
  %866 = vmatprep.subr.bf16.mxu0 0
  %867 = vmatpush1.bf16.xpose.msra.mxu0 0
  %868 = vmatprep.subr.bf16.mxu0 0
  %869 = vmatpush1.bf16.xpose.msra.mxu0 0
  %870 = vmatprep.subr.bf16.mxu0 0
  %871 = vmatpush1.bf16.xpose.msra.mxu0 0
  %872 = vmatprep.mubr.bf16.mxu0 0
  %873 = vmatmul.mubr.bf16.gmra.mrb[0].mxu0 %v829
  %v874 = vpop.f32.mrb[0].mxu0
  %v875 = vadd.f32 0.0, %v874
  %v876 = vpop.f32.mrb[0].mxu0
  %v877 = vpop.f32.mrb[0].mxu0
  %v878 = vadd.f32 0.0, %v877
  %v879 = vpop.f32.mrb[0].mxu0
  %880 = vmatprep.mubr.bf16.mxu0 0
  %881 = vmatmul.mubr.bf16.gmra.mrb[0].mxu0 %v832
  %v882 = vpop.f32.mrb[0].mxu0
  %v883 = vadd.f32 0.0, %v882
  %v884 = vpop.f32.mrb[0].mxu0
  %v885 = vpop.f32.mrb[0].mxu0
  %v886 = vpop.f32.mrb[0].mxu0
  %887 = vdwg.mxu0
  %890 = vrot.lane.b32.xlu0 %v487, 96
  %v891 = vpop.permute.xlu0 %890
  %892 = vrot.lane.b32.xlu0 %v488, 96
  %v893 = vpop.permute.xlu0 %892
  %v895 = vsel %vm497, %v487, 0
  %v898 = vsel %vm497, %v488, 0
  %v901 = vsel %vm497, %v891, 0
  %v904 = vsel %vm497, %v893, 0
  %906 = vmatprep.subr.bf16.mxu0 0
  %907 = vmatpush1.bf16.xpose.msra.mxu0 %v901
  %908 = vmatprep.subr.bf16.mxu0 0
  %909 = vmatpush1.bf16.xpose.msra.mxu0 %v904
  %910 = vmatprep.subr.bf16.mxu0 0
  %911 = vmatpush1.bf16.xpose.msra.mxu0 0
  %912 = vmatprep.subr.bf16.mxu0 0
  %913 = vmatpush1.bf16.xpose.msra.mxu0 0
  %914 = vmatprep.subr.bf16.mxu0 0
  %915 = vmatpush1.bf16.xpose.msra.mxu0 0
  %916 = vmatprep.subr.bf16.mxu0 0
  %917 = vmatpush1.bf16.xpose.msra.mxu0 0
  %918 = vmatprep.subr.bf16.mxu0 0
  %919 = vmatpush1.bf16.xpose.msra.mxu0 0
  %920 = vmatprep.subr.bf16.mxu0 0
  %921 = vmatpush1.bf16.xpose.msra.mxu0 0
  %922 = vmatprep.subr.bf16.mxu0 0
  %923 = vmatpush1.bf16.xpose.msra.mxu0 0
  %924 = vmatprep.subr.bf16.mxu0 0
  %925 = vmatpush1.bf16.xpose.msra.mxu0 0
  %926 = vmatprep.subr.bf16.mxu0 0
  %927 = vmatpush1.bf16.xpose.msra.mxu0 0
  %928 = vmatprep.subr.bf16.mxu0 0
  %929 = vmatpush1.bf16.xpose.msra.mxu0 0
  %930 = vmatprep.subr.bf16.mxu0 0
  %931 = vmatpush1.bf16.xpose.msra.mxu0 0
  %932 = vmatprep.subr.bf16.mxu0 0
  %933 = vmatpush1.bf16.xpose.msra.mxu0 0
  %934 = vmatprep.subr.bf16.mxu0 0
  %935 = vmatpush1.bf16.xpose.msra.mxu0 0
  %936 = vmatprep.subr.bf16.mxu0 0
  %937 = vmatpush1.bf16.xpose.msra.mxu0 0
  %938 = vmatprep.mubr.bf16.mxu0 0
  %939 = vmatmul.mubr.bf16.gmra.mrb[0].mxu0 %v895
  %v940 = vpop.f32.mrb[0].mxu0
  %v941 = vadd.f32 0.0, %v940
  %v942 = vpop.f32.mrb[0].mxu0
  %v943 = vpop.f32.mrb[0].mxu0
  %v944 = vadd.f32 0.0, %v943
  %v945 = vpop.f32.mrb[0].mxu0
  %946 = vmatprep.mubr.bf16.mxu0 0
  %947 = vmatmul.mubr.bf16.gmra.mrb[0].mxu0 %v898
  %v948 = vpop.f32.mrb[0].mxu0
  %v949 = vadd.f32 0.0, %v948
  %v950 = vpop.f32.mrb[0].mxu0
  %v951 = vpop.f32.mrb[0].mxu0
  %v952 = vpop.f32.mrb[0].mxu0
  %953 = vdwg.mxu0
  %956 = vrot.lane.b32.xlu0 %v489, 96
  %v957 = vpop.permute.xlu0 %956
  %958 = vrot.lane.b32.xlu0 %v490, 96
  %v959 = vpop.permute.xlu0 %958
  %v961 = vsel %vm497, %v489, 0
  %v964 = vsel %vm497, %v490, 0
  %v967 = vsel %vm497, %v957, 0
  %v970 = vsel %vm497, %v959, 0
  %972 = vmatprep.subr.bf16.mxu0 0
  %973 = vmatpush1.bf16.xpose.msra.mxu0 %v967
  %974 = vmatprep.subr.bf16.mxu0 0
  %975 = vmatpush1.bf16.xpose.msra.mxu0 %v970
  %976 = vmatprep.subr.bf16.mxu0 0
  %977 = vmatpush1.bf16.xpose.msra.mxu0 0
  %978 = vmatprep.subr.bf16.mxu0 0
  %979 = vmatpush1.bf16.xpose.msra.mxu0 0
  %980 = vmatprep.subr.bf16.mxu0 0
  %981 = vmatpush1.bf16.xpose.msra.mxu0 0
  %982 = vmatprep.subr.bf16.mxu0 0
  %983 = vmatpush1.bf16.xpose.msra.mxu0 0
  %984 = vmatprep.subr.bf16.mxu0 0
  %985 = vmatpush1.bf16.xpose.msra.mxu0 0
  %986 = vmatprep.subr.bf16.mxu0 0
  %987 = vmatpush1.bf16.xpose.msra.mxu0 0
  %988 = vmatprep.subr.bf16.mxu0 0
  %989 = vmatpush1.bf16.xpose.msra.mxu0 0
  %990 = vmatprep.subr.bf16.mxu0 0
  %991 = vmatpush1.bf16.xpose.msra.mxu0 0
  %992 = vmatprep.subr.bf16.mxu0 0
  %993 = vmatpush1.bf16.xpose.msra.mxu0 0
  %994 = vmatprep.subr.bf16.mxu0 0
  %995 = vmatpush1.bf16.xpose.msra.mxu0 0
  %996 = vmatprep.subr.bf16.mxu0 0
  %997 = vmatpush1.bf16.xpose.msra.mxu0 0
  %998 = vmatprep.subr.bf16.mxu0 0
  %999 = vmatpush1.bf16.xpose.msra.mxu0 0
  %1000 = vmatprep.subr.bf16.mxu0 0
  %1001 = vmatpush1.bf16.xpose.msra.mxu0 0
  %1002 = vmatprep.subr.bf16.mxu0 0
  %1003 = vmatpush1.bf16.xpose.msra.mxu0 0
  %1004 = vmatprep.mubr.bf16.mxu0 0
  %1005 = vmatmul.mubr.bf16.gmra.mrb[0].mxu0 %v961
  %v1006 = vpop.f32.mrb[0].mxu0
  %v1007 = vadd.f32 0.0, %v1006
  %v1008 = vpop.f32.mrb[0].mxu0
  %v1009 = vpop.f32.mrb[0].mxu0
  %v1010 = vadd.f32 0.0, %v1009
  %v1011 = vpop.f32.mrb[0].mxu0
  %1012 = vmatprep.mubr.bf16.mxu0 0
  %1013 = vmatmul.mubr.bf16.gmra.mrb[0].mxu0 %v964
  %v1014 = vpop.f32.mrb[0].mxu0
  %v1015 = vadd.f32 0.0, %v1014
  %v1016 = vpop.f32.mrb[0].mxu0
  %v1017 = vpop.f32.mrb[0].mxu0
  %v1018 = vpop.f32.mrb[0].mxu0
  %1019 = vdwg.mxu0
  %v1020 = vmul.f32 %v545, 0.25
  %v1021 = vmul.f32 %v548, 0.25
  %v1022 = vmul.f32 %v553, 0.25
  %v1023 = vmul.f32 %v611, 0.25
  %v1024 = vmul.f32 %v614, 0.25
  %v1025 = vmul.f32 %v619, 0.25
  %v1026 = vmul.f32 %v677, 0.25
  %v1027 = vmul.f32 %v680, 0.25
  %v1028 = vmul.f32 %v685, 0.25
  %v1029 = vmul.f32 %v743, 0.25
  %v1030 = vmul.f32 %v746, 0.25
  %v1031 = vmul.f32 %v751, 0.25
  %v1032 = vmul.f32 %v809, 0.25
  %v1033 = vmul.f32 %v812, 0.25
  %v1034 = vmul.f32 %v817, 0.25
  %v1035 = vmul.f32 %v875, 0.25
  %v1036 = vmul.f32 %v878, 0.25
  %v1037 = vmul.f32 %v883, 0.25
  %v1038 = vmul.f32 %v941, 0.25
  %v1039 = vmul.f32 %v944, 0.25
  %v1040 = vmul.f32 %v949, 0.25
  %v1041 = vmul.f32 %v1007, 0.25
  %v1042 = vmul.f32 %v1010, 0.25
  %v1043 = vmul.f32 %v1015, 0.25
  %v1044 = vlaneseq
  %v1045 = vand.u32 %v1044, 127
  %vm1046 = vcmp.lt.s32.totalorder %v1045, 17
  %v1047 = vsel %vm1046, 0.0, -1e+30
  %v1048 = vadd.f32 %v1020, %v1047
  %v1049 = vadd.f32 %v1021, %v1047
  %v1050 = vadd.f32 %v1022, %v1047
  %v1051 = vadd.f32 %v1023, %v1047
  %v1052 = vadd.f32 %v1024, %v1047
  %v1053 = vadd.f32 %v1025, %v1047
  %v1054 = vadd.f32 %v1026, %v1047
  %v1055 = vadd.f32 %v1027, %v1047
  %v1056 = vadd.f32 %v1028, %v1047
  %v1057 = vadd.f32 %v1029, %v1047
  %v1058 = vadd.f32 %v1030, %v1047
  %v1059 = vadd.f32 %v1031, %v1047
  %v1060 = vadd.f32 %v1032, %v1047
  %v1061 = vadd.f32 %v1033, %v1047
  %v1062 = vadd.f32 %v1034, %v1047
  %v1063 = vadd.f32 %v1035, %v1047
  %v1064 = vadd.f32 %v1036, %v1047
  %v1065 = vadd.f32 %v1037, %v1047
  %v1066 = vadd.f32 %v1038, %v1047
  %v1067 = vadd.f32 %v1039, %v1047
  %v1068 = vadd.f32 %v1040, %v1047
  %v1069 = vadd.f32 %v1041, %v1047
  %v1070 = vadd.f32 %v1042, %v1047
  %v1071 = vadd.f32 %v1043, %v1047
  %vm1072 = vcmask 195584
  %v1073 = vsel %vm1072, %v1048, -inf
  %1074 = vmax.xlane.f32.xlu0 %v1073
  %v1075 = vpop.xlane.xlu0 %1074
  %v1076 = vsel %vm1072, %v1049, -inf
  %1077 = vmax.xlane.f32.xlu0 %v1076
  %v1078 = vpop.xlane.xlu0 %1077
  %v1079 = vsel %vm1072, %v1050, -inf
  %1080 = vmax.xlane.f32.xlu0 %v1079
  %v1081 = vpop.xlane.xlu0 %1080
  %v1082 = vsel %vm1072, %v1051, -inf
  %1083 = vmax.xlane.f32.xlu0 %v1082
  %v1084 = vpop.xlane.xlu0 %1083
  %v1085 = vsel %vm1072, %v1052, -inf
  %1086 = vmax.xlane.f32.xlu0 %v1085
  %v1087 = vpop.xlane.xlu0 %1086
  %v1088 = vsel %vm1072, %v1053, -inf
  %1089 = vmax.xlane.f32.xlu0 %v1088
  %v1090 = vpop.xlane.xlu0 %1089
  %v1091 = vsel %vm1072, %v1054, -inf
  %1092 = vmax.xlane.f32.xlu0 %v1091
  %v1093 = vpop.xlane.xlu0 %1092
  %v1094 = vsel %vm1072, %v1055, -inf
  %1095 = vmax.xlane.f32.xlu0 %v1094
  %v1096 = vpop.xlane.xlu0 %1095
  %v1097 = vsel %vm1072, %v1056, -inf
  %1098 = vmax.xlane.f32.xlu0 %v1097
  %v1099 = vpop.xlane.xlu0 %1098
  %v1100 = vsel %vm1072, %v1057, -inf
  %1101 = vmax.xlane.f32.xlu0 %v1100
  %v1102 = vpop.xlane.xlu0 %1101
  %v1103 = vsel %vm1072, %v1058, -inf
  %1104 = vmax.xlane.f32.xlu0 %v1103
  %v1105 = vpop.xlane.xlu0 %1104
  %v1106 = vsel %vm1072, %v1059, -inf
  %1107 = vmax.xlane.f32.xlu0 %v1106
  %v1108 = vpop.xlane.xlu0 %1107
  %v1109 = vsel %vm1072, %v1060, -inf
  %1110 = vmax.xlane.f32.xlu0 %v1109
  %v1111 = vpop.xlane.xlu0 %1110
  %v1112 = vsel %vm1072, %v1061, -inf
  %1113 = vmax.xlane.f32.xlu0 %v1112
  %v1114 = vpop.xlane.xlu0 %1113
  %v1115 = vsel %vm1072, %v1062, -inf
  %1116 = vmax.xlane.f32.xlu0 %v1115
  %v1117 = vpop.xlane.xlu0 %1116
  %v1118 = vsel %vm1072, %v1063, -inf
  %1119 = vmax.xlane.f32.xlu0 %v1118
  %v1120 = vpop.xlane.xlu0 %1119
  %v1121 = vsel %vm1072, %v1064, -inf
  %1122 = vmax.xlane.f32.xlu0 %v1121
  %v1123 = vpop.xlane.xlu0 %1122
  %v1124 = vsel %vm1072, %v1065, -inf
  %1125 = vmax.xlane.f32.xlu0 %v1124
  %v1126 = vpop.xlane.xlu0 %1125
  %v1127 = vsel %vm1072, %v1066, -inf
  %1128 = vmax.xlane.f32.xlu0 %v1127
  %v1129 = vpop.xlane.xlu0 %1128
  %v1130 = vsel %vm1072, %v1067, -inf
  %1131 = vmax.xlane.f32.xlu0 %v1130
  %v1132 = vpop.xlane.xlu0 %1131
  %v1133 = vsel %vm1072, %v1068, -inf
  %1134 = vmax.xlane.f32.xlu0 %v1133
  %v1135 = vpop.xlane.xlu0 %1134
  %v1136 = vsel %vm1072, %v1069, -inf
  %1137 = vmax.xlane.f32.xlu0 %v1136
  %v1138 = vpop.xlane.xlu0 %1137
  %v1139 = vsel %vm1072, %v1070, -inf
  %1140 = vmax.xlane.f32.xlu0 %v1139
  %v1141 = vpop.xlane.xlu0 %1140
  %v1142 = vsel %vm1072, %v1071, -inf
  %1143 = vmax.xlane.f32.xlu0 %v1142
  %v1144 = vpop.xlane.xlu0 %1143
  %v1145 = vsub.f32 %v1048, %v1075
  %v1146 = vsub.f32 %v1049, %v1078
  %v1147 = vsub.f32 %v1050, %v1081
  %v1148 = vsub.f32 %v1051, %v1084
  %v1149 = vsub.f32 %v1052, %v1087
  %v1150 = vsub.f32 %v1053, %v1090
  %v1151 = vsub.f32 %v1054, %v1093
  %v1152 = vsub.f32 %v1055, %v1096
  %v1153 = vsub.f32 %v1056, %v1099
  %v1154 = vsub.f32 %v1057, %v1102
  %v1155 = vsub.f32 %v1058, %v1105
  %v1156 = vsub.f32 %v1059, %v1108
  %v1157 = vsub.f32 %v1060, %v1111
  %v1158 = vsub.f32 %v1061, %v1114
  %v1159 = vsub.f32 %v1062, %v1117
  %v1160 = vsub.f32 %v1063, %v1120
  %v1161 = vsub.f32 %v1064, %v1123
  %v1162 = vsub.f32 %v1065, %v1126
  %v1163 = vsub.f32 %v1066, %v1129
  %v1164 = vsub.f32 %v1067, %v1132
  %v1165 = vsub.f32 %v1068, %v1135
  %v1166 = vsub.f32 %v1069, %v1138
  %v1167 = vsub.f32 %v1070, %v1141
  %v1168 = vsub.f32 %v1071, %v1144
  %v1169 = vmul.f32 %v1145, 1.442695
  %v1170 = vpow.pop %v1169
  %v1171 = vmul.f32 %v1146, 1.442695
  %v1172 = vpow.pop %v1171
  %v1173 = vmul.f32 %v1147, 1.442695
  %v1174 = vpow.pop %v1173
  %v1175 = vmul.f32 %v1148, 1.442695
  %v1176 = vpow.pop %v1175
  %v1177 = vmul.f32 %v1149, 1.442695
  %v1178 = vpow.pop %v1177
  %v1179 = vmul.f32 %v1150, 1.442695
  %v1180 = vpow.pop %v1179
  %v1181 = vmul.f32 %v1151, 1.442695
  %v1182 = vpow.pop %v1181
  %v1183 = vmul.f32 %v1152, 1.442695
  %v1184 = vpow.pop %v1183
  %v1185 = vmul.f32 %v1153, 1.442695
  %v1186 = vpow.pop %v1185
  %v1187 = vmul.f32 %v1154, 1.442695
  %v1188 = vpow.pop %v1187
  %v1189 = vmul.f32 %v1155, 1.442695
  %v1190 = vpow.pop %v1189
  %v1191 = vmul.f32 %v1156, 1.442695
  %v1192 = vpow.pop %v1191
  %v1193 = vmul.f32 %v1157, 1.442695
  %v1194 = vpow.pop %v1193
  %v1195 = vmul.f32 %v1158, 1.442695
  %v1196 = vpow.pop %v1195
  %v1197 = vmul.f32 %v1159, 1.442695
  %v1198 = vpow.pop %v1197
  %v1199 = vmul.f32 %v1160, 1.442695
  %v1200 = vpow.pop %v1199
  %v1201 = vmul.f32 %v1161, 1.442695
  %v1202 = vpow.pop %v1201
  %v1203 = vmul.f32 %v1162, 1.442695
  %v1204 = vpow.pop %v1203
  %v1205 = vmul.f32 %v1163, 1.442695
  %v1206 = vpow.pop %v1205
  %v1207 = vmul.f32 %v1164, 1.442695
  %v1208 = vpow.pop %v1207
  %v1209 = vmul.f32 %v1165, 1.442695
  %v1210 = vpow.pop %v1209
  %v1211 = vmul.f32 %v1166, 1.442695
  %v1212 = vpow.pop %v1211
  %v1213 = vmul.f32 %v1167, 1.442695
  %v1214 = vpow.pop %v1213
  %v1215 = vmul.f32 %v1168, 1.442695
  %v1216 = vpow.pop %v1215
  %v1217 = vsel %vm1072, %v1170, 0.0
  %1218 = vadd.xlane.f32.xlu0 %v1217
  %v1219 = vpop.xlane.xlu0 %1218
  %v1220 = vsel %vm1072, %v1172, 0.0
  %1221 = vadd.xlane.f32.xlu0 %v1220
  %v1222 = vpop.xlane.xlu0 %1221
  %v1223 = vsel %vm1072, %v1174, 0.0
  %1224 = vadd.xlane.f32.xlu0 %v1223
  %v1225 = vpop.xlane.xlu0 %1224
  %v1226 = vsel %vm1072, %v1176, 0.0
  %1227 = vadd.xlane.f32.xlu0 %v1226
  %v1228 = vpop.xlane.xlu0 %1227
  %v1229 = vsel %vm1072, %v1178, 0.0
  %1230 = vadd.xlane.f32.xlu0 %v1229
  %v1231 = vpop.xlane.xlu0 %1230
  %v1232 = vsel %vm1072, %v1180, 0.0
  %1233 = vadd.xlane.f32.xlu0 %v1232
  %v1234 = vpop.xlane.xlu0 %1233
  %v1235 = vsel %vm1072, %v1182, 0.0
  %1236 = vadd.xlane.f32.xlu0 %v1235
  %v1237 = vpop.xlane.xlu0 %1236
  %v1238 = vsel %vm1072, %v1184, 0.0
  %1239 = vadd.xlane.f32.xlu0 %v1238
  %v1240 = vpop.xlane.xlu0 %1239
  %v1241 = vsel %vm1072, %v1186, 0.0
  %1242 = vadd.xlane.f32.xlu0 %v1241
  %v1243 = vpop.xlane.xlu0 %1242
  %v1244 = vsel %vm1072, %v1188, 0.0
  %1245 = vadd.xlane.f32.xlu0 %v1244
  %v1246 = vpop.xlane.xlu0 %1245
  %v1247 = vsel %vm1072, %v1190, 0.0
  %1248 = vadd.xlane.f32.xlu0 %v1247
  %v1249 = vpop.xlane.xlu0 %1248
  %v1250 = vsel %vm1072, %v1192, 0.0
  %1251 = vadd.xlane.f32.xlu0 %v1250
  %v1252 = vpop.xlane.xlu0 %1251
  %v1253 = vsel %vm1072, %v1194, 0.0
  %1254 = vadd.xlane.f32.xlu0 %v1253
  %v1255 = vpop.xlane.xlu0 %1254
  %v1256 = vsel %vm1072, %v1196, 0.0
  %1257 = vadd.xlane.f32.xlu0 %v1256
  %v1258 = vpop.xlane.xlu0 %1257
  %v1259 = vsel %vm1072, %v1198, 0.0
  %1260 = vadd.xlane.f32.xlu0 %v1259
  %v1261 = vpop.xlane.xlu0 %1260
  %v1262 = vsel %vm1072, %v1200, 0.0
  %1263 = vadd.xlane.f32.xlu0 %v1262
  %v1264 = vpop.xlane.xlu0 %1263
  %v1265 = vsel %vm1072, %v1202, 0.0
  %1266 = vadd.xlane.f32.xlu0 %v1265
  %v1267 = vpop.xlane.xlu0 %1266
  %v1268 = vsel %vm1072, %v1204, 0.0
  %1269 = vadd.xlane.f32.xlu0 %v1268
  %v1270 = vpop.xlane.xlu0 %1269
  %v1271 = vsel %vm1072, %v1206, 0.0
  %1272 = vadd.xlane.f32.xlu0 %v1271
  %v1273 = vpop.xlane.xlu0 %1272
  %v1274 = vsel %vm1072, %v1208, 0.0
  %1275 = vadd.xlane.f32.xlu0 %v1274
  %v1276 = vpop.xlane.xlu0 %1275
  %v1277 = vsel %vm1072, %v1210, 0.0
  %1278 = vadd.xlane.f32.xlu0 %v1277
  %v1279 = vpop.xlane.xlu0 %1278
  %v1280 = vsel %vm1072, %v1212, 0.0
  %1281 = vadd.xlane.f32.xlu0 %v1280
  %v1282 = vpop.xlane.xlu0 %1281
  %v1283 = vsel %vm1072, %v1214, 0.0
  %1284 = vadd.xlane.f32.xlu0 %v1283
  %v1285 = vpop.xlane.xlu0 %1284
  %v1286 = vsel %vm1072, %v1216, 0.0
  %1287 = vadd.xlane.f32.xlu0 %v1286
  %v1288 = vpop.xlane.xlu0 %1287
  %v1289 = vrcp.pop %v1219
  %v1290 = vrcp.pop %v1222
  %v1291 = vrcp.pop %v1225
  %v1292 = vrcp.pop %v1228
  %v1293 = vrcp.pop %v1231
  %v1294 = vrcp.pop %v1234
  %v1295 = vrcp.pop %v1237
  %v1296 = vrcp.pop %v1240
  %v1297 = vrcp.pop %v1243
  %v1298 = vrcp.pop %v1246
  %v1299 = vrcp.pop %v1249
  %v1300 = vrcp.pop %v1252
  %v1301 = vrcp.pop %v1255
  %v1302 = vrcp.pop %v1258
  %v1303 = vrcp.pop %v1261
  %v1304 = vrcp.pop %v1264
  %v1305 = vrcp.pop %v1267
  %v1306 = vrcp.pop %v1270
  %v1307 = vrcp.pop %v1273
  %v1308 = vrcp.pop %v1276
  %v1309 = vrcp.pop %v1279
  %v1310 = vrcp.pop %v1282
  %v1311 = vrcp.pop %v1285
  %v1312 = vrcp.pop %v1288
  %v1313 = vmul.f32 %v1170, %v1289
  %v1314 = vmul.f32 %v1172, %v1290
  %v1315 = vmul.f32 %v1174, %v1291
  %v1316 = vmul.f32 %v1176, %v1292
  %v1317 = vmul.f32 %v1178, %v1293
  %v1318 = vmul.f32 %v1180, %v1294
  %v1319 = vmul.f32 %v1182, %v1295
  %v1320 = vmul.f32 %v1184, %v1296
  %v1321 = vmul.f32 %v1186, %v1297
  %v1322 = vmul.f32 %v1188, %v1298
  %v1323 = vmul.f32 %v1190, %v1299
  %v1324 = vmul.f32 %v1192, %v1300
  %v1325 = vmul.f32 %v1194, %v1301
  %v1326 = vmul.f32 %v1196, %v1302
  %v1327 = vmul.f32 %v1198, %v1303
  %v1328 = vmul.f32 %v1200, %v1304
  %v1329 = vmul.f32 %v1202, %v1305
  %v1330 = vmul.f32 %v1204, %v1306
  %v1331 = vmul.f32 %v1206, %v1307
  %v1332 = vmul.f32 %v1208, %v1308
  %v1333 = vmul.f32 %v1210, %v1309
  %v1334 = vmul.f32 %v1212, %v1310
  %v1335 = vmul.f32 %v1214, %v1311
  %v1336 = vmul.f32 %v1216, %v1312
  %v1337 = vpack.c.bf16 %v1314, %v1313
  %v1338 = vpack.c.bf16 %v1315, %v1315
  %v1339 = vpack.c.bf16 %v1317, %v1316
  %v1340 = vpack.c.bf16 %v1318, %v1318
  %v1341 = vpack.c.bf16 %v1320, %v1319
  %v1342 = vpack.c.bf16 %v1321, %v1321
  %v1343 = vpack.c.bf16 %v1323, %v1322
  %v1344 = vpack.c.bf16 %v1324, %v1324
  %v1345 = vpack.c.bf16 %v1326, %v1325
  %v1346 = vpack.c.bf16 %v1327, %v1327
  %v1347 = vpack.c.bf16 %v1329, %v1328
  %v1348 = vpack.c.bf16 %v1330, %v1330
  %v1349 = vpack.c.bf16 %v1332, %v1331
  %v1350 = vpack.c.bf16 %v1333, %v1333
  %v1351 = vpack.c.bf16 %v1335, %v1334
  %v1352 = vpack.c.bf16 %v1336, %v1336
  %1353 = vrot.lane.b32.xlu0 %v475, 64
  %v1354 = vpop.permute.xlu0 %1353
  %1355 = vrot.lane.b32.xlu0 %v476, 64
  %v1356 = vpop.permute.xlu0 %1355
  %v1359 = vsel %vm1072, %v1337, 0
  %v1362 = vsel %vm1072, %v1338, 0
  %vm1364 = vcmask 1043456
  %v1366 = vsel %vm1364, %v1356, 0
  %1368 = vmatprep.subr.bf16.mxu0 0
  %1369 = vmatpush1.bf16.msra.mxu0 %v1354
  %1370 = vmatprep.subr.bf16.mxu0 0
  %1371 = vmatpush1.bf16.msra.mxu0 %v1366
  %1372 = vmatprep.subr.bf16.mxu0 0
  %1373 = vmatpush1.bf16.msra.mxu0 0
  %1374 = vmatprep.subr.bf16.mxu0 0
  %1375 = vmatpush1.bf16.msra.mxu0 0
  %1376 = vmatprep.subr.bf16.mxu0 0
  %1377 = vmatpush1.bf16.msra.mxu0 0
  %1378 = vmatprep.subr.bf16.mxu0 0
  %1379 = vmatpush1.bf16.msra.mxu0 0
  %1380 = vmatprep.subr.bf16.mxu0 0
  %1381 = vmatpush1.bf16.msra.mxu0 0
  %1382 = vmatprep.subr.bf16.mxu0 0
  %1383 = vmatpush1.bf16.msra.mxu0 0
  %1384 = vmatprep.subr.bf16.mxu0 0
  %1385 = vmatpush1.bf16.msra.mxu0 0
  %1386 = vmatprep.subr.bf16.mxu0 0
  %1387 = vmatpush1.bf16.msra.mxu0 0
  %1388 = vmatprep.subr.bf16.mxu0 0
  %1389 = vmatpush1.bf16.msra.mxu0 0
  %1390 = vmatprep.subr.bf16.mxu0 0
  %1391 = vmatpush1.bf16.msra.mxu0 0
  %1392 = vmatprep.subr.bf16.mxu0 0
  %1393 = vmatpush1.bf16.msra.mxu0 0
  %1394 = vmatprep.subr.bf16.mxu0 0
  %1395 = vmatpush1.bf16.msra.mxu0 0
  %1396 = vmatprep.subr.bf16.mxu0 0
  %1397 = vmatpush1.bf16.msra.mxu0 0
  %1398 = vmatprep.subr.bf16.mxu0 0
  %1399 = vmatpush1.bf16.msra.mxu0 0
  %1400 = vmatprep.mubr.bf16.mxu0 0
  %1401 = vmatmul.mubr.bf16.gmra.mrb[0].mxu0 %v1359
  %v1402 = vpop.f32.mrb[0].mxu0
  %v1403 = vadd.f32 0.0, %v1402
  %v1404 = vpop.f32.mrb[0].mxu0
  %v1405 = vpop.f32.mrb[0].mxu0
  %v1406 = vadd.f32 0.0, %v1405
  %v1407 = vpop.f32.mrb[0].mxu0
  %1408 = vmatprep.mubr.bf16.mxu0 0
  %1409 = vmatmul.mubr.bf16.gmra.mrb[0].mxu0 %v1362
  %v1410 = vpop.f32.mrb[0].mxu0
  %v1411 = vadd.f32 0.0, %v1410
  %v1412 = vpop.f32.mrb[0].mxu0
  %v1413 = vpop.f32.mrb[0].mxu0
  %v1414 = vpop.f32.mrb[0].mxu0
  %1415 = vdwg.mxu0
  %1416 = vrot.lane.b32.xlu0 %v477, 64
  %v1417 = vpop.permute.xlu0 %1416
  %1418 = vrot.lane.b32.xlu0 %v478, 64
  %v1419 = vpop.permute.xlu0 %1418
  %v1422 = vsel %vm1072, %v1339, 0
  %v1425 = vsel %vm1072, %v1340, 0
  %v1428 = vsel %vm1364, %v1419, 0
  %1430 = vmatprep.subr.bf16.mxu0 0
  %1431 = vmatpush1.bf16.msra.mxu0 %v1417
  %1432 = vmatprep.subr.bf16.mxu0 0
  %1433 = vmatpush1.bf16.msra.mxu0 %v1428
  %1434 = vmatprep.subr.bf16.mxu0 0
  %1435 = vmatpush1.bf16.msra.mxu0 0
  %1436 = vmatprep.subr.bf16.mxu0 0
  %1437 = vmatpush1.bf16.msra.mxu0 0
  %1438 = vmatprep.subr.bf16.mxu0 0
  %1439 = vmatpush1.bf16.msra.mxu0 0
  %1440 = vmatprep.subr.bf16.mxu0 0
  %1441 = vmatpush1.bf16.msra.mxu0 0
  %1442 = vmatprep.subr.bf16.mxu0 0
  %1443 = vmatpush1.bf16.msra.mxu0 0
  %1444 = vmatprep.subr.bf16.mxu0 0
  %1445 = vmatpush1.bf16.msra.mxu0 0
  %1446 = vmatprep.subr.bf16.mxu0 0
  %1447 = vmatpush1.bf16.msra.mxu0 0
  %1448 = vmatprep.subr.bf16.mxu0 0
  %1449 = vmatpush1.bf16.msra.mxu0 0
  %1450 = vmatprep.subr.bf16.mxu0 0
  %1451 = vmatpush1.bf16.msra.mxu0 0
  %1452 = vmatprep.subr.bf16.mxu0 0
  %1453 = vmatpush1.bf16.msra.mxu0 0
  %1454 = vmatprep.subr.bf16.mxu0 0
  %1455 = vmatpush1.bf16.msra.mxu0 0
  %1456 = vmatprep.subr.bf16.mxu0 0
  %1457 = vmatpush1.bf16.msra.mxu0 0
  %1458 = vmatprep.subr.bf16.mxu0 0
  %1459 = vmatpush1.bf16.msra.mxu0 0
  %1460 = vmatprep.subr.bf16.mxu0 0
  %1461 = vmatpush1.bf16.msra.mxu0 0
  %1462 = vmatprep.mubr.bf16.mxu0 0
  %1463 = vmatmul.mubr.bf16.gmra.mrb[0].mxu0 %v1422
  %v1464 = vpop.f32.mrb[0].mxu0
  %v1465 = vadd.f32 0.0, %v1464
  %v1466 = vpop.f32.mrb[0].mxu0
  %v1467 = vpop.f32.mrb[0].mxu0
  %v1468 = vadd.f32 0.0, %v1467
  %v1469 = vpop.f32.mrb[0].mxu0
  %1470 = vmatprep.mubr.bf16.mxu0 0
  %1471 = vmatmul.mubr.bf16.gmra.mrb[0].mxu0 %v1425
  %v1472 = vpop.f32.mrb[0].mxu0
  %v1473 = vadd.f32 0.0, %v1472
  %v1474 = vpop.f32.mrb[0].mxu0
  %v1475 = vpop.f32.mrb[0].mxu0
  %v1476 = vpop.f32.mrb[0].mxu0
  %1477 = vdwg.mxu0
  %1478 = vrot.lane.b32.xlu0 %v479, 64
  %v1479 = vpop.permute.xlu0 %1478
  %1480 = vrot.lane.b32.xlu0 %v480, 64
  %v1481 = vpop.permute.xlu0 %1480
  %v1484 = vsel %vm1072, %v1341, 0
  %v1487 = vsel %vm1072, %v1342, 0
  %v1490 = vsel %vm1364, %v1481, 0
  %1492 = vmatprep.subr.bf16.mxu0 0
  %1493 = vmatpush1.bf16.msra.mxu0 %v1479
  %1494 = vmatprep.subr.bf16.mxu0 0
  %1495 = vmatpush1.bf16.msra.mxu0 %v1490
  %1496 = vmatprep.subr.bf16.mxu0 0
  %1497 = vmatpush1.bf16.msra.mxu0 0
  %1498 = vmatprep.subr.bf16.mxu0 0
  %1499 = vmatpush1.bf16.msra.mxu0 0
  %1500 = vmatprep.subr.bf16.mxu0 0
  %1501 = vmatpush1.bf16.msra.mxu0 0
  %1502 = vmatprep.subr.bf16.mxu0 0
  %1503 = vmatpush1.bf16.msra.mxu0 0
  %1504 = vmatprep.subr.bf16.mxu0 0
  %1505 = vmatpush1.bf16.msra.mxu0 0
  %1506 = vmatprep.subr.bf16.mxu0 0
  %1507 = vmatpush1.bf16.msra.mxu0 0
  %1508 = vmatprep.subr.bf16.mxu0 0
  %1509 = vmatpush1.bf16.msra.mxu0 0
  %1510 = vmatprep.subr.bf16.mxu0 0
  %1511 = vmatpush1.bf16.msra.mxu0 0
  %1512 = vmatprep.subr.bf16.mxu0 0
  %1513 = vmatpush1.bf16.msra.mxu0 0
  %1514 = vmatprep.subr.bf16.mxu0 0
  %1515 = vmatpush1.bf16.msra.mxu0 0
  %1516 = vmatprep.subr.bf16.mxu0 0
  %1517 = vmatpush1.bf16.msra.mxu0 0
  %1518 = vmatprep.subr.bf16.mxu0 0
  %1519 = vmatpush1.bf16.msra.mxu0 0
  %1520 = vmatprep.subr.bf16.mxu0 0
  %1521 = vmatpush1.bf16.msra.mxu0 0
  %1522 = vmatprep.subr.bf16.mxu0 0
  %1523 = vmatpush1.bf16.msra.mxu0 0
  %1524 = vmatprep.mubr.bf16.mxu0 0
  %1525 = vmatmul.mubr.bf16.gmra.mrb[0].mxu0 %v1484
  %v1526 = vpop.f32.mrb[0].mxu0
  %v1527 = vadd.f32 0.0, %v1526
  %v1528 = vpop.f32.mrb[0].mxu0
  %v1529 = vpop.f32.mrb[0].mxu0
  %v1530 = vadd.f32 0.0, %v1529
  %v1531 = vpop.f32.mrb[0].mxu0
  %1532 = vmatprep.mubr.bf16.mxu0 0
  %1533 = vmatmul.mubr.bf16.gmra.mrb[0].mxu0 %v1487
  %v1534 = vpop.f32.mrb[0].mxu0
  %v1535 = vadd.f32 0.0, %v1534
  %v1536 = vpop.f32.mrb[0].mxu0
  %v1537 = vpop.f32.mrb[0].mxu0
  %v1538 = vpop.f32.mrb[0].mxu0
  %1539 = vdwg.mxu0
  %1540 = vrot.lane.b32.xlu0 %v481, 64
  %v1541 = vpop.permute.xlu0 %1540
  %1542 = vrot.lane.b32.xlu0 %v482, 64
  %v1543 = vpop.permute.xlu0 %1542
  %v1546 = vsel %vm1072, %v1343, 0
  %v1549 = vsel %vm1072, %v1344, 0
  %v1552 = vsel %vm1364, %v1543, 0
  %1554 = vmatprep.subr.bf16.mxu0 0
  %1555 = vmatpush1.bf16.msra.mxu0 %v1541
  %1556 = vmatprep.subr.bf16.mxu0 0
  %1557 = vmatpush1.bf16.msra.mxu0 %v1552
  %1558 = vmatprep.subr.bf16.mxu0 0
  %1559 = vmatpush1.bf16.msra.mxu0 0
  %1560 = vmatprep.subr.bf16.mxu0 0
  %1561 = vmatpush1.bf16.msra.mxu0 0
  %1562 = vmatprep.subr.bf16.mxu0 0
  %1563 = vmatpush1.bf16.msra.mxu0 0
  %1564 = vmatprep.subr.bf16.mxu0 0
  %1565 = vmatpush1.bf16.msra.mxu0 0
  %1566 = vmatprep.subr.bf16.mxu0 0
  %1567 = vmatpush1.bf16.msra.mxu0 0
  %1568 = vmatprep.subr.bf16.mxu0 0
  %1569 = vmatpush1.bf16.msra.mxu0 0
  %1570 = vmatprep.subr.bf16.mxu0 0
  %1571 = vmatpush1.bf16.msra.mxu0 0
  %1572 = vmatprep.subr.bf16.mxu0 0
  %1573 = vmatpush1.bf16.msra.mxu0 0
  %1574 = vmatprep.subr.bf16.mxu0 0
  %1575 = vmatpush1.bf16.msra.mxu0 0
  %1576 = vmatprep.subr.bf16.mxu0 0
  %1577 = vmatpush1.bf16.msra.mxu0 0
  %1578 = vmatprep.subr.bf16.mxu0 0
  %1579 = vmatpush1.bf16.msra.mxu0 0
  %1580 = vmatprep.subr.bf16.mxu0 0
  %1581 = vmatpush1.bf16.msra.mxu0 0
  %1582 = vmatprep.subr.bf16.mxu0 0
  %1583 = vmatpush1.bf16.msra.mxu0 0
  %1584 = vmatprep.subr.bf16.mxu0 0
  %1585 = vmatpush1.bf16.msra.mxu0 0
  %1586 = vmatprep.mubr.bf16.mxu0 0
  %1587 = vmatmul.mubr.bf16.gmra.mrb[0].mxu0 %v1546
  %v1588 = vpop.f32.mrb[0].mxu0
  %v1589 = vadd.f32 0.0, %v1588
  %v1590 = vpop.f32.mrb[0].mxu0
  %v1591 = vpop.f32.mrb[0].mxu0
  %v1592 = vadd.f32 0.0, %v1591
  %v1593 = vpop.f32.mrb[0].mxu0
  %1594 = vmatprep.mubr.bf16.mxu0 0
  %1595 = vmatmul.mubr.bf16.gmra.mrb[0].mxu0 %v1549
  %v1596 = vpop.f32.mrb[0].mxu0
  %v1597 = vadd.f32 0.0, %v1596
  %v1598 = vpop.f32.mrb[0].mxu0
  %v1599 = vpop.f32.mrb[0].mxu0
  %v1600 = vpop.f32.mrb[0].mxu0
  %1601 = vdwg.mxu0
  %1602 = vrot.lane.b32.xlu0 %v483, 64
  %v1603 = vpop.permute.xlu0 %1602
  %1604 = vrot.lane.b32.xlu0 %v484, 64
  %v1605 = vpop.permute.xlu0 %1604
  %v1608 = vsel %vm1072, %v1345, 0
  %v1611 = vsel %vm1072, %v1346, 0
  %v1614 = vsel %vm1364, %v1605, 0
  %1616 = vmatprep.subr.bf16.mxu0 0
  %1617 = vmatpush1.bf16.msra.mxu0 %v1603
  %1618 = vmatprep.subr.bf16.mxu0 0
  %1619 = vmatpush1.bf16.msra.mxu0 %v1614
  %1620 = vmatprep.subr.bf16.mxu0 0
  %1621 = vmatpush1.bf16.msra.mxu0 0
  %1622 = vmatprep.subr.bf16.mxu0 0
  %1623 = vmatpush1.bf16.msra.mxu0 0
  %1624 = vmatprep.subr.bf16.mxu0 0
  %1625 = vmatpush1.bf16.msra.mxu0 0
  %1626 = vmatprep.subr.bf16.mxu0 0
  %1627 = vmatpush1.bf16.msra.mxu0 0
  %1628 = vmatprep.subr.bf16.mxu0 0
  %1629 = vmatpush1.bf16.msra.mxu0 0
  %1630 = vmatprep.subr.bf16.mxu0 0
  %1631 = vmatpush1.bf16.msra.mxu0 0
  %1632 = vmatprep.subr.bf16.mxu0 0
  %1633 = vmatpush1.bf16.msra.mxu0 0
  %1634 = vmatprep.subr.bf16.mxu0 0
  %1635 = vmatpush1.bf16.msra.mxu0 0
  %1636 = vmatprep.subr.bf16.mxu0 0
  %1637 = vmatpush1.bf16.msra.mxu0 0
  %1638 = vmatprep.subr.bf16.mxu0 0
  %1639 = vmatpush1.bf16.msra.mxu0 0
  %1640 = vmatprep.subr.bf16.mxu0 0
  %1641 = vmatpush1.bf16.msra.mxu0 0
  %1642 = vmatprep.subr.bf16.mxu0 0
  %1643 = vmatpush1.bf16.msra.mxu0 0
  %1644 = vmatprep.subr.bf16.mxu0 0
  %1645 = vmatpush1.bf16.msra.mxu0 0
  %1646 = vmatprep.subr.bf16.mxu0 0
  %1647 = vmatpush1.bf16.msra.mxu0 0
  %1648 = vmatprep.mubr.bf16.mxu0 0
  %1649 = vmatmul.mubr.bf16.gmra.mrb[0].mxu0 %v1608
  %v1650 = vpop.f32.mrb[0].mxu0
  %v1651 = vadd.f32 0.0, %v1650
  %v1652 = vpop.f32.mrb[0].mxu0
  %v1653 = vpop.f32.mrb[0].mxu0
  %v1654 = vadd.f32 0.0, %v1653
  %v1655 = vpop.f32.mrb[0].mxu0
  %1656 = vmatprep.mubr.bf16.mxu0 0
  %1657 = vmatmul.mubr.bf16.gmra.mrb[0].mxu0 %v1611
  %v1658 = vpop.f32.mrb[0].mxu0
  %v1659 = vadd.f32 0.0, %v1658
  %v1660 = vpop.f32.mrb[0].mxu0
  %v1661 = vpop.f32.mrb[0].mxu0
  %v1662 = vpop.f32.mrb[0].mxu0
  %1663 = vdwg.mxu0
  %1664 = vrot.lane.b32.xlu0 %v485, 64
  %v1665 = vpop.permute.xlu0 %1664
  %1666 = vrot.lane.b32.xlu0 %v486, 64
  %v1667 = vpop.permute.xlu0 %1666
  %v1670 = vsel %vm1072, %v1347, 0
  %v1673 = vsel %vm1072, %v1348, 0
  %v1676 = vsel %vm1364, %v1667, 0
  %1678 = vmatprep.subr.bf16.mxu0 0
  %1679 = vmatpush1.bf16.msra.mxu0 %v1665
  %1680 = vmatprep.subr.bf16.mxu0 0
  %1681 = vmatpush1.bf16.msra.mxu0 %v1676
  %1682 = vmatprep.subr.bf16.mxu0 0
  %1683 = vmatpush1.bf16.msra.mxu0 0
  %1684 = vmatprep.subr.bf16.mxu0 0
  %1685 = vmatpush1.bf16.msra.mxu0 0
  %1686 = vmatprep.subr.bf16.mxu0 0
  %1687 = vmatpush1.bf16.msra.mxu0 0
  %1688 = vmatprep.subr.bf16.mxu0 0
  %1689 = vmatpush1.bf16.msra.mxu0 0
  %1690 = vmatprep.subr.bf16.mxu0 0
  %1691 = vmatpush1.bf16.msra.mxu0 0
  %1692 = vmatprep.subr.bf16.mxu0 0
  %1693 = vmatpush1.bf16.msra.mxu0 0
  %1694 = vmatprep.subr.bf16.mxu0 0
  %1695 = vmatpush1.bf16.msra.mxu0 0
  %1696 = vmatprep.subr.bf16.mxu0 0
  %1697 = vmatpush1.bf16.msra.mxu0 0
  %1698 = vmatprep.subr.bf16.mxu0 0
  %1699 = vmatpush1.bf16.msra.mxu0 0
  %1700 = vmatprep.subr.bf16.mxu0 0
  %1701 = vmatpush1.bf16.msra.mxu0 0
  %1702 = vmatprep.subr.bf16.mxu0 0
  %1703 = vmatpush1.bf16.msra.mxu0 0
  %1704 = vmatprep.subr.bf16.mxu0 0
  %1705 = vmatpush1.bf16.msra.mxu0 0
  %1706 = vmatprep.subr.bf16.mxu0 0
  %1707 = vmatpush1.bf16.msra.mxu0 0
  %1708 = vmatprep.subr.bf16.mxu0 0
  %1709 = vmatpush1.bf16.msra.mxu0 0
  %1710 = vmatprep.mubr.bf16.mxu0 0
  %1711 = vmatmul.mubr.bf16.gmra.mrb[0].mxu0 %v1670
  %v1712 = vpop.f32.mrb[0].mxu0
  %v1713 = vadd.f32 0.0, %v1712
  %v1714 = vpop.f32.mrb[0].mxu0
  %v1715 = vpop.f32.mrb[0].mxu0
  %v1716 = vadd.f32 0.0, %v1715
  %v1717 = vpop.f32.mrb[0].mxu0
  %1718 = vmatprep.mubr.bf16.mxu0 0
  %1719 = vmatmul.mubr.bf16.gmra.mrb[0].mxu0 %v1673
  %v1720 = vpop.f32.mrb[0].mxu0
  %v1721 = vadd.f32 0.0, %v1720
  %v1722 = vpop.f32.mrb[0].mxu0
  %v1723 = vpop.f32.mrb[0].mxu0
  %v1724 = vpop.f32.mrb[0].mxu0
  %1725 = vdwg.mxu0
  %1726 = vrot.lane.b32.xlu0 %v487, 64
  %v1727 = vpop.permute.xlu0 %1726
  %1728 = vrot.lane.b32.xlu0 %v488, 64
  %v1729 = vpop.permute.xlu0 %1728
  %v1732 = vsel %vm1072, %v1349, 0
  %v1735 = vsel %vm1072, %v1350, 0
  %v1738 = vsel %vm1364, %v1729, 0
  %1740 = vmatprep.subr.bf16.mxu0 0
  %1741 = vmatpush1.bf16.msra.mxu0 %v1727
  %1742 = vmatprep.subr.bf16.mxu0 0
  %1743 = vmatpush1.bf16.msra.mxu0 %v1738
  %1744 = vmatprep.subr.bf16.mxu0 0
  %1745 = vmatpush1.bf16.msra.mxu0 0
  %1746 = vmatprep.subr.bf16.mxu0 0
  %1747 = vmatpush1.bf16.msra.mxu0 0
  %1748 = vmatprep.subr.bf16.mxu0 0
  %1749 = vmatpush1.bf16.msra.mxu0 0
  %1750 = vmatprep.subr.bf16.mxu0 0
  %1751 = vmatpush1.bf16.msra.mxu0 0
  %1752 = vmatprep.subr.bf16.mxu0 0
  %1753 = vmatpush1.bf16.msra.mxu0 0
  %1754 = vmatprep.subr.bf16.mxu0 0
  %1755 = vmatpush1.bf16.msra.mxu0 0
  %1756 = vmatprep.subr.bf16.mxu0 0
  %1757 = vmatpush1.bf16.msra.mxu0 0
  %1758 = vmatprep.subr.bf16.mxu0 0
  %1759 = vmatpush1.bf16.msra.mxu0 0
  %1760 = vmatprep.subr.bf16.mxu0 0
  %1761 = vmatpush1.bf16.msra.mxu0 0
  %1762 = vmatprep.subr.bf16.mxu0 0
  %1763 = vmatpush1.bf16.msra.mxu0 0
  %1764 = vmatprep.subr.bf16.mxu0 0
  %1765 = vmatpush1.bf16.msra.mxu0 0
  %1766 = vmatprep.subr.bf16.mxu0 0
  %1767 = vmatpush1.bf16.msra.mxu0 0
  %1768 = vmatprep.subr.bf16.mxu0 0
  %1769 = vmatpush1.bf16.msra.mxu0 0
  %1770 = vmatprep.subr.bf16.mxu0 0
  %1771 = vmatpush1.bf16.msra.mxu0 0
  %1772 = vmatprep.mubr.bf16.mxu0 0
  %1773 = vmatmul.mubr.bf16.gmra.mrb[0].mxu0 %v1732
  %v1774 = vpop.f32.mrb[0].mxu0
  %v1775 = vadd.f32 0.0, %v1774
  %v1776 = vpop.f32.mrb[0].mxu0
  %v1777 = vpop.f32.mrb[0].mxu0
  %v1778 = vadd.f32 0.0, %v1777
  %v1779 = vpop.f32.mrb[0].mxu0
  %1780 = vmatprep.mubr.bf16.mxu0 0
  %1781 = vmatmul.mubr.bf16.gmra.mrb[0].mxu0 %v1735
  %v1782 = vpop.f32.mrb[0].mxu0
  %v1783 = vadd.f32 0.0, %v1782
  %v1784 = vpop.f32.mrb[0].mxu0
  %v1785 = vpop.f32.mrb[0].mxu0
  %v1786 = vpop.f32.mrb[0].mxu0
  %1787 = vdwg.mxu0
  %1788 = vrot.lane.b32.xlu0 %v489, 64
  %v1789 = vpop.permute.xlu0 %1788
  %1790 = vrot.lane.b32.xlu0 %v490, 64
  %v1791 = vpop.permute.xlu0 %1790
  %v1794 = vsel %vm1072, %v1351, 0
  %v1797 = vsel %vm1072, %v1352, 0
  %v1800 = vsel %vm1364, %v1791, 0
  %1802 = vmatprep.subr.bf16.mxu0 0
  %1803 = vmatpush1.bf16.msra.mxu0 %v1789
  %1804 = vmatprep.subr.bf16.mxu0 0
  %1805 = vmatpush1.bf16.msra.mxu0 %v1800
  %1806 = vmatprep.subr.bf16.mxu0 0
  %1807 = vmatpush1.bf16.msra.mxu0 0
  %1808 = vmatprep.subr.bf16.mxu0 0
  %1809 = vmatpush1.bf16.msra.mxu0 0
  %1810 = vmatprep.subr.bf16.mxu0 0
  %1811 = vmatpush1.bf16.msra.mxu0 0
  %1812 = vmatprep.subr.bf16.mxu0 0
  %1813 = vmatpush1.bf16.msra.mxu0 0
  %1814 = vmatprep.subr.bf16.mxu0 0
  %1815 = vmatpush1.bf16.msra.mxu0 0
  %1816 = vmatprep.subr.bf16.mxu0 0
  %1817 = vmatpush1.bf16.msra.mxu0 0
  %1818 = vmatprep.subr.bf16.mxu0 0
  %1819 = vmatpush1.bf16.msra.mxu0 0
  %1820 = vmatprep.subr.bf16.mxu0 0
  %1821 = vmatpush1.bf16.msra.mxu0 0
  %1822 = vmatprep.subr.bf16.mxu0 0
  %1823 = vmatpush1.bf16.msra.mxu0 0
  %1824 = vmatprep.subr.bf16.mxu0 0
  %1825 = vmatpush1.bf16.msra.mxu0 0
  %1826 = vmatprep.subr.bf16.mxu0 0
  %1827 = vmatpush1.bf16.msra.mxu0 0
  %1828 = vmatprep.subr.bf16.mxu0 0
  %1829 = vmatpush1.bf16.msra.mxu0 0
  %1830 = vmatprep.subr.bf16.mxu0 0
  %1831 = vmatpush1.bf16.msra.mxu0 0
  %1832 = vmatprep.subr.bf16.mxu0 0
  %1833 = vmatpush1.bf16.msra.mxu0 0
  %1834 = vmatprep.mubr.bf16.mxu0 0
  %1835 = vmatmul.mubr.bf16.gmra.mrb[0].mxu0 %v1794
  %v1836 = vpop.f32.mrb[0].mxu0
  %v1837 = vadd.f32 0.0, %v1836
  %v1838 = vpop.f32.mrb[0].mxu0
  %v1839 = vpop.f32.mrb[0].mxu0
  %v1840 = vadd.f32 0.0, %v1839
  %v1841 = vpop.f32.mrb[0].mxu0
  %1842 = vmatprep.mubr.bf16.mxu0 0
  %1843 = vmatmul.mubr.bf16.gmra.mrb[0].mxu0 %v1797
  %v1844 = vpop.f32.mrb[0].mxu0
  %v1845 = vadd.f32 0.0, %v1844
  %v1846 = vpop.f32.mrb[0].mxu0
  %v1847 = vpop.f32.mrb[0].mxu0
  %v1848 = vpop.f32.mrb[0].mxu0
  %1849 = vdwg.mxu0
  %1862 = vrot.lane.b32.xlu0 %v1651, 16
  %v1863 = vpop.permute.xlu0 %1862
  %1864 = vrot.lane.b32.xlu0 %v1654, 16
  %v1865 = vpop.permute.xlu0 %1864
  %1866 = vrot.lane.b32.xlu0 %v1659, 16
  %v1867 = vpop.permute.xlu0 %1866
  %1868 = vrot.lane.b32.xlu0 %v1713, 16
  %v1869 = vpop.permute.xlu0 %1868
  %1870 = vrot.lane.b32.xlu0 %v1716, 16
  %v1871 = vpop.permute.xlu0 %1870
  %1872 = vrot.lane.b32.xlu0 %v1721, 16
  %v1873 = vpop.permute.xlu0 %1872
  %1874 = vrot.lane.b32.xlu0 %v1775, 16
  %v1875 = vpop.permute.xlu0 %1874
  %1876 = vrot.lane.b32.xlu0 %v1778, 16
  %v1877 = vpop.permute.xlu0 %1876
  %1878 = vrot.lane.b32.xlu0 %v1783, 16
  %v1879 = vpop.permute.xlu0 %1878
  %1880 = vrot.lane.b32.xlu0 %v1837, 16
  %v1881 = vpop.permute.xlu0 %1880
  %1882 = vrot.lane.b32.xlu0 %v1840, 16
  %v1883 = vpop.permute.xlu0 %1882
  %1884 = vrot.lane.b32.xlu0 %v1845, 16
  %v1885 = vpop.permute.xlu0 %1884
  %v1898 = vsel %vm497, %v1403, %v1863
  %v1899 = vsel %vm497, %v1406, %v1865
  %v1900 = vsel %vm497, %v1411, %v1867
  %v1901 = vsel %vm497, %v1465, %v1869
  %v1902 = vsel %vm497, %v1468, %v1871
  %v1903 = vsel %vm497, %v1473, %v1873
  %v1904 = vsel %vm497, %v1527, %v1875
  %v1905 = vsel %vm497, %v1530, %v1877
  %v1906 = vsel %vm497, %v1535, %v1879
  %v1907 = vsel %vm497, %v1589, %v1881
  %v1908 = vsel %vm497, %v1592, %v1883
  %v1909 = vsel %vm497, %v1597, %v1885
  %v1910 = vpack.c.bf16 %v1899, %v1898
  %v1911 = vpack.c.bf16 %v1901, %v1900
  %v1912 = vpack.c.bf16 %v1903, %v1902
  %v1913 = vpack.c.bf16 %v1905, %v1904
  %v1914 = vpack.c.bf16 %v1907, %v1906
  %v1915 = vpack.c.bf16 %v1909, %v1908
  %v1917 = vlaneseq
  %v1918 = vshrl.u32 %v1917, 7
  %v1919 = vsub.s32 0, %v1918
  %v1920 = vrot.slane %v309, %v1919
  %v1926 = vunpack.c.l.b16 %v305
  %v1927 = vunpack.c.l.b16 %v306
  %v1928 = vunpack.c.l.b16 %v307
  %v1929 = vunpack.c.l.b16 %v308
  %v1930 = vpack.c.b16 %v1927, %v1926
  %v1931 = vpack.c.b16 %v1929, %v1928
  %v1935 = vsel %vm107, %v1910, 0
  %v1938 = vsel %vm107, %v1911, 0
  %v1941 = vsel %vm107, %v1912, 0
  %v1944 = vsel %vm107, %v1913, 0
  %v1947 = vsel %vm107, %v1914, 0
  %v1950 = vsel %vm107, %v1915, 0
  %1952 = vmatprep.subr.bf16.mxu0 0
  %1953 = vmatpush1.bf16.msra.mxu0 %v1930
  %1954 = vmatprep.subr.bf16.mxu0 0
  %1955 = vmatpush1.bf16.msra.mxu0 %v1931
  %1956 = vmatprep.subr.bf16.mxu0 0
  %1957 = vmatpush1.bf16.msra.mxu0 0
  %1958 = vmatprep.subr.bf16.mxu0 0
  %1959 = vmatpush1.bf16.msra.mxu0 0
  %1960 = vmatprep.subr.bf16.mxu0 0
  %1961 = vmatpush1.bf16.msra.mxu0 0
  %1962 = vmatprep.subr.bf16.mxu0 0
  %1963 = vmatpush1.bf16.msra.mxu0 0
  %1964 = vmatprep.subr.bf16.mxu0 0
  %1965 = vmatpush1.bf16.msra.mxu0 0
  %1966 = vmatprep.subr.bf16.mxu0 0
  %1967 = vmatpush1.bf16.msra.mxu0 0
  %1968 = vmatprep.subr.bf16.mxu0 0
  %1969 = vmatpush1.bf16.msra.mxu0 0
  %1970 = vmatprep.subr.bf16.mxu0 0
  %1971 = vmatpush1.bf16.msra.mxu0 0
  %1972 = vmatprep.subr.bf16.mxu0 0
  %1973 = vmatpush1.bf16.msra.mxu0 0
  %1974 = vmatprep.subr.bf16.mxu0 0
  %1975 = vmatpush1.bf16.msra.mxu0 0
  %1976 = vmatprep.subr.bf16.mxu0 0
  %1977 = vmatpush1.bf16.msra.mxu0 0
  %1978 = vmatprep.subr.bf16.mxu0 0
  %1979 = vmatpush1.bf16.msra.mxu0 0
  %1980 = vmatprep.subr.bf16.mxu0 0
  %1981 = vmatpush1.bf16.msra.mxu0 0
  %1982 = vmatprep.subr.bf16.mxu0 0
  %1983 = vmatpush1.bf16.msra.mxu0 0
  %1984 = vmatprep.mubr.bf16.mxu0 0
  %1985 = vmatmul.mubr.bf16.gmra.mrb[0].mxu0 %v1935
  %v1986 = vpop.f32.mrb[0].mxu0
  %v1987 = vadd.f32 %v1920, %v1986
  %v1988 = vpop.f32.mrb[0].mxu0
  %v1989 = vpop.f32.mrb[0].mxu0
  %v1990 = vadd.f32 %v1920, %v1989
  %v1991 = vpop.f32.mrb[0].mxu0
  %1992 = vmatprep.mubr.bf16.mxu0 0
  %1993 = vmatmul.mubr.bf16.gmra.mrb[0].mxu0 %v1938
  %v1994 = vpop.f32.mrb[0].mxu0
  %v1995 = vadd.f32 %v1920, %v1994
  %v1996 = vpop.f32.mrb[0].mxu0
  %v1997 = vpop.f32.mrb[0].mxu0
  %v1998 = vadd.f32 %v1920, %v1997
  %v1999 = vpop.f32.mrb[0].mxu0
  %2000 = vmatprep.mubr.bf16.mxu0 0
  %2001 = vmatmul.mubr.bf16.gmra.mrb[0].mxu0 %v1941
  %v2002 = vpop.f32.mrb[0].mxu0
  %v2003 = vadd.f32 %v1920, %v2002
  %v2004 = vpop.f32.mrb[0].mxu0
  %v2005 = vpop.f32.mrb[0].mxu0
  %v2006 = vadd.f32 %v1920, %v2005
  %v2007 = vpop.f32.mrb[0].mxu0
  %2008 = vmatprep.mubr.bf16.mxu0 0
  %2009 = vmatmul.mubr.bf16.gmra.mrb[0].mxu0 %v1944
  %v2010 = vpop.f32.mrb[0].mxu0
  %v2011 = vadd.f32 %v1920, %v2010
  %v2012 = vpop.f32.mrb[0].mxu0
  %v2013 = vpop.f32.mrb[0].mxu0
  %v2014 = vadd.f32 %v1920, %v2013
  %v2015 = vpop.f32.mrb[0].mxu0
  %2016 = vmatprep.mubr.bf16.mxu0 0
  %2017 = vmatmul.mubr.bf16.gmra.mrb[0].mxu0 %v1947
  %v2018 = vpop.f32.mrb[0].mxu0
  %v2019 = vadd.f32 %v1920, %v2018
  %v2020 = vpop.f32.mrb[0].mxu0
  %v2021 = vpop.f32.mrb[0].mxu0
  %v2022 = vadd.f32 %v1920, %v2021
  %v2023 = vpop.f32.mrb[0].mxu0
  %2024 = vmatprep.mubr.bf16.mxu0 0
  %2025 = vmatmul.mubr.bf16.gmra.mrb[0].mxu0 %v1950
  %v2026 = vpop.f32.mrb[0].mxu0
  %v2027 = vadd.f32 %v1920, %v2026
  %v2028 = vpop.f32.mrb[0].mxu0
  %v2029 = vpop.f32.mrb[0].mxu0
  %v2030 = vadd.f32 %v1920, %v2029
  %v2031 = vpop.f32.mrb[0].mxu0
  %2032 = vdwg.mxu0
  %v2033 = vadd.f32 %v93, %v1987
  %v2034 = vadd.f32 %v94, %v1990
  %v2035 = vadd.f32 %v95, %v1995
  %v2036 = vadd.f32 %v96, %v1998
  %v2037 = vadd.f32 %v97, %v2003
  %v2038 = vadd.f32 %v98, %v2006
  %v2039 = vadd.f32 %v99, %v2011
  %v2040 = vadd.f32 %v100, %v2014
  %v2041 = vadd.f32 %v101, %v2019
  %v2042 = vadd.f32 %v102, %v2022
  %v2043 = vadd.f32 %v103, %v2027
  %v2044 = vadd.f32 %v104, %v2030
  %v2045 = vld [vmem:[%s7] sm:$0x1]
  %v2046 = vld [vmem:[%s8] sm:$0x1]
  %v2047 = vsel %vm107, %v2033, 0.0
  %2048 = vadd.xlane.f32.xlu0 %v2047
  %v2049 = vpop.xlane.xlu0 %2048
  %v2050 = vsel %vm107, %v2034, 0.0
  %2051 = vadd.xlane.f32.xlu0 %v2050
  %v2052 = vpop.xlane.xlu0 %2051
  %v2053 = vsel %vm107, %v2035, 0.0
  %2054 = vadd.xlane.f32.xlu0 %v2053
  %v2055 = vpop.xlane.xlu0 %2054
  %v2056 = vsel %vm107, %v2036, 0.0
  %2057 = vadd.xlane.f32.xlu0 %v2056
  %v2058 = vpop.xlane.xlu0 %2057
  %v2059 = vsel %vm107, %v2037, 0.0
  %2060 = vadd.xlane.f32.xlu0 %v2059
  %v2061 = vpop.xlane.xlu0 %2060
  %v2062 = vsel %vm107, %v2038, 0.0
  %2063 = vadd.xlane.f32.xlu0 %v2062
  %v2064 = vpop.xlane.xlu0 %2063
  %v2065 = vsel %vm107, %v2039, 0.0
  %2066 = vadd.xlane.f32.xlu0 %v2065
  %v2067 = vpop.xlane.xlu0 %2066
  %v2068 = vsel %vm107, %v2040, 0.0
  %2069 = vadd.xlane.f32.xlu0 %v2068
  %v2070 = vpop.xlane.xlu0 %2069
  %v2071 = vsel %vm107, %v2041, 0.0
  %2072 = vadd.xlane.f32.xlu0 %v2071
  %v2073 = vpop.xlane.xlu0 %2072
  %v2074 = vsel %vm107, %v2042, 0.0
  %2075 = vadd.xlane.f32.xlu0 %v2074
  %v2076 = vpop.xlane.xlu0 %2075
  %v2077 = vsel %vm107, %v2043, 0.0
  %2078 = vadd.xlane.f32.xlu0 %v2077
  %v2079 = vpop.xlane.xlu0 %2078
  %v2080 = vsel %vm107, %v2044, 0.0
  %2081 = vadd.xlane.f32.xlu0 %v2080
  %v2082 = vpop.xlane.xlu0 %2081
  %v2083 = vmul.f32 %v2049, %v144
  %v2084 = vmul.f32 %v2052, %v144
  %v2085 = vmul.f32 %v2055, %v144
  %v2086 = vmul.f32 %v2058, %v144
  %v2087 = vmul.f32 %v2061, %v144
  %v2088 = vmul.f32 %v2064, %v144
  %v2089 = vmul.f32 %v2067, %v144
  %v2090 = vmul.f32 %v2070, %v144
  %v2091 = vmul.f32 %v2073, %v144
  %v2092 = vmul.f32 %v2076, %v144
  %v2093 = vmul.f32 %v2079, %v144
  %v2094 = vmul.f32 %v2082, %v144
  %v2095 = vsub.f32 %v2033, %v2083
  %v2096 = vsub.f32 %v2034, %v2084
  %v2097 = vsub.f32 %v2035, %v2085
  %v2098 = vsub.f32 %v2036, %v2086
  %v2099 = vsub.f32 %v2037, %v2087
  %v2100 = vsub.f32 %v2038, %v2088
  %v2101 = vsub.f32 %v2039, %v2089
  %v2102 = vsub.f32 %v2040, %v2090
  %v2103 = vsub.f32 %v2041, %v2091
  %v2104 = vsub.f32 %v2042, %v2092
  %v2105 = vsub.f32 %v2043, %v2093
  %v2106 = vsub.f32 %v2044, %v2094
  %v2107 = vmul.f32 %v2095, %v2095
  %v2108 = vmul.f32 %v2096, %v2096
  %v2109 = vmul.f32 %v2097, %v2097
  %v2110 = vmul.f32 %v2098, %v2098
  %v2111 = vmul.f32 %v2099, %v2099
  %v2112 = vmul.f32 %v2100, %v2100
  %v2113 = vmul.f32 %v2101, %v2101
  %v2114 = vmul.f32 %v2102, %v2102
  %v2115 = vmul.f32 %v2103, %v2103
  %v2116 = vmul.f32 %v2104, %v2104
  %v2117 = vmul.f32 %v2105, %v2105
  %v2118 = vmul.f32 %v2106, %v2106
  %v2119 = vsel %vm107, %v2107, 0.0
  %2120 = vadd.xlane.f32.xlu0 %v2119
  %v2121 = vpop.xlane.xlu0 %2120
  %v2122 = vsel %vm107, %v2108, 0.0
  %2123 = vadd.xlane.f32.xlu0 %v2122
  %v2124 = vpop.xlane.xlu0 %2123
  %v2125 = vsel %vm107, %v2109, 0.0
  %2126 = vadd.xlane.f32.xlu0 %v2125
  %v2127 = vpop.xlane.xlu0 %2126
  %v2128 = vsel %vm107, %v2110, 0.0
  %2129 = vadd.xlane.f32.xlu0 %v2128
  %v2130 = vpop.xlane.xlu0 %2129
  %v2131 = vsel %vm107, %v2111, 0.0
  %2132 = vadd.xlane.f32.xlu0 %v2131
  %v2133 = vpop.xlane.xlu0 %2132
  %v2134 = vsel %vm107, %v2112, 0.0
  %2135 = vadd.xlane.f32.xlu0 %v2134
  %v2136 = vpop.xlane.xlu0 %2135
  %v2137 = vsel %vm107, %v2113, 0.0
  %2138 = vadd.xlane.f32.xlu0 %v2137
  %v2139 = vpop.xlane.xlu0 %2138
  %v2140 = vsel %vm107, %v2114, 0.0
  %2141 = vadd.xlane.f32.xlu0 %v2140
  %v2142 = vpop.xlane.xlu0 %2141
  %v2143 = vsel %vm107, %v2115, 0.0
  %2144 = vadd.xlane.f32.xlu0 %v2143
  %v2145 = vpop.xlane.xlu0 %2144
  %v2146 = vsel %vm107, %v2116, 0.0
  %2147 = vadd.xlane.f32.xlu0 %v2146
  %v2148 = vpop.xlane.xlu0 %2147
  %v2149 = vsel %vm107, %v2117, 0.0
  %2150 = vadd.xlane.f32.xlu0 %v2149
  %v2151 = vpop.xlane.xlu0 %2150
  %v2152 = vsel %vm107, %v2118, 0.0
  %2153 = vadd.xlane.f32.xlu0 %v2152
  %v2154 = vpop.xlane.xlu0 %2153
  %v2155 = vmul.f32 %v2121, %v144
  %v2156 = vmul.f32 %v2124, %v144
  %v2157 = vmul.f32 %v2127, %v144
  %v2158 = vmul.f32 %v2130, %v144
  %v2159 = vmul.f32 %v2133, %v144
  %v2160 = vmul.f32 %v2136, %v144
  %v2161 = vmul.f32 %v2139, %v144
  %v2162 = vmul.f32 %v2142, %v144
  %v2163 = vmul.f32 %v2145, %v144
  %v2164 = vmul.f32 %v2148, %v144
  %v2165 = vmul.f32 %v2151, %v144
  %v2166 = vmul.f32 %v2154, %v144
  %v2167 = vadd.f32 %v2155, 1e-05
  %v2168 = vadd.f32 %v2156, 1e-05
  %v2169 = vadd.f32 %v2157, 1e-05
  %v2170 = vadd.f32 %v2158, 1e-05
  %v2171 = vadd.f32 %v2159, 1e-05
  %v2172 = vadd.f32 %v2160, 1e-05
  %v2173 = vadd.f32 %v2161, 1e-05
  %v2174 = vadd.f32 %v2162, 1e-05
  %v2175 = vadd.f32 %v2163, 1e-05
  %v2176 = vadd.f32 %v2164, 1e-05
  %v2177 = vadd.f32 %v2165, 1e-05
  %v2178 = vadd.f32 %v2166, 1e-05
  %v2179 = vrsqrt.pop %v2167
  %v2180 = vrsqrt.pop %v2168
  %v2181 = vrsqrt.pop %v2169
  %v2182 = vrsqrt.pop %v2170
  %v2183 = vrsqrt.pop %v2171
  %v2184 = vrsqrt.pop %v2172
  %v2185 = vrsqrt.pop %v2173
  %v2186 = vrsqrt.pop %v2174
  %v2187 = vrsqrt.pop %v2175
  %v2188 = vrsqrt.pop %v2176
  %v2189 = vrsqrt.pop %v2177
  %v2190 = vrsqrt.pop %v2178
  %v2191 = vmul.f32 %v2095, %v2179
  %v2192 = vmul.f32 %v2096, %v2180
  %v2193 = vmul.f32 %v2097, %v2181
  %v2194 = vmul.f32 %v2098, %v2182
  %v2195 = vmul.f32 %v2099, %v2183
  %v2196 = vmul.f32 %v2100, %v2184
  %v2197 = vmul.f32 %v2101, %v2185
  %v2198 = vmul.f32 %v2102, %v2186
  %v2199 = vmul.f32 %v2103, %v2187
  %v2200 = vmul.f32 %v2104, %v2188
  %v2201 = vmul.f32 %v2105, %v2189
  %v2202 = vmul.f32 %v2106, %v2190
  %v2204 = vlaneseq
  %v2205 = vshrl.u32 %v2204, 7
  %v2206 = vsub.s32 0, %v2205
  %v2207 = vrot.slane %v2045, %v2206
  %v2209 = vmul.f32 %v2191, %v2207
  %v2210 = vmul.f32 %v2192, %v2207
  %v2211 = vmul.f32 %v2193, %v2207
  %v2212 = vmul.f32 %v2194, %v2207
  %v2213 = vmul.f32 %v2195, %v2207
  %v2214 = vmul.f32 %v2196, %v2207
  %v2215 = vmul.f32 %v2197, %v2207
  %v2216 = vmul.f32 %v2198, %v2207
  %v2217 = vmul.f32 %v2199, %v2207
  %v2218 = vmul.f32 %v2200, %v2207
  %v2219 = vmul.f32 %v2201, %v2207
  %v2220 = vmul.f32 %v2202, %v2207
  %v2222 = vlaneseq
  %v2223 = vshrl.u32 %v2222, 7
  %v2224 = vsub.s32 0, %v2223
  %v2225 = vrot.slane %v2046, %v2224
  %v2227 = vadd.f32 %v2209, %v2225
  %v2228 = vadd.f32 %v2210, %v2225
  %v2229 = vadd.f32 %v2211, %v2225
  %v2230 = vadd.f32 %v2212, %v2225
  %v2231 = vadd.f32 %v2213, %v2225
  %v2232 = vadd.f32 %v2214, %v2225
  %v2233 = vadd.f32 %v2215, %v2225
  %v2234 = vadd.f32 %v2216, %v2225
  %v2235 = vadd.f32 %v2217, %v2225
  %v2236 = vadd.f32 %v2218, %v2225
  %v2237 = vadd.f32 %v2219, %v2225
  %v2238 = vadd.f32 %v2220, %v2225
  %v2239 = vpack.c.bf16 %v2228, %v2227
  %v2240 = vpack.c.bf16 %v2230, %v2229
  %v2241 = vpack.c.bf16 %v2232, %v2231
  %v2242 = vpack.c.bf16 %v2234, %v2233
  %v2243 = vpack.c.bf16 %v2236, %v2235
  %v2244 = vpack.c.bf16 %v2238, %v2237
  %v2245 = vld [vmem:[%s9] sm:$0xf]
  %v2246 = vld [vmem:[%s9 + $0x4] sm:$0xf]
  %v2247 = vld [vmem:[%s9 + $0x8] sm:$0xf]
  %v2248 = vld [vmem:[%s9 + $0xc] sm:$0xf]
  %v2249 = vld [vmem:[%s10] sm:$0x1]
  %v2251 = vlaneseq
  %v2252 = vshrl.u32 %v2251, 7
  %v2253 = vsub.s32 0, %v2252
  %v2254 = vrot.slane %v2249, %v2253
  %v2260 = vunpack.c.l.b16 %v2245
  %v2261 = vunpack.c.l.b16 %v2246
  %v2262 = vunpack.c.l.b16 %v2247
  %v2263 = vunpack.c.l.b16 %v2248
  %v2264 = vpack.c.b16 %v2261, %v2260
  %v2265 = vpack.c.b16 %v2263, %v2262
  %v2269 = vsel %vm107, %v2239, 0
  %v2272 = vsel %vm107, %v2240, 0
  %v2275 = vsel %vm107, %v2241, 0
  %v2278 = vsel %vm107, %v2242, 0
  %v2281 = vsel %vm107, %v2243, 0
  %v2284 = vsel %vm107, %v2244, 0
  %2286 = vmatprep.subr.bf16.mxu0 0
  %2287 = vmatpush1.bf16.msra.mxu0 %v2264
  %2288 = vmatprep.subr.bf16.mxu0 0
  %2289 = vmatpush1.bf16.msra.mxu0 %v2265
  %2290 = vmatprep.subr.bf16.mxu0 0
  %2291 = vmatpush1.bf16.msra.mxu0 0
  %2292 = vmatprep.subr.bf16.mxu0 0
  %2293 = vmatpush1.bf16.msra.mxu0 0
  %2294 = vmatprep.subr.bf16.mxu0 0
  %2295 = vmatpush1.bf16.msra.mxu0 0
  %2296 = vmatprep.subr.bf16.mxu0 0
  %2297 = vmatpush1.bf16.msra.mxu0 0
  %2298 = vmatprep.subr.bf16.mxu0 0
  %2299 = vmatpush1.bf16.msra.mxu0 0
  %2300 = vmatprep.subr.bf16.mxu0 0
  %2301 = vmatpush1.bf16.msra.mxu0 0
  %2302 = vmatprep.subr.bf16.mxu0 0
  %2303 = vmatpush1.bf16.msra.mxu0 0
  %2304 = vmatprep.subr.bf16.mxu0 0
  %2305 = vmatpush1.bf16.msra.mxu0 0
  %2306 = vmatprep.subr.bf16.mxu0 0
  %2307 = vmatpush1.bf16.msra.mxu0 0
  %2308 = vmatprep.subr.bf16.mxu0 0
  %2309 = vmatpush1.bf16.msra.mxu0 0
  %2310 = vmatprep.subr.bf16.mxu0 0
  %2311 = vmatpush1.bf16.msra.mxu0 0
  %2312 = vmatprep.subr.bf16.mxu0 0
  %2313 = vmatpush1.bf16.msra.mxu0 0
  %2314 = vmatprep.subr.bf16.mxu0 0
  %2315 = vmatpush1.bf16.msra.mxu0 0
  %2316 = vmatprep.subr.bf16.mxu0 0
  %2317 = vmatpush1.bf16.msra.mxu0 0
  %2318 = vmatprep.mubr.bf16.mxu0 0
  %2319 = vmatmul.mubr.bf16.gmra.mrb[0].mxu0 %v2269
  %v2320 = vpop.f32.mrb[0].mxu0
  %v2321 = vadd.f32 %v2254, %v2320
  %v2322 = vpop.f32.mrb[0].mxu0
  %v2323 = vpop.f32.mrb[0].mxu0
  %v2324 = vadd.f32 %v2254, %v2323
  %v2325 = vpop.f32.mrb[0].mxu0
  %2326 = vmatprep.mubr.bf16.mxu0 0
  %2327 = vmatmul.mubr.bf16.gmra.mrb[0].mxu0 %v2272
  %v2328 = vpop.f32.mrb[0].mxu0
  %v2329 = vadd.f32 %v2254, %v2328
  %v2330 = vpop.f32.mrb[0].mxu0
  %v2331 = vpop.f32.mrb[0].mxu0
  %v2332 = vadd.f32 %v2254, %v2331
  %v2333 = vpop.f32.mrb[0].mxu0
  %2334 = vmatprep.mubr.bf16.mxu0 0
  %2335 = vmatmul.mubr.bf16.gmra.mrb[0].mxu0 %v2275
  %v2336 = vpop.f32.mrb[0].mxu0
  %v2337 = vadd.f32 %v2254, %v2336
  %v2338 = vpop.f32.mrb[0].mxu0
  %v2339 = vpop.f32.mrb[0].mxu0
  %v2340 = vadd.f32 %v2254, %v2339
  %v2341 = vpop.f32.mrb[0].mxu0
  %2342 = vmatprep.mubr.bf16.mxu0 0
  %2343 = vmatmul.mubr.bf16.gmra.mrb[0].mxu0 %v2278
  %v2344 = vpop.f32.mrb[0].mxu0
  %v2345 = vadd.f32 %v2254, %v2344
  %v2346 = vpop.f32.mrb[0].mxu0
  %v2347 = vpop.f32.mrb[0].mxu0
  %v2348 = vadd.f32 %v2254, %v2347
  %v2349 = vpop.f32.mrb[0].mxu0
  %2350 = vmatprep.mubr.bf16.mxu0 0
  %2351 = vmatmul.mubr.bf16.gmra.mrb[0].mxu0 %v2281
  %v2352 = vpop.f32.mrb[0].mxu0
  %v2353 = vadd.f32 %v2254, %v2352
  %v2354 = vpop.f32.mrb[0].mxu0
  %v2355 = vpop.f32.mrb[0].mxu0
  %v2356 = vadd.f32 %v2254, %v2355
  %v2357 = vpop.f32.mrb[0].mxu0
  %2358 = vmatprep.mubr.bf16.mxu0 0
  %2359 = vmatmul.mubr.bf16.gmra.mrb[0].mxu0 %v2284
  %v2360 = vpop.f32.mrb[0].mxu0
  %v2361 = vadd.f32 %v2254, %v2360
  %v2362 = vpop.f32.mrb[0].mxu0
  %v2363 = vpop.f32.mrb[0].mxu0
  %v2364 = vadd.f32 %v2254, %v2363
  %v2365 = vpop.f32.mrb[0].mxu0
  %2366 = vdwg.mxu0
  %v2367 = vmul.f32 %v2321, 0.5
  %v2368 = vmul.f32 %v2324, 0.5
  %v2369 = vmul.f32 %v2329, 0.5
  %v2370 = vmul.f32 %v2332, 0.5
  %v2371 = vmul.f32 %v2337, 0.5
  %v2372 = vmul.f32 %v2340, 0.5
  %v2373 = vmul.f32 %v2345, 0.5
  %v2374 = vmul.f32 %v2348, 0.5
  %v2375 = vmul.f32 %v2353, 0.5
  %v2376 = vmul.f32 %v2356, 0.5
  %v2377 = vmul.f32 %v2361, 0.5
  %v2378 = vmul.f32 %v2364, 0.5
  %v2379 = vmul.f32 %v2321, 0.70710677
  %v2380 = vmul.f32 %v2324, 0.70710677
  %v2381 = vmul.f32 %v2329, 0.70710677
  %v2382 = vmul.f32 %v2332, 0.70710677
  %v2383 = vmul.f32 %v2337, 0.70710677
  %v2384 = vmul.f32 %v2340, 0.70710677
  %v2385 = vmul.f32 %v2345, 0.70710677
  %v2386 = vmul.f32 %v2348, 0.70710677
  %v2387 = vmul.f32 %v2353, 0.70710677
  %v2388 = vmul.f32 %v2356, 0.70710677
  %v2389 = vmul.f32 %v2361, 0.70710677
  %v2390 = vmul.f32 %v2364, 0.70710677
  %v2391 = vand.u32 2147483647, %v2379
  %v2392 = vand.u32 2147483647, %v2380
  %v2393 = vand.u32 2147483647, %v2381
  %v2394 = vand.u32 2147483647, %v2382
  %v2395 = vand.u32 2147483647, %v2383
  %v2396 = vand.u32 2147483647, %v2384
  %v2397 = vand.u32 2147483647, %v2385
  %v2398 = vand.u32 2147483647, %v2386
  %v2399 = vand.u32 2147483647, %v2387
  %v2400 = vand.u32 2147483647, %v2388
  %v2401 = vand.u32 2147483647, %v2389
  %v2402 = vand.u32 2147483647, %v2390
  %v2403 = vmul.f32 %v2391, 0.3275911
  %v2404 = vmul.f32 %v2392, 0.3275911
  %v2405 = vmul.f32 %v2393, 0.3275911
  %v2406 = vmul.f32 %v2394, 0.3275911
  %v2407 = vmul.f32 %v2395, 0.3275911
  %v2408 = vmul.f32 %v2396, 0.3275911
  %v2409 = vmul.f32 %v2397, 0.3275911
  %v2410 = vmul.f32 %v2398, 0.3275911
  %v2411 = vmul.f32 %v2399, 0.3275911
  %v2412 = vmul.f32 %v2400, 0.3275911
  %v2413 = vmul.f32 %v2401, 0.3275911
  %v2414 = vmul.f32 %v2402, 0.3275911
  %v2415 = vadd.f32 %v2403, 1.0
  %v2416 = vadd.f32 %v2404, 1.0
  %v2417 = vadd.f32 %v2405, 1.0
  %v2418 = vadd.f32 %v2406, 1.0
  %v2419 = vadd.f32 %v2407, 1.0
  %v2420 = vadd.f32 %v2408, 1.0
  %v2421 = vadd.f32 %v2409, 1.0
  %v2422 = vadd.f32 %v2410, 1.0
  %v2423 = vadd.f32 %v2411, 1.0
  %v2424 = vadd.f32 %v2412, 1.0
  %v2425 = vadd.f32 %v2413, 1.0
  %v2426 = vadd.f32 %v2414, 1.0
  %v2427 = vrcp.pop %v2415
  %v2428 = vmul.f32 1.0, %v2427
  %v2429 = vrcp.pop %v2416
  %v2430 = vmul.f32 1.0, %v2429
  %v2431 = vrcp.pop %v2417
  %v2432 = vmul.f32 1.0, %v2431
  %v2433 = vrcp.pop %v2418
  %v2434 = vmul.f32 1.0, %v2433
  %v2435 = vrcp.pop %v2419
  %v2436 = vmul.f32 1.0, %v2435
  %v2437 = vrcp.pop %v2420
  %v2438 = vmul.f32 1.0, %v2437
  %v2439 = vrcp.pop %v2421
  %v2440 = vmul.f32 1.0, %v2439
  %v2441 = vrcp.pop %v2422
  %v2442 = vmul.f32 1.0, %v2441
  %v2443 = vrcp.pop %v2423
  %v2444 = vmul.f32 1.0, %v2443
  %v2445 = vrcp.pop %v2424
  %v2446 = vmul.f32 1.0, %v2445
  %v2447 = vrcp.pop %v2425
  %v2448 = vmul.f32 1.0, %v2447
  %v2449 = vrcp.pop %v2426
  %v2450 = vmul.f32 1.0, %v2449
  %v2451 = vmul.f32 %v2428, 1.0614054
  %v2452 = vmul.f32 %v2430, 1.0614054
  %v2453 = vmul.f32 %v2432, 1.0614054
  %v2454 = vmul.f32 %v2434, 1.0614054
  %v2455 = vmul.f32 %v2436, 1.0614054
  %v2456 = vmul.f32 %v2438, 1.0614054
  %v2457 = vmul.f32 %v2440, 1.0614054
  %v2458 = vmul.f32 %v2442, 1.0614054
  %v2459 = vmul.f32 %v2444, 1.0614054
  %v2460 = vmul.f32 %v2446, 1.0614054
  %v2461 = vmul.f32 %v2448, 1.0614054
  %v2462 = vmul.f32 %v2450, 1.0614054
  %v2463 = vadd.f32 %v2451, -1.4531521
  %v2464 = vadd.f32 %v2452, -1.4531521
  %v2465 = vadd.f32 %v2453, -1.4531521
  %v2466 = vadd.f32 %v2454, -1.4531521
  %v2467 = vadd.f32 %v2455, -1.4531521
  %v2468 = vadd.f32 %v2456, -1.4531521
  %v2469 = vadd.f32 %v2457, -1.4531521
  %v2470 = vadd.f32 %v2458, -1.4531521
  %v2471 = vadd.f32 %v2459, -1.4531521
  %v2472 = vadd.f32 %v2460, -1.4531521
  %v2473 = vadd.f32 %v2461, -1.4531521
  %v2474 = vadd.f32 %v2462, -1.4531521
  %v2475 = vmul.f32 %v2463, %v2428
  %v2476 = vmul.f32 %v2464, %v2430
  %v2477 = vmul.f32 %v2465, %v2432
  %v2478 = vmul.f32 %v2466, %v2434
  %v2479 = vmul.f32 %v2467, %v2436
  %v2480 = vmul.f32 %v2468, %v2438
  %v2481 = vmul.f32 %v2469, %v2440
  %v2482 = vmul.f32 %v2470, %v2442
  %v2483 = vmul.f32 %v2471, %v2444
  %v2484 = vmul.f32 %v2472, %v2446
  %v2485 = vmul.f32 %v2473, %v2448
  %v2486 = vmul.f32 %v2474, %v2450
  %v2487 = vadd.f32 %v2475, 1.4214138
  %v2488 = vadd.f32 %v2476, 1.4214138
  %v2489 = vadd.f32 %v2477, 1.4214138
  %v2490 = vadd.f32 %v2478, 1.4214138
  %v2491 = vadd.f32 %v2479, 1.4214138
  %v2492 = vadd.f32 %v2480, 1.4214138
  %v2493 = vadd.f32 %v2481, 1.4214138
  %v2494 = vadd.f32 %v2482, 1.4214138
  %v2495 = vadd.f32 %v2483, 1.4214138
  %v2496 = vadd.f32 %v2484, 1.4214138
  %v2497 = vadd.f32 %v2485, 1.4214138
  %v2498 = vadd.f32 %v2486, 1.4214138
  %v2499 = vmul.f32 %v2487, %v2428
  %v2500 = vmul.f32 %v2488, %v2430
  %v2501 = vmul.f32 %v2489, %v2432
  %v2502 = vmul.f32 %v2490, %v2434
  %v2503 = vmul.f32 %v2491, %v2436
  %v2504 = vmul.f32 %v2492, %v2438
  %v2505 = vmul.f32 %v2493, %v2440
  %v2506 = vmul.f32 %v2494, %v2442
  %v2507 = vmul.f32 %v2495, %v2444
  %v2508 = vmul.f32 %v2496, %v2446
  %v2509 = vmul.f32 %v2497, %v2448
  %v2510 = vmul.f32 %v2498, %v2450
  %v2511 = vadd.f32 %v2499, -0.28449672
  %v2512 = vadd.f32 %v2500, -0.28449672
  %v2513 = vadd.f32 %v2501, -0.28449672
  %v2514 = vadd.f32 %v2502, -0.28449672
  %v2515 = vadd.f32 %v2503, -0.28449672
  %v2516 = vadd.f32 %v2504, -0.28449672
  %v2517 = vadd.f32 %v2505, -0.28449672
  %v2518 = vadd.f32 %v2506, -0.28449672
  %v2519 = vadd.f32 %v2507, -0.28449672
  %v2520 = vadd.f32 %v2508, -0.28449672
  %v2521 = vadd.f32 %v2509, -0.28449672
  %v2522 = vadd.f32 %v2510, -0.28449672
  %v2523 = vmul.f32 %v2511, %v2428
  %v2524 = vmul.f32 %v2512, %v2430
  %v2525 = vmul.f32 %v2513, %v2432
  %v2526 = vmul.f32 %v2514, %v2434
  %v2527 = vmul.f32 %v2515, %v2436
  %v2528 = vmul.f32 %v2516, %v2438
  %v2529 = vmul.f32 %v2517, %v2440
  %v2530 = vmul.f32 %v2518, %v2442
  %v2531 = vmul.f32 %v2519, %v2444
  %v2532 = vmul.f32 %v2520, %v2446
  %v2533 = vmul.f32 %v2521, %v2448
  %v2534 = vmul.f32 %v2522, %v2450
  %v2535 = vadd.f32 %v2523, 0.2548296
  %v2536 = vadd.f32 %v2524, 0.2548296
  %v2537 = vadd.f32 %v2525, 0.2548296
  %v2538 = vadd.f32 %v2526, 0.2548296
  %v2539 = vadd.f32 %v2527, 0.2548296
  %v2540 = vadd.f32 %v2528, 0.2548296
  %v2541 = vadd.f32 %v2529, 0.2548296
  %v2542 = vadd.f32 %v2530, 0.2548296
  %v2543 = vadd.f32 %v2531, 0.2548296
  %v2544 = vadd.f32 %v2532, 0.2548296
  %v2545 = vadd.f32 %v2533, 0.2548296
  %v2546 = vadd.f32 %v2534, 0.2548296
  %v2547 = vmul.f32 %v2535, %v2428
  %v2548 = vmul.f32 %v2536, %v2430
  %v2549 = vmul.f32 %v2537, %v2432
  %v2550 = vmul.f32 %v2538, %v2434
  %v2551 = vmul.f32 %v2539, %v2436
  %v2552 = vmul.f32 %v2540, %v2438
  %v2553 = vmul.f32 %v2541, %v2440
  %v2554 = vmul.f32 %v2542, %v2442
  %v2555 = vmul.f32 %v2543, %v2444
  %v2556 = vmul.f32 %v2544, %v2446
  %v2557 = vmul.f32 %v2545, %v2448
  %v2558 = vmul.f32 %v2546, %v2450
  %v2559 = vsub.f32 0.0, %v2391
  %v2560 = vsub.f32 0.0, %v2392
  %v2561 = vsub.f32 0.0, %v2393
  %v2562 = vsub.f32 0.0, %v2394
  %v2563 = vsub.f32 0.0, %v2395
  %v2564 = vsub.f32 0.0, %v2396
  %v2565 = vsub.f32 0.0, %v2397
  %v2566 = vsub.f32 0.0, %v2398
  %v2567 = vsub.f32 0.0, %v2399
  %v2568 = vsub.f32 0.0, %v2400
  %v2569 = vsub.f32 0.0, %v2401
  %v2570 = vsub.f32 0.0, %v2402
  %v2571 = vmul.f32 %v2559, %v2391
  %v2572 = vmul.f32 %v2560, %v2392
  %v2573 = vmul.f32 %v2561, %v2393
  %v2574 = vmul.f32 %v2562, %v2394
  %v2575 = vmul.f32 %v2563, %v2395
  %v2576 = vmul.f32 %v2564, %v2396
  %v2577 = vmul.f32 %v2565, %v2397
  %v2578 = vmul.f32 %v2566, %v2398
  %v2579 = vmul.f32 %v2567, %v2399
  %v2580 = vmul.f32 %v2568, %v2400
  %v2581 = vmul.f32 %v2569, %v2401
  %v2582 = vmul.f32 %v2570, %v2402
  %v2583 = vmul.f32 %v2571, 1.442695
  %v2584 = vpow.pop %v2583
  %v2585 = vmul.f32 %v2572, 1.442695
  %v2586 = vpow.pop %v2585
  %v2587 = vmul.f32 %v2573, 1.442695
  %v2588 = vpow.pop %v2587
  %v2589 = vmul.f32 %v2574, 1.442695
  %v2590 = vpow.pop %v2589
  %v2591 = vmul.f32 %v2575, 1.442695
  %v2592 = vpow.pop %v2591
  %v2593 = vmul.f32 %v2576, 1.442695
  %v2594 = vpow.pop %v2593
  %v2595 = vmul.f32 %v2577, 1.442695
  %v2596 = vpow.pop %v2595
  %v2597 = vmul.f32 %v2578, 1.442695
  %v2598 = vpow.pop %v2597
  %v2599 = vmul.f32 %v2579, 1.442695
  %v2600 = vpow.pop %v2599
  %v2601 = vmul.f32 %v2580, 1.442695
  %v2602 = vpow.pop %v2601
  %v2603 = vmul.f32 %v2581, 1.442695
  %v2604 = vpow.pop %v2603
  %v2605 = vmul.f32 %v2582, 1.442695
  %v2606 = vpow.pop %v2605
  %v2607 = vmul.f32 %v2547, %v2584
  %v2608 = vmul.f32 %v2548, %v2586
  %v2609 = vmul.f32 %v2549, %v2588
  %v2610 = vmul.f32 %v2550, %v2590
  %v2611 = vmul.f32 %v2551, %v2592
  %v2612 = vmul.f32 %v2552, %v2594
  %v2613 = vmul.f32 %v2553, %v2596
  %v2614 = vmul.f32 %v2554, %v2598
  %v2615 = vmul.f32 %v2555, %v2600
  %v2616 = vmul.f32 %v2556, %v2602
  %v2617 = vmul.f32 %v2557, %v2604
  %v2618 = vmul.f32 %v2558, %v2606
  %v2619 = vsub.f32 1.0, %v2607
  %v2620 = vsub.f32 1.0, %v2608
  %v2621 = vsub.f32 1.0, %v2609
  %v2622 = vsub.f32 1.0, %v2610
  %v2623 = vsub.f32 1.0, %v2611
  %v2624 = vsub.f32 1.0, %v2612
  %v2625 = vsub.f32 1.0, %v2613
  %v2626 = vsub.f32 1.0, %v2614
  %v2627 = vsub.f32 1.0, %v2615
  %v2628 = vsub.f32 1.0, %v2616
  %v2629 = vsub.f32 1.0, %v2617
  %v2630 = vsub.f32 1.0, %v2618
  %vm2631 = vcmp.ge.f32.partialorder %v2379, 0.0
  %vm2632 = vcmp.ge.f32.partialorder %v2380, 0.0
  %vm2633 = vcmp.ge.f32.partialorder %v2381, 0.0
  %vm2634 = vcmp.ge.f32.partialorder %v2382, 0.0
  %vm2635 = vcmp.ge.f32.partialorder %v2383, 0.0
  %vm2636 = vcmp.ge.f32.partialorder %v2384, 0.0
  %vm2637 = vcmp.ge.f32.partialorder %v2385, 0.0
  %vm2638 = vcmp.ge.f32.partialorder %v2386, 0.0
  %vm2639 = vcmp.ge.f32.partialorder %v2387, 0.0
  %vm2640 = vcmp.ge.f32.partialorder %v2388, 0.0
  %vm2641 = vcmp.ge.f32.partialorder %v2389, 0.0
  %vm2642 = vcmp.ge.f32.partialorder %v2390, 0.0
  %v2643 = vsub.f32 0.0, %v2619
  %v2644 = vsub.f32 0.0, %v2620
  %v2645 = vsub.f32 0.0, %v2621
  %v2646 = vsub.f32 0.0, %v2622
  %v2647 = vsub.f32 0.0, %v2623
  %v2648 = vsub.f32 0.0, %v2624
  %v2649 = vsub.f32 0.0, %v2625
  %v2650 = vsub.f32 0.0, %v2626
  %v2651 = vsub.f32 0.0, %v2627
  %v2652 = vsub.f32 0.0, %v2628
  %v2653 = vsub.f32 0.0, %v2629
  %v2654 = vsub.f32 0.0, %v2630
  %v2655 = vsel %vm2631, %v2619, %v2643
  %v2656 = vsel %vm2632, %v2620, %v2644
  %v2657 = vsel %vm2633, %v2621, %v2645
  %v2658 = vsel %vm2634, %v2622, %v2646
  %v2659 = vsel %vm2635, %v2623, %v2647
  %v2660 = vsel %vm2636, %v2624, %v2648
  %v2661 = vsel %vm2637, %v2625, %v2649
  %v2662 = vsel %vm2638, %v2626, %v2650
  %v2663 = vsel %vm2639, %v2627, %v2651
  %v2664 = vsel %vm2640, %v2628, %v2652
  %v2665 = vsel %vm2641, %v2629, %v2653
  %v2666 = vsel %vm2642, %v2630, %v2654
  %v2667 = vadd.f32 %v2655, 1.0
  %v2668 = vadd.f32 %v2656, 1.0
  %v2669 = vadd.f32 %v2657, 1.0
  %v2670 = vadd.f32 %v2658, 1.0
  %v2671 = vadd.f32 %v2659, 1.0
  %v2672 = vadd.f32 %v2660, 1.0
  %v2673 = vadd.f32 %v2661, 1.0
  %v2674 = vadd.f32 %v2662, 1.0
  %v2675 = vadd.f32 %v2663, 1.0
  %v2676 = vadd.f32 %v2664, 1.0
  %v2677 = vadd.f32 %v2665, 1.0
  %v2678 = vadd.f32 %v2666, 1.0
  %v2679 = vmul.f32 %v2367, %v2667
  %v2680 = vmul.f32 %v2368, %v2668
  %v2681 = vmul.f32 %v2369, %v2669
  %v2682 = vmul.f32 %v2370, %v2670
  %v2683 = vmul.f32 %v2371, %v2671
  %v2684 = vmul.f32 %v2372, %v2672
  %v2685 = vmul.f32 %v2373, %v2673
  %v2686 = vmul.f32 %v2374, %v2674
  %v2687 = vmul.f32 %v2375, %v2675
  %v2688 = vmul.f32 %v2376, %v2676
  %v2689 = vmul.f32 %v2377, %v2677
  %v2690 = vmul.f32 %v2378, %v2678
  %v2691 = vpack.c.bf16 %v2680, %v2679
  %v2692 = vpack.c.bf16 %v2682, %v2681
  %v2693 = vpack.c.bf16 %v2684, %v2683
  %v2694 = vpack.c.bf16 %v2686, %v2685
  %v2695 = vpack.c.bf16 %v2688, %v2687
  %v2696 = vpack.c.bf16 %v2690, %v2689
  %v2697 = vld [vmem:[%s11] sm:$0xf]
  %v2698 = vld [vmem:[%s11 + $0x4] sm:$0xf]
  %v2699 = vld [vmem:[%s11 + $0x8] sm:$0xf]
  %v2700 = vld [vmem:[%s11 + $0xc] sm:$0xf]
  %v2701 = vld [vmem:[%s11 + $0x10] sm:$0xf]
  %v2702 = vld [vmem:[%s11 + $0x14] sm:$0xf]
  %v2703 = vld [vmem:[%s12] sm:$0x1]
  %v2705 = vlaneseq
  %v2706 = vshrl.u32 %v2705, 7
  %v2707 = vsub.s32 0, %v2706
  %v2708 = vrot.slane %v2703, %v2707
  %v2716 = vunpack.c.l.b16 %v2697
  %v2717 = vunpack.c.l.b16 %v2698
  %v2718 = vunpack.c.l.b16 %v2699
  %v2719 = vunpack.c.l.b16 %v2700
  %v2720 = vunpack.c.l.b16 %v2701
  %v2721 = vunpack.c.l.b16 %v2702
  %v2722 = vpack.c.b16 %v2717, %v2716
  %v2723 = vpack.c.b16 %v2719, %v2718
  %v2724 = vpack.c.b16 %v2721, %v2720
  %vm2728 = vcmask 392192
  %v2730 = vsel %vm2728, %v2691, 0
  %v2733 = vsel %vm2728, %v2692, 0
  %v2736 = vsel %vm2728, %v2693, 0
  %v2739 = vsel %vm2728, %v2694, 0
  %v2742 = vsel %vm2728, %v2695, 0
  %v2745 = vsel %vm2728, %v2696, 0
  %2747 = vmatprep.subr.bf16.mxu0 0
  %2748 = vmatpush1.bf16.msra.mxu0 %v2722
  %2749 = vmatprep.subr.bf16.mxu0 0
  %2750 = vmatpush1.bf16.msra.mxu0 %v2723
  %2751 = vmatprep.subr.bf16.mxu0 0
  %2752 = vmatpush1.bf16.msra.mxu0 %v2724
  %2753 = vmatprep.subr.bf16.mxu0 0
  %2754 = vmatpush1.bf16.msra.mxu0 0
  %2755 = vmatprep.subr.bf16.mxu0 0
  %2756 = vmatpush1.bf16.msra.mxu0 0
  %2757 = vmatprep.subr.bf16.mxu0 0
  %2758 = vmatpush1.bf16.msra.mxu0 0
  %2759 = vmatprep.subr.bf16.mxu0 0
  %2760 = vmatpush1.bf16.msra.mxu0 0
  %2761 = vmatprep.subr.bf16.mxu0 0
  %2762 = vmatpush1.bf16.msra.mxu0 0
  %2763 = vmatprep.subr.bf16.mxu0 0
  %2764 = vmatpush1.bf16.msra.mxu0 0
  %2765 = vmatprep.subr.bf16.mxu0 0
  %2766 = vmatpush1.bf16.msra.mxu0 0
  %2767 = vmatprep.subr.bf16.mxu0 0
  %2768 = vmatpush1.bf16.msra.mxu0 0
  %2769 = vmatprep.subr.bf16.mxu0 0
  %2770 = vmatpush1.bf16.msra.mxu0 0
  %2771 = vmatprep.subr.bf16.mxu0 0
  %2772 = vmatpush1.bf16.msra.mxu0 0
  %2773 = vmatprep.subr.bf16.mxu0 0
  %2774 = vmatpush1.bf16.msra.mxu0 0
  %2775 = vmatprep.subr.bf16.mxu0 0
  %2776 = vmatpush1.bf16.msra.mxu0 0
  %2777 = vmatprep.subr.bf16.mxu0 0
  %2778 = vmatpush1.bf16.msra.mxu0 0
  %2779 = vmatprep.mubr.bf16.mxu0 0
  %2780 = vmatmul.mubr.bf16.gmra.mrb[0].mxu0 %v2730
  %v2781 = vpop.f32.mrb[0].mxu0
  %v2782 = vadd.f32 %v2708, %v2781
  %v2783 = vpop.f32.mrb[0].mxu0
  %v2784 = vpop.f32.mrb[0].mxu0
  %v2785 = vadd.f32 %v2708, %v2784
  %v2786 = vpop.f32.mrb[0].mxu0
  %2787 = vmatprep.mubr.bf16.mxu0 0
  %2788 = vmatmul.mubr.bf16.gmra.mrb[0].mxu0 %v2733
  %v2789 = vpop.f32.mrb[0].mxu0
  %v2790 = vadd.f32 %v2708, %v2789
  %v2791 = vpop.f32.mrb[0].mxu0
  %v2792 = vpop.f32.mrb[0].mxu0
  %v2793 = vadd.f32 %v2708, %v2792
  %v2794 = vpop.f32.mrb[0].mxu0
  %2795 = vmatprep.mubr.bf16.mxu0 0
  %2796 = vmatmul.mubr.bf16.gmra.mrb[0].mxu0 %v2736
  %v2797 = vpop.f32.mrb[0].mxu0
  %v2798 = vadd.f32 %v2708, %v2797
  %v2799 = vpop.f32.mrb[0].mxu0
  %v2800 = vpop.f32.mrb[0].mxu0
  %v2801 = vadd.f32 %v2708, %v2800
  %v2802 = vpop.f32.mrb[0].mxu0
  %2803 = vmatprep.mubr.bf16.mxu0 0
  %2804 = vmatmul.mubr.bf16.gmra.mrb[0].mxu0 %v2739
  %v2805 = vpop.f32.mrb[0].mxu0
  %v2806 = vadd.f32 %v2708, %v2805
  %v2807 = vpop.f32.mrb[0].mxu0
  %v2808 = vpop.f32.mrb[0].mxu0
  %v2809 = vadd.f32 %v2708, %v2808
  %v2810 = vpop.f32.mrb[0].mxu0
  %2811 = vmatprep.mubr.bf16.mxu0 0
  %2812 = vmatmul.mubr.bf16.gmra.mrb[0].mxu0 %v2742
  %v2813 = vpop.f32.mrb[0].mxu0
  %v2814 = vadd.f32 %v2708, %v2813
  %v2815 = vpop.f32.mrb[0].mxu0
  %v2816 = vpop.f32.mrb[0].mxu0
  %v2817 = vadd.f32 %v2708, %v2816
  %v2818 = vpop.f32.mrb[0].mxu0
  %2819 = vmatprep.mubr.bf16.mxu0 0
  %2820 = vmatmul.mubr.bf16.gmra.mrb[0].mxu0 %v2745
  %v2821 = vpop.f32.mrb[0].mxu0
  %v2822 = vadd.f32 %v2708, %v2821
  %v2823 = vpop.f32.mrb[0].mxu0
  %v2824 = vpop.f32.mrb[0].mxu0
  %v2825 = vadd.f32 %v2708, %v2824
  %v2826 = vpop.f32.mrb[0].mxu0
  %2827 = vdwg.mxu0
  %v2828 = vadd.f32 %v2033, %v2782
  %v2829 = vadd.f32 %v2034, %v2785
  %v2830 = vadd.f32 %v2035, %v2790
  %v2831 = vadd.f32 %v2036, %v2793
  %v2832 = vadd.f32 %v2037, %v2798
  %v2833 = vadd.f32 %v2038, %v2801
  %v2834 = vadd.f32 %v2039, %v2806
  %v2835 = vadd.f32 %v2040, %v2809
  %v2836 = vadd.f32 %v2041, %v2814
  %v2837 = vadd.f32 %v2042, %v2817
  %v2838 = vadd.f32 %v2043, %v2822
  %v2839 = vadd.f32 %v2044, %v2825
  %2840 = vst.msk [vmem:[%s13] sm:$0xff] %vm107, %v2828
  %2841 = vst.msk [vmem:[%s13 + $0x8] sm:$0xff] %vm107, %v2829
  %2842 = vst.msk [vmem:[%s13 + $0x10] sm:$0xff] %vm107, %v2830
  %2843 = vst.msk [vmem:[%s13 + $0x18] sm:$0xff] %vm107, %v2831
  %2844 = vst.msk [vmem:[%s13 + $0x20] sm:$0xff] %vm107, %v2832
  %2845 = vst.msk [vmem:[%s13 + $0x28] sm:$0xff] %vm107, %v2833
  %2846 = vst.msk [vmem:[%s13 + $0x30] sm:$0xff] %vm107, %v2834
  %2847 = vst.msk [vmem:[%s13 + $0x38] sm:$0xff] %vm107, %v2835
  %2848 = vst.msk [vmem:[%s13 + $0x40] sm:$0xff] %vm107, %v2836
  %2849 = vst.msk [vmem:[%s13 + $0x48] sm:$0xff] %vm107, %v2837
  %2850 = vst.msk [vmem:[%s13 + $0x50] sm:$0xff] %vm107, %v2838
  %2851 = vst.msk [vmem:[%s13 + $0x58] sm:$0xff] %vm107, %v2839
  // Predicated region
  $region54: #{factorized_attention_block.3} parent=0 // pred_check
    _
  $region55: #{factorized_attention_block.3} parent=0 // pred_check_branch
    %2853 = sbr.rel (0) target = $region57
  $region56: #{factorized_attention_block.3} parent=0 // pred_region
    _
  $region57: #{factorized_attention_block.3} parent=0 // pred_fallthru
    _
  // Predicated region
  $region58: #{factorized_attention_block.3} parent=0 // pred_check
    _
  $region59: #{factorized_attention_block.3} parent=0 // pred_check_branch
    %2855 = sbr.rel (0) target = $region61
  $region60: #{factorized_attention_block.3} parent=0 // pred_region
    _
  $region61: #{factorized_attention_block.3} parent=0 // pred_fallthru
    _

// kernel: factorized_attention_block.2
$region0: #{factorized_attention_block.2}
  #allocation0 [shape = 'u32[]', space=smem, size = 0x4, offset = 0x4, fixed_abs, tag = 'smem constant byte address 0x4 - core index']
  #allocation1 [shape = 'u32[144,128]{1,0:T(1,128)}', space=vmem, size = 0x12000, scoped, tag = 'internal scratch']
  %s0 = inlined_call_operand.vmem [shape: bf16[256,32], index: 0, kind: input, shape index: {}]
  %s1 = inlined_call_operand.vmem [shape: f32[1,32], index: 1, kind: input, shape index: {}]
  %s2 = inlined_call_operand.vmem [shape: f32[1,32], index: 2, kind: input, shape index: {}]
  %s3 = inlined_call_operand.vmem [shape: bf16[32,96], index: 3, kind: input, shape index: {}]
  %s4 = inlined_call_operand.vmem [shape: bf16[32,32], index: 4, kind: input, shape index: {}]
  %s5 = inlined_call_operand.vmem [shape: f32[1,32], index: 5, kind: input, shape index: {}]
  %s6 = inlined_call_operand.vmem [shape: bf16[32,32], index: 6, kind: input, shape index: {}]
  %s7 = inlined_call_operand.vmem [shape: f32[1,32], index: 7, kind: input, shape index: {}]
  %s8 = inlined_call_operand.vmem [shape: bf16[256,32], index: 8, kind: output, shape index: {}]
  %s9 = sld [smem:[#allocation0]]
  $region42: #{factorized_attention_block.2} parent=0
    _
  %s11 = ssub.s32 1, %s9
  %s12 = scalar_select 0, %s11, %s9
  // Predicated region
  $region2: #{factorized_attention_block.2} parent=0 // pred_check
    _
  $region3: #{factorized_attention_block.2} parent=0 // pred_check_branch
    %14 = sbr.rel (0) target = $region5
  $region4: #{factorized_attention_block.2} parent=0 // pred_region
    _
  $region5: #{factorized_attention_block.2} parent=0 // pred_fallthru
    _
  // Predicated region
  $region6: #{factorized_attention_block.2} parent=0 // pred_check
    _
  $region7: #{factorized_attention_block.2} parent=0 // pred_check_branch
    %16 = sbr.rel (0) target = $region9
  $region8: #{factorized_attention_block.2} parent=0 // pred_region
    _
  $region9: #{factorized_attention_block.2} parent=0 // pred_fallthru
    _
  // Predicated region
  $region10: #{factorized_attention_block.2} parent=0 // pred_check
    _
  $region11: #{factorized_attention_block.2} parent=0 // pred_check_branch
    %18 = sbr.rel (0) target = $region13
  $region12: #{factorized_attention_block.2} parent=0 // pred_region
    _
  $region13: #{factorized_attention_block.2} parent=0 // pred_fallthru
    _
  // Predicated region
  $region14: #{factorized_attention_block.2} parent=0 // pred_check
    _
  $region15: #{factorized_attention_block.2} parent=0 // pred_check_branch
    %20 = sbr.rel (0) target = $region17
  $region16: #{factorized_attention_block.2} parent=0 // pred_region
    _
  $region17: #{factorized_attention_block.2} parent=0 // pred_fallthru
    _
  // Predicated region
  $region18: #{factorized_attention_block.2} parent=0 // pred_check
    _
  $region19: #{factorized_attention_block.2} parent=0 // pred_check_branch
    %22 = sbr.rel (0) target = $region21
  $region20: #{factorized_attention_block.2} parent=0 // pred_region
    _
  $region21: #{factorized_attention_block.2} parent=0 // pred_fallthru
    _
  // Predicated region
  $region22: #{factorized_attention_block.2} parent=0 // pred_check
    _
  $region23: #{factorized_attention_block.2} parent=0 // pred_check_branch
    %24 = sbr.rel (0) target = $region25
  $region24: #{factorized_attention_block.2} parent=0 // pred_region
    _
  $region25: #{factorized_attention_block.2} parent=0 // pred_fallthru
    _
  // Predicated region
  $region26: #{factorized_attention_block.2} parent=0 // pred_check
    _
  $region27: #{factorized_attention_block.2} parent=0 // pred_check_branch
    %26 = sbr.rel (0) target = $region29
  $region28: #{factorized_attention_block.2} parent=0 // pred_region
    _
  $region29: #{factorized_attention_block.2} parent=0 // pred_fallthru
    _
  // Predicated region
  $region30: #{factorized_attention_block.2} parent=0 // pred_check
    _
  $region31: #{factorized_attention_block.2} parent=0 // pred_check_branch
    %28 = sbr.rel (0) target = $region33
  $region32: #{factorized_attention_block.2} parent=0 // pred_region
    _
  $region33: #{factorized_attention_block.2} parent=0 // pred_fallthru
    _
  %v30 = vld [vmem:[%s0] sm:$0xf]
  %v31 = vld [vmem:[%s0 + $0x4] sm:$0xf]
  %v32 = vld [vmem:[%s0 + $0x8] sm:$0xf]
  %v33 = vld [vmem:[%s0 + $0xc] sm:$0xf]
  %v34 = vld [vmem:[%s0 + $0x10] sm:$0xf]
  %v35 = vld [vmem:[%s0 + $0x14] sm:$0xf]
  %v36 = vld [vmem:[%s0 + $0x18] sm:$0xf]
  %v37 = vld [vmem:[%s0 + $0x1c] sm:$0xf]
  %v38 = vld [vmem:[%s0 + $0x20] sm:$0xf]
  %v39 = vld [vmem:[%s0 + $0x24] sm:$0xf]
  %v40 = vld [vmem:[%s0 + $0x28] sm:$0xf]
  %v41 = vld [vmem:[%s0 + $0x2c] sm:$0xf]
  %v42 = vld [vmem:[%s0 + $0x30] sm:$0xf]
  %v43 = vld [vmem:[%s0 + $0x34] sm:$0xf]
  %v44 = vld [vmem:[%s0 + $0x38] sm:$0xf]
  %v45 = vld [vmem:[%s0 + $0x3c] sm:$0xf]
  %v46 = vld [vmem:[%s0 + $0x40] sm:$0xf]
  %v47 = vld [vmem:[%s0 + $0x44] sm:$0xf]
  %v48 = vld [vmem:[%s0 + $0x48] sm:$0xf]
  %v49 = vld [vmem:[%s0 + $0x4c] sm:$0xf]
  %v50 = vld [vmem:[%s0 + $0x50] sm:$0xf]
  %v51 = vld [vmem:[%s0 + $0x54] sm:$0xf]
  %v52 = vld [vmem:[%s0 + $0x58] sm:$0xf]
  %v53 = vld [vmem:[%s0 + $0x5c] sm:$0xf]
  %v54 = vld [vmem:[%s0 + $0x60] sm:$0xf]
  %v55 = vld [vmem:[%s0 + $0x64] sm:$0xf]
  %v56 = vld [vmem:[%s0 + $0x68] sm:$0xf]
  %v57 = vld [vmem:[%s0 + $0x6c] sm:$0xf]
  %v58 = vld [vmem:[%s0 + $0x70] sm:$0xf]
  %v59 = vld [vmem:[%s0 + $0x74] sm:$0xf]
  %v60 = vld [vmem:[%s0 + $0x78] sm:$0xf]
  %v61 = vld [vmem:[%s0 + $0x7c] sm:$0xf]
  %v62 = vunpack.c.l.bf16 %v30
  %v63 = vunpack.c.l.bf16 %v31
  %v64 = vunpack.c.l.bf16 %v32
  %v65 = vunpack.c.l.bf16 %v33
  %v66 = vunpack.c.l.bf16 %v34
  %v67 = vunpack.c.l.bf16 %v35
  %v68 = vunpack.c.l.bf16 %v36
  %v69 = vunpack.c.l.bf16 %v37
  %v70 = vunpack.c.l.bf16 %v38
  %v71 = vunpack.c.l.bf16 %v39
  %v72 = vunpack.c.l.bf16 %v40
  %v73 = vunpack.c.l.bf16 %v41
  %v74 = vunpack.c.l.bf16 %v42
  %v75 = vunpack.c.l.bf16 %v43
  %v76 = vunpack.c.l.bf16 %v44
  %v77 = vunpack.c.l.bf16 %v45
  %v78 = vunpack.c.l.bf16 %v46
  %v79 = vunpack.c.l.bf16 %v47
  %v80 = vunpack.c.l.bf16 %v48
  %v81 = vunpack.c.l.bf16 %v49
  %v82 = vunpack.c.l.bf16 %v50
  %v83 = vunpack.c.l.bf16 %v51
  %v84 = vunpack.c.l.bf16 %v52
  %v85 = vunpack.c.l.bf16 %v53
  %v86 = vunpack.c.l.bf16 %v54
  %v87 = vunpack.c.l.bf16 %v55
  %v88 = vunpack.c.l.bf16 %v56
  %v89 = vunpack.c.l.bf16 %v57
  %v90 = vunpack.c.l.bf16 %v58
  %v91 = vunpack.c.l.bf16 %v59
  %v92 = vunpack.c.l.bf16 %v60
  %v93 = vunpack.c.l.bf16 %v61
  %v94 = vld [vmem:[%s1] sm:$0x1]
  %v95 = vld [vmem:[%s2] sm:$0x1]
  %vm96 = vcmask 261120
  %v97 = vsel %vm96, %v62, 0.0
  %98 = vadd.xlane.f32.xlu0 %v97
  %v99 = vpop.xlane.xlu0 %98
  %v100 = vsel %vm96, %v63, 0.0
  %101 = vadd.xlane.f32.xlu0 %v100
  %v102 = vpop.xlane.xlu0 %101
  %v103 = vsel %vm96, %v64, 0.0
  %104 = vadd.xlane.f32.xlu0 %v103
  %v105 = vpop.xlane.xlu0 %104
  %v106 = vsel %vm96, %v65, 0.0
  %107 = vadd.xlane.f32.xlu0 %v106
  %v108 = vpop.xlane.xlu0 %107
  %v109 = vsel %vm96, %v66, 0.0
  %110 = vadd.xlane.f32.xlu0 %v109
  %v111 = vpop.xlane.xlu0 %110
  %v112 = vsel %vm96, %v67, 0.0
  %113 = vadd.xlane.f32.xlu0 %v112
  %v114 = vpop.xlane.xlu0 %113
  %v115 = vsel %vm96, %v68, 0.0
  %116 = vadd.xlane.f32.xlu0 %v115
  %v117 = vpop.xlane.xlu0 %116
  %v118 = vsel %vm96, %v69, 0.0
  %119 = vadd.xlane.f32.xlu0 %v118
  %v120 = vpop.xlane.xlu0 %119
  %v121 = vsel %vm96, %v70, 0.0
  %122 = vadd.xlane.f32.xlu0 %v121
  %v123 = vpop.xlane.xlu0 %122
  %v124 = vsel %vm96, %v71, 0.0
  %125 = vadd.xlane.f32.xlu0 %v124
  %v126 = vpop.xlane.xlu0 %125
  %v127 = vsel %vm96, %v72, 0.0
  %128 = vadd.xlane.f32.xlu0 %v127
  %v129 = vpop.xlane.xlu0 %128
  %v130 = vsel %vm96, %v73, 0.0
  %131 = vadd.xlane.f32.xlu0 %v130
  %v132 = vpop.xlane.xlu0 %131
  %v133 = vsel %vm96, %v74, 0.0
  %134 = vadd.xlane.f32.xlu0 %v133
  %v135 = vpop.xlane.xlu0 %134
  %v136 = vsel %vm96, %v75, 0.0
  %137 = vadd.xlane.f32.xlu0 %v136
  %v138 = vpop.xlane.xlu0 %137
  %v139 = vsel %vm96, %v76, 0.0
  %140 = vadd.xlane.f32.xlu0 %v139
  %v141 = vpop.xlane.xlu0 %140
  %v142 = vsel %vm96, %v77, 0.0
  %143 = vadd.xlane.f32.xlu0 %v142
  %v144 = vpop.xlane.xlu0 %143
  %v145 = vsel %vm96, %v78, 0.0
  %146 = vadd.xlane.f32.xlu0 %v145
  %v147 = vpop.xlane.xlu0 %146
  %v148 = vsel %vm96, %v79, 0.0
  %149 = vadd.xlane.f32.xlu0 %v148
  %v150 = vpop.xlane.xlu0 %149
  %v151 = vsel %vm96, %v80, 0.0
  %152 = vadd.xlane.f32.xlu0 %v151
  %v153 = vpop.xlane.xlu0 %152
  %v154 = vsel %vm96, %v81, 0.0
  %155 = vadd.xlane.f32.xlu0 %v154
  %v156 = vpop.xlane.xlu0 %155
  %v157 = vsel %vm96, %v82, 0.0
  %158 = vadd.xlane.f32.xlu0 %v157
  %v159 = vpop.xlane.xlu0 %158
  %v160 = vsel %vm96, %v83, 0.0
  %161 = vadd.xlane.f32.xlu0 %v160
  %v162 = vpop.xlane.xlu0 %161
  %v163 = vsel %vm96, %v84, 0.0
  %164 = vadd.xlane.f32.xlu0 %v163
  %v165 = vpop.xlane.xlu0 %164
  %v166 = vsel %vm96, %v85, 0.0
  %167 = vadd.xlane.f32.xlu0 %v166
  %v168 = vpop.xlane.xlu0 %167
  %v169 = vsel %vm96, %v86, 0.0
  %170 = vadd.xlane.f32.xlu0 %v169
  %v171 = vpop.xlane.xlu0 %170
  %v172 = vsel %vm96, %v87, 0.0
  %173 = vadd.xlane.f32.xlu0 %v172
  %v174 = vpop.xlane.xlu0 %173
  %v175 = vsel %vm96, %v88, 0.0
  %176 = vadd.xlane.f32.xlu0 %v175
  %v177 = vpop.xlane.xlu0 %176
  %v178 = vsel %vm96, %v89, 0.0
  %179 = vadd.xlane.f32.xlu0 %v178
  %v180 = vpop.xlane.xlu0 %179
  %v181 = vsel %vm96, %v90, 0.0
  %182 = vadd.xlane.f32.xlu0 %v181
  %v183 = vpop.xlane.xlu0 %182
  %v184 = vsel %vm96, %v91, 0.0
  %185 = vadd.xlane.f32.xlu0 %v184
  %v186 = vpop.xlane.xlu0 %185
  %v187 = vsel %vm96, %v92, 0.0
  %188 = vadd.xlane.f32.xlu0 %v187
  %v189 = vpop.xlane.xlu0 %188
  %v190 = vsel %vm96, %v93, 0.0
  %191 = vadd.xlane.f32.xlu0 %v190
  %v192 = vpop.xlane.xlu0 %191
  %v193 = vrcp.pop 32.0
  %v194 = vmul.f32 %v99, %v193
  %v195 = vmul.f32 %v102, %v193
  %v196 = vmul.f32 %v105, %v193
  %v197 = vmul.f32 %v108, %v193
  %v198 = vmul.f32 %v111, %v193
  %v199 = vmul.f32 %v114, %v193
  %v200 = vmul.f32 %v117, %v193
  %v201 = vmul.f32 %v120, %v193
  %v202 = vmul.f32 %v123, %v193
  %v203 = vmul.f32 %v126, %v193
  %v204 = vmul.f32 %v129, %v193
  %v205 = vmul.f32 %v132, %v193
  %v206 = vmul.f32 %v135, %v193
  %v207 = vmul.f32 %v138, %v193
  %v208 = vmul.f32 %v141, %v193
  %v209 = vmul.f32 %v144, %v193
  %v210 = vmul.f32 %v147, %v193
  %v211 = vmul.f32 %v150, %v193
  %v212 = vmul.f32 %v153, %v193
  %v213 = vmul.f32 %v156, %v193
  %v214 = vmul.f32 %v159, %v193
  %v215 = vmul.f32 %v162, %v193
  %v216 = vmul.f32 %v165, %v193
  %v217 = vmul.f32 %v168, %v193
  %v218 = vmul.f32 %v171, %v193
  %v219 = vmul.f32 %v174, %v193
  %v220 = vmul.f32 %v177, %v193
  %v221 = vmul.f32 %v180, %v193
  %v222 = vmul.f32 %v183, %v193
  %v223 = vmul.f32 %v186, %v193
  %v224 = vmul.f32 %v189, %v193
  %v225 = vmul.f32 %v192, %v193
  %v226 = vsub.f32 %v62, %v194
  %v227 = vsub.f32 %v63, %v195
  %v228 = vsub.f32 %v64, %v196
  %v229 = vsub.f32 %v65, %v197
  %v230 = vsub.f32 %v66, %v198
  %v231 = vsub.f32 %v67, %v199
  %v232 = vsub.f32 %v68, %v200
  %v233 = vsub.f32 %v69, %v201
  %v234 = vsub.f32 %v70, %v202
  %v235 = vsub.f32 %v71, %v203
  %v236 = vsub.f32 %v72, %v204
  %v237 = vsub.f32 %v73, %v205
  %v238 = vsub.f32 %v74, %v206
  %v239 = vsub.f32 %v75, %v207
  %v240 = vsub.f32 %v76, %v208
  %v241 = vsub.f32 %v77, %v209
  %v242 = vsub.f32 %v78, %v210
  %v243 = vsub.f32 %v79, %v211
  %v244 = vsub.f32 %v80, %v212
  %v245 = vsub.f32 %v81, %v213
  %v246 = vsub.f32 %v82, %v214
  %v247 = vsub.f32 %v83, %v215
  %v248 = vsub.f32 %v84, %v216
  %v249 = vsub.f32 %v85, %v217
  %v250 = vsub.f32 %v86, %v218
  %v251 = vsub.f32 %v87, %v219
  %v252 = vsub.f32 %v88, %v220
  %v253 = vsub.f32 %v89, %v221
  %v254 = vsub.f32 %v90, %v222
  %v255 = vsub.f32 %v91, %v223
  %v256 = vsub.f32 %v92, %v224
  %v257 = vsub.f32 %v93, %v225
  %v258 = vmul.f32 %v226, %v226
  %v259 = vmul.f32 %v227, %v227
  %v260 = vmul.f32 %v228, %v228
  %v261 = vmul.f32 %v229, %v229
  %v262 = vmul.f32 %v230, %v230
  %v263 = vmul.f32 %v231, %v231
  %v264 = vmul.f32 %v232, %v232
  %v265 = vmul.f32 %v233, %v233
  %v266 = vmul.f32 %v234, %v234
  %v267 = vmul.f32 %v235, %v235
  %v268 = vmul.f32 %v236, %v236
  %v269 = vmul.f32 %v237, %v237
  %v270 = vmul.f32 %v238, %v238
  %v271 = vmul.f32 %v239, %v239
  %v272 = vmul.f32 %v240, %v240
  %v273 = vmul.f32 %v241, %v241
  %v274 = vmul.f32 %v242, %v242
  %v275 = vmul.f32 %v243, %v243
  %v276 = vmul.f32 %v244, %v244
  %v277 = vmul.f32 %v245, %v245
  %v278 = vmul.f32 %v246, %v246
  %v279 = vmul.f32 %v247, %v247
  %v280 = vmul.f32 %v248, %v248
  %v281 = vmul.f32 %v249, %v249
  %v282 = vmul.f32 %v250, %v250
  %v283 = vmul.f32 %v251, %v251
  %v284 = vmul.f32 %v252, %v252
  %v285 = vmul.f32 %v253, %v253
  %v286 = vmul.f32 %v254, %v254
  %v287 = vmul.f32 %v255, %v255
  %v288 = vmul.f32 %v256, %v256
  %v289 = vmul.f32 %v257, %v257
  %v290 = vsel %vm96, %v258, 0.0
  %291 = vadd.xlane.f32.xlu0 %v290
  %v292 = vpop.xlane.xlu0 %291
  %v293 = vsel %vm96, %v259, 0.0
  %294 = vadd.xlane.f32.xlu0 %v293
  %v295 = vpop.xlane.xlu0 %294
  %v296 = vsel %vm96, %v260, 0.0
  %297 = vadd.xlane.f32.xlu0 %v296
  %v298 = vpop.xlane.xlu0 %297
  %v299 = vsel %vm96, %v261, 0.0
  %300 = vadd.xlane.f32.xlu0 %v299
  %v301 = vpop.xlane.xlu0 %300
  %v302 = vsel %vm96, %v262, 0.0
  %303 = vadd.xlane.f32.xlu0 %v302
  %v304 = vpop.xlane.xlu0 %303
  %v305 = vsel %vm96, %v263, 0.0
  %306 = vadd.xlane.f32.xlu0 %v305
  %v307 = vpop.xlane.xlu0 %306
  %v308 = vsel %vm96, %v264, 0.0
  %309 = vadd.xlane.f32.xlu0 %v308
  %v310 = vpop.xlane.xlu0 %309
  %v311 = vsel %vm96, %v265, 0.0
  %312 = vadd.xlane.f32.xlu0 %v311
  %v313 = vpop.xlane.xlu0 %312
  %v314 = vsel %vm96, %v266, 0.0
  %315 = vadd.xlane.f32.xlu0 %v314
  %v316 = vpop.xlane.xlu0 %315
  %v317 = vsel %vm96, %v267, 0.0
  %318 = vadd.xlane.f32.xlu0 %v317
  %v319 = vpop.xlane.xlu0 %318
  %v320 = vsel %vm96, %v268, 0.0
  %321 = vadd.xlane.f32.xlu0 %v320
  %v322 = vpop.xlane.xlu0 %321
  %v323 = vsel %vm96, %v269, 0.0
  %324 = vadd.xlane.f32.xlu0 %v323
  %v325 = vpop.xlane.xlu0 %324
  %v326 = vsel %vm96, %v270, 0.0
  %327 = vadd.xlane.f32.xlu0 %v326
  %v328 = vpop.xlane.xlu0 %327
  %v329 = vsel %vm96, %v271, 0.0
  %330 = vadd.xlane.f32.xlu0 %v329
  %v331 = vpop.xlane.xlu0 %330
  %v332 = vsel %vm96, %v272, 0.0
  %333 = vadd.xlane.f32.xlu0 %v332
  %v334 = vpop.xlane.xlu0 %333
  %v335 = vsel %vm96, %v273, 0.0
  %336 = vadd.xlane.f32.xlu0 %v335
  %v337 = vpop.xlane.xlu0 %336
  %v338 = vsel %vm96, %v274, 0.0
  %339 = vadd.xlane.f32.xlu0 %v338
  %v340 = vpop.xlane.xlu0 %339
  %v341 = vsel %vm96, %v275, 0.0
  %342 = vadd.xlane.f32.xlu0 %v341
  %v343 = vpop.xlane.xlu0 %342
  %v344 = vsel %vm96, %v276, 0.0
  %345 = vadd.xlane.f32.xlu0 %v344
  %v346 = vpop.xlane.xlu0 %345
  %v347 = vsel %vm96, %v277, 0.0
  %348 = vadd.xlane.f32.xlu0 %v347
  %v349 = vpop.xlane.xlu0 %348
  %v350 = vsel %vm96, %v278, 0.0
  %351 = vadd.xlane.f32.xlu0 %v350
  %v352 = vpop.xlane.xlu0 %351
  %v353 = vsel %vm96, %v279, 0.0
  %354 = vadd.xlane.f32.xlu0 %v353
  %v355 = vpop.xlane.xlu0 %354
  %v356 = vsel %vm96, %v280, 0.0
  %357 = vadd.xlane.f32.xlu0 %v356
  %v358 = vpop.xlane.xlu0 %357
  %v359 = vsel %vm96, %v281, 0.0
  %360 = vadd.xlane.f32.xlu0 %v359
  %v361 = vpop.xlane.xlu0 %360
  %v362 = vsel %vm96, %v282, 0.0
  %363 = vadd.xlane.f32.xlu0 %v362
  %v364 = vpop.xlane.xlu0 %363
  %v365 = vsel %vm96, %v283, 0.0
  %366 = vadd.xlane.f32.xlu0 %v365
  %v367 = vpop.xlane.xlu0 %366
  %v368 = vsel %vm96, %v284, 0.0
  %369 = vadd.xlane.f32.xlu0 %v368
  %v370 = vpop.xlane.xlu0 %369
  %v371 = vsel %vm96, %v285, 0.0
  %372 = vadd.xlane.f32.xlu0 %v371
  %v373 = vpop.xlane.xlu0 %372
  %v374 = vsel %vm96, %v286, 0.0
  %375 = vadd.xlane.f32.xlu0 %v374
  %v376 = vpop.xlane.xlu0 %375
  %v377 = vsel %vm96, %v287, 0.0
  %378 = vadd.xlane.f32.xlu0 %v377
  %v379 = vpop.xlane.xlu0 %378
  %v380 = vsel %vm96, %v288, 0.0
  %381 = vadd.xlane.f32.xlu0 %v380
  %v382 = vpop.xlane.xlu0 %381
  %v383 = vsel %vm96, %v289, 0.0
  %384 = vadd.xlane.f32.xlu0 %v383
  %v385 = vpop.xlane.xlu0 %384
  %v386 = vmul.f32 %v292, %v193
  %v387 = vmul.f32 %v295, %v193
  %v388 = vmul.f32 %v298, %v193
  %v389 = vmul.f32 %v301, %v193
  %v390 = vmul.f32 %v304, %v193
  %v391 = vmul.f32 %v307, %v193
  %v392 = vmul.f32 %v310, %v193
  %v393 = vmul.f32 %v313, %v193
  %v394 = vmul.f32 %v316, %v193
  %v395 = vmul.f32 %v319, %v193
  %v396 = vmul.f32 %v322, %v193
  %v397 = vmul.f32 %v325, %v193
  %v398 = vmul.f32 %v328, %v193
  %v399 = vmul.f32 %v331, %v193
  %v400 = vmul.f32 %v334, %v193
  %v401 = vmul.f32 %v337, %v193
  %v402 = vmul.f32 %v340, %v193
  %v403 = vmul.f32 %v343, %v193
  %v404 = vmul.f32 %v346, %v193
  %v405 = vmul.f32 %v349, %v193
  %v406 = vmul.f32 %v352, %v193
  %v407 = vmul.f32 %v355, %v193
  %v408 = vmul.f32 %v358, %v193
  %v409 = vmul.f32 %v361, %v193
  %v410 = vmul.f32 %v364, %v193
  %v411 = vmul.f32 %v367, %v193
  %v412 = vmul.f32 %v370, %v193
  %v413 = vmul.f32 %v373, %v193
  %v414 = vmul.f32 %v376, %v193
  %v415 = vmul.f32 %v379, %v193
  %v416 = vmul.f32 %v382, %v193
  %v417 = vmul.f32 %v385, %v193
  %v418 = vadd.f32 %v386, 1e-05
  %v419 = vadd.f32 %v387, 1e-05
  %v420 = vadd.f32 %v388, 1e-05
  %v421 = vadd.f32 %v389, 1e-05
  %v422 = vadd.f32 %v390, 1e-05
  %v423 = vadd.f32 %v391, 1e-05
  %v424 = vadd.f32 %v392, 1e-05
  %v425 = vadd.f32 %v393, 1e-05
  %v426 = vadd.f32 %v394, 1e-05
  %v427 = vadd.f32 %v395, 1e-05
  %v428 = vadd.f32 %v396, 1e-05
  %v429 = vadd.f32 %v397, 1e-05
  %v430 = vadd.f32 %v398, 1e-05
  %v431 = vadd.f32 %v399, 1e-05
  %v432 = vadd.f32 %v400, 1e-05
  %v433 = vadd.f32 %v401, 1e-05
  %v434 = vadd.f32 %v402, 1e-05
  %v435 = vadd.f32 %v403, 1e-05
  %v436 = vadd.f32 %v404, 1e-05
  %v437 = vadd.f32 %v405, 1e-05
  %v438 = vadd.f32 %v406, 1e-05
  %v439 = vadd.f32 %v407, 1e-05
  %v440 = vadd.f32 %v408, 1e-05
  %v441 = vadd.f32 %v409, 1e-05
  %v442 = vadd.f32 %v410, 1e-05
  %v443 = vadd.f32 %v411, 1e-05
  %v444 = vadd.f32 %v412, 1e-05
  %v445 = vadd.f32 %v413, 1e-05
  %v446 = vadd.f32 %v414, 1e-05
  %v447 = vadd.f32 %v415, 1e-05
  %v448 = vadd.f32 %v416, 1e-05
  %v449 = vadd.f32 %v417, 1e-05
  %v450 = vrsqrt.pop %v418
  %v451 = vrsqrt.pop %v419
  %v452 = vrsqrt.pop %v420
  %v453 = vrsqrt.pop %v421
  %v454 = vrsqrt.pop %v422
  %v455 = vrsqrt.pop %v423
  %v456 = vrsqrt.pop %v424
  %v457 = vrsqrt.pop %v425
  %v458 = vrsqrt.pop %v426
  %v459 = vrsqrt.pop %v427
  %v460 = vrsqrt.pop %v428
  %v461 = vrsqrt.pop %v429
  %v462 = vrsqrt.pop %v430
  %v463 = vrsqrt.pop %v431
  %v464 = vrsqrt.pop %v432
  %v465 = vrsqrt.pop %v433
  %v466 = vrsqrt.pop %v434
  %v467 = vrsqrt.pop %v435
  %v468 = vrsqrt.pop %v436
  %v469 = vrsqrt.pop %v437
  %v470 = vrsqrt.pop %v438
  %v471 = vrsqrt.pop %v439
  %v472 = vrsqrt.pop %v440
  %v473 = vrsqrt.pop %v441
  %v474 = vrsqrt.pop %v442
  %v475 = vrsqrt.pop %v443
  %v476 = vrsqrt.pop %v444
  %v477 = vrsqrt.pop %v445
  %v478 = vrsqrt.pop %v446
  %v479 = vrsqrt.pop %v447
  %v480 = vrsqrt.pop %v448
  %v481 = vrsqrt.pop %v449
  %v482 = vmul.f32 %v226, %v450
  %v483 = vmul.f32 %v227, %v451
  %v484 = vmul.f32 %v228, %v452
  %v485 = vmul.f32 %v229, %v453
  %v486 = vmul.f32 %v230, %v454
  %v487 = vmul.f32 %v231, %v455
  %v488 = vmul.f32 %v232, %v456
  %v489 = vmul.f32 %v233, %v457
  %v490 = vmul.f32 %v234, %v458
  %v491 = vmul.f32 %v235, %v459
  %v492 = vmul.f32 %v236, %v460
  %v493 = vmul.f32 %v237, %v461
  %v494 = vmul.f32 %v238, %v462
  %v495 = vmul.f32 %v239, %v463
  %v496 = vmul.f32 %v240, %v464
  %v497 = vmul.f32 %v241, %v465
  %v498 = vmul.f32 %v242, %v466
  %v499 = vmul.f32 %v243, %v467
  %v500 = vmul.f32 %v244, %v468
  %v501 = vmul.f32 %v245, %v469
  %v502 = vmul.f32 %v246, %v470
  %v503 = vmul.f32 %v247, %v471
  %v504 = vmul.f32 %v248, %v472
  %v505 = vmul.f32 %v249, %v473
  %v506 = vmul.f32 %v250, %v474
  %v507 = vmul.f32 %v251, %v475
  %v508 = vmul.f32 %v252, %v476
  %v509 = vmul.f32 %v253, %v477
  %v510 = vmul.f32 %v254, %v478
  %v511 = vmul.f32 %v255, %v479
  %v512 = vmul.f32 %v256, %v480
  %v513 = vmul.f32 %v257, %v481
  %v515 = vlaneseq
  %v516 = vshrl.u32 %v515, 7
  %v517 = vsub.s32 0, %v516
  %v518 = vrot.slane %v94, %v517
  %v520 = vmul.f32 %v482, %v518
  %v521 = vmul.f32 %v483, %v518
  %v522 = vmul.f32 %v484, %v518
  %v523 = vmul.f32 %v485, %v518
  %v524 = vmul.f32 %v486, %v518
  %v525 = vmul.f32 %v487, %v518
  %v526 = vmul.f32 %v488, %v518
  %v527 = vmul.f32 %v489, %v518
  %v528 = vmul.f32 %v490, %v518
  %v529 = vmul.f32 %v491, %v518
  %v530 = vmul.f32 %v492, %v518
  %v531 = vmul.f32 %v493, %v518
  %v532 = vmul.f32 %v494, %v518
  %v533 = vmul.f32 %v495, %v518
  %v534 = vmul.f32 %v496, %v518
  %v535 = vmul.f32 %v497, %v518
  %v536 = vmul.f32 %v498, %v518
  %v537 = vmul.f32 %v499, %v518
  %v538 = vmul.f32 %v500, %v518
  %v539 = vmul.f32 %v501, %v518
  %v540 = vmul.f32 %v502, %v518
  %v541 = vmul.f32 %v503, %v518
  %v542 = vmul.f32 %v504, %v518
  %v543 = vmul.f32 %v505, %v518
  %v544 = vmul.f32 %v506, %v518
  %v545 = vmul.f32 %v507, %v518
  %v546 = vmul.f32 %v508, %v518
  %v547 = vmul.f32 %v509, %v518
  %v548 = vmul.f32 %v510, %v518
  %v549 = vmul.f32 %v511, %v518
  %v550 = vmul.f32 %v512, %v518
  %v551 = vmul.f32 %v513, %v518
  %v553 = vlaneseq
  %v554 = vshrl.u32 %v553, 7
  %v555 = vsub.s32 0, %v554
  %v556 = vrot.slane %v95, %v555
  %v558 = vadd.f32 %v520, %v556
  %v559 = vadd.f32 %v521, %v556
  %v560 = vadd.f32 %v522, %v556
  %v561 = vadd.f32 %v523, %v556
  %v562 = vadd.f32 %v524, %v556
  %v563 = vadd.f32 %v525, %v556
  %v564 = vadd.f32 %v526, %v556
  %v565 = vadd.f32 %v527, %v556
  %v566 = vadd.f32 %v528, %v556
  %v567 = vadd.f32 %v529, %v556
  %v568 = vadd.f32 %v530, %v556
  %v569 = vadd.f32 %v531, %v556
  %v570 = vadd.f32 %v532, %v556
  %v571 = vadd.f32 %v533, %v556
  %v572 = vadd.f32 %v534, %v556
  %v573 = vadd.f32 %v535, %v556
  %v574 = vadd.f32 %v536, %v556
  %v575 = vadd.f32 %v537, %v556
  %v576 = vadd.f32 %v538, %v556
  %v577 = vadd.f32 %v539, %v556
  %v578 = vadd.f32 %v540, %v556
  %v579 = vadd.f32 %v541, %v556
  %v580 = vadd.f32 %v542, %v556
  %v581 = vadd.f32 %v543, %v556
  %v582 = vadd.f32 %v544, %v556
  %v583 = vadd.f32 %v545, %v556
  %v584 = vadd.f32 %v546, %v556
  %v585 = vadd.f32 %v547, %v556
  %v586 = vadd.f32 %v548, %v556
  %v587 = vadd.f32 %v549, %v556
  %v588 = vadd.f32 %v550, %v556
  %v589 = vadd.f32 %v551, %v556
  %v590 = vld [vmem:[%s3] sm:$0xf]
  %v591 = vld [vmem:[%s3 + $0x4] sm:$0xf]
  %v592 = vld [vmem:[%s3 + $0x8] sm:$0xf]
  %v593 = vld [vmem:[%s3 + $0xc] sm:$0xf]
  %v594 = vld [vmem:[%s4] sm:$0xf]
  %v595 = vld [vmem:[%s4 + $0x4] sm:$0xf]
  %v596 = vld [vmem:[%s4 + $0x8] sm:$0xf]
  %v597 = vld [vmem:[%s4 + $0xc] sm:$0xf]
  %v598 = vld [vmem:[%s5] sm:$0x1]
  %v599 = vpack.c.bf16 %v559, %v558
  %v600 = vpack.c.bf16 %v561, %v560
  %v601 = vpack.c.bf16 %v563, %v562
  %v602 = vpack.c.bf16 %v565, %v564
  %v603 = vpack.c.bf16 %v567, %v566
  %v604 = vpack.c.bf16 %v569, %v568
  %v605 = vpack.c.bf16 %v571, %v570
  %v606 = vpack.c.bf16 %v573, %v572
  %v607 = vpack.c.bf16 %v575, %v574
  %v608 = vpack.c.bf16 %v577, %v576
  %v609 = vpack.c.bf16 %v579, %v578
  %v610 = vpack.c.bf16 %v581, %v580
  %v611 = vpack.c.bf16 %v583, %v582
  %v612 = vpack.c.bf16 %v585, %v584
  %v613 = vpack.c.bf16 %v587, %v586
  %v614 = vpack.c.bf16 %v589, %v588
  %v619 = vunpack.c.l.b16 %v590
  %v620 = vunpack.c.l.b16 %v591
  %v621 = vunpack.c.l.b16 %v592
  %v622 = vunpack.c.l.b16 %v593
  %v623 = vpack.c.b16 %v620, %v619
  %v624 = vpack.c.b16 %v622, %v621
  %v628 = vsel %vm96, %v599, 0
  %v631 = vsel %vm96, %v600, 0
  %v634 = vsel %vm96, %v601, 0
  %v637 = vsel %vm96, %v602, 0
  %v640 = vsel %vm96, %v603, 0
  %v643 = vsel %vm96, %v604, 0
  %v646 = vsel %vm96, %v605, 0
  %v649 = vsel %vm96, %v606, 0
  %v652 = vsel %vm96, %v607, 0
  %v655 = vsel %vm96, %v608, 0
  %v658 = vsel %vm96, %v609, 0
  %v661 = vsel %vm96, %v610, 0
  %v664 = vsel %vm96, %v611, 0
  %v667 = vsel %vm96, %v612, 0
  %v670 = vsel %vm96, %v613, 0
  %v673 = vsel %vm96, %v614, 0
  %675 = vmatprep.subr.bf16.mxu0 0
  %676 = vmatpush1.bf16.msra.mxu0 %v623
  %677 = vmatprep.subr.bf16.mxu0 0
  %678 = vmatpush1.bf16.msra.mxu0 %v624
  %679 = vmatprep.subr.bf16.mxu0 0
  %680 = vmatpush1.bf16.msra.mxu0 0
  %681 = vmatprep.subr.bf16.mxu0 0
  %682 = vmatpush1.bf16.msra.mxu0 0
  %683 = vmatprep.subr.bf16.mxu0 0
  %684 = vmatpush1.bf16.msra.mxu0 0
  %685 = vmatprep.subr.bf16.mxu0 0
  %686 = vmatpush1.bf16.msra.mxu0 0
  %687 = vmatprep.subr.bf16.mxu0 0
  %688 = vmatpush1.bf16.msra.mxu0 0
  %689 = vmatprep.subr.bf16.mxu0 0
  %690 = vmatpush1.bf16.msra.mxu0 0
  %691 = vmatprep.subr.bf16.mxu0 0
  %692 = vmatpush1.bf16.msra.mxu0 0
  %693 = vmatprep.subr.bf16.mxu0 0
  %694 = vmatpush1.bf16.msra.mxu0 0
  %695 = vmatprep.subr.bf16.mxu0 0
  %696 = vmatpush1.bf16.msra.mxu0 0
  %697 = vmatprep.subr.bf16.mxu0 0
  %698 = vmatpush1.bf16.msra.mxu0 0
  %699 = vmatprep.subr.bf16.mxu0 0
  %700 = vmatpush1.bf16.msra.mxu0 0
  %701 = vmatprep.subr.bf16.mxu0 0
  %702 = vmatpush1.bf16.msra.mxu0 0
  %703 = vmatprep.subr.bf16.mxu0 0
  %704 = vmatpush1.bf16.msra.mxu0 0
  %705 = vmatprep.subr.bf16.mxu0 0
  %706 = vmatpush1.bf16.msra.mxu0 0
  %707 = vmatprep.mubr.bf16.mxu0 0
  %708 = vmatmul.mubr.bf16.gmra.mrb[0].mxu0 %v628
  %v709 = vpop.f32.mrb[0].mxu0
  %v710 = vadd.f32 0.0, %v709
  %v711 = vpop.f32.mrb[0].mxu0
  %v712 = vpop.f32.mrb[0].mxu0
  %v713 = vadd.f32 0.0, %v712
  %v714 = vpop.f32.mrb[0].mxu0
  %715 = vmatprep.mubr.bf16.mxu0 0
  %716 = vmatmul.mubr.bf16.gmra.mrb[0].mxu0 %v631
  %v717 = vpop.f32.mrb[0].mxu0
  %v718 = vadd.f32 0.0, %v717
  %v719 = vpop.f32.mrb[0].mxu0
  %v720 = vpop.f32.mrb[0].mxu0
  %v721 = vadd.f32 0.0, %v720
  %v722 = vpop.f32.mrb[0].mxu0
  %723 = vmatprep.mubr.bf16.mxu0 0
  %724 = vmatmul.mubr.bf16.gmra.mrb[0].mxu0 %v634
  %v725 = vpop.f32.mrb[0].mxu0
  %v726 = vadd.f32 0.0, %v725
  %v727 = vpop.f32.mrb[0].mxu0
  %v728 = vpop.f32.mrb[0].mxu0
  %v729 = vadd.f32 0.0, %v728
  %v730 = vpop.f32.mrb[0].mxu0
  %731 = vmatprep.mubr.bf16.mxu0 0
  %732 = vmatmul.mubr.bf16.gmra.mrb[0].mxu0 %v637
  %v733 = vpop.f32.mrb[0].mxu0
  %v734 = vadd.f32 0.0, %v733
  %v735 = vpop.f32.mrb[0].mxu0
  %v736 = vpop.f32.mrb[0].mxu0
  %v737 = vadd.f32 0.0, %v736
  %v738 = vpop.f32.mrb[0].mxu0
  %739 = vmatprep.mubr.bf16.mxu0 0
  %740 = vmatmul.mubr.bf16.gmra.mrb[0].mxu0 %v640
  %v741 = vpop.f32.mrb[0].mxu0
  %v742 = vadd.f32 0.0, %v741
  %v743 = vpop.f32.mrb[0].mxu0
  %v744 = vpop.f32.mrb[0].mxu0
  %v745 = vadd.f32 0.0, %v744
  %v746 = vpop.f32.mrb[0].mxu0
  %747 = vmatprep.mubr.bf16.mxu0 0
  %748 = vmatmul.mubr.bf16.gmra.mrb[0].mxu0 %v643
  %v749 = vpop.f32.mrb[0].mxu0
  %v750 = vadd.f32 0.0, %v749
  %v751 = vpop.f32.mrb[0].mxu0
  %v752 = vpop.f32.mrb[0].mxu0
  %v753 = vadd.f32 0.0, %v752
  %v754 = vpop.f32.mrb[0].mxu0
  %755 = vmatprep.mubr.bf16.mxu0 0
  %756 = vmatmul.mubr.bf16.gmra.mrb[0].mxu0 %v646
  %v757 = vpop.f32.mrb[0].mxu0
  %v758 = vadd.f32 0.0, %v757
  %v759 = vpop.f32.mrb[0].mxu0
  %v760 = vpop.f32.mrb[0].mxu0
  %v761 = vadd.f32 0.0, %v760
  %v762 = vpop.f32.mrb[0].mxu0
  %763 = vmatprep.mubr.bf16.mxu0 0
  %764 = vmatmul.mubr.bf16.gmra.mrb[0].mxu0 %v649
  %v765 = vpop.f32.mrb[0].mxu0
  %v766 = vadd.f32 0.0, %v765
  %v767 = vpop.f32.mrb[0].mxu0
  %v768 = vpop.f32.mrb[0].mxu0
  %v769 = vadd.f32 0.0, %v768
  %v770 = vpop.f32.mrb[0].mxu0
  %771 = vmatprep.mubr.bf16.mxu0 0
  %772 = vmatmul.mubr.bf16.gmra.mrb[0].mxu0 %v652
  %v773 = vpop.f32.mrb[0].mxu0
  %v774 = vadd.f32 0.0, %v773
  %v775 = vpop.f32.mrb[0].mxu0
  %v776 = vpop.f32.mrb[0].mxu0
  %v777 = vadd.f32 0.0, %v776
  %v778 = vpop.f32.mrb[0].mxu0
  %779 = vmatprep.mubr.bf16.mxu0 0
  %780 = vmatmul.mubr.bf16.gmra.mrb[0].mxu0 %v655
  %v781 = vpop.f32.mrb[0].mxu0
  %v782 = vadd.f32 0.0, %v781
  %v783 = vpop.f32.mrb[0].mxu0
  %v784 = vpop.f32.mrb[0].mxu0
  %v785 = vadd.f32 0.0, %v784
  %v786 = vpop.f32.mrb[0].mxu0
  %787 = vmatprep.mubr.bf16.mxu0 0
  %788 = vmatmul.mubr.bf16.gmra.mrb[0].mxu0 %v658
  %v789 = vpop.f32.mrb[0].mxu0
  %v790 = vadd.f32 0.0, %v789
  %v791 = vpop.f32.mrb[0].mxu0
  %v792 = vpop.f32.mrb[0].mxu0
  %v793 = vadd.f32 0.0, %v792
  %v794 = vpop.f32.mrb[0].mxu0
  %795 = vmatprep.mubr.bf16.mxu0 0
  %796 = vmatmul.mubr.bf16.gmra.mrb[0].mxu0 %v661
  %v797 = vpop.f32.mrb[0].mxu0
  %v798 = vadd.f32 0.0, %v797
  %v799 = vpop.f32.mrb[0].mxu0
  %v800 = vpop.f32.mrb[0].mxu0
  %v801 = vadd.f32 0.0, %v800
  %v802 = vpop.f32.mrb[0].mxu0
  %803 = vmatprep.mubr.bf16.mxu0 0
  %804 = vmatmul.mubr.bf16.gmra.mrb[0].mxu0 %v664
  %v805 = vpop.f32.mrb[0].mxu0
  %v806 = vadd.f32 0.0, %v805
  %v807 = vpop.f32.mrb[0].mxu0
  %v808 = vpop.f32.mrb[0].mxu0
  %v809 = vadd.f32 0.0, %v808
  %v810 = vpop.f32.mrb[0].mxu0
  %811 = vmatprep.mubr.bf16.mxu0 0
  %812 = vmatmul.mubr.bf16.gmra.mrb[0].mxu0 %v667
  %v813 = vpop.f32.mrb[0].mxu0
  %v814 = vadd.f32 0.0, %v813
  %v815 = vpop.f32.mrb[0].mxu0
  %v816 = vpop.f32.mrb[0].mxu0
  %v817 = vadd.f32 0.0, %v816
  %v818 = vpop.f32.mrb[0].mxu0
  %819 = vmatprep.mubr.bf16.mxu0 0
  %820 = vmatmul.mubr.bf16.gmra.mrb[0].mxu0 %v670
  %v821 = vpop.f32.mrb[0].mxu0
  %v822 = vadd.f32 0.0, %v821
  %v823 = vpop.f32.mrb[0].mxu0
  %v824 = vpop.f32.mrb[0].mxu0
  %v825 = vadd.f32 0.0, %v824
  %v826 = vpop.f32.mrb[0].mxu0
  %827 = vmatprep.mubr.bf16.mxu0 0
  %828 = vmatmul.mubr.bf16.gmra.mrb[0].mxu0 %v673
  %v829 = vpop.f32.mrb[0].mxu0
  %v830 = vadd.f32 0.0, %v829
  %v831 = vpop.f32.mrb[0].mxu0
  %v832 = vpop.f32.mrb[0].mxu0
  %v833 = vadd.f32 0.0, %v832
  %v834 = vpop.f32.mrb[0].mxu0
  %835 = vdwg.mxu0
  %868 = vrot.lane.b32.xlu0 %v710, 112
  %v869 = vpop.permute.xlu0 %868
  %870 = vrot.lane.b32.xlu0 %v713, 112
  %v871 = vpop.permute.xlu0 %870
  %872 = vrot.lane.b32.xlu0 %v718, 112
  %v873 = vpop.permute.xlu0 %872
  %874 = vrot.lane.b32.xlu0 %v721, 112
  %v875 = vpop.permute.xlu0 %874
  %876 = vrot.lane.b32.xlu0 %v726, 112
  %v877 = vpop.permute.xlu0 %876
  %878 = vrot.lane.b32.xlu0 %v729, 112
  %v879 = vpop.permute.xlu0 %878
  %880 = vrot.lane.b32.xlu0 %v734, 112
  %v881 = vpop.permute.xlu0 %880
  %882 = vrot.lane.b32.xlu0 %v737, 112
  %v883 = vpop.permute.xlu0 %882
  %884 = vrot.lane.b32.xlu0 %v742, 112
  %v885 = vpop.permute.xlu0 %884
  %886 = vrot.lane.b32.xlu0 %v745, 112
  %v887 = vpop.permute.xlu0 %886
  %888 = vrot.lane.b32.xlu0 %v750, 112
  %v889 = vpop.permute.xlu0 %888
  %890 = vrot.lane.b32.xlu0 %v753, 112
  %v891 = vpop.permute.xlu0 %890
  %892 = vrot.lane.b32.xlu0 %v758, 112
  %v893 = vpop.permute.xlu0 %892
  %894 = vrot.lane.b32.xlu0 %v761, 112
  %v895 = vpop.permute.xlu0 %894
  %896 = vrot.lane.b32.xlu0 %v766, 112
  %v897 = vpop.permute.xlu0 %896
  %898 = vrot.lane.b32.xlu0 %v769, 112
  %v899 = vpop.permute.xlu0 %898
  %900 = vrot.lane.b32.xlu0 %v774, 112
  %v901 = vpop.permute.xlu0 %900
  %902 = vrot.lane.b32.xlu0 %v777, 112
  %v903 = vpop.permute.xlu0 %902
  %904 = vrot.lane.b32.xlu0 %v782, 112
  %v905 = vpop.permute.xlu0 %904
  %906 = vrot.lane.b32.xlu0 %v785, 112
  %v907 = vpop.permute.xlu0 %906
  %908 = vrot.lane.b32.xlu0 %v790, 112
  %v909 = vpop.permute.xlu0 %908
  %910 = vrot.lane.b32.xlu0 %v793, 112
  %v911 = vpop.permute.xlu0 %910
  %912 = vrot.lane.b32.xlu0 %v798, 112
  %v913 = vpop.permute.xlu0 %912
  %914 = vrot.lane.b32.xlu0 %v801, 112
  %v915 = vpop.permute.xlu0 %914
  %916 = vrot.lane.b32.xlu0 %v806, 112
  %v917 = vpop.permute.xlu0 %916
  %918 = vrot.lane.b32.xlu0 %v809, 112
  %v919 = vpop.permute.xlu0 %918
  %920 = vrot.lane.b32.xlu0 %v814, 112
  %v921 = vpop.permute.xlu0 %920
  %922 = vrot.lane.b32.xlu0 %v817, 112
  %v923 = vpop.permute.xlu0 %922
  %924 = vrot.lane.b32.xlu0 %v822, 112
  %v925 = vpop.permute.xlu0 %924
  %926 = vrot.lane.b32.xlu0 %v825, 112
  %v927 = vpop.permute.xlu0 %926
  %928 = vrot.lane.b32.xlu0 %v830, 112
  %v929 = vpop.permute.xlu0 %928
  %930 = vrot.lane.b32.xlu0 %v833, 112
  %v931 = vpop.permute.xlu0 %930
  %v964 = vpack.c.bf16 %v710, %v710
  %v965 = vpack.c.bf16 %v713, %v713
  %v966 = vpack.c.bf16 %v718, %v718
  %v967 = vpack.c.bf16 %v721, %v721
  %v968 = vpack.c.bf16 %v726, %v726
  %v969 = vpack.c.bf16 %v729, %v729
  %v970 = vpack.c.bf16 %v734, %v734
  %v971 = vpack.c.bf16 %v737, %v737
  %v972 = vpack.c.bf16 %v742, %v742
  %v973 = vpack.c.bf16 %v745, %v745
  %v974 = vpack.c.bf16 %v750, %v750
  %v975 = vpack.c.bf16 %v753, %v753
  %v976 = vpack.c.bf16 %v758, %v758
  %v977 = vpack.c.bf16 %v761, %v761
  %v978 = vpack.c.bf16 %v766, %v766
  %v979 = vpack.c.bf16 %v769, %v769
  %v980 = vpack.c.bf16 %v774, %v774
  %v981 = vpack.c.bf16 %v777, %v777
  %v982 = vpack.c.bf16 %v782, %v782
  %v983 = vpack.c.bf16 %v785, %v785
  %v984 = vpack.c.bf16 %v790, %v790
  %v985 = vpack.c.bf16 %v793, %v793
  %v986 = vpack.c.bf16 %v798, %v798
  %v987 = vpack.c.bf16 %v801, %v801
  %v988 = vpack.c.bf16 %v806, %v806
  %v989 = vpack.c.bf16 %v809, %v809
  %v990 = vpack.c.bf16 %v814, %v814
  %v991 = vpack.c.bf16 %v817, %v817
  %v992 = vpack.c.bf16 %v822, %v822
  %v993 = vpack.c.bf16 %v825, %v825
  %v994 = vpack.c.bf16 %v830, %v830
  %v995 = vpack.c.bf16 %v833, %v833
  %v996 = vpack.c.bf16 %v869, %v869
  %v997 = vpack.c.bf16 %v871, %v871
  %v998 = vpack.c.bf16 %v873, %v873
  %v999 = vpack.c.bf16 %v875, %v875
  %v1000 = vpack.c.bf16 %v877, %v877
  %v1001 = vpack.c.bf16 %v879, %v879
  %v1002 = vpack.c.bf16 %v881, %v881
  %v1003 = vpack.c.bf16 %v883, %v883
  %v1004 = vpack.c.bf16 %v885, %v885
  %v1005 = vpack.c.bf16 %v887, %v887
  %v1006 = vpack.c.bf16 %v889, %v889
  %v1007 = vpack.c.bf16 %v891, %v891
  %v1008 = vpack.c.bf16 %v893, %v893
  %v1009 = vpack.c.bf16 %v895, %v895
  %v1010 = vpack.c.bf16 %v897, %v897
  %v1011 = vpack.c.bf16 %v899, %v899
  %v1012 = vpack.c.bf16 %v901, %v901
  %v1013 = vpack.c.bf16 %v903, %v903
  %v1014 = vpack.c.bf16 %v905, %v905
  %v1015 = vpack.c.bf16 %v907, %v907
  %v1016 = vpack.c.bf16 %v909, %v909
  %v1017 = vpack.c.bf16 %v911, %v911
  %v1018 = vpack.c.bf16 %v913, %v913
  %v1019 = vpack.c.bf16 %v915, %v915
  %v1020 = vpack.c.bf16 %v917, %v917
  %v1021 = vpack.c.bf16 %v919, %v919
  %v1022 = vpack.c.bf16 %v921, %v921
  %v1023 = vpack.c.bf16 %v923, %v923
  %v1024 = vpack.c.bf16 %v925, %v925
  %v1025 = vpack.c.bf16 %v927, %v927
  %v1026 = vpack.c.bf16 %v929, %v929
  %v1027 = vpack.c.bf16 %v931, %v931
  %1029 = vrot.lane.b32.xlu0 %v964, 96
  %v1030 = vpop.permute.xlu0 %1029
  %vm1031 = vcmask 130048
  %v1033 = vsel %vm1031, %v964, 0
  %v1036 = vsel %vm1031, %v1030, 0
  %1038 = vmatprep.subr.bf16.mxu0 0
  %1039 = vmatpush1.bf16.xpose.msra.mxu0 %v1036
  %1040 = vmatprep.subr.bf16.mxu0 0
  %1041 = vmatpush1.bf16.xpose.msra.mxu0 0
  %1042 = vmatprep.subr.bf16.mxu0 0
  %1043 = vmatpush1.bf16.xpose.msra.mxu0 0
  %1044 = vmatprep.subr.bf16.mxu0 0
  %1045 = vmatpush1.bf16.xpose.msra.mxu0 0
  %1046 = vmatprep.subr.bf16.mxu0 0
  %1047 = vmatpush1.bf16.xpose.msra.mxu0 0
  %1048 = vmatprep.subr.bf16.mxu0 0
  %1049 = vmatpush1.bf16.xpose.msra.mxu0 0
  %1050 = vmatprep.subr.bf16.mxu0 0
  %1051 = vmatpush1.bf16.xpose.msra.mxu0 0
  %1052 = vmatprep.subr.bf16.mxu0 0
  %1053 = vmatpush1.bf16.xpose.msra.mxu0 0
  %1054 = vmatprep.subr.bf16.mxu0 0
  %1055 = vmatpush1.bf16.xpose.msra.mxu0 0
  %1056 = vmatprep.subr.bf16.mxu0 0
  %1057 = vmatpush1.bf16.xpose.msra.mxu0 0
  %1058 = vmatprep.subr.bf16.mxu0 0
  %1059 = vmatpush1.bf16.xpose.msra.mxu0 0
  %1060 = vmatprep.subr.bf16.mxu0 0
  %1061 = vmatpush1.bf16.xpose.msra.mxu0 0
  %1062 = vmatprep.subr.bf16.mxu0 0
  %1063 = vmatpush1.bf16.xpose.msra.mxu0 0
  %1064 = vmatprep.subr.bf16.mxu0 0
  %1065 = vmatpush1.bf16.xpose.msra.mxu0 0
  %1066 = vmatprep.subr.bf16.mxu0 0
  %1067 = vmatpush1.bf16.xpose.msra.mxu0 0
  %1068 = vmatprep.subr.bf16.mxu0 0
  %1069 = vmatpush1.bf16.xpose.msra.mxu0 0
  %1070 = vmatprep.mubr.bf16.mxu0 0
  %1071 = vmatmul.mubr.bf16.gmra.mrb[0].mxu0 %v1033
  %v1072 = vpop.f32.mrb[0].mxu0
  %v1073 = vadd.f32 0.0, %v1072
  %v1074 = vpop.f32.mrb[0].mxu0
  %v1075 = vpop.f32.mrb[0].mxu0
  %v1076 = vpop.f32.mrb[0].mxu0
  %1077 = vdwg.mxu0
  %1079 = vrot.lane.b32.xlu0 %v965, 96
  %v1080 = vpop.permute.xlu0 %1079
  %v1082 = vsel %vm1031, %v965, 0
  %v1085 = vsel %vm1031, %v1080, 0
  %1087 = vmatprep.subr.bf16.mxu0 0
  %1088 = vmatpush1.bf16.xpose.msra.mxu0 %v1085
  %1089 = vmatprep.subr.bf16.mxu0 0
  %1090 = vmatpush1.bf16.xpose.msra.mxu0 0
  %1091 = vmatprep.subr.bf16.mxu0 0
  %1092 = vmatpush1.bf16.xpose.msra.mxu0 0
  %1093 = vmatprep.subr.bf16.mxu0 0
  %1094 = vmatpush1.bf16.xpose.msra.mxu0 0
  %1095 = vmatprep.subr.bf16.mxu0 0
  %1096 = vmatpush1.bf16.xpose.msra.mxu0 0
  %1097 = vmatprep.subr.bf16.mxu0 0
  %1098 = vmatpush1.bf16.xpose.msra.mxu0 0
  %1099 = vmatprep.subr.bf16.mxu0 0
  %1100 = vmatpush1.bf16.xpose.msra.mxu0 0
  %1101 = vmatprep.subr.bf16.mxu0 0
  %1102 = vmatpush1.bf16.xpose.msra.mxu0 0
  %1103 = vmatprep.subr.bf16.mxu0 0
  %1104 = vmatpush1.bf16.xpose.msra.mxu0 0
  %1105 = vmatprep.subr.bf16.mxu0 0
  %1106 = vmatpush1.bf16.xpose.msra.mxu0 0
  %1107 = vmatprep.subr.bf16.mxu0 0
  %1108 = vmatpush1.bf16.xpose.msra.mxu0 0
  %1109 = vmatprep.subr.bf16.mxu0 0
  %1110 = vmatpush1.bf16.xpose.msra.mxu0 0
  %1111 = vmatprep.subr.bf16.mxu0 0
  %1112 = vmatpush1.bf16.xpose.msra.mxu0 0
  %1113 = vmatprep.subr.bf16.mxu0 0
  %1114 = vmatpush1.bf16.xpose.msra.mxu0 0
  %1115 = vmatprep.subr.bf16.mxu0 0
  %1116 = vmatpush1.bf16.xpose.msra.mxu0 0
  %1117 = vmatprep.subr.bf16.mxu0 0
  %1118 = vmatpush1.bf16.xpose.msra.mxu0 0
  %1119 = vmatprep.mubr.bf16.mxu0 0
  %1120 = vmatmul.mubr.bf16.gmra.mrb[0].mxu0 %v1082
  %v1121 = vpop.f32.mrb[0].mxu0
  %v1122 = vadd.f32 0.0, %v1121
  %v1123 = vpop.f32.mrb[0].mxu0
  %v1124 = vpop.f32.mrb[0].mxu0
  %v1125 = vpop.f32.mrb[0].mxu0
  %1126 = vdwg.mxu0
  %1128 = vrot.lane.b32.xlu0 %v966, 96
  %v1129 = vpop.permute.xlu0 %1128
  %v1131 = vsel %vm1031, %v966, 0
  %v1134 = vsel %vm1031, %v1129, 0
  %1136 = vmatprep.subr.bf16.mxu0 0
  %1137 = vmatpush1.bf16.xpose.msra.mxu0 %v1134
  %1138 = vmatprep.subr.bf16.mxu0 0
  %1139 = vmatpush1.bf16.xpose.msra.mxu0 0
  %1140 = vmatprep.subr.bf16.mxu0 0
  %1141 = vmatpush1.bf16.xpose.msra.mxu0 0
  %1142 = vmatprep.subr.bf16.mxu0 0
  %1143 = vmatpush1.bf16.xpose.msra.mxu0 0
  %1144 = vmatprep.subr.bf16.mxu0 0
  %1145 = vmatpush1.bf16.xpose.msra.mxu0 0
  %1146 = vmatprep.subr.bf16.mxu0 0
  %1147 = vmatpush1.bf16.xpose.msra.mxu0 0
  %1148 = vmatprep.subr.bf16.mxu0 0
  %1149 = vmatpush1.bf16.xpose.msra.mxu0 0
  %1150 = vmatprep.subr.bf16.mxu0 0
  %1151 = vmatpush1.bf16.xpose.msra.mxu0 0
  %1152 = vmatprep.subr.bf16.mxu0 0
  %1153 = vmatpush1.bf16.xpose.msra.mxu0 0
  %1154 = vmatprep.subr.bf16.mxu0 0
  %1155 = vmatpush1.bf16.xpose.msra.mxu0 0
  %1156 = vmatprep.subr.bf16.mxu0 0
  %1157 = vmatpush1.bf16.xpose.msra.mxu0 0
  %1158 = vmatprep.subr.bf16.mxu0 0
  %1159 = vmatpush1.bf16.xpose.msra.mxu0 0
  %1160 = vmatprep.subr.bf16.mxu0 0
  %1161 = vmatpush1.bf16.xpose.msra.mxu0 0
  %1162 = vmatprep.subr.bf16.mxu0 0
  %1163 = vmatpush1.bf16.xpose.msra.mxu0 0
  %1164 = vmatprep.subr.bf16.mxu0 0
  %1165 = vmatpush1.bf16.xpose.msra.mxu0 0
  %1166 = vmatprep.subr.bf16.mxu0 0
  %1167 = vmatpush1.bf16.xpose.msra.mxu0 0
  %1168 = vmatprep.mubr.bf16.mxu0 0
  %1169 = vmatmul.mubr.bf16.gmra.mrb[0].mxu0 %v1131
  %v1170 = vpop.f32.mrb[0].mxu0
  %v1171 = vadd.f32 0.0, %v1170
  %v1172 = vpop.f32.mrb[0].mxu0
  %v1173 = vpop.f32.mrb[0].mxu0
  %v1174 = vpop.f32.mrb[0].mxu0
  %1175 = vdwg.mxu0
  %1177 = vrot.lane.b32.xlu0 %v967, 96
  %v1178 = vpop.permute.xlu0 %1177
  %v1180 = vsel %vm1031, %v967, 0
  %v1183 = vsel %vm1031, %v1178, 0
  %1185 = vmatprep.subr.bf16.mxu0 0
  %1186 = vmatpush1.bf16.xpose.msra.mxu0 %v1183
  %1187 = vmatprep.subr.bf16.mxu0 0
  %1188 = vmatpush1.bf16.xpose.msra.mxu0 0
  %1189 = vmatprep.subr.bf16.mxu0 0
  %1190 = vmatpush1.bf16.xpose.msra.mxu0 0
  %1191 = vmatprep.subr.bf16.mxu0 0
  %1192 = vmatpush1.bf16.xpose.msra.mxu0 0
  %1193 = vmatprep.subr.bf16.mxu0 0
  %1194 = vmatpush1.bf16.xpose.msra.mxu0 0
  %1195 = vmatprep.subr.bf16.mxu0 0
  %1196 = vmatpush1.bf16.xpose.msra.mxu0 0
  %1197 = vmatprep.subr.bf16.mxu0 0
  %1198 = vmatpush1.bf16.xpose.msra.mxu0 0
  %1199 = vmatprep.subr.bf16.mxu0 0
  %1200 = vmatpush1.bf16.xpose.msra.mxu0 0
  %1201 = vmatprep.subr.bf16.mxu0 0
  %1202 = vmatpush1.bf16.xpose.msra.mxu0 0
  %1203 = vmatprep.subr.bf16.mxu0 0
  %1204 = vmatpush1.bf16.xpose.msra.mxu0 0
  %1205 = vmatprep.subr.bf16.mxu0 0
  %1206 = vmatpush1.bf16.xpose.msra.mxu0 0
  %1207 = vmatprep.subr.bf16.mxu0 0
  %1208 = vmatpush1.bf16.xpose.msra.mxu0 0
  %1209 = vmatprep.subr.bf16.mxu0 0
  %1210 = vmatpush1.bf16.xpose.msra.mxu0 0
  %1211 = vmatprep.subr.bf16.mxu0 0
  %1212 = vmatpush1.bf16.xpose.msra.mxu0 0
  %1213 = vmatprep.subr.bf16.mxu0 0
  %1214 = vmatpush1.bf16.xpose.msra.mxu0 0
  %1215 = vmatprep.subr.bf16.mxu0 0
  %1216 = vmatpush1.bf16.xpose.msra.mxu0 0
  %1217 = vmatprep.mubr.bf16.mxu0 0
  %1218 = vmatmul.mubr.bf16.gmra.mrb[0].mxu0 %v1180
  %v1219 = vpop.f32.mrb[0].mxu0
  %v1220 = vadd.f32 0.0, %v1219
  %v1221 = vpop.f32.mrb[0].mxu0
  %v1222 = vpop.f32.mrb[0].mxu0
  %v1223 = vpop.f32.mrb[0].mxu0
  %1224 = vdwg.mxu0
  %1226 = vrot.lane.b32.xlu0 %v968, 96
  %v1227 = vpop.permute.xlu0 %1226
  %v1229 = vsel %vm1031, %v968, 0
  %v1232 = vsel %vm1031, %v1227, 0
  %1234 = vmatprep.subr.bf16.mxu0 0
  %1235 = vmatpush1.bf16.xpose.msra.mxu0 %v1232
  %1236 = vmatprep.subr.bf16.mxu0 0
  %1237 = vmatpush1.bf16.xpose.msra.mxu0 0
  %1238 = vmatprep.subr.bf16.mxu0 0
  %1239 = vmatpush1.bf16.xpose.msra.mxu0 0
  %1240 = vmatprep.subr.bf16.mxu0 0
  %1241 = vmatpush1.bf16.xpose.msra.mxu0 0
  %1242 = vmatprep.subr.bf16.mxu0 0
  %1243 = vmatpush1.bf16.xpose.msra.mxu0 0
  %1244 = vmatprep.subr.bf16.mxu0 0
  %1245 = vmatpush1.bf16.xpose.msra.mxu0 0
  %1246 = vmatprep.subr.bf16.mxu0 0
  %1247 = vmatpush1.bf16.xpose.msra.mxu0 0
  %1248 = vmatprep.subr.bf16.mxu0 0
  %1249 = vmatpush1.bf16.xpose.msra.mxu0 0
  %1250 = vmatprep.subr.bf16.mxu0 0
  %1251 = vmatpush1.bf16.xpose.msra.mxu0 0
  %1252 = vmatprep.subr.bf16.mxu0 0
  %1253 = vmatpush1.bf16.xpose.msra.mxu0 0
  %1254 = vmatprep.subr.bf16.mxu0 0
  %1255 = vmatpush1.bf16.xpose.msra.mxu0 0
  %1256 = vmatprep.subr.bf16.mxu0 0
  %1257 = vmatpush1.bf16.xpose.msra.mxu0 0
  %1258 = vmatprep.subr.bf16.mxu0 0
  %1259 = vmatpush1.bf16.xpose.msra.mxu0 0
  %1260 = vmatprep.subr.bf16.mxu0 0
  %1261 = vmatpush1.bf16.xpose.msra.mxu0 0
  %1262 = vmatprep.subr.bf16.mxu0 0
  %1263 = vmatpush1.bf16.xpose.msra.mxu0 0
  %1264 = vmatprep.subr.bf16.mxu0 0
  %1265 = vmatpush1.bf16.xpose.msra.mxu0 0
  %1266 = vmatprep.mubr.bf16.mxu0 0
  %1267 = vmatmul.mubr.bf16.gmra.mrb[0].mxu0 %v1229
  %v1268 = vpop.f32.mrb[0].mxu0
  %v1269 = vadd.f32 0.0, %v1268
  %v1270 = vpop.f32.mrb[0].mxu0
  %v1271 = vpop.f32.mrb[0].mxu0
  %v1272 = vpop.f32.mrb[0].mxu0
  %1273 = vdwg.mxu0
  %1275 = vrot.lane.b32.xlu0 %v969, 96
  %v1276 = vpop.permute.xlu0 %1275
  %v1278 = vsel %vm1031, %v969, 0
  %v1281 = vsel %vm1031, %v1276, 0
  %1283 = vmatprep.subr.bf16.mxu0 0
  %1284 = vmatpush1.bf16.xpose.msra.mxu0 %v1281
  %1285 = vmatprep.subr.bf16.mxu0 0
  %1286 = vmatpush1.bf16.xpose.msra.mxu0 0
  %1287 = vmatprep.subr.bf16.mxu0 0
  %1288 = vmatpush1.bf16.xpose.msra.mxu0 0
  %1289 = vmatprep.subr.bf16.mxu0 0
  %1290 = vmatpush1.bf16.xpose.msra.mxu0 0
  %1291 = vmatprep.subr.bf16.mxu0 0
  %1292 = vmatpush1.bf16.xpose.msra.mxu0 0
  %1293 = vmatprep.subr.bf16.mxu0 0
  %1294 = vmatpush1.bf16.xpose.msra.mxu0 0
  %1295 = vmatprep.subr.bf16.mxu0 0
  %1296 = vmatpush1.bf16.xpose.msra.mxu0 0
  %1297 = vmatprep.subr.bf16.mxu0 0
  %1298 = vmatpush1.bf16.xpose.msra.mxu0 0
  %1299 = vmatprep.subr.bf16.mxu0 0
  %1300 = vmatpush1.bf16.xpose.msra.mxu0 0
  %1301 = vmatprep.subr.bf16.mxu0 0
  %1302 = vmatpush1.bf16.xpose.msra.mxu0 0
  %1303 = vmatprep.subr.bf16.mxu0 0
  %1304 = vmatpush1.bf16.xpose.msra.mxu0 0
  %1305 = vmatprep.subr.bf16.mxu0 0
  %1306 = vmatpush1.bf16.xpose.msra.mxu0 0
  %1307 = vmatprep.subr.bf16.mxu0 0
  %1308 = vmatpush1.bf16.xpose.msra.mxu0 0
  %1309 = vmatprep.subr.bf16.mxu0 0
  %1310 = vmatpush1.bf16.xpose.msra.mxu0 0
  %1311 = vmatprep.subr.bf16.mxu0 0
  %1312 = vmatpush1.bf16.xpose.msra.mxu0 0
  %1313 = vmatprep.subr.bf16.mxu0 0
  %1314 = vmatpush1.bf16.xpose.msra.mxu0 0
  %1315 = vmatprep.mubr.bf16.mxu0 0
  %1316 = vmatmul.mubr.bf16.gmra.mrb[0].mxu0 %v1278
  %v1317 = vpop.f32.mrb[0].mxu0
  %v1318 = vadd.f32 0.0, %v1317
  %v1319 = vpop.f32.mrb[0].mxu0
  %v1320 = vpop.f32.mrb[0].mxu0
  %v1321 = vpop.f32.mrb[0].mxu0
  %1322 = vdwg.mxu0
  %1324 = vrot.lane.b32.xlu0 %v970, 96
  %v1325 = vpop.permute.xlu0 %1324
  %v1327 = vsel %vm1031, %v970, 0
  %v1330 = vsel %vm1031, %v1325, 0
  %1332 = vmatprep.subr.bf16.mxu0 0
  %1333 = vmatpush1.bf16.xpose.msra.mxu0 %v1330
  %1334 = vmatprep.subr.bf16.mxu0 0
  %1335 = vmatpush1.bf16.xpose.msra.mxu0 0
  %1336 = vmatprep.subr.bf16.mxu0 0
  %1337 = vmatpush1.bf16.xpose.msra.mxu0 0
  %1338 = vmatprep.subr.bf16.mxu0 0
  %1339 = vmatpush1.bf16.xpose.msra.mxu0 0
  %1340 = vmatprep.subr.bf16.mxu0 0
  %1341 = vmatpush1.bf16.xpose.msra.mxu0 0
  %1342 = vmatprep.subr.bf16.mxu0 0
  %1343 = vmatpush1.bf16.xpose.msra.mxu0 0
  %1344 = vmatprep.subr.bf16.mxu0 0
  %1345 = vmatpush1.bf16.xpose.msra.mxu0 0
  %1346 = vmatprep.subr.bf16.mxu0 0
  %1347 = vmatpush1.bf16.xpose.msra.mxu0 0
  %1348 = vmatprep.subr.bf16.mxu0 0
  %1349 = vmatpush1.bf16.xpose.msra.mxu0 0
  %1350 = vmatprep.subr.bf16.mxu0 0
  %1351 = vmatpush1.bf16.xpose.msra.mxu0 0
  %1352 = vmatprep.subr.bf16.mxu0 0
  %1353 = vmatpush1.bf16.xpose.msra.mxu0 0
  %1354 = vmatprep.subr.bf16.mxu0 0
  %1355 = vmatpush1.bf16.xpose.msra.mxu0 0
  %1356 = vmatprep.subr.bf16.mxu0 0
  %1357 = vmatpush1.bf16.xpose.msra.mxu0 0
  %1358 = vmatprep.subr.bf16.mxu0 0
  %1359 = vmatpush1.bf16.xpose.msra.mxu0 0
  %1360 = vmatprep.subr.bf16.mxu0 0
  %1361 = vmatpush1.bf16.xpose.msra.mxu0 0
  %1362 = vmatprep.subr.bf16.mxu0 0
  %1363 = vmatpush1.bf16.xpose.msra.mxu0 0
  %1364 = vmatprep.mubr.bf16.mxu0 0
  %1365 = vmatmul.mubr.bf16.gmra.mrb[0].mxu0 %v1327
  %v1366 = vpop.f32.mrb[0].mxu0
  %v1367 = vadd.f32 0.0, %v1366
  %v1368 = vpop.f32.mrb[0].mxu0
  %v1369 = vpop.f32.mrb[0].mxu0
  %v1370 = vpop.f32.mrb[0].mxu0
  %1371 = vdwg.mxu0
  %1373 = vrot.lane.b32.xlu0 %v971, 96
  %v1374 = vpop.permute.xlu0 %1373
  %v1376 = vsel %vm1031, %v971, 0
  %v1379 = vsel %vm1031, %v1374, 0
  %1381 = vmatprep.subr.bf16.mxu0 0
  %1382 = vmatpush1.bf16.xpose.msra.mxu0 %v1379
  %1383 = vmatprep.subr.bf16.mxu0 0
  %1384 = vmatpush1.bf16.xpose.msra.mxu0 0
  %1385 = vmatprep.subr.bf16.mxu0 0
  %1386 = vmatpush1.bf16.xpose.msra.mxu0 0
  %1387 = vmatprep.subr.bf16.mxu0 0
  %1388 = vmatpush1.bf16.xpose.msra.mxu0 0
  %1389 = vmatprep.subr.bf16.mxu0 0
  %1390 = vmatpush1.bf16.xpose.msra.mxu0 0
  %1391 = vmatprep.subr.bf16.mxu0 0
  %1392 = vmatpush1.bf16.xpose.msra.mxu0 0
  %1393 = vmatprep.subr.bf16.mxu0 0
  %1394 = vmatpush1.bf16.xpose.msra.mxu0 0
  %1395 = vmatprep.subr.bf16.mxu0 0
  %1396 = vmatpush1.bf16.xpose.msra.mxu0 0
  %1397 = vmatprep.subr.bf16.mxu0 0
  %1398 = vmatpush1.bf16.xpose.msra.mxu0 0
  %1399 = vmatprep.subr.bf16.mxu0 0
  %1400 = vmatpush1.bf16.xpose.msra.mxu0 0
  %1401 = vmatprep.subr.bf16.mxu0 0
  %1402 = vmatpush1.bf16.xpose.msra.mxu0 0
  %1403 = vmatprep.subr.bf16.mxu0 0
  %1404 = vmatpush1.bf16.xpose.msra.mxu0 0
  %1405 = vmatprep.subr.bf16.mxu0 0
  %1406 = vmatpush1.bf16.xpose.msra.mxu0 0
  %1407 = vmatprep.subr.bf16.mxu0 0
  %1408 = vmatpush1.bf16.xpose.msra.mxu0 0
  %1409 = vmatprep.subr.bf16.mxu0 0
  %1410 = vmatpush1.bf16.xpose.msra.mxu0 0
  %1411 = vmatprep.subr.bf16.mxu0 0
  %1412 = vmatpush1.bf16.xpose.msra.mxu0 0
  %1413 = vmatprep.mubr.bf16.mxu0 0
  %1414 = vmatmul.mubr.bf16.gmra.mrb[0].mxu0 %v1376
  %v1415 = vpop.f32.mrb[0].mxu0
  %v1416 = vadd.f32 0.0, %v1415
  %v1417 = vpop.f32.mrb[0].mxu0
  %v1418 = vpop.f32.mrb[0].mxu0
  %v1419 = vpop.f32.mrb[0].mxu0
  %1420 = vdwg.mxu0
  %1422 = vrot.lane.b32.xlu0 %v972, 96
  %v1423 = vpop.permute.xlu0 %1422
  %v1425 = vsel %vm1031, %v972, 0
  %v1428 = vsel %vm1031, %v1423, 0
  %1430 = vmatprep.subr.bf16.mxu0 0
  %1431 = vmatpush1.bf16.xpose.msra.mxu0 %v1428
  %1432 = vmatprep.subr.bf16.mxu0 0
  %1433 = vmatpush1.bf16.xpose.msra.mxu0 0
  %1434 = vmatprep.subr.bf16.mxu0 0
  %1435 = vmatpush1.bf16.xpose.msra.mxu0 0
  %1436 = vmatprep.subr.bf16.mxu0 0
  %1437 = vmatpush1.bf16.xpose.msra.mxu0 0
  %1438 = vmatprep.subr.bf16.mxu0 0
  %1439 = vmatpush1.bf16.xpose.msra.mxu0 0
  %1440 = vmatprep.subr.bf16.mxu0 0
  %1441 = vmatpush1.bf16.xpose.msra.mxu0 0
  %1442 = vmatprep.subr.bf16.mxu0 0
  %1443 = vmatpush1.bf16.xpose.msra.mxu0 0
  %1444 = vmatprep.subr.bf16.mxu0 0
  %1445 = vmatpush1.bf16.xpose.msra.mxu0 0
  %1446 = vmatprep.subr.bf16.mxu0 0
  %1447 = vmatpush1.bf16.xpose.msra.mxu0 0
  %1448 = vmatprep.subr.bf16.mxu0 0
  %1449 = vmatpush1.bf16.xpose.msra.mxu0 0
  %1450 = vmatprep.subr.bf16.mxu0 0
  %1451 = vmatpush1.bf16.xpose.msra.mxu0 0
  %1452 = vmatprep.subr.bf16.mxu0 0
  %1453 = vmatpush1.bf16.xpose.msra.mxu0 0
  %1454 = vmatprep.subr.bf16.mxu0 0
  %1455 = vmatpush1.bf16.xpose.msra.mxu0 0
  %1456 = vmatprep.subr.bf16.mxu0 0
  %1457 = vmatpush1.bf16.xpose.msra.mxu0 0
  %1458 = vmatprep.subr.bf16.mxu0 0
  %1459 = vmatpush1.bf16.xpose.msra.mxu0 0
  %1460 = vmatprep.subr.bf16.mxu0 0
  %1461 = vmatpush1.bf16.xpose.msra.mxu0 0
  %1462 = vmatprep.mubr.bf16.mxu0 0
  %1463 = vmatmul.mubr.bf16.gmra.mrb[0].mxu0 %v1425
  %v1464 = vpop.f32.mrb[0].mxu0
  %v1465 = vadd.f32 0.0, %v1464
  %v1466 = vpop.f32.mrb[0].mxu0
  %v1467 = vpop.f32.mrb[0].mxu0
  %v1468 = vpop.f32.mrb[0].mxu0
  %1469 = vdwg.mxu0
  %1471 = vrot.lane.b32.xlu0 %v973, 96
  %v1472 = vpop.permute.xlu0 %1471
  %v1474 = vsel %vm1031, %v973, 0
  %v1477 = vsel %vm1031, %v1472, 0
  %1479 = vmatprep.subr.bf16.mxu0 0
  %1480 = vmatpush1.bf16.xpose.msra.mxu0 %v1477
  %1481 = vmatprep.subr.bf16.mxu0 0
  %1482 = vmatpush1.bf16.xpose.msra.mxu0 0
  %1483 = vmatprep.subr.bf16.mxu0 0
  %1484 = vmatpush1.bf16.xpose.msra.mxu0 0
  %1485 = vmatprep.subr.bf16.mxu0 0
  %1486 = vmatpush1.bf16.xpose.msra.mxu0 0
  %1487 = vmatprep.subr.bf16.mxu0 0
  %1488 = vmatpush1.bf16.xpose.msra.mxu0 0
  %1489 = vmatprep.subr.bf16.mxu0 0
  %1490 = vmatpush1.bf16.xpose.msra.mxu0 0
  %1491 = vmatprep.subr.bf16.mxu0 0
  %1492 = vmatpush1.bf16.xpose.msra.mxu0 0
  %1493 = vmatprep.subr.bf16.mxu0 0
  %1494 = vmatpush1.bf16.xpose.msra.mxu0 0
  %1495 = vmatprep.subr.bf16.mxu0 0
  %1496 = vmatpush1.bf16.xpose.msra.mxu0 0
  %1497 = vmatprep.subr.bf16.mxu0 0
  %1498 = vmatpush1.bf16.xpose.msra.mxu0 0
  %1499 = vmatprep.subr.bf16.mxu0 0
  %1500 = vmatpush1.bf16.xpose.msra.mxu0 0
  %1501 = vmatprep.subr.bf16.mxu0 0
  %1502 = vmatpush1.bf16.xpose.msra.mxu0 0
  %1503 = vmatprep.subr.bf16.mxu0 0
  %1504 = vmatpush1.bf16.xpose.msra.mxu0 0
  %1505 = vmatprep.subr.bf16.mxu0 0
  %1506 = vmatpush1.bf16.xpose.msra.mxu0 0
  %1507 = vmatprep.subr.bf16.mxu0 0
  %1508 = vmatpush1.bf16.xpose.msra.mxu0 0
  %1509 = vmatprep.subr.bf16.mxu0 0
  %1510 = vmatpush1.bf16.xpose.msra.mxu0 0
  %1511 = vmatprep.mubr.bf16.mxu0 0
  %1512 = vmatmul.mubr.bf16.gmra.mrb[0].mxu0 %v1474
  %v1513 = vpop.f32.mrb[0].mxu0
  %v1514 = vadd.f32 0.0, %v1513
  %v1515 = vpop.f32.mrb[0].mxu0
  %v1516 = vpop.f32.mrb[0].mxu0
  %v1517 = vpop.f32.mrb[0].mxu0
  %1518 = vdwg.mxu0
  %1520 = vrot.lane.b32.xlu0 %v974, 96
  %v1521 = vpop.permute.xlu0 %1520
  %v1523 = vsel %vm1031, %v974, 0
  %v1526 = vsel %vm1031, %v1521, 0
  %1528 = vmatprep.subr.bf16.mxu0 0
  %1529 = vmatpush1.bf16.xpose.msra.mxu0 %v1526
  %1530 = vmatprep.subr.bf16.mxu0 0
  %1531 = vmatpush1.bf16.xpose.msra.mxu0 0
  %1532 = vmatprep.subr.bf16.mxu0 0
  %1533 = vmatpush1.bf16.xpose.msra.mxu0 0
  %1534 = vmatprep.subr.bf16.mxu0 0
  %1535 = vmatpush1.bf16.xpose.msra.mxu0 0
  %1536 = vmatprep.subr.bf16.mxu0 0
  %1537 = vmatpush1.bf16.xpose.msra.mxu0 0
  %1538 = vmatprep.subr.bf16.mxu0 0
  %1539 = vmatpush1.bf16.xpose.msra.mxu0 0
  %1540 = vmatprep.subr.bf16.mxu0 0
  %1541 = vmatpush1.bf16.xpose.msra.mxu0 0
  %1542 = vmatprep.subr.bf16.mxu0 0
  %1543 = vmatpush1.bf16.xpose.msra.mxu0 0
  %1544 = vmatprep.subr.bf16.mxu0 0
  %1545 = vmatpush1.bf16.xpose.msra.mxu0 0
  %1546 = vmatprep.subr.bf16.mxu0 0
  %1547 = vmatpush1.bf16.xpose.msra.mxu0 0
  %1548 = vmatprep.subr.bf16.mxu0 0
  %1549 = vmatpush1.bf16.xpose.msra.mxu0 0
  %1550 = vmatprep.subr.bf16.mxu0 0
  %1551 = vmatpush1.bf16.xpose.msra.mxu0 0
  %1552 = vmatprep.subr.bf16.mxu0 0
  %1553 = vmatpush1.bf16.xpose.msra.mxu0 0
  %1554 = vmatprep.subr.bf16.mxu0 0
  %1555 = vmatpush1.bf16.xpose.msra.mxu0 0
  %1556 = vmatprep.subr.bf16.mxu0 0
  %1557 = vmatpush1.bf16.xpose.msra.mxu0 0
  %1558 = vmatprep.subr.bf16.mxu0 0
  %1559 = vmatpush1.bf16.xpose.msra.mxu0 0
  %1560 = vmatprep.mubr.bf16.mxu0 0
  %1561 = vmatmul.mubr.bf16.gmra.mrb[0].mxu0 %v1523
  %v1562 = vpop.f32.mrb[0].mxu0
  %v1563 = vadd.f32 0.0, %v1562
  %v1564 = vpop.f32.mrb[0].mxu0
  %v1565 = vpop.f32.mrb[0].mxu0
  %v1566 = vpop.f32.mrb[0].mxu0
  %1567 = vdwg.mxu0
  %1569 = vrot.lane.b32.xlu0 %v975, 96
  %v1570 = vpop.permute.xlu0 %1569
  %v1572 = vsel %vm1031, %v975, 0
  %v1575 = vsel %vm1031, %v1570, 0
  %1577 = vmatprep.subr.bf16.mxu0 0
  %1578 = vmatpush1.bf16.xpose.msra.mxu0 %v1575
  %1579 = vmatprep.subr.bf16.mxu0 0
  %1580 = vmatpush1.bf16.xpose.msra.mxu0 0
  %1581 = vmatprep.subr.bf16.mxu0 0
  %1582 = vmatpush1.bf16.xpose.msra.mxu0 0
  %1583 = vmatprep.subr.bf16.mxu0 0
  %1584 = vmatpush1.bf16.xpose.msra.mxu0 0
  %1585 = vmatprep.subr.bf16.mxu0 0
  %1586 = vmatpush1.bf16.xpose.msra.mxu0 0
  %1587 = vmatprep.subr.bf16.mxu0 0
  %1588 = vmatpush1.bf16.xpose.msra.mxu0 0
  %1589 = vmatprep.subr.bf16.mxu0 0
  %1590 = vmatpush1.bf16.xpose.msra.mxu0 0
  %1591 = vmatprep.subr.bf16.mxu0 0
  %1592 = vmatpush1.bf16.xpose.msra.mxu0 0
  %1593 = vmatprep.subr.bf16.mxu0 0
  %1594 = vmatpush1.bf16.xpose.msra.mxu0 0
  %1595 = vmatprep.subr.bf16.mxu0 0
  %1596 = vmatpush1.bf16.xpose.msra.mxu0 0
  %1597 = vmatprep.subr.bf16.mxu0 0
  %1598 = vmatpush1.bf16.xpose.msra.mxu0 0
  %1599 = vmatprep.subr.bf16.mxu0 0
  %1600 = vmatpush1.bf16.xpose.msra.mxu0 0
  %1601 = vmatprep.subr.bf16.mxu0 0
  %1602 = vmatpush1.bf16.xpose.msra.mxu0 0
  %1603 = vmatprep.subr.bf16.mxu0 0
  %1604 = vmatpush1.bf16.xpose.msra.mxu0 0
  %1605 = vmatprep.subr.bf16.mxu0 0
  %1606 = vmatpush1.bf16.xpose.msra.mxu0 0
  %1607 = vmatprep.subr.bf16.mxu0 0
  %1608 = vmatpush1.bf16.xpose.msra.mxu0 0
  %1609 = vmatprep.mubr.bf16.mxu0 0
  %1610 = vmatmul.mubr.bf16.gmra.mrb[0].mxu0 %v1572
  %v1611 = vpop.f32.mrb[0].mxu0
  %v1612 = vadd.f32 0.0, %v1611
  %v1613 = vpop.f32.mrb[0].mxu0
  %v1614 = vpop.f32.mrb[0].mxu0
  %v1615 = vpop.f32.mrb[0].mxu0
  %1616 = vdwg.mxu0
  %1618 = vrot.lane.b32.xlu0 %v976, 96
  %v1619 = vpop.permute.xlu0 %1618
  %v1621 = vsel %vm1031, %v976, 0
  %v1624 = vsel %vm1031, %v1619, 0
  %1626 = vmatprep.subr.bf16.mxu0 0
  %1627 = vmatpush1.bf16.xpose.msra.mxu0 %v1624
  %1628 = vmatprep.subr.bf16.mxu0 0
  %1629 = vmatpush1.bf16.xpose.msra.mxu0 0
  %1630 = vmatprep.subr.bf16.mxu0 0
  %1631 = vmatpush1.bf16.xpose.msra.mxu0 0
  %1632 = vmatprep.subr.bf16.mxu0 0
  %1633 = vmatpush1.bf16.xpose.msra.mxu0 0
  %1634 = vmatprep.subr.bf16.mxu0 0
  %1635 = vmatpush1.bf16.xpose.msra.mxu0 0
  %1636 = vmatprep.subr.bf16.mxu0 0
  %1637 = vmatpush1.bf16.xpose.msra.mxu0 0
  %1638 = vmatprep.subr.bf16.mxu0 0
  %1639 = vmatpush1.bf16.xpose.msra.mxu0 0
  %1640 = vmatprep.subr.bf16.mxu0 0
  %1641 = vmatpush1.bf16.xpose.msra.mxu0 0
  %1642 = vmatprep.subr.bf16.mxu0 0
  %1643 = vmatpush1.bf16.xpose.msra.mxu0 0
  %1644 = vmatprep.subr.bf16.mxu0 0
  %1645 = vmatpush1.bf16.xpose.msra.mxu0 0
  %1646 = vmatprep.subr.bf16.mxu0 0
  %1647 = vmatpush1.bf16.xpose.msra.mxu0 0
  %1648 = vmatprep.subr.bf16.mxu0 0
  %1649 = vmatpush1.bf16.xpose.msra.mxu0 0
  %1650 = vmatprep.subr.bf16.mxu0 0
  %1651 = vmatpush1.bf16.xpose.msra.mxu0 0
  %1652 = vmatprep.subr.bf16.mxu0 0
  %1653 = vmatpush1.bf16.xpose.msra.mxu0 0
  %1654 = vmatprep.subr.bf16.mxu0 0
  %1655 = vmatpush1.bf16.xpose.msra.mxu0 0
  %1656 = vmatprep.subr.bf16.mxu0 0
  %1657 = vmatpush1.bf16.xpose.msra.mxu0 0
  %1658 = vmatprep.mubr.bf16.mxu0 0
  %1659 = vmatmul.mubr.bf16.gmra.mrb[0].mxu0 %v1621
  %v1660 = vpop.f32.mrb[0].mxu0
  %v1661 = vadd.f32 0.0, %v1660
  %v1662 = vpop.f32.mrb[0].mxu0
  %v1663 = vpop.f32.mrb[0].mxu0
  %v1664 = vpop.f32.mrb[0].mxu0
  %1665 = vdwg.mxu0
  %1667 = vrot.lane.b32.xlu0 %v977, 96
  %v1668 = vpop.permute.xlu0 %1667
  %v1670 = vsel %vm1031, %v977, 0
  %v1673 = vsel %vm1031, %v1668, 0
  %1675 = vmatprep.subr.bf16.mxu0 0
  %1676 = vmatpush1.bf16.xpose.msra.mxu0 %v1673
  %1677 = vmatprep.subr.bf16.mxu0 0
  %1678 = vmatpush1.bf16.xpose.msra.mxu0 0
  %1679 = vmatprep.subr.bf16.mxu0 0
  %1680 = vmatpush1.bf16.xpose.msra.mxu0 0
  %1681 = vmatprep.subr.bf16.mxu0 0
  %1682 = vmatpush1.bf16.xpose.msra.mxu0 0
  %1683 = vmatprep.subr.bf16.mxu0 0
  %1684 = vmatpush1.bf16.xpose.msra.mxu0 0
  %1685 = vmatprep.subr.bf16.mxu0 0
  %1686 = vmatpush1.bf16.xpose.msra.mxu0 0
  %1687 = vmatprep.subr.bf16.mxu0 0
  %1688 = vmatpush1.bf16.xpose.msra.mxu0 0
  %1689 = vmatprep.subr.bf16.mxu0 0
  %1690 = vmatpush1.bf16.xpose.msra.mxu0 0
  %1691 = vmatprep.subr.bf16.mxu0 0
  %1692 = vmatpush1.bf16.xpose.msra.mxu0 0
  %1693 = vmatprep.subr.bf16.mxu0 0
  %1694 = vmatpush1.bf16.xpose.msra.mxu0 0
  %1695 = vmatprep.subr.bf16.mxu0 0
  %1696 = vmatpush1.bf16.xpose.msra.mxu0 0
  %1697 = vmatprep.subr.bf16.mxu0 0
  %1698 = vmatpush1.bf16.xpose.msra.mxu0 0
  %1699 = vmatprep.subr.bf16.mxu0 0
  %1700 = vmatpush1.bf16.xpose.msra.mxu0 0
  %1701 = vmatprep.subr.bf16.mxu0 0
  %1702 = vmatpush1.bf16.xpose.msra.mxu0 0
  %1703 = vmatprep.subr.bf16.mxu0 0
  %1704 = vmatpush1.bf16.xpose.msra.mxu0 0
  %1705 = vmatprep.subr.bf16.mxu0 0
  %1706 = vmatpush1.bf16.xpose.msra.mxu0 0
  %1707 = vmatprep.mubr.bf16.mxu0 0
  %1708 = vmatmul.mubr.bf16.gmra.mrb[0].mxu0 %v1670
  %v1709 = vpop.f32.mrb[0].mxu0
  %v1710 = vadd.f32 0.0, %v1709
  %v1711 = vpop.f32.mrb[0].mxu0
  %v1712 = vpop.f32.mrb[0].mxu0
  %v1713 = vpop.f32.mrb[0].mxu0
  %1714 = vdwg.mxu0
  %1716 = vrot.lane.b32.xlu0 %v978, 96
  %v1717 = vpop.permute.xlu0 %1716
  %v1719 = vsel %vm1031, %v978, 0
  %v1722 = vsel %vm1031, %v1717, 0
  %1724 = vmatprep.subr.bf16.mxu0 0
  %1725 = vmatpush1.bf16.xpose.msra.mxu0 %v1722
  %1726 = vmatprep.subr.bf16.mxu0 0
  %1727 = vmatpush1.bf16.xpose.msra.mxu0 0
  %1728 = vmatprep.subr.bf16.mxu0 0
  %1729 = vmatpush1.bf16.xpose.msra.mxu0 0
  %1730 = vmatprep.subr.bf16.mxu0 0
  %1731 = vmatpush1.bf16.xpose.msra.mxu0 0
  %1732 = vmatprep.subr.bf16.mxu0 0
  %1733 = vmatpush1.bf16.xpose.msra.mxu0 0
  %1734 = vmatprep.subr.bf16.mxu0 0
  %1735 = vmatpush1.bf16.xpose.msra.mxu0 0
  %1736 = vmatprep.subr.bf16.mxu0 0
  %1737 = vmatpush1.bf16.xpose.msra.mxu0 0
  %1738 = vmatprep.subr.bf16.mxu0 0
  %1739 = vmatpush1.bf16.xpose.msra.mxu0 0
  %1740 = vmatprep.subr.bf16.mxu0 0
  %1741 = vmatpush1.bf16.xpose.msra.mxu0 0
  %1742 = vmatprep.subr.bf16.mxu0 0
  %1743 = vmatpush1.bf16.xpose.msra.mxu0 0
  %1744 = vmatprep.subr.bf16.mxu0 0
  %1745 = vmatpush1.bf16.xpose.msra.mxu0 0
  %1746 = vmatprep.subr.bf16.mxu0 0
  %1747 = vmatpush1.bf16.xpose.msra.mxu0 0
  %1748 = vmatprep.subr.bf16.mxu0 0
  %1749 = vmatpush1.bf16.xpose.msra.mxu0 0
  %1750 = vmatprep.subr.bf16.mxu0 0
  %1751 = vmatpush1.bf16.xpose.msra.mxu0 0
  %1752 = vmatprep.subr.bf16.mxu0 0
  %1753 = vmatpush1.bf16.xpose.msra.mxu0 0
  %1754 = vmatprep.subr.bf16.mxu0 0
  %1755 = vmatpush1.bf16.xpose.msra.mxu0 0
  %1756 = vmatprep.mubr.bf16.mxu0 0
  %1757 = vmatmul.mubr.bf16.gmra.mrb[0].mxu0 %v1719
  %v1758 = vpop.f32.mrb[0].mxu0
  %v1759 = vadd.f32 0.0, %v1758
  %v1760 = vpop.f32.mrb[0].mxu0
  %v1761 = vpop.f32.mrb[0].mxu0
  %v1762 = vpop.f32.mrb[0].mxu0
  %1763 = vdwg.mxu0
  %1765 = vrot.lane.b32.xlu0 %v979, 96
  %v1766 = vpop.permute.xlu0 %1765
  %v1768 = vsel %vm1031, %v979, 0
  %v1771 = vsel %vm1031, %v1766, 0
  %1773 = vmatprep.subr.bf16.mxu0 0
  %1774 = vmatpush1.bf16.xpose.msra.mxu0 %v1771
  %1775 = vmatprep.subr.bf16.mxu0 0
  %1776 = vmatpush1.bf16.xpose.msra.mxu0 0
  %1777 = vmatprep.subr.bf16.mxu0 0
  %1778 = vmatpush1.bf16.xpose.msra.mxu0 0
  %1779 = vmatprep.subr.bf16.mxu0 0
  %1780 = vmatpush1.bf16.xpose.msra.mxu0 0
  %1781 = vmatprep.subr.bf16.mxu0 0
  %1782 = vmatpush1.bf16.xpose.msra.mxu0 0
  %1783 = vmatprep.subr.bf16.mxu0 0
  %1784 = vmatpush1.bf16.xpose.msra.mxu0 0
  %1785 = vmatprep.subr.bf16.mxu0 0
  %1786 = vmatpush1.bf16.xpose.msra.mxu0 0
  %1787 = vmatprep.subr.bf16.mxu0 0
  %1788 = vmatpush1.bf16.xpose.msra.mxu0 0
  %1789 = vmatprep.subr.bf16.mxu0 0
  %1790 = vmatpush1.bf16.xpose.msra.mxu0 0
  %1791 = vmatprep.subr.bf16.mxu0 0
  %1792 = vmatpush1.bf16.xpose.msra.mxu0 0
  %1793 = vmatprep.subr.bf16.mxu0 0
  %1794 = vmatpush1.bf16.xpose.msra.mxu0 0
  %1795 = vmatprep.subr.bf16.mxu0 0
  %1796 = vmatpush1.bf16.xpose.msra.mxu0 0
  %1797 = vmatprep.subr.bf16.mxu0 0
  %1798 = vmatpush1.bf16.xpose.msra.mxu0 0
  %1799 = vmatprep.subr.bf16.mxu0 0
  %1800 = vmatpush1.bf16.xpose.msra.mxu0 0
  %1801 = vmatprep.subr.bf16.mxu0 0
  %1802 = vmatpush1.bf16.xpose.msra.mxu0 0
  %1803 = vmatprep.subr.bf16.mxu0 0
  %1804 = vmatpush1.bf16.xpose.msra.mxu0 0
  %1805 = vmatprep.mubr.bf16.mxu0 0
  %1806 = vmatmul.mubr.bf16.gmra.mrb[0].mxu0 %v1768
  %v1807 = vpop.f32.mrb[0].mxu0
  %v1808 = vadd.f32 0.0, %v1807
  %v1809 = vpop.f32.mrb[0].mxu0
  %v1810 = vpop.f32.mrb[0].mxu0
  %v1811 = vpop.f32.mrb[0].mxu0
  %1812 = vdwg.mxu0
  %1814 = vrot.lane.b32.xlu0 %v980, 96
  %v1815 = vpop.permute.xlu0 %1814
  %v1817 = vsel %vm1031, %v980, 0
  %v1820 = vsel %vm1031, %v1815, 0
  %1822 = vmatprep.subr.bf16.mxu0 0
  %1823 = vmatpush1.bf16.xpose.msra.mxu0 %v1820
  %1824 = vmatprep.subr.bf16.mxu0 0
  %1825 = vmatpush1.bf16.xpose.msra.mxu0 0
  %1826 = vmatprep.subr.bf16.mxu0 0
  %1827 = vmatpush1.bf16.xpose.msra.mxu0 0
  %1828 = vmatprep.subr.bf16.mxu0 0
  %1829 = vmatpush1.bf16.xpose.msra.mxu0 0
  %1830 = vmatprep.subr.bf16.mxu0 0
  %1831 = vmatpush1.bf16.xpose.msra.mxu0 0
  %1832 = vmatprep.subr.bf16.mxu0 0
  %1833 = vmatpush1.bf16.xpose.msra.mxu0 0
  %1834 = vmatprep.subr.bf16.mxu0 0
  %1835 = vmatpush1.bf16.xpose.msra.mxu0 0
  %1836 = vmatprep.subr.bf16.mxu0 0
  %1837 = vmatpush1.bf16.xpose.msra.mxu0 0
  %1838 = vmatprep.subr.bf16.mxu0 0
  %1839 = vmatpush1.bf16.xpose.msra.mxu0 0
  %1840 = vmatprep.subr.bf16.mxu0 0
  %1841 = vmatpush1.bf16.xpose.msra.mxu0 0
  %1842 = vmatprep.subr.bf16.mxu0 0
  %1843 = vmatpush1.bf16.xpose.msra.mxu0 0
  %1844 = vmatprep.subr.bf16.mxu0 0
  %1845 = vmatpush1.bf16.xpose.msra.mxu0 0
  %1846 = vmatprep.subr.bf16.mxu0 0
  %1847 = vmatpush1.bf16.xpose.msra.mxu0 0
  %1848 = vmatprep.subr.bf16.mxu0 0
  %1849 = vmatpush1.bf16.xpose.msra.mxu0 0
  %1850 = vmatprep.subr.bf16.mxu0 0
  %1851 = vmatpush1.bf16.xpose.msra.mxu0 0
  %1852 = vmatprep.subr.bf16.mxu0 0
  %1853 = vmatpush1.bf16.xpose.msra.mxu0 0
  %1854 = vmatprep.mubr.bf16.mxu0 0
  %1855 = vmatmul.mubr.bf16.gmra.mrb[0].mxu0 %v1817
  %v1856 = vpop.f32.mrb[0].mxu0
  %v1857 = vadd.f32 0.0, %v1856
  %v1858 = vpop.f32.mrb[0].mxu0
  %v1859 = vpop.f32.mrb[0].mxu0
  %v1860 = vpop.f32.mrb[0].mxu0
  %1861 = vdwg.mxu0
  %1863 = vrot.lane.b32.xlu0 %v981, 96
  %v1864 = vpop.permute.xlu0 %1863
  %v1866 = vsel %vm1031, %v981, 0
  %v1869 = vsel %vm1031, %v1864, 0
  %1871 = vmatprep.subr.bf16.mxu0 0
  %1872 = vmatpush1.bf16.xpose.msra.mxu0 %v1869
  %1873 = vmatprep.subr.bf16.mxu0 0
  %1874 = vmatpush1.bf16.xpose.msra.mxu0 0
  %1875 = vmatprep.subr.bf16.mxu0 0
  %1876 = vmatpush1.bf16.xpose.msra.mxu0 0
  %1877 = vmatprep.subr.bf16.mxu0 0
  %1878 = vmatpush1.bf16.xpose.msra.mxu0 0
  %1879 = vmatprep.subr.bf16.mxu0 0
  %1880 = vmatpush1.bf16.xpose.msra.mxu0 0
  %1881 = vmatprep.subr.bf16.mxu0 0
  %1882 = vmatpush1.bf16.xpose.msra.mxu0 0
  %1883 = vmatprep.subr.bf16.mxu0 0
  %1884 = vmatpush1.bf16.xpose.msra.mxu0 0
  %1885 = vmatprep.subr.bf16.mxu0 0
  %1886 = vmatpush1.bf16.xpose.msra.mxu0 0
  %1887 = vmatprep.subr.bf16.mxu0 0
  %1888 = vmatpush1.bf16.xpose.msra.mxu0 0
  %1889 = vmatprep.subr.bf16.mxu0 0
  %1890 = vmatpush1.bf16.xpose.msra.mxu0 0
  %1891 = vmatprep.subr.bf16.mxu0 0
  %1892 = vmatpush1.bf16.xpose.msra.mxu0 0
  %1893 = vmatprep.subr.bf16.mxu0 0
  %1894 = vmatpush1.bf16.xpose.msra.mxu0 0
  %1895 = vmatprep.subr.bf16.mxu0 0
  %1896 = vmatpush1.bf16.xpose.msra.mxu0 0
  %1897 = vmatprep.subr.bf16.mxu0 0
  %1898 = vmatpush1.bf16.xpose.msra.mxu0 0
  %1899 = vmatprep.subr.bf16.mxu0 0
  %1900 = vmatpush1.bf16.xpose.msra.mxu0 0
  %1901 = vmatprep.subr.bf16.mxu0 0
  %1902 = vmatpush1.bf16.xpose.msra.mxu0 0
  %1903 = vmatprep.mubr.bf16.mxu0 0
  %1904 = vmatmul.mubr.bf16.gmra.mrb[0].mxu0 %v1866
  %v1905 = vpop.f32.mrb[0].mxu0
  %v1906 = vadd.f32 0.0, %v1905
  %v1907 = vpop.f32.mrb[0].mxu0
  %v1908 = vpop.f32.mrb[0].mxu0
  %v1909 = vpop.f32.mrb[0].mxu0
  %1910 = vdwg.mxu0
  %1912 = vrot.lane.b32.xlu0 %v982, 96
  %v1913 = vpop.permute.xlu0 %1912
  %v1915 = vsel %vm1031, %v982, 0
  %v1918 = vsel %vm1031, %v1913, 0
  %1920 = vmatprep.subr.bf16.mxu0 0
  %1921 = vmatpush1.bf16.xpose.msra.mxu0 %v1918
  %1922 = vmatprep.subr.bf16.mxu0 0
  %1923 = vmatpush1.bf16.xpose.msra.mxu0 0
  %1924 = vmatprep.subr.bf16.mxu0 0
  %1925 = vmatpush1.bf16.xpose.msra.mxu0 0
  %1926 = vmatprep.subr.bf16.mxu0 0
  %1927 = vmatpush1.bf16.xpose.msra.mxu0 0
  %1928 = vmatprep.subr.bf16.mxu0 0
  %1929 = vmatpush1.bf16.xpose.msra.mxu0 0
  %1930 = vmatprep.subr.bf16.mxu0 0
  %1931 = vmatpush1.bf16.xpose.msra.mxu0 0
  %1932 = vmatprep.subr.bf16.mxu0 0
  %1933 = vmatpush1.bf16.xpose.msra.mxu0 0
  %1934 = vmatprep.subr.bf16.mxu0 0
  %1935 = vmatpush1.bf16.xpose.msra.mxu0 0
  %1936 = vmatprep.subr.bf16.mxu0 0
  %1937 = vmatpush1.bf16.xpose.msra.mxu0 0
  %1938 = vmatprep.subr.bf16.mxu0 0
  %1939 = vmatpush1.bf16.xpose.msra.mxu0 0
  %1940 = vmatprep.subr.bf16.mxu0 0
  %1941 = vmatpush1.bf16.xpose.msra.mxu0 0
  %1942 = vmatprep.subr.bf16.mxu0 0
  %1943 = vmatpush1.bf16.xpose.msra.mxu0 0
  %1944 = vmatprep.subr.bf16.mxu0 0
  %1945 = vmatpush1.bf16.xpose.msra.mxu0 0
  %1946 = vmatprep.subr.bf16.mxu0 0
  %1947 = vmatpush1.bf16.xpose.msra.mxu0 0
  %1948 = vmatprep.subr.bf16.mxu0 0
  %1949 = vmatpush1.bf16.xpose.msra.mxu0 0
  %1950 = vmatprep.subr.bf16.mxu0 0
  %1951 = vmatpush1.bf16.xpose.msra.mxu0 0
  %1952 = vmatprep.mubr.bf16.mxu0 0
  %1953 = vmatmul.mubr.bf16.gmra.mrb[0].mxu0 %v1915
  %v1954 = vpop.f32.mrb[0].mxu0
  %v1955 = vadd.f32 0.0, %v1954
  %v1956 = vpop.f32.mrb[0].mxu0
  %v1957 = vpop.f32.mrb[0].mxu0
  %v1958 = vpop.f32.mrb[0].mxu0
  %1959 = vdwg.mxu0
  %1961 = vrot.lane.b32.xlu0 %v983, 96
  %v1962 = vpop.permute.xlu0 %1961
  %v1964 = vsel %vm1031, %v983, 0
  %v1967 = vsel %vm1031, %v1962, 0
  %1969 = vmatprep.subr.bf16.mxu0 0
  %1970 = vmatpush1.bf16.xpose.msra.mxu0 %v1967
  %1971 = vmatprep.subr.bf16.mxu0 0
  %1972 = vmatpush1.bf16.xpose.msra.mxu0 0
  %1973 = vmatprep.subr.bf16.mxu0 0
  %1974 = vmatpush1.bf16.xpose.msra.mxu0 0
  %1975 = vmatprep.subr.bf16.mxu0 0
  %1976 = vmatpush1.bf16.xpose.msra.mxu0 0
  %1977 = vmatprep.subr.bf16.mxu0 0
  %1978 = vmatpush1.bf16.xpose.msra.mxu0 0
  %1979 = vmatprep.subr.bf16.mxu0 0
  %1980 = vmatpush1.bf16.xpose.msra.mxu0 0
  %1981 = vmatprep.subr.bf16.mxu0 0
  %1982 = vmatpush1.bf16.xpose.msra.mxu0 0
  %1983 = vmatprep.subr.bf16.mxu0 0
  %1984 = vmatpush1.bf16.xpose.msra.mxu0 0
  %1985 = vmatprep.subr.bf16.mxu0 0
  %1986 = vmatpush1.bf16.xpose.msra.mxu0 0
  %1987 = vmatprep.subr.bf16.mxu0 0
  %1988 = vmatpush1.bf16.xpose.msra.mxu0 0
  %1989 = vmatprep.subr.bf16.mxu0 0
  %1990 = vmatpush1.bf16.xpose.msra.mxu0 0
  %1991 = vmatprep.subr.bf16.mxu0 0
  %1992 = vmatpush1.bf16.xpose.msra.mxu0 0
  %1993 = vmatprep.subr.bf16.mxu0 0
  %1994 = vmatpush1.bf16.xpose.msra.mxu0 0
  %1995 = vmatprep.subr.bf16.mxu0 0
  %1996 = vmatpush1.bf16.xpose.msra.mxu0 0
  %1997 = vmatprep.subr.bf16.mxu0 0
  %1998 = vmatpush1.bf16.xpose.msra.mxu0 0
  %1999 = vmatprep.subr.bf16.mxu0 0
  %2000 = vmatpush1.bf16.xpose.msra.mxu0 0
  %2001 = vmatprep.mubr.bf16.mxu0 0
  %2002 = vmatmul.mubr.bf16.gmra.mrb[0].mxu0 %v1964
  %v2003 = vpop.f32.mrb[0].mxu0
  %v2004 = vadd.f32 0.0, %v2003
  %v2005 = vpop.f32.mrb[0].mxu0
  %v2006 = vpop.f32.mrb[0].mxu0
  %v2007 = vpop.f32.mrb[0].mxu0
  %2008 = vdwg.mxu0
  %2010 = vrot.lane.b32.xlu0 %v984, 96
  %v2011 = vpop.permute.xlu0 %2010
  %v2013 = vsel %vm1031, %v984, 0
  %v2016 = vsel %vm1031, %v2011, 0
  %2018 = vmatprep.subr.bf16.mxu0 0
  %2019 = vmatpush1.bf16.xpose.msra.mxu0 %v2016
  %2020 = vmatprep.subr.bf16.mxu0 0
  %2021 = vmatpush1.bf16.xpose.msra.mxu0 0
  %2022 = vmatprep.subr.bf16.mxu0 0
  %2023 = vmatpush1.bf16.xpose.msra.mxu0 0
  %2024 = vmatprep.subr.bf16.mxu0 0
  %2025 = vmatpush1.bf16.xpose.msra.mxu0 0
  %2026 = vmatprep.subr.bf16.mxu0 0
  %2027 = vmatpush1.bf16.xpose.msra.mxu0 0
  %2028 = vmatprep.subr.bf16.mxu0 0
  %2029 = vmatpush1.bf16.xpose.msra.mxu0 0
  %2030 = vmatprep.subr.bf16.mxu0 0
  %2031 = vmatpush1.bf16.xpose.msra.mxu0 0
  %2032 = vmatprep.subr.bf16.mxu0 0
  %2033 = vmatpush1.bf16.xpose.msra.mxu0 0
  %2034 = vmatprep.subr.bf16.mxu0 0
  %2035 = vmatpush1.bf16.xpose.msra.mxu0 0
  %2036 = vmatprep.subr.bf16.mxu0 0
  %2037 = vmatpush1.bf16.xpose.msra.mxu0 0
  %2038 = vmatprep.subr.bf16.mxu0 0
  %2039 = vmatpush1.bf16.xpose.msra.mxu0 0
  %2040 = vmatprep.subr.bf16.mxu0 0
  %2041 = vmatpush1.bf16.xpose.msra.mxu0 0
  %2042 = vmatprep.subr.bf16.mxu0 0
  %2043 = vmatpush1.bf16.xpose.msra.mxu0 0
  %2044 = vmatprep.subr.bf16.mxu0 0
  %2045 = vmatpush1.bf16.xpose.msra.mxu0 0
  %2046 = vmatprep.subr.bf16.mxu0 0
  %2047 = vmatpush1.bf16.xpose.msra.mxu0 0
  %2048 = vmatprep.subr.bf16.mxu0 0
  %2049 = vmatpush1.bf16.xpose.msra.mxu0 0
  %2050 = vmatprep.mubr.bf16.mxu0 0
  %2051 = vmatmul.mubr.bf16.gmra.mrb[0].mxu0 %v2013
  %v2052 = vpop.f32.mrb[0].mxu0
  %v2053 = vadd.f32 0.0, %v2052
  %v2054 = vpop.f32.mrb[0].mxu0
  %v2055 = vpop.f32.mrb[0].mxu0
  %v2056 = vpop.f32.mrb[0].mxu0
  %2057 = vdwg.mxu0
  %2059 = vrot.lane.b32.xlu0 %v985, 96
  %v2060 = vpop.permute.xlu0 %2059
  %v2062 = vsel %vm1031, %v985, 0
  %v2065 = vsel %vm1031, %v2060, 0
  %2067 = vmatprep.subr.bf16.mxu0 0
  %2068 = vmatpush1.bf16.xpose.msra.mxu0 %v2065
  %2069 = vmatprep.subr.bf16.mxu0 0
  %2070 = vmatpush1.bf16.xpose.msra.mxu0 0
  %2071 = vmatprep.subr.bf16.mxu0 0
  %2072 = vmatpush1.bf16.xpose.msra.mxu0 0
  %2073 = vmatprep.subr.bf16.mxu0 0
  %2074 = vmatpush1.bf16.xpose.msra.mxu0 0
  %2075 = vmatprep.subr.bf16.mxu0 0
  %2076 = vmatpush1.bf16.xpose.msra.mxu0 0
  %2077 = vmatprep.subr.bf16.mxu0 0
  %2078 = vmatpush1.bf16.xpose.msra.mxu0 0
  %2079 = vmatprep.subr.bf16.mxu0 0
  %2080 = vmatpush1.bf16.xpose.msra.mxu0 0
  %2081 = vmatprep.subr.bf16.mxu0 0
  %2082 = vmatpush1.bf16.xpose.msra.mxu0 0
  %2083 = vmatprep.subr.bf16.mxu0 0
  %2084 = vmatpush1.bf16.xpose.msra.mxu0 0
  %2085 = vmatprep.subr.bf16.mxu0 0
  %2086 = vmatpush1.bf16.xpose.msra.mxu0 0
  %2087 = vmatprep.subr.bf16.mxu0 0
  %2088 = vmatpush1.bf16.xpose.msra.mxu0 0
  %2089 = vmatprep.subr.bf16.mxu0 0
  %2090 = vmatpush1.bf16.xpose.msra.mxu0 0
  %2091 = vmatprep.subr.bf16.mxu0 0
  %2092 = vmatpush1.bf16.xpose.msra.mxu0 0
  %2093 = vmatprep.subr.bf16.mxu0 0
  %2094 = vmatpush1.bf16.xpose.msra.mxu0 0
  %2095 = vmatprep.subr.bf16.mxu0 0
  %2096 = vmatpush1.bf16.xpose.msra.mxu0 0
  %2097 = vmatprep.subr.bf16.mxu0 0
  %2098 = vmatpush1.bf16.xpose.msra.mxu0 0
  %2099 = vmatprep.mubr.bf16.mxu0 0
  %2100 = vmatmul.mubr.bf16.gmra.mrb[0].mxu0 %v2062
  %v2101 = vpop.f32.mrb[0].mxu0
  %v2102 = vadd.f32 0.0, %v2101
  %v2103 = vpop.f32.mrb[0].mxu0
  %v2104 = vpop.f32.mrb[0].mxu0
  %v2105 = vpop.f32.mrb[0].mxu0
  %2106 = vdwg.mxu0
  %2108 = vrot.lane.b32.xlu0 %v986, 96
  %v2109 = vpop.permute.xlu0 %2108
  %v2111 = vsel %vm1031, %v986, 0
  %v2114 = vsel %vm1031, %v2109, 0
  %2116 = vmatprep.subr.bf16.mxu0 0
  %2117 = vmatpush1.bf16.xpose.msra.mxu0 %v2114
  %2118 = vmatprep.subr.bf16.mxu0 0
  %2119 = vmatpush1.bf16.xpose.msra.mxu0 0
  %2120 = vmatprep.subr.bf16.mxu0 0
  %2121 = vmatpush1.bf16.xpose.msra.mxu0 0
  %2122 = vmatprep.subr.bf16.mxu0 0
  %2123 = vmatpush1.bf16.xpose.msra.mxu0 0
  %2124 = vmatprep.subr.bf16.mxu0 0
  %2125 = vmatpush1.bf16.xpose.msra.mxu0 0
  %2126 = vmatprep.subr.bf16.mxu0 0
  %2127 = vmatpush1.bf16.xpose.msra.mxu0 0
  %2128 = vmatprep.subr.bf16.mxu0 0
  %2129 = vmatpush1.bf16.xpose.msra.mxu0 0
  %2130 = vmatprep.subr.bf16.mxu0 0
  %2131 = vmatpush1.bf16.xpose.msra.mxu0 0
  %2132 = vmatprep.subr.bf16.mxu0 0
  %2133 = vmatpush1.bf16.xpose.msra.mxu0 0
  %2134 = vmatprep.subr.bf16.mxu0 0
  %2135 = vmatpush1.bf16.xpose.msra.mxu0 0
  %2136 = vmatprep.subr.bf16.mxu0 0
  %2137 = vmatpush1.bf16.xpose.msra.mxu0 0
  %2138 = vmatprep.subr.bf16.mxu0 0
  %2139 = vmatpush1.bf16.xpose.msra.mxu0 0
  %2140 = vmatprep.subr.bf16.mxu0 0
  %2141 = vmatpush1.bf16.xpose.msra.mxu0 0
  %2142 = vmatprep.subr.bf16.mxu0 0
  %2143 = vmatpush1.bf16.xpose.msra.mxu0 0
  %2144 = vmatprep.subr.bf16.mxu0 0
  %2145 = vmatpush1.bf16.xpose.msra.mxu0 0
  %2146 = vmatprep.subr.bf16.mxu0 0
  %2147 = vmatpush1.bf16.xpose.msra.mxu0 0
  %2148 = vmatprep.mubr.bf16.mxu0 0
  %2149 = vmatmul.mubr.bf16.gmra.mrb[0].mxu0 %v2111
  %v2150 = vpop.f32.mrb[0].mxu0
  %v2151 = vadd.f32 0.0, %v2150
  %v2152 = vpop.f32.mrb[0].mxu0
  %v2153 = vpop.f32.mrb[0].mxu0
  %v2154 = vpop.f32.mrb[0].mxu0
  %2155 = vdwg.mxu0
  %2157 = vrot.lane.b32.xlu0 %v987, 96
  %v2158 = vpop.permute.xlu0 %2157
  %v2160 = vsel %vm1031, %v987, 0
  %v2163 = vsel %vm1031, %v2158, 0
  %2165 = vmatprep.subr.bf16.mxu0 0
  %2166 = vmatpush1.bf16.xpose.msra.mxu0 %v2163
  %2167 = vmatprep.subr.bf16.mxu0 0
  %2168 = vmatpush1.bf16.xpose.msra.mxu0 0
  %2169 = vmatprep.subr.bf16.mxu0 0
  %2170 = vmatpush1.bf16.xpose.msra.mxu0 0
  %2171 = vmatprep.subr.bf16.mxu0 0
  %2172 = vmatpush1.bf16.xpose.msra.mxu0 0
  %2173 = vmatprep.subr.bf16.mxu0 0
  %2174 = vmatpush1.bf16.xpose.msra.mxu0 0
  %2175 = vmatprep.subr.bf16.mxu0 0
  %2176 = vmatpush1.bf16.xpose.msra.mxu0 0
  %2177 = vmatprep.subr.bf16.mxu0 0
  %2178 = vmatpush1.bf16.xpose.msra.mxu0 0
  %2179 = vmatprep.subr.bf16.mxu0 0
  %2180 = vmatpush1.bf16.xpose.msra.mxu0 0
  %2181 = vmatprep.subr.bf16.mxu0 0
  %2182 = vmatpush1.bf16.xpose.msra.mxu0 0
  %2183 = vmatprep.subr.bf16.mxu0 0
  %2184 = vmatpush1.bf16.xpose.msra.mxu0 0
  %2185 = vmatprep.subr.bf16.mxu0 0
  %2186 = vmatpush1.bf16.xpose.msra.mxu0 0
  %2187 = vmatprep.subr.bf16.mxu0 0
  %2188 = vmatpush1.bf16.xpose.msra.mxu0 0
  %2189 = vmatprep.subr.bf16.mxu0 0
  %2190 = vmatpush1.bf16.xpose.msra.mxu0 0
  %2191 = vmatprep.subr.bf16.mxu0 0
  %2192 = vmatpush1.bf16.xpose.msra.mxu0 0
  %2193 = vmatprep.subr.bf16.mxu0 0
  %2194 = vmatpush1.bf16.xpose.msra.mxu0 0
  %2195 = vmatprep.subr.bf16.mxu0 0
  %2196 = vmatpush1.bf16.xpose.msra.mxu0 0
  %2197 = vmatprep.mubr.bf16.mxu0 0
  %2198 = vmatmul.mubr.bf16.gmra.mrb[0].mxu0 %v2160
  %v2199 = vpop.f32.mrb[0].mxu0
  %v2200 = vadd.f32 0.0, %v2199
  %v2201 = vpop.f32.mrb[0].mxu0
  %v2202 = vpop.f32.mrb[0].mxu0
  %v2203 = vpop.f32.mrb[0].mxu0
  %2204 = vdwg.mxu0
  %2206 = vrot.lane.b32.xlu0 %v988, 96
  %v2207 = vpop.permute.xlu0 %2206
  %v2209 = vsel %vm1031, %v988, 0
  %v2212 = vsel %vm1031, %v2207, 0
  %2214 = vmatprep.subr.bf16.mxu0 0
  %2215 = vmatpush1.bf16.xpose.msra.mxu0 %v2212
  %2216 = vmatprep.subr.bf16.mxu0 0
  %2217 = vmatpush1.bf16.xpose.msra.mxu0 0
  %2218 = vmatprep.subr.bf16.mxu0 0
  %2219 = vmatpush1.bf16.xpose.msra.mxu0 0
  %2220 = vmatprep.subr.bf16.mxu0 0
  %2221 = vmatpush1.bf16.xpose.msra.mxu0 0
  %2222 = vmatprep.subr.bf16.mxu0 0
  %2223 = vmatpush1.bf16.xpose.msra.mxu0 0
  %2224 = vmatprep.subr.bf16.mxu0 0
  %2225 = vmatpush1.bf16.xpose.msra.mxu0 0
  %2226 = vmatprep.subr.bf16.mxu0 0
  %2227 = vmatpush1.bf16.xpose.msra.mxu0 0
  %2228 = vmatprep.subr.bf16.mxu0 0
  %2229 = vmatpush1.bf16.xpose.msra.mxu0 0
  %2230 = vmatprep.subr.bf16.mxu0 0
  %2231 = vmatpush1.bf16.xpose.msra.mxu0 0
  %2232 = vmatprep.subr.bf16.mxu0 0
  %2233 = vmatpush1.bf16.xpose.msra.mxu0 0
  %2234 = vmatprep.subr.bf16.mxu0 0
  %2235 = vmatpush1.bf16.xpose.msra.mxu0 0
  %2236 = vmatprep.subr.bf16.mxu0 0
  %2237 = vmatpush1.bf16.xpose.msra.mxu0 0
  %2238 = vmatprep.subr.bf16.mxu0 0
  %2239 = vmatpush1.bf16.xpose.msra.mxu0 0
  %2240 = vmatprep.subr.bf16.mxu0 0
  %2241 = vmatpush1.bf16.xpose.msra.mxu0 0
  %2242 = vmatprep.subr.bf16.mxu0 0
  %2243 = vmatpush1.bf16.xpose.msra.mxu0 0
  %2244 = vmatprep.subr.bf16.mxu0 0
  %2245 = vmatpush1.bf16.xpose.msra.mxu0 0
  %2246 = vmatprep.mubr.bf16.mxu0 0
  %2247 = vmatmul.mubr.bf16.gmra.mrb[0].mxu0 %v2209
  %v2248 = vpop.f32.mrb[0].mxu0
  %v2249 = vadd.f32 0.0, %v2248
  %v2250 = vpop.f32.mrb[0].mxu0
  %v2251 = vpop.f32.mrb[0].mxu0
  %v2252 = vpop.f32.mrb[0].mxu0
  %2253 = vdwg.mxu0
  %2255 = vrot.lane.b32.xlu0 %v989, 96
  %v2256 = vpop.permute.xlu0 %2255
  %v2258 = vsel %vm1031, %v989, 0
  %v2261 = vsel %vm1031, %v2256, 0
  %2263 = vmatprep.subr.bf16.mxu0 0
  %2264 = vmatpush1.bf16.xpose.msra.mxu0 %v2261
  %2265 = vmatprep.subr.bf16.mxu0 0
  %2266 = vmatpush1.bf16.xpose.msra.mxu0 0
  %2267 = vmatprep.subr.bf16.mxu0 0
  %2268 = vmatpush1.bf16.xpose.msra.mxu0 0
  %2269 = vmatprep.subr.bf16.mxu0 0
  %2270 = vmatpush1.bf16.xpose.msra.mxu0 0
  %2271 = vmatprep.subr.bf16.mxu0 0
  %2272 = vmatpush1.bf16.xpose.msra.mxu0 0
  %2273 = vmatprep.subr.bf16.mxu0 0
  %2274 = vmatpush1.bf16.xpose.msra.mxu0 0
  %2275 = vmatprep.subr.bf16.mxu0 0
  %2276 = vmatpush1.bf16.xpose.msra.mxu0 0
  %2277 = vmatprep.subr.bf16.mxu0 0
  %2278 = vmatpush1.bf16.xpose.msra.mxu0 0
  %2279 = vmatprep.subr.bf16.mxu0 0
  %2280 = vmatpush1.bf16.xpose.msra.mxu0 0
  %2281 = vmatprep.subr.bf16.mxu0 0
  %2282 = vmatpush1.bf16.xpose.msra.mxu0 0
  %2283 = vmatprep.subr.bf16.mxu0 0
  %2284 = vmatpush1.bf16.xpose.msra.mxu0 0
  %2285 = vmatprep.subr.bf16.mxu0 0
  %2286 = vmatpush1.bf16.xpose.msra.mxu0 0
  %2287 = vmatprep.subr.bf16.mxu0 0
  %2288 = vmatpush1.bf16.xpose.msra.mxu0 0
  %2289 = vmatprep.subr.bf16.mxu0 0
  %2290 = vmatpush1.bf16.xpose.msra.mxu0 0
  %2291 = vmatprep.subr.bf16.mxu0 0
  %2292 = vmatpush1.bf16.xpose.msra.mxu0 0
  %2293 = vmatprep.subr.bf16.mxu0 0
  %2294 = vmatpush1.bf16.xpose.msra.mxu0 0
  %2295 = vmatprep.mubr.bf16.mxu0 0
  %2296 = vmatmul.mubr.bf16.gmra.mrb[0].mxu0 %v2258
  %v2297 = vpop.f32.mrb[0].mxu0
  %v2298 = vadd.f32 0.0, %v2297
  %v2299 = vpop.f32.mrb[0].mxu0
  %v2300 = vpop.f32.mrb[0].mxu0
  %v2301 = vpop.f32.mrb[0].mxu0
  %2302 = vdwg.mxu0
  %2304 = vrot.lane.b32.xlu0 %v990, 96
  %v2305 = vpop.permute.xlu0 %2304
  %v2307 = vsel %vm1031, %v990, 0
  %v2310 = vsel %vm1031, %v2305, 0
  %2312 = vmatprep.subr.bf16.mxu0 0
  %2313 = vmatpush1.bf16.xpose.msra.mxu0 %v2310
  %2314 = vmatprep.subr.bf16.mxu0 0
  %2315 = vmatpush1.bf16.xpose.msra.mxu0 0
  %2316 = vmatprep.subr.bf16.mxu0 0
  %2317 = vmatpush1.bf16.xpose.msra.mxu0 0
  %2318 = vmatprep.subr.bf16.mxu0 0
  %2319 = vmatpush1.bf16.xpose.msra.mxu0 0
  %2320 = vmatprep.subr.bf16.mxu0 0
  %2321 = vmatpush1.bf16.xpose.msra.mxu0 0
  %2322 = vmatprep.subr.bf16.mxu0 0
  %2323 = vmatpush1.bf16.xpose.msra.mxu0 0
  %2324 = vmatprep.subr.bf16.mxu0 0
  %2325 = vmatpush1.bf16.xpose.msra.mxu0 0
  %2326 = vmatprep.subr.bf16.mxu0 0
  %2327 = vmatpush1.bf16.xpose.msra.mxu0 0
  %2328 = vmatprep.subr.bf16.mxu0 0
  %2329 = vmatpush1.bf16.xpose.msra.mxu0 0
  %2330 = vmatprep.subr.bf16.mxu0 0
  %2331 = vmatpush1.bf16.xpose.msra.mxu0 0
  %2332 = vmatprep.subr.bf16.mxu0 0
  %2333 = vmatpush1.bf16.xpose.msra.mxu0 0
  %2334 = vmatprep.subr.bf16.mxu0 0
  %2335 = vmatpush1.bf16.xpose.msra.mxu0 0
  %2336 = vmatprep.subr.bf16.mxu0 0
  %2337 = vmatpush1.bf16.xpose.msra.mxu0 0
  %2338 = vmatprep.subr.bf16.mxu0 0
  %2339 = vmatpush1.bf16.xpose.msra.mxu0 0
  %2340 = vmatprep.subr.bf16.mxu0 0
  %2341 = vmatpush1.bf16.xpose.msra.mxu0 0
  %2342 = vmatprep.subr.bf16.mxu0 0
  %2343 = vmatpush1.bf16.xpose.msra.mxu0 0
  %2344 = vmatprep.mubr.bf16.mxu0 0
  %2345 = vmatmul.mubr.bf16.gmra.mrb[0].mxu0 %v2307
  %v2346 = vpop.f32.mrb[0].mxu0
  %v2347 = vadd.f32 0.0, %v2346
  %v2348 = vpop.f32.mrb[0].mxu0
  %v2349 = vpop.f32.mrb[0].mxu0
  %v2350 = vpop.f32.mrb[0].mxu0
  %2351 = vdwg.mxu0
  %2353 = vrot.lane.b32.xlu0 %v991, 96
  %v2354 = vpop.permute.xlu0 %2353
  %v2356 = vsel %vm1031, %v991, 0
  %v2359 = vsel %vm1031, %v2354, 0
  %2361 = vmatprep.subr.bf16.mxu0 0
  %2362 = vmatpush1.bf16.xpose.msra.mxu0 %v2359
  %2363 = vmatprep.subr.bf16.mxu0 0
  %2364 = vmatpush1.bf16.xpose.msra.mxu0 0
  %2365 = vmatprep.subr.bf16.mxu0 0
  %2366 = vmatpush1.bf16.xpose.msra.mxu0 0
  %2367 = vmatprep.subr.bf16.mxu0 0
  %2368 = vmatpush1.bf16.xpose.msra.mxu0 0
  %2369 = vmatprep.subr.bf16.mxu0 0
  %2370 = vmatpush1.bf16.xpose.msra.mxu0 0
  %2371 = vmatprep.subr.bf16.mxu0 0
  %2372 = vmatpush1.bf16.xpose.msra.mxu0 0
  %2373 = vmatprep.subr.bf16.mxu0 0
  %2374 = vmatpush1.bf16.xpose.msra.mxu0 0
  %2375 = vmatprep.subr.bf16.mxu0 0
  %2376 = vmatpush1.bf16.xpose.msra.mxu0 0
  %2377 = vmatprep.subr.bf16.mxu0 0
  %2378 = vmatpush1.bf16.xpose.msra.mxu0 0
  %2379 = vmatprep.subr.bf16.mxu0 0
  %2380 = vmatpush1.bf16.xpose.msra.mxu0 0
  %2381 = vmatprep.subr.bf16.mxu0 0
  %2382 = vmatpush1.bf16.xpose.msra.mxu0 0
  %2383 = vmatprep.subr.bf16.mxu0 0
  %2384 = vmatpush1.bf16.xpose.msra.mxu0 0
  %2385 = vmatprep.subr.bf16.mxu0 0
  %2386 = vmatpush1.bf16.xpose.msra.mxu0 0
  %2387 = vmatprep.subr.bf16.mxu0 0
  %2388 = vmatpush1.bf16.xpose.msra.mxu0 0
  %2389 = vmatprep.subr.bf16.mxu0 0
  %2390 = vmatpush1.bf16.xpose.msra.mxu0 0
  %2391 = vmatprep.subr.bf16.mxu0 0
  %2392 = vmatpush1.bf16.xpose.msra.mxu0 0
  %2393 = vmatprep.mubr.bf16.mxu0 0
  %2394 = vmatmul.mubr.bf16.gmra.mrb[0].mxu0 %v2356
  %v2395 = vpop.f32.mrb[0].mxu0
  %v2396 = vadd.f32 0.0, %v2395
  %v2397 = vpop.f32.mrb[0].mxu0
  %v2398 = vpop.f32.mrb[0].mxu0
  %v2399 = vpop.f32.mrb[0].mxu0
  %2400 = vdwg.mxu0
  %2402 = vrot.lane.b32.xlu0 %v992, 96
  %v2403 = vpop.permute.xlu0 %2402
  %v2405 = vsel %vm1031, %v992, 0
  %v2408 = vsel %vm1031, %v2403, 0
  %2410 = vmatprep.subr.bf16.mxu0 0
  %2411 = vmatpush1.bf16.xpose.msra.mxu0 %v2408
  %2412 = vmatprep.subr.bf16.mxu0 0
  %2413 = vmatpush1.bf16.xpose.msra.mxu0 0
  %2414 = vmatprep.subr.bf16.mxu0 0
  %2415 = vmatpush1.bf16.xpose.msra.mxu0 0
  %2416 = vmatprep.subr.bf16.mxu0 0
  %2417 = vmatpush1.bf16.xpose.msra.mxu0 0
  %2418 = vmatprep.subr.bf16.mxu0 0
  %2419 = vmatpush1.bf16.xpose.msra.mxu0 0
  %2420 = vmatprep.subr.bf16.mxu0 0
  %2421 = vmatpush1.bf16.xpose.msra.mxu0 0
  %2422 = vmatprep.subr.bf16.mxu0 0
  %2423 = vmatpush1.bf16.xpose.msra.mxu0 0
  %2424 = vmatprep.subr.bf16.mxu0 0
  %2425 = vmatpush1.bf16.xpose.msra.mxu0 0
  %2426 = vmatprep.subr.bf16.mxu0 0
  %2427 = vmatpush1.bf16.xpose.msra.mxu0 0
  %2428 = vmatprep.subr.bf16.mxu0 0
  %2429 = vmatpush1.bf16.xpose.msra.mxu0 0
  %2430 = vmatprep.subr.bf16.mxu0 0
  %2431 = vmatpush1.bf16.xpose.msra.mxu0 0
  %2432 = vmatprep.subr.bf16.mxu0 0
  %2433 = vmatpush1.bf16.xpose.msra.mxu0 0
  %2434 = vmatprep.subr.bf16.mxu0 0
  %2435 = vmatpush1.bf16.xpose.msra.mxu0 0
  %2436 = vmatprep.subr.bf16.mxu0 0
  %2437 = vmatpush1.bf16.xpose.msra.mxu0 0
  %2438 = vmatprep.subr.bf16.mxu0 0
  %2439 = vmatpush1.bf16.xpose.msra.mxu0 0
  %2440 = vmatprep.subr.bf16.mxu0 0
  %2441 = vmatpush1.bf16.xpose.msra.mxu0 0
  %2442 = vmatprep.mubr.bf16.mxu0 0
  %2443 = vmatmul.mubr.bf16.gmra.mrb[0].mxu0 %v2405
  %v2444 = vpop.f32.mrb[0].mxu0
  %v2445 = vadd.f32 0.0, %v2444
  %v2446 = vpop.f32.mrb[0].mxu0
  %v2447 = vpop.f32.mrb[0].mxu0
  %v2448 = vpop.f32.mrb[0].mxu0
  %2449 = vdwg.mxu0
  %2451 = vrot.lane.b32.xlu0 %v993, 96
  %v2452 = vpop.permute.xlu0 %2451
  %v2454 = vsel %vm1031, %v993, 0
  %v2457 = vsel %vm1031, %v2452, 0
  %2459 = vmatprep.subr.bf16.mxu0 0
  %2460 = vmatpush1.bf16.xpose.msra.mxu0 %v2457
  %2461 = vmatprep.subr.bf16.mxu0 0
  %2462 = vmatpush1.bf16.xpose.msra.mxu0 0
  %2463 = vmatprep.subr.bf16.mxu0 0
  %2464 = vmatpush1.bf16.xpose.msra.mxu0 0
  %2465 = vmatprep.subr.bf16.mxu0 0
  %2466 = vmatpush1.bf16.xpose.msra.mxu0 0
  %2467 = vmatprep.subr.bf16.mxu0 0
  %2468 = vmatpush1.bf16.xpose.msra.mxu0 0
  %2469 = vmatprep.subr.bf16.mxu0 0
  %2470 = vmatpush1.bf16.xpose.msra.mxu0 0
  %2471 = vmatprep.subr.bf16.mxu0 0
  %2472 = vmatpush1.bf16.xpose.msra.mxu0 0
  %2473 = vmatprep.subr.bf16.mxu0 0
  %2474 = vmatpush1.bf16.xpose.msra.mxu0 0
  %2475 = vmatprep.subr.bf16.mxu0 0
  %2476 = vmatpush1.bf16.xpose.msra.mxu0 0
  %2477 = vmatprep.subr.bf16.mxu0 0
  %2478 = vmatpush1.bf16.xpose.msra.mxu0 0
  %2479 = vmatprep.subr.bf16.mxu0 0
  %2480 = vmatpush1.bf16.xpose.msra.mxu0 0
  %2481 = vmatprep.subr.bf16.mxu0 0
  %2482 = vmatpush1.bf16.xpose.msra.mxu0 0
  %2483 = vmatprep.subr.bf16.mxu0 0
  %2484 = vmatpush1.bf16.xpose.msra.mxu0 0
  %2485 = vmatprep.subr.bf16.mxu0 0
  %2486 = vmatpush1.bf16.xpose.msra.mxu0 0
  %2487 = vmatprep.subr.bf16.mxu0 0
  %2488 = vmatpush1.bf16.xpose.msra.mxu0 0
  %2489 = vmatprep.subr.bf16.mxu0 0
  %2490 = vmatpush1.bf16.xpose.msra.mxu0 0
  %2491 = vmatprep.mubr.bf16.mxu0 0
  %2492 = vmatmul.mubr.bf16.gmra.mrb[0].mxu0 %v2454
  %v2493 = vpop.f32.mrb[0].mxu0
  %v2494 = vadd.f32 0.0, %v2493
  %v2495 = vpop.f32.mrb[0].mxu0
  %v2496 = vpop.f32.mrb[0].mxu0
  %v2497 = vpop.f32.mrb[0].mxu0
  %2498 = vdwg.mxu0
  %2500 = vrot.lane.b32.xlu0 %v994, 96
  %v2501 = vpop.permute.xlu0 %2500
  %v2503 = vsel %vm1031, %v994, 0
  %v2506 = vsel %vm1031, %v2501, 0
  %2508 = vmatprep.subr.bf16.mxu0 0
  %2509 = vmatpush1.bf16.xpose.msra.mxu0 %v2506
  %2510 = vmatprep.subr.bf16.mxu0 0
  %2511 = vmatpush1.bf16.xpose.msra.mxu0 0
  %2512 = vmatprep.subr.bf16.mxu0 0
  %2513 = vmatpush1.bf16.xpose.msra.mxu0 0
  %2514 = vmatprep.subr.bf16.mxu0 0
  %2515 = vmatpush1.bf16.xpose.msra.mxu0 0
  %2516 = vmatprep.subr.bf16.mxu0 0
  %2517 = vmatpush1.bf16.xpose.msra.mxu0 0
  %2518 = vmatprep.subr.bf16.mxu0 0
  %2519 = vmatpush1.bf16.xpose.msra.mxu0 0
  %2520 = vmatprep.subr.bf16.mxu0 0
  %2521 = vmatpush1.bf16.xpose.msra.mxu0 0
  %2522 = vmatprep.subr.bf16.mxu0 0
  %2523 = vmatpush1.bf16.xpose.msra.mxu0 0
  %2524 = vmatprep.subr.bf16.mxu0 0
  %2525 = vmatpush1.bf16.xpose.msra.mxu0 0
  %2526 = vmatprep.subr.bf16.mxu0 0
  %2527 = vmatpush1.bf16.xpose.msra.mxu0 0
  %2528 = vmatprep.subr.bf16.mxu0 0
  %2529 = vmatpush1.bf16.xpose.msra.mxu0 0
  %2530 = vmatprep.subr.bf16.mxu0 0
  %2531 = vmatpush1.bf16.xpose.msra.mxu0 0
  %2532 = vmatprep.subr.bf16.mxu0 0
  %2533 = vmatpush1.bf16.xpose.msra.mxu0 0
  %2534 = vmatprep.subr.bf16.mxu0 0
  %2535 = vmatpush1.bf16.xpose.msra.mxu0 0
  %2536 = vmatprep.subr.bf16.mxu0 0
  %2537 = vmatpush1.bf16.xpose.msra.mxu0 0
  %2538 = vmatprep.subr.bf16.mxu0 0
  %2539 = vmatpush1.bf16.xpose.msra.mxu0 0
  %2540 = vmatprep.mubr.bf16.mxu0 0
  %2541 = vmatmul.mubr.bf16.gmra.mrb[0].mxu0 %v2503
  %v2542 = vpop.f32.mrb[0].mxu0
  %v2543 = vadd.f32 0.0, %v2542
  %v2544 = vpop.f32.mrb[0].mxu0
  %v2545 = vpop.f32.mrb[0].mxu0
  %v2546 = vpop.f32.mrb[0].mxu0
  %2547 = vdwg.mxu0
  %2549 = vrot.lane.b32.xlu0 %v995, 96
  %v2550 = vpop.permute.xlu0 %2549
  %v2552 = vsel %vm1031, %v995, 0
  %v2555 = vsel %vm1031, %v2550, 0
  %2557 = vmatprep.subr.bf16.mxu0 0
  %2558 = vmatpush1.bf16.xpose.msra.mxu0 %v2555
  %2559 = vmatprep.subr.bf16.mxu0 0
  %2560 = vmatpush1.bf16.xpose.msra.mxu0 0
  %2561 = vmatprep.subr.bf16.mxu0 0
  %2562 = vmatpush1.bf16.xpose.msra.mxu0 0
  %2563 = vmatprep.subr.bf16.mxu0 0
  %2564 = vmatpush1.bf16.xpose.msra.mxu0 0
  %2565 = vmatprep.subr.bf16.mxu0 0
  %2566 = vmatpush1.bf16.xpose.msra.mxu0 0
  %2567 = vmatprep.subr.bf16.mxu0 0
  %2568 = vmatpush1.bf16.xpose.msra.mxu0 0
  %2569 = vmatprep.subr.bf16.mxu0 0
  %2570 = vmatpush1.bf16.xpose.msra.mxu0 0
  %2571 = vmatprep.subr.bf16.mxu0 0
  %2572 = vmatpush1.bf16.xpose.msra.mxu0 0
  %2573 = vmatprep.subr.bf16.mxu0 0
  %2574 = vmatpush1.bf16.xpose.msra.mxu0 0
  %2575 = vmatprep.subr.bf16.mxu0 0
  %2576 = vmatpush1.bf16.xpose.msra.mxu0 0
  %2577 = vmatprep.subr.bf16.mxu0 0
  %2578 = vmatpush1.bf16.xpose.msra.mxu0 0
  %2579 = vmatprep.subr.bf16.mxu0 0
  %2580 = vmatpush1.bf16.xpose.msra.mxu0 0
  %2581 = vmatprep.subr.bf16.mxu0 0
  %2582 = vmatpush1.bf16.xpose.msra.mxu0 0
  %2583 = vmatprep.subr.bf16.mxu0 0
  %2584 = vmatpush1.bf16.xpose.msra.mxu0 0
  %2585 = vmatprep.subr.bf16.mxu0 0
  %2586 = vmatpush1.bf16.xpose.msra.mxu0 0
  %2587 = vmatprep.subr.bf16.mxu0 0
  %2588 = vmatpush1.bf16.xpose.msra.mxu0 0
  %2589 = vmatprep.mubr.bf16.mxu0 0
  %2590 = vmatmul.mubr.bf16.gmra.mrb[0].mxu0 %v2552
  %v2591 = vpop.f32.mrb[0].mxu0
  %v2592 = vadd.f32 0.0, %v2591
  %v2593 = vpop.f32.mrb[0].mxu0
  %v2594 = vpop.f32.mrb[0].mxu0
  %v2595 = vpop.f32.mrb[0].mxu0
  %2596 = vdwg.mxu0
  %2598 = vrot.lane.b32.xlu0 %v996, 96
  %v2599 = vpop.permute.xlu0 %2598
  %v2601 = vsel %vm1031, %v996, 0
  %v2604 = vsel %vm1031, %v2599, 0
  %2606 = vmatprep.subr.bf16.mxu0 0
  %2607 = vmatpush1.bf16.xpose.msra.mxu0 %v2604
  %2608 = vmatprep.subr.bf16.mxu0 0
  %2609 = vmatpush1.bf16.xpose.msra.mxu0 0
  %2610 = vmatprep.subr.bf16.mxu0 0
  %2611 = vmatpush1.bf16.xpose.msra.mxu0 0
  %2612 = vmatprep.subr.bf16.mxu0 0
  %2613 = vmatpush1.bf16.xpose.msra.mxu0 0
  %2614 = vmatprep.subr.bf16.mxu0 0
  %2615 = vmatpush1.bf16.xpose.msra.mxu0 0
  %2616 = vmatprep.subr.bf16.mxu0 0
  %2617 = vmatpush1.bf16.xpose.msra.mxu0 0
  %2618 = vmatprep.subr.bf16.mxu0 0
  %2619 = vmatpush1.bf16.xpose.msra.mxu0 0
  %2620 = vmatprep.subr.bf16.mxu0 0
  %2621 = vmatpush1.bf16.xpose.msra.mxu0 0
  %2622 = vmatprep.subr.bf16.mxu0 0
  %2623 = vmatpush1.bf16.xpose.msra.mxu0 0
  %2624 = vmatprep.subr.bf16.mxu0 0
  %2625 = vmatpush1.bf16.xpose.msra.mxu0 0
  %2626 = vmatprep.subr.bf16.mxu0 0
  %2627 = vmatpush1.bf16.xpose.msra.mxu0 0
  %2628 = vmatprep.subr.bf16.mxu0 0
  %2629 = vmatpush1.bf16.xpose.msra.mxu0 0
  %2630 = vmatprep.subr.bf16.mxu0 0
  %2631 = vmatpush1.bf16.xpose.msra.mxu0 0
  %2632 = vmatprep.subr.bf16.mxu0 0
  %2633 = vmatpush1.bf16.xpose.msra.mxu0 0
  %2634 = vmatprep.subr.bf16.mxu0 0
  %2635 = vmatpush1.bf16.xpose.msra.mxu0 0
  %2636 = vmatprep.subr.bf16.mxu0 0
  %2637 = vmatpush1.bf16.xpose.msra.mxu0 0
  %2638 = vmatprep.mubr.bf16.mxu0 0
  %2639 = vmatmul.mubr.bf16.gmra.mrb[0].mxu0 %v2601
  %v2640 = vpop.f32.mrb[0].mxu0
  %v2641 = vadd.f32 0.0, %v2640
  %v2642 = vpop.f32.mrb[0].mxu0
  %v2643 = vpop.f32.mrb[0].mxu0
  %v2644 = vpop.f32.mrb[0].mxu0
  %2645 = vdwg.mxu0
  %2647 = vrot.lane.b32.xlu0 %v997, 96
  %v2648 = vpop.permute.xlu0 %2647
  %v2650 = vsel %vm1031, %v997, 0
  %v2653 = vsel %vm1031, %v2648, 0
  %2655 = vmatprep.subr.bf16.mxu0 0
  %2656 = vmatpush1.bf16.xpose.msra.mxu0 %v2653
  %2657 = vmatprep.subr.bf16.mxu0 0
  %2658 = vmatpush1.bf16.xpose.msra.mxu0 0
  %2659 = vmatprep.subr.bf16.mxu0 0
  %2660 = vmatpush1.bf16.xpose.msra.mxu0 0
  %2661 = vmatprep.subr.bf16.mxu0 0
  %2662 = vmatpush1.bf16.xpose.msra.mxu0 0
  %2663 = vmatprep.subr.bf16.mxu0 0
  %2664 = vmatpush1.bf16.xpose.msra.mxu0 0
  %2665 = vmatprep.subr.bf16.mxu0 0
  %2666 = vmatpush1.bf16.xpose.msra.mxu0 0
  %2667 = vmatprep.subr.bf16.mxu0 0
  %2668 = vmatpush1.bf16.xpose.msra.mxu0 0
  %2669 = vmatprep.subr.bf16.mxu0 0
  %2670 = vmatpush1.bf16.xpose.msra.mxu0 0
  %2671 = vmatprep.subr.bf16.mxu0 0
  %2672 = vmatpush1.bf16.xpose.msra.mxu0 0
  %2673 = vmatprep.subr.bf16.mxu0 0
  %2674 = vmatpush1.bf16.xpose.msra.mxu0 0
  %2675 = vmatprep.subr.bf16.mxu0 0
  %2676 = vmatpush1.bf16.xpose.msra.mxu0 0
  %2677 = vmatprep.subr.bf16.mxu0 0
  %2678 = vmatpush1.bf16.xpose.msra.mxu0 0
  %2679 = vmatprep.subr.bf16.mxu0 0
  %2680 = vmatpush1.bf16.xpose.msra.mxu0 0
  %2681 = vmatprep.subr.bf16.mxu0 0
  %2682 = vmatpush1.bf16.xpose.msra.mxu0 0
  %2683 = vmatprep.subr.bf16.mxu0 0
  %2684 = vmatpush1.bf16.xpose.msra.mxu0 0
  %2685 = vmatprep.subr.bf16.mxu0 0
  %2686 = vmatpush1.bf16.xpose.msra.mxu0 0
  %2687 = vmatprep.mubr.bf16.mxu0 0
  %2688 = vmatmul.mubr.bf16.gmra.mrb[0].mxu0 %v2650
  %v2689 = vpop.f32.mrb[0].mxu0
  %v2690 = vadd.f32 0.0, %v2689
  %v2691 = vpop.f32.mrb[0].mxu0
  %v2692 = vpop.f32.mrb[0].mxu0
  %v2693 = vpop.f32.mrb[0].mxu0
  %2694 = vdwg.mxu0
  %2696 = vrot.lane.b32.xlu0 %v998, 96
  %v2697 = vpop.permute.xlu0 %2696
  %v2699 = vsel %vm1031, %v998, 0
  %v2702 = vsel %vm1031, %v2697, 0
  %2704 = vmatprep.subr.bf16.mxu0 0
  %2705 = vmatpush1.bf16.xpose.msra.mxu0 %v2702
  %2706 = vmatprep.subr.bf16.mxu0 0
  %2707 = vmatpush1.bf16.xpose.msra.mxu0 0
  %2708 = vmatprep.subr.bf16.mxu0 0
  %2709 = vmatpush1.bf16.xpose.msra.mxu0 0
  %2710 = vmatprep.subr.bf16.mxu0 0
  %2711 = vmatpush1.bf16.xpose.msra.mxu0 0
  %2712 = vmatprep.subr.bf16.mxu0 0
  %2713 = vmatpush1.bf16.xpose.msra.mxu0 0
  %2714 = vmatprep.subr.bf16.mxu0 0
  %2715 = vmatpush1.bf16.xpose.msra.mxu0 0
  %2716 = vmatprep.subr.bf16.mxu0 0
  %2717 = vmatpush1.bf16.xpose.msra.mxu0 0
  %2718 = vmatprep.subr.bf16.mxu0 0
  %2719 = vmatpush1.bf16.xpose.msra.mxu0 0
  %2720 = vmatprep.subr.bf16.mxu0 0
  %2721 = vmatpush1.bf16.xpose.msra.mxu0 0
  %2722 = vmatprep.subr.bf16.mxu0 0
  %2723 = vmatpush1.bf16.xpose.msra.mxu0 0
  %2724 = vmatprep.subr.bf16.mxu0 0
  %2725 = vmatpush1.bf16.xpose.msra.mxu0 0
  %2726 = vmatprep.subr.bf16.mxu0 0
  %2727 = vmatpush1.bf16.xpose.msra.mxu0 0
  %2728 = vmatprep.subr.bf16.mxu0 0
  %2729 = vmatpush1.bf16.xpose.msra.mxu0 0
  %2730 = vmatprep.subr.bf16.mxu0 0
  %2731 = vmatpush1.bf16.xpose.msra.mxu0 0
  %2732 = vmatprep.subr.bf16.mxu0 0
  %2733 = vmatpush1.bf16.xpose.msra.mxu0 0
  %2734 = vmatprep.subr.bf16.mxu0 0
  %2735 = vmatpush1.bf16.xpose.msra.mxu0 0
  %2736 = vmatprep.mubr.bf16.mxu0 0
  %2737 = vmatmul.mubr.bf16.gmra.mrb[0].mxu0 %v2699
  %v2738 = vpop.f32.mrb[0].mxu0
  %v2739 = vadd.f32 0.0, %v2738
  %v2740 = vpop.f32.mrb[0].mxu0
  %v2741 = vpop.f32.mrb[0].mxu0
  %v2742 = vpop.f32.mrb[0].mxu0
  %2743 = vdwg.mxu0
  %2745 = vrot.lane.b32.xlu0 %v999, 96
  %v2746 = vpop.permute.xlu0 %2745
  %v2748 = vsel %vm1031, %v999, 0
  %v2751 = vsel %vm1031, %v2746, 0
  %2753 = vmatprep.subr.bf16.mxu0 0
  %2754 = vmatpush1.bf16.xpose.msra.mxu0 %v2751
  %2755 = vmatprep.subr.bf16.mxu0 0
  %2756 = vmatpush1.bf16.xpose.msra.mxu0 0
  %2757 = vmatprep.subr.bf16.mxu0 0
  %2758 = vmatpush1.bf16.xpose.msra.mxu0 0
  %2759 = vmatprep.subr.bf16.mxu0 0
  %2760 = vmatpush1.bf16.xpose.msra.mxu0 0
  %2761 = vmatprep.subr.bf16.mxu0 0
  %2762 = vmatpush1.bf16.xpose.msra.mxu0 0
  %2763 = vmatprep.subr.bf16.mxu0 0
  %2764 = vmatpush1.bf16.xpose.msra.mxu0 0
  %2765 = vmatprep.subr.bf16.mxu0 0
  %2766 = vmatpush1.bf16.xpose.msra.mxu0 0
  %2767 = vmatprep.subr.bf16.mxu0 0
  %2768 = vmatpush1.bf16.xpose.msra.mxu0 0
  %2769 = vmatprep.subr.bf16.mxu0 0
  %2770 = vmatpush1.bf16.xpose.msra.mxu0 0
  %2771 = vmatprep.subr.bf16.mxu0 0
  %2772 = vmatpush1.bf16.xpose.msra.mxu0 0
  %2773 = vmatprep.subr.bf16.mxu0 0
  %2774 = vmatpush1.bf16.xpose.msra.mxu0 0
  %2775 = vmatprep.subr.bf16.mxu0 0
  %2776 = vmatpush1.bf16.xpose.msra.mxu0 0
  %2777 = vmatprep.subr.bf16.mxu0 0
  %2778 = vmatpush1.bf16.xpose.msra.mxu0 0
  %2779 = vmatprep.subr.bf16.mxu0 0
  %2780 = vmatpush1.bf16.xpose.msra.mxu0 0
  %2781 = vmatprep.subr.bf16.mxu0 0
  %2782 = vmatpush1.bf16.xpose.msra.mxu0 0
  %2783 = vmatprep.subr.bf16.mxu0 0
  %2784 = vmatpush1.bf16.xpose.msra.mxu0 0
  %2785 = vmatprep.mubr.bf16.mxu0 0
  %2786 = vmatmul.mubr.bf16.gmra.mrb[0].mxu0 %v2748
  %v2787 = vpop.f32.mrb[0].mxu0
  %v2788 = vadd.f32 0.0, %v2787
  %v2789 = vpop.f32.mrb[0].mxu0
  %v2790 = vpop.f32.mrb[0].mxu0
  %v2791 = vpop.f32.mrb[0].mxu0
  %2792 = vdwg.mxu0
  %2794 = vrot.lane.b32.xlu0 %v1000, 96
  %v2795 = vpop.permute.xlu0 %2794
  %v2797 = vsel %vm1031, %v1000, 0
  %v2800 = vsel %vm1031, %v2795, 0
  %2802 = vmatprep.subr.bf16.mxu0 0
  %2803 = vmatpush1.bf16.xpose.msra.mxu0 %v2800
  %2804 = vmatprep.subr.bf16.mxu0 0
  %2805 = vmatpush1.bf16.xpose.msra.mxu0 0
  %2806 = vmatprep.subr.bf16.mxu0 0
  %2807 = vmatpush1.bf16.xpose.msra.mxu0 0
  %2808 = vmatprep.subr.bf16.mxu0 0
  %2809 = vmatpush1.bf16.xpose.msra.mxu0 0
  %2810 = vmatprep.subr.bf16.mxu0 0
  %2811 = vmatpush1.bf16.xpose.msra.mxu0 0
  %2812 = vmatprep.subr.bf16.mxu0 0
  %2813 = vmatpush1.bf16.xpose.msra.mxu0 0
  %2814 = vmatprep.subr.bf16.mxu0 0
  %2815 = vmatpush1.bf16.xpose.msra.mxu0 0
  %2816 = vmatprep.subr.bf16.mxu0 0
  %2817 = vmatpush1.bf16.xpose.msra.mxu0 0
  %2818 = vmatprep.subr.bf16.mxu0 0
  %2819 = vmatpush1.bf16.xpose.msra.mxu0 0
  %2820 = vmatprep.subr.bf16.mxu0 0
  %2821 = vmatpush1.bf16.xpose.msra.mxu0 0
  %2822 = vmatprep.subr.bf16.mxu0 0
  %2823 = vmatpush1.bf16.xpose.msra.mxu0 0
  %2824 = vmatprep.subr.bf16.mxu0 0
  %2825 = vmatpush1.bf16.xpose.msra.mxu0 0
  %2826 = vmatprep.subr.bf16.mxu0 0
  %2827 = vmatpush1.bf16.xpose.msra.mxu0 0
  %2828 = vmatprep.subr.bf16.mxu0 0
  %2829 = vmatpush1.bf16.xpose.msra.mxu0 0
  %2830 = vmatprep.subr.bf16.mxu0 0
  %2831 = vmatpush1.bf16.xpose.msra.mxu0 0
  %2832 = vmatprep.subr.bf16.mxu0 0
  %2833 = vmatpush1.bf16.xpose.msra.mxu0 0
  %2834 = vmatprep.mubr.bf16.mxu0 0
  %2835 = vmatmul.mubr.bf16.gmra.mrb[0].mxu0 %v2797
  %v2836 = vpop.f32.mrb[0].mxu0
  %v2837 = vadd.f32 0.0, %v2836
  %v2838 = vpop.f32.mrb[0].mxu0
  %v2839 = vpop.f32.mrb[0].mxu0
  %v2840 = vpop.f32.mrb[0].mxu0
  %2841 = vdwg.mxu0
  %2843 = vrot.lane.b32.xlu0 %v1001, 96
  %v2844 = vpop.permute.xlu0 %2843
  %v2846 = vsel %vm1031, %v1001, 0
  %v2849 = vsel %vm1031, %v2844, 0
  %2851 = vmatprep.subr.bf16.mxu0 0
  %2852 = vmatpush1.bf16.xpose.msra.mxu0 %v2849
  %2853 = vmatprep.subr.bf16.mxu0 0
  %2854 = vmatpush1.bf16.xpose.msra.mxu0 0
  %2855 = vmatprep.subr.bf16.mxu0 0
  %2856 = vmatpush1.bf16.xpose.msra.mxu0 0
  %2857 = vmatprep.subr.bf16.mxu0 0
  %2858 = vmatpush1.bf16.xpose.msra.mxu0 0
  %2859 = vmatprep.subr.bf16.mxu0 0
  %2860 = vmatpush1.bf16.xpose.msra.mxu0 0
  %2861 = vmatprep.subr.bf16.mxu0 0
  %2862 = vmatpush1.bf16.xpose.msra.mxu0 0
  %2863 = vmatprep.subr.bf16.mxu0 0
  %2864 = vmatpush1.bf16.xpose.msra.mxu0 0
  %2865 = vmatprep.subr.bf16.mxu0 0
  %2866 = vmatpush1.bf16.xpose.msra.mxu0 0
  %2867 = vmatprep.subr.bf16.mxu0 0
  %2868 = vmatpush1.bf16.xpose.msra.mxu0 0
  %2869 = vmatprep.subr.bf16.mxu0 0
  %2870 = vmatpush1.bf16.xpose.msra.mxu0 0
  %2871 = vmatprep.subr.bf16.mxu0 0
  %2872 = vmatpush1.bf16.xpose.msra.mxu0 0
  %2873 = vmatprep.subr.bf16.mxu0 0
  %2874 = vmatpush1.bf16.xpose.msra.mxu0 0
  %2875 = vmatprep.subr.bf16.mxu0 0
  %2876 = vmatpush1.bf16.xpose.msra.mxu0 0
  %2877 = vmatprep.subr.bf16.mxu0 0
  %2878 = vmatpush1.bf16.xpose.msra.mxu0 0
  %2879 = vmatprep.subr.bf16.mxu0 0
  %2880 = vmatpush1.bf16.xpose.msra.mxu0 0
  %2881 = vmatprep.subr.bf16.mxu0 0
  %2882 = vmatpush1.bf16.xpose.msra.mxu0 0
  %2883 = vmatprep.mubr.bf16.mxu0 0
  %2884 = vmatmul.mubr.bf16.gmra.mrb[0].mxu0 %v2846
  %v2885 = vpop.f32.mrb[0].mxu0
  %v2886 = vadd.f32 0.0, %v2885
  %v2887 = vpop.f32.mrb[0].mxu0
  %v2888 = vpop.f32.mrb[0].mxu0
  %v2889 = vpop.f32.mrb[0].mxu0
  %2890 = vdwg.mxu0
  %2892 = vrot.lane.b32.xlu0 %v1002, 96
  %v2893 = vpop.permute.xlu0 %2892
  %v2895 = vsel %vm1031, %v1002, 0
  %v2898 = vsel %vm1031, %v2893, 0
  %2900 = vmatprep.subr.bf16.mxu0 0
  %2901 = vmatpush1.bf16.xpose.msra.mxu0 %v2898
  %2902 = vmatprep.subr.bf16.mxu0 0
  %2903 = vmatpush1.bf16.xpose.msra.mxu0 0
  %2904 = vmatprep.subr.bf16.mxu0 0
  %2905 = vmatpush1.bf16.xpose.msra.mxu0 0
  %2906 = vmatprep.subr.bf16.mxu0 0
  %2907 = vmatpush1.bf16.xpose.msra.mxu0 0
  %2908 = vmatprep.subr.bf16.mxu0 0
  %2909 = vmatpush1.bf16.xpose.msra.mxu0 0
  %2910 = vmatprep.subr.bf16.mxu0 0
  %2911 = vmatpush1.bf16.xpose.msra.mxu0 0
  %2912 = vmatprep.subr.bf16.mxu0 0
  %2913 = vmatpush1.bf16.xpose.msra.mxu0 0
  %2914 = vmatprep.subr.bf16.mxu0 0
  %2915 = vmatpush1.bf16.xpose.msra.mxu0 0
  %2916 = vmatprep.subr.bf16.mxu0 0
  %2917 = vmatpush1.bf16.xpose.msra.mxu0 0
  %2918 = vmatprep.subr.bf16.mxu0 0
  %2919 = vmatpush1.bf16.xpose.msra.mxu0 0
  %2920 = vmatprep.subr.bf16.mxu0 0
  %2921 = vmatpush1.bf16.xpose.msra.mxu0 0
  %2922 = vmatprep.subr.bf16.mxu0 0
  %2923 = vmatpush1.bf16.xpose.msra.mxu0 0
  %2924 = vmatprep.subr.bf16.mxu0 0
  %2925 = vmatpush1.bf16.xpose.msra.mxu0 0
  %2926 = vmatprep.subr.bf16.mxu0 0
  %2927 = vmatpush1.bf16.xpose.msra.mxu0 0
  %2928 = vmatprep.subr.bf16.mxu0 0
  %2929 = vmatpush1.bf16.xpose.msra.mxu0 0
  %2930 = vmatprep.subr.bf16.mxu0 0
  %2931 = vmatpush1.bf16.xpose.msra.mxu0 0
  %2932 = vmatprep.mubr.bf16.mxu0 0
  %2933 = vmatmul.mubr.bf16.gmra.mrb[0].mxu0 %v2895
  %v2934 = vpop.f32.mrb[0].mxu0
  %v2935 = vadd.f32 0.0, %v2934
  %v2936 = vpop.f32.mrb[0].mxu0
  %v2937 = vpop.f32.mrb[0].mxu0
  %v2938 = vpop.f32.mrb[0].mxu0
  %2939 = vdwg.mxu0
  %2941 = vrot.lane.b32.xlu0 %v1003, 96
  %v2942 = vpop.permute.xlu0 %2941
  %v2944 = vsel %vm1031, %v1003, 0
  %v2947 = vsel %vm1031, %v2942, 0
  %2949 = vmatprep.subr.bf16.mxu0 0
  %2950 = vmatpush1.bf16.xpose.msra.mxu0 %v2947
  %2951 = vmatprep.subr.bf16.mxu0 0
  %2952 = vmatpush1.bf16.xpose.msra.mxu0 0
  %2953 = vmatprep.subr.bf16.mxu0 0
  %2954 = vmatpush1.bf16.xpose.msra.mxu0 0
  %2955 = vmatprep.subr.bf16.mxu0 0
  %2956 = vmatpush1.bf16.xpose.msra.mxu0 0
  %2957 = vmatprep.subr.bf16.mxu0 0
  %2958 = vmatpush1.bf16.xpose.msra.mxu0 0
  %2959 = vmatprep.subr.bf16.mxu0 0
  %2960 = vmatpush1.bf16.xpose.msra.mxu0 0
  %2961 = vmatprep.subr.bf16.mxu0 0
  %2962 = vmatpush1.bf16.xpose.msra.mxu0 0
  %2963 = vmatprep.subr.bf16.mxu0 0
  %2964 = vmatpush1.bf16.xpose.msra.mxu0 0
  %2965 = vmatprep.subr.bf16.mxu0 0
  %2966 = vmatpush1.bf16.xpose.msra.mxu0 0
  %2967 = vmatprep.subr.bf16.mxu0 0
  %2968 = vmatpush1.bf16.xpose.msra.mxu0 0
  %2969 = vmatprep.subr.bf16.mxu0 0
  %2970 = vmatpush1.bf16.xpose.msra.mxu0 0
  %2971 = vmatprep.subr.bf16.mxu0 0
  %2972 = vmatpush1.bf16.xpose.msra.mxu0 0
  %2973 = vmatprep.subr.bf16.mxu0 0
  %2974 = vmatpush1.bf16.xpose.msra.mxu0 0
  %2975 = vmatprep.subr.bf16.mxu0 0
  %2976 = vmatpush1.bf16.xpose.msra.mxu0 0
  %2977 = vmatprep.subr.bf16.mxu0 0
  %2978 = vmatpush1.bf16.xpose.msra.mxu0 0
  %2979 = vmatprep.subr.bf16.mxu0 0
  %2980 = vmatpush1.bf16.xpose.msra.mxu0 0
  %2981 = vmatprep.mubr.bf16.mxu0 0
  %2982 = vmatmul.mubr.bf16.gmra.mrb[0].mxu0 %v2944
  %v2983 = vpop.f32.mrb[0].mxu0
  %v2984 = vadd.f32 0.0, %v2983
  %v2985 = vpop.f32.mrb[0].mxu0
  %v2986 = vpop.f32.mrb[0].mxu0
  %v2987 = vpop.f32.mrb[0].mxu0
  %2988 = vdwg.mxu0
  %2990 = vrot.lane.b32.xlu0 %v1004, 96
  %v2991 = vpop.permute.xlu0 %2990
  %v2993 = vsel %vm1031, %v1004, 0
  %v2996 = vsel %vm1031, %v2991, 0
  %2998 = vmatprep.subr.bf16.mxu0 0
  %2999 = vmatpush1.bf16.xpose.msra.mxu0 %v2996
  %3000 = vmatprep.subr.bf16.mxu0 0
  %3001 = vmatpush1.bf16.xpose.msra.mxu0 0
  %3002 = vmatprep.subr.bf16.mxu0 0
  %3003 = vmatpush1.bf16.xpose.msra.mxu0 0
  %3004 = vmatprep.subr.bf16.mxu0 0
  %3005 = vmatpush1.bf16.xpose.msra.mxu0 0
  %3006 = vmatprep.subr.bf16.mxu0 0
  %3007 = vmatpush1.bf16.xpose.msra.mxu0 0
  %3008 = vmatprep.subr.bf16.mxu0 0
  %3009 = vmatpush1.bf16.xpose.msra.mxu0 0
  %3010 = vmatprep.subr.bf16.mxu0 0
  %3011 = vmatpush1.bf16.xpose.msra.mxu0 0
  %3012 = vmatprep.subr.bf16.mxu0 0
  %3013 = vmatpush1.bf16.xpose.msra.mxu0 0
  %3014 = vmatprep.subr.bf16.mxu0 0
  %3015 = vmatpush1.bf16.xpose.msra.mxu0 0
  %3016 = vmatprep.subr.bf16.mxu0 0
  %3017 = vmatpush1.bf16.xpose.msra.mxu0 0
  %3018 = vmatprep.subr.bf16.mxu0 0
  %3019 = vmatpush1.bf16.xpose.msra.mxu0 0
  %3020 = vmatprep.subr.bf16.mxu0 0
  %3021 = vmatpush1.bf16.xpose.msra.mxu0 0
  %3022 = vmatprep.subr.bf16.mxu0 0
  %3023 = vmatpush1.bf16.xpose.msra.mxu0 0
  %3024 = vmatprep.subr.bf16.mxu0 0
  %3025 = vmatpush1.bf16.xpose.msra.mxu0 0
  %3026 = vmatprep.subr.bf16.mxu0 0
  %3027 = vmatpush1.bf16.xpose.msra.mxu0 0
  %3028 = vmatprep.subr.bf16.mxu0 0
  %3029 = vmatpush1.bf16.xpose.msra.mxu0 0
  %3030 = vmatprep.mubr.bf16.mxu0 0
  %3031 = vmatmul.mubr.bf16.gmra.mrb[0].mxu0 %v2993
  %v3032 = vpop.f32.mrb[0].mxu0
  %v3033 = vadd.f32 0.0, %v3032
  %v3034 = vpop.f32.mrb[0].mxu0
  %v3035 = vpop.f32.mrb[0].mxu0
  %v3036 = vpop.f32.mrb[0].mxu0
  %3037 = vdwg.mxu0
  %3039 = vrot.lane.b32.xlu0 %v1005, 96
  %v3040 = vpop.permute.xlu0 %3039
  %v3042 = vsel %vm1031, %v1005, 0
  %v3045 = vsel %vm1031, %v3040, 0
  %3047 = vmatprep.subr.bf16.mxu0 0
  %3048 = vmatpush1.bf16.xpose.msra.mxu0 %v3045
  %3049 = vmatprep.subr.bf16.mxu0 0
  %3050 = vmatpush1.bf16.xpose.msra.mxu0 0
  %3051 = vmatprep.subr.bf16.mxu0 0
  %3052 = vmatpush1.bf16.xpose.msra.mxu0 0
  %3053 = vmatprep.subr.bf16.mxu0 0
  %3054 = vmatpush1.bf16.xpose.msra.mxu0 0
  %3055 = vmatprep.subr.bf16.mxu0 0
  %3056 = vmatpush1.bf16.xpose.msra.mxu0 0
  %3057 = vmatprep.subr.bf16.mxu0 0
  %3058 = vmatpush1.bf16.xpose.msra.mxu0 0
  %3059 = vmatprep.subr.bf16.mxu0 0
  %3060 = vmatpush1.bf16.xpose.msra.mxu0 0
  %3061 = vmatprep.subr.bf16.mxu0 0
  %3062 = vmatpush1.bf16.xpose.msra.mxu0 0
  %3063 = vmatprep.subr.bf16.mxu0 0
  %3064 = vmatpush1.bf16.xpose.msra.mxu0 0
  %3065 = vmatprep.subr.bf16.mxu0 0
  %3066 = vmatpush1.bf16.xpose.msra.mxu0 0
  %3067 = vmatprep.subr.bf16.mxu0 0
  %3068 = vmatpush1.bf16.xpose.msra.mxu0 0
  %3069 = vmatprep.subr.bf16.mxu0 0
  %3070 = vmatpush1.bf16.xpose.msra.mxu0 0
  %3071 = vmatprep.subr.bf16.mxu0 0
  %3072 = vmatpush1.bf16.xpose.msra.mxu0 0
  %3073 = vmatprep.subr.bf16.mxu0 0
  %3074 = vmatpush1.bf16.xpose.msra.mxu0 0
  %3075 = vmatprep.subr.bf16.mxu0 0
  %3076 = vmatpush1.bf16.xpose.msra.mxu0 0
  %3077 = vmatprep.subr.bf16.mxu0 0
  %3078 = vmatpush1.bf16.xpose.msra.mxu0 0
  %3079 = vmatprep.mubr.bf16.mxu0 0
  %3080 = vmatmul.mubr.bf16.gmra.mrb[0].mxu0 %v3042
  %v3081 = vpop.f32.mrb[0].mxu0
  %v3082 = vadd.f32 0.0, %v3081
  %v3083 = vpop.f32.mrb[0].mxu0
  %v3084 = vpop.f32.mrb[0].mxu0
  %v3085 = vpop.f32.mrb[0].mxu0
  %3086 = vdwg.mxu0
  %3088 = vrot.lane.b32.xlu0 %v1006, 96
  %v3089 = vpop.permute.xlu0 %3088
  %v3091 = vsel %vm1031, %v1006, 0
  %v3094 = vsel %vm1031, %v3089, 0
  %3096 = vmatprep.subr.bf16.mxu0 0
  %3097 = vmatpush1.bf16.xpose.msra.mxu0 %v3094
  %3098 = vmatprep.subr.bf16.mxu0 0
  %3099 = vmatpush1.bf16.xpose.msra.mxu0 0
  %3100 = vmatprep.subr.bf16.mxu0 0
  %3101 = vmatpush1.bf16.xpose.msra.mxu0 0
  %3102 = vmatprep.subr.bf16.mxu0 0
  %3103 = vmatpush1.bf16.xpose.msra.mxu0 0
  %3104 = vmatprep.subr.bf16.mxu0 0
  %3105 = vmatpush1.bf16.xpose.msra.mxu0 0
  %3106 = vmatprep.subr.bf16.mxu0 0
  %3107 = vmatpush1.bf16.xpose.msra.mxu0 0
  %3108 = vmatprep.subr.bf16.mxu0 0
  %3109 = vmatpush1.bf16.xpose.msra.mxu0 0
  %3110 = vmatprep.subr.bf16.mxu0 0
  %3111 = vmatpush1.bf16.xpose.msra.mxu0 0
  %3112 = vmatprep.subr.bf16.mxu0 0
  %3113 = vmatpush1.bf16.xpose.msra.mxu0 0
  %3114 = vmatprep.subr.bf16.mxu0 0
  %3115 = vmatpush1.bf16.xpose.msra.mxu0 0
  %3116 = vmatprep.subr.bf16.mxu0 0
  %3117 = vmatpush1.bf16.xpose.msra.mxu0 0
  %3118 = vmatprep.subr.bf16.mxu0 0
  %3119 = vmatpush1.bf16.xpose.msra.mxu0 0
  %3120 = vmatprep.subr.bf16.mxu0 0
  %3121 = vmatpush1.bf16.xpose.msra.mxu0 0
  %3122 = vmatprep.subr.bf16.mxu0 0
  %3123 = vmatpush1.bf16.xpose.msra.mxu0 0
  %3124 = vmatprep.subr.bf16.mxu0 0
  %3125 = vmatpush1.bf16.xpose.msra.mxu0 0
  %3126 = vmatprep.subr.bf16.mxu0 0
  %3127 = vmatpush1.bf16.xpose.msra.mxu0 0
  %3128 = vmatprep.mubr.bf16.mxu0 0
  %3129 = vmatmul.mubr.bf16.gmra.mrb[0].mxu0 %v3091
  %v3130 = vpop.f32.mrb[0].mxu0
  %v3131 = vadd.f32 0.0, %v3130
  %v3132 = vpop.f32.mrb[0].mxu0
  %v3133 = vpop.f32.mrb[0].mxu0
  %v3134 = vpop.f32.mrb[0].mxu0
  %3135 = vdwg.mxu0
  %3137 = vrot.lane.b32.xlu0 %v1007, 96
  %v3138 = vpop.permute.xlu0 %3137
  %v3140 = vsel %vm1031, %v1007, 0
  %v3143 = vsel %vm1031, %v3138, 0
  %3145 = vmatprep.subr.bf16.mxu0 0
  %3146 = vmatpush1.bf16.xpose.msra.mxu0 %v3143
  %3147 = vmatprep.subr.bf16.mxu0 0
  %3148 = vmatpush1.bf16.xpose.msra.mxu0 0
  %3149 = vmatprep.subr.bf16.mxu0 0
  %3150 = vmatpush1.bf16.xpose.msra.mxu0 0
  %3151 = vmatprep.subr.bf16.mxu0 0
  %3152 = vmatpush1.bf16.xpose.msra.mxu0 0
  %3153 = vmatprep.subr.bf16.mxu0 0
  %3154 = vmatpush1.bf16.xpose.msra.mxu0 0
  %3155 = vmatprep.subr.bf16.mxu0 0
  %3156 = vmatpush1.bf16.xpose.msra.mxu0 0
  %3157 = vmatprep.subr.bf16.mxu0 0
  %3158 = vmatpush1.bf16.xpose.msra.mxu0 0
  %3159 = vmatprep.subr.bf16.mxu0 0
  %3160 = vmatpush1.bf16.xpose.msra.mxu0 0
  %3161 = vmatprep.subr.bf16.mxu0 0
  %3162 = vmatpush1.bf16.xpose.msra.mxu0 0
  %3163 = vmatprep.subr.bf16.mxu0 0
  %3164 = vmatpush1.bf16.xpose.msra.mxu0 0
  %3165 = vmatprep.subr.bf16.mxu0 0
  %3166 = vmatpush1.bf16.xpose.msra.mxu0 0
  %3167 = vmatprep.subr.bf16.mxu0 0
  %3168 = vmatpush1.bf16.xpose.msra.mxu0 0
  %3169 = vmatprep.subr.bf16.mxu0 0
  %3170 = vmatpush1.bf16.xpose.msra.mxu0 0
  %3171 = vmatprep.subr.bf16.mxu0 0
  %3172 = vmatpush1.bf16.xpose.msra.mxu0 0
  %3173 = vmatprep.subr.bf16.mxu0 0
  %3174 = vmatpush1.bf16.xpose.msra.mxu0 0
  %3175 = vmatprep.subr.bf16.mxu0 0
  %3176 = vmatpush1.bf16.xpose.msra.mxu0 0
  %3177 = vmatprep.mubr.bf16.mxu0 0
  %3178 = vmatmul.mubr.bf16.gmra.mrb[0].mxu0 %v3140
  %v3179 = vpop.f32.mrb[0].mxu0
  %v3180 = vadd.f32 0.0, %v3179
  %v3181 = vpop.f32.mrb[0].mxu0
  %v3182 = vpop.f32.mrb[0].mxu0
  %v3183 = vpop.f32.mrb[0].mxu0
  %3184 = vdwg.mxu0
  %3186 = vrot.lane.b32.xlu0 %v1008, 96
  %v3187 = vpop.permute.xlu0 %3186
  %v3189 = vsel %vm1031, %v1008, 0
  %v3192 = vsel %vm1031, %v3187, 0
  %3194 = vmatprep.subr.bf16.mxu0 0
  %3195 = vmatpush1.bf16.xpose.msra.mxu0 %v3192
  %3196 = vmatprep.subr.bf16.mxu0 0
  %3197 = vmatpush1.bf16.xpose.msra.mxu0 0
  %3198 = vmatprep.subr.bf16.mxu0 0
  %3199 = vmatpush1.bf16.xpose.msra.mxu0 0
  %3200 = vmatprep.subr.bf16.mxu0 0
  %3201 = vmatpush1.bf16.xpose.msra.mxu0 0
  %3202 = vmatprep.subr.bf16.mxu0 0
  %3203 = vmatpush1.bf16.xpose.msra.mxu0 0
  %3204 = vmatprep.subr.bf16.mxu0 0
  %3205 = vmatpush1.bf16.xpose.msra.mxu0 0
  %3206 = vmatprep.subr.bf16.mxu0 0
  %3207 = vmatpush1.bf16.xpose.msra.mxu0 0
  %3208 = vmatprep.subr.bf16.mxu0 0
  %3209 = vmatpush1.bf16.xpose.msra.mxu0 0
  %3210 = vmatprep.subr.bf16.mxu0 0
  %3211 = vmatpush1.bf16.xpose.msra.mxu0 0
  %3212 = vmatprep.subr.bf16.mxu0 0
  %3213 = vmatpush1.bf16.xpose.msra.mxu0 0
  %3214 = vmatprep.subr.bf16.mxu0 0
  %3215 = vmatpush1.bf16.xpose.msra.mxu0 0
  %3216 = vmatprep.subr.bf16.mxu0 0
  %3217 = vmatpush1.bf16.xpose.msra.mxu0 0
  %3218 = vmatprep.subr.bf16.mxu0 0
  %3219 = vmatpush1.bf16.xpose.msra.mxu0 0
  %3220 = vmatprep.subr.bf16.mxu0 0
  %3221 = vmatpush1.bf16.xpose.msra.mxu0 0
  %3222 = vmatprep.subr.bf16.mxu0 0
  %3223 = vmatpush1.bf16.xpose.msra.mxu0 0
  %3224 = vmatprep.subr.bf16.mxu0 0
  %3225 = vmatpush1.bf16.xpose.msra.mxu0 0
  %3226 = vmatprep.mubr.bf16.mxu0 0
  %3227 = vmatmul.mubr.bf16.gmra.mrb[0].mxu0 %v3189
  %v3228 = vpop.f32.mrb[0].mxu0
  %v3229 = vadd.f32 0.0, %v3228
  %v3230 = vpop.f32.mrb[0].mxu0
  %v3231 = vpop.f32.mrb[0].mxu0
  %v3232 = vpop.f32.mrb[0].mxu0
  %3233 = vdwg.mxu0
  %3235 = vrot.lane.b32.xlu0 %v1009, 96
  %v3236 = vpop.permute.xlu0 %3235
  %v3238 = vsel %vm1031, %v1009, 0
  %v3241 = vsel %vm1031, %v3236, 0
  %3243 = vmatprep.subr.bf16.mxu0 0
  %3244 = vmatpush1.bf16.xpose.msra.mxu0 %v3241
  %3245 = vmatprep.subr.bf16.mxu0 0
  %3246 = vmatpush1.bf16.xpose.msra.mxu0 0
  %3247 = vmatprep.subr.bf16.mxu0 0
  %3248 = vmatpush1.bf16.xpose.msra.mxu0 0
  %3249 = vmatprep.subr.bf16.mxu0 0
  %3250 = vmatpush1.bf16.xpose.msra.mxu0 0
  %3251 = vmatprep.subr.bf16.mxu0 0
  %3252 = vmatpush1.bf16.xpose.msra.mxu0 0
  %3253 = vmatprep.subr.bf16.mxu0 0
  %3254 = vmatpush1.bf16.xpose.msra.mxu0 0
  %3255 = vmatprep.subr.bf16.mxu0 0
  %3256 = vmatpush1.bf16.xpose.msra.mxu0 0
  %3257 = vmatprep.subr.bf16.mxu0 0
  %3258 = vmatpush1.bf16.xpose.msra.mxu0 0
  %3259 = vmatprep.subr.bf16.mxu0 0
  %3260 = vmatpush1.bf16.xpose.msra.mxu0 0
  %3261 = vmatprep.subr.bf16.mxu0 0
  %3262 = vmatpush1.bf16.xpose.msra.mxu0 0
  %3263 = vmatprep.subr.bf16.mxu0 0
  %3264 = vmatpush1.bf16.xpose.msra.mxu0 0
  %3265 = vmatprep.subr.bf16.mxu0 0
  %3266 = vmatpush1.bf16.xpose.msra.mxu0 0
  %3267 = vmatprep.subr.bf16.mxu0 0
  %3268 = vmatpush1.bf16.xpose.msra.mxu0 0
  %3269 = vmatprep.subr.bf16.mxu0 0
  %3270 = vmatpush1.bf16.xpose.msra.mxu0 0
  %3271 = vmatprep.subr.bf16.mxu0 0
  %3272 = vmatpush1.bf16.xpose.msra.mxu0 0
  %3273 = vmatprep.subr.bf16.mxu0 0
  %3274 = vmatpush1.bf16.xpose.msra.mxu0 0
  %3275 = vmatprep.mubr.bf16.mxu0 0
  %3276 = vmatmul.mubr.bf16.gmra.mrb[0].mxu0 %v3238
  %v3277 = vpop.f32.mrb[0].mxu0
  %v3278 = vadd.f32 0.0, %v3277
  %v3279 = vpop.f32.mrb[0].mxu0
  %v3280 = vpop.f32.mrb[0].mxu0
  %v3281 = vpop.f32.mrb[0].mxu0
  %3282 = vdwg.mxu0
  %3284 = vrot.lane.b32.xlu0 %v1010, 96
  %v3285 = vpop.permute.xlu0 %3284
  %v3287 = vsel %vm1031, %v1010, 0
  %v3290 = vsel %vm1031, %v3285, 0
  %3292 = vmatprep.subr.bf16.mxu0 0
  %3293 = vmatpush1.bf16.xpose.msra.mxu0 %v3290
  %3294 = vmatprep.subr.bf16.mxu0 0
  %3295 = vmatpush1.bf16.xpose.msra.mxu0 0
  %3296 = vmatprep.subr.bf16.mxu0 0
  %3297 = vmatpush1.bf16.xpose.msra.mxu0 0
  %3298 = vmatprep.subr.bf16.mxu0 0
  %3299 = vmatpush1.bf16.xpose.msra.mxu0 0
  %3300 = vmatprep.subr.bf16.mxu0 0
  %3301 = vmatpush1.bf16.xpose.msra.mxu0 0
  %3302 = vmatprep.subr.bf16.mxu0 0
  %3303 = vmatpush1.bf16.xpose.msra.mxu0 0
  %3304 = vmatprep.subr.bf16.mxu0 0
  %3305 = vmatpush1.bf16.xpose.msra.mxu0 0
  %3306 = vmatprep.subr.bf16.mxu0 0
  %3307 = vmatpush1.bf16.xpose.msra.mxu0 0
  %3308 = vmatprep.subr.bf16.mxu0 0
  %3309 = vmatpush1.bf16.xpose.msra.mxu0 0
  %3310 = vmatprep.subr.bf16.mxu0 0
  %3311 = vmatpush1.bf16.xpose.msra.mxu0 0
  %3312 = vmatprep.subr.bf16.mxu0 0
  %3313 = vmatpush1.bf16.xpose.msra.mxu0 0
  %3314 = vmatprep.subr.bf16.mxu0 0
  %3315 = vmatpush1.bf16.xpose.msra.mxu0 0
  %3316 = vmatprep.subr.bf16.mxu0 0
  %3317 = vmatpush1.bf16.xpose.msra.mxu0 0
  %3318 = vmatprep.subr.bf16.mxu0 0
  %3319 = vmatpush1.bf16.xpose.msra.mxu0 0
  %3320 = vmatprep.subr.bf16.mxu0 0
  %3321 = vmatpush1.bf16.xpose.msra.mxu0 0
  %3322 = vmatprep.subr.bf16.mxu0 0
  %3323 = vmatpush1.bf16.xpose.msra.mxu0 0
  %3324 = vmatprep.mubr.bf16.mxu0 0
  %3325 = vmatmul.mubr.bf16.gmra.mrb[0].mxu0 %v3287
  %v3326 = vpop.f32.mrb[0].mxu0
  %v3327 = vadd.f32 0.0, %v3326
  %v3328 = vpop.f32.mrb[0].mxu0
  %v3329 = vpop.f32.mrb[0].mxu0
  %v3330 = vpop.f32.mrb[0].mxu0
  %3331 = vdwg.mxu0
  %3333 = vrot.lane.b32.xlu0 %v1011, 96
  %v3334 = vpop.permute.xlu0 %3333
  %v3336 = vsel %vm1031, %v1011, 0
  %v3339 = vsel %vm1031, %v3334, 0
  %3341 = vmatprep.subr.bf16.mxu0 0
  %3342 = vmatpush1.bf16.xpose.msra.mxu0 %v3339
  %3343 = vmatprep.subr.bf16.mxu0 0
  %3344 = vmatpush1.bf16.xpose.msra.mxu0 0
  %3345 = vmatprep.subr.bf16.mxu0 0
  %3346 = vmatpush1.bf16.xpose.msra.mxu0 0
  %3347 = vmatprep.subr.bf16.mxu0 0
  %3348 = vmatpush1.bf16.xpose.msra.mxu0 0
  %3349 = vmatprep.subr.bf16.mxu0 0
  %3350 = vmatpush1.bf16.xpose.msra.mxu0 0
  %3351 = vmatprep.subr.bf16.mxu0 0
  %3352 = vmatpush1.bf16.xpose.msra.mxu0 0
  %3353 = vmatprep.subr.bf16.mxu0 0
  %3354 = vmatpush1.bf16.xpose.msra.mxu0 0
  %3355 = vmatprep.subr.bf16.mxu0 0
  %3356 = vmatpush1.bf16.xpose.msra.mxu0 0
  %3357 = vmatprep.subr.bf16.mxu0 0
  %3358 = vmatpush1.bf16.xpose.msra.mxu0 0
  %3359 = vmatprep.subr.bf16.mxu0 0
  %3360 = vmatpush1.bf16.xpose.msra.mxu0 0
  %3361 = vmatprep.subr.bf16.mxu0 0
  %3362 = vmatpush1.bf16.xpose.msra.mxu0 0
  %3363 = vmatprep.subr.bf16.mxu0 0
  %3364 = vmatpush1.bf16.xpose.msra.mxu0 0
  %3365 = vmatprep.subr.bf16.mxu0 0
  %3366 = vmatpush1.bf16.xpose.msra.mxu0 0
  %3367 = vmatprep.subr.bf16.mxu0 0
  %3368 = vmatpush1.bf16.xpose.msra.mxu0 0
  %3369 = vmatprep.subr.bf16.mxu0 0
  %3370 = vmatpush1.bf16.xpose.msra.mxu0 0
  %3371 = vmatprep.subr.bf16.mxu0 0
  %3372 = vmatpush1.bf16.xpose.msra.mxu0 0
  %3373 = vmatprep.mubr.bf16.mxu0 0
  %3374 = vmatmul.mubr.bf16.gmra.mrb[0].mxu0 %v3336
  %v3375 = vpop.f32.mrb[0].mxu0
  %v3376 = vadd.f32 0.0, %v3375
  %v3377 = vpop.f32.mrb[0].mxu0
  %v3378 = vpop.f32.mrb[0].mxu0
  %v3379 = vpop.f32.mrb[0].mxu0
  %3380 = vdwg.mxu0
  %3382 = vrot.lane.b32.xlu0 %v1012, 96
  %v3383 = vpop.permute.xlu0 %3382
  %v3385 = vsel %vm1031, %v1012, 0
  %v3388 = vsel %vm1031, %v3383, 0
  %3390 = vmatprep.subr.bf16.mxu0 0
  %3391 = vmatpush1.bf16.xpose.msra.mxu0 %v3388
  %3392 = vmatprep.subr.bf16.mxu0 0
  %3393 = vmatpush1.bf16.xpose.msra.mxu0 0
  %3394 = vmatprep.subr.bf16.mxu0 0
  %3395 = vmatpush1.bf16.xpose.msra.mxu0 0
  %3396 = vmatprep.subr.bf16.mxu0 0
  %3397 = vmatpush1.bf16.xpose.msra.mxu0 0
  %3398 = vmatprep.subr.bf16.mxu0 0
  %3399 = vmatpush1.bf16.xpose.msra.mxu0 0
  %3400 = vmatprep.subr.bf16.mxu0 0
  %3401 = vmatpush1.bf16.xpose.msra.mxu0 0
  %3402 = vmatprep.subr.bf16.mxu0 0
  %3403 = vmatpush1.bf16.xpose.msra.mxu0 0
  %3404 = vmatprep.subr.bf16.mxu0 0
  %3405 = vmatpush1.bf16.xpose.msra.mxu0 0
  %3406 = vmatprep.subr.bf16.mxu0 0
  %3407 = vmatpush1.bf16.xpose.msra.mxu0 0
  %3408 = vmatprep.subr.bf16.mxu0 0
  %3409 = vmatpush1.bf16.xpose.msra.mxu0 0
  %3410 = vmatprep.subr.bf16.mxu0 0
  %3411 = vmatpush1.bf16.xpose.msra.mxu0 0
  %3412 = vmatprep.subr.bf16.mxu0 0
  %3413 = vmatpush1.bf16.xpose.msra.mxu0 0
  %3414 = vmatprep.subr.bf16.mxu0 0
  %3415 = vmatpush1.bf16.xpose.msra.mxu0 0
  %3416 = vmatprep.subr.bf16.mxu0 0
  %3417 = vmatpush1.bf16.xpose.msra.mxu0 0
  %3418 = vmatprep.subr.bf16.mxu0 0
  %3419 = vmatpush1.bf16.xpose.msra.mxu0 0
  %3420 = vmatprep.subr.bf16.mxu0 0
  %3421 = vmatpush1.bf16.xpose.msra.mxu0 0
  %3422 = vmatprep.mubr.bf16.mxu0 0
  %3423 = vmatmul.mubr.bf16.gmra.mrb[0].mxu0 %v3385
  %v3424 = vpop.f32.mrb[0].mxu0
  %v3425 = vadd.f32 0.0, %v3424
  %v3426 = vpop.f32.mrb[0].mxu0
  %v3427 = vpop.f32.mrb[0].mxu0
  %v3428 = vpop.f32.mrb[0].mxu0
  %3429 = vdwg.mxu0
  %3431 = vrot.lane.b32.xlu0 %v1013, 96
  %v3432 = vpop.permute.xlu0 %3431
  %v3434 = vsel %vm1031, %v1013, 0
  %v3437 = vsel %vm1031, %v3432, 0
  %3439 = vmatprep.subr.bf16.mxu0 0
  %3440 = vmatpush1.bf16.xpose.msra.mxu0 %v3437
  %3441 = vmatprep.subr.bf16.mxu0 0
  %3442 = vmatpush1.bf16.xpose.msra.mxu0 0
  %3443 = vmatprep.subr.bf16.mxu0 0
  %3444 = vmatpush1.bf16.xpose.msra.mxu0 0
  %3445 = vmatprep.subr.bf16.mxu0 0
  %3446 = vmatpush1.bf16.xpose.msra.mxu0 0
  %3447 = vmatprep.subr.bf16.mxu0 0
  %3448 = vmatpush1.bf16.xpose.msra.mxu0 0
  %3449 = vmatprep.subr.bf16.mxu0 0
  %3450 = vmatpush1.bf16.xpose.msra.mxu0 0
  %3451 = vmatprep.subr.bf16.mxu0 0
  %3452 = vmatpush1.bf16.xpose.msra.mxu0 0
  %3453 = vmatprep.subr.bf16.mxu0 0
  %3454 = vmatpush1.bf16.xpose.msra.mxu0 0
  %3455 = vmatprep.subr.bf16.mxu0 0
  %3456 = vmatpush1.bf16.xpose.msra.mxu0 0
  %3457 = vmatprep.subr.bf16.mxu0 0
  %3458 = vmatpush1.bf16.xpose.msra.mxu0 0
  %3459 = vmatprep.subr.bf16.mxu0 0
  %3460 = vmatpush1.bf16.xpose.msra.mxu0 0
  %3461 = vmatprep.subr.bf16.mxu0 0
  %3462 = vmatpush1.bf16.xpose.msra.mxu0 0
  %3463 = vmatprep.subr.bf16.mxu0 0
  %3464 = vmatpush1.bf16.xpose.msra.mxu0 0
  %3465 = vmatprep.subr.bf16.mxu0 0
  %3466 = vmatpush1.bf16.xpose.msra.mxu0 0
  %3467 = vmatprep.subr.bf16.mxu0 0
  %3468 = vmatpush1.bf16.xpose.msra.mxu0 0
  %3469 = vmatprep.subr.bf16.mxu0 0
  %3470 = vmatpush1.bf16.xpose.msra.mxu0 0
  %3471 = vmatprep.mubr.bf16.mxu0 0
  %3472 = vmatmul.mubr.bf16.gmra.mrb[0].mxu0 %v3434
  %v3473 = vpop.f32.mrb[0].mxu0
  %v3474 = vadd.f32 0.0, %v3473
  %v3475 = vpop.f32.mrb[0].mxu0
  %v3476 = vpop.f32.mrb[0].mxu0
  %v3477 = vpop.f32.mrb[0].mxu0
  %3478 = vdwg.mxu0
  %3480 = vrot.lane.b32.xlu0 %v1014, 96
  %v3481 = vpop.permute.xlu0 %3480
  %v3483 = vsel %vm1031, %v1014, 0
  %v3486 = vsel %vm1031, %v3481, 0
  %3488 = vmatprep.subr.bf16.mxu0 0
  %3489 = vmatpush1.bf16.xpose.msra.mxu0 %v3486
  %3490 = vmatprep.subr.bf16.mxu0 0
  %3491 = vmatpush1.bf16.xpose.msra.mxu0 0
  %3492 = vmatprep.subr.bf16.mxu0 0
  %3493 = vmatpush1.bf16.xpose.msra.mxu0 0
  %3494 = vmatprep.subr.bf16.mxu0 0
  %3495 = vmatpush1.bf16.xpose.msra.mxu0 0
  %3496 = vmatprep.subr.bf16.mxu0 0
  %3497 = vmatpush1.bf16.xpose.msra.mxu0 0
  %3498 = vmatprep.subr.bf16.mxu0 0
  %3499 = vmatpush1.bf16.xpose.msra.mxu0 0
  %3500 = vmatprep.subr.bf16.mxu0 0
  %3501 = vmatpush1.bf16.xpose.msra.mxu0 0
  %3502 = vmatprep.subr.bf16.mxu0 0
  %3503 = vmatpush1.bf16.xpose.msra.mxu0 0
  %3504 = vmatprep.subr.bf16.mxu0 0
  %3505 = vmatpush1.bf16.xpose.msra.mxu0 0
  %3506 = vmatprep.subr.bf16.mxu0 0
  %3507 = vmatpush1.bf16.xpose.msra.mxu0 0
  %3508 = vmatprep.subr.bf16.mxu0 0
  %3509 = vmatpush1.bf16.xpose.msra.mxu0 0
  %3510 = vmatprep.subr.bf16.mxu0 0
  %3511 = vmatpush1.bf16.xpose.msra.mxu0 0
  %3512 = vmatprep.subr.bf16.mxu0 0
  %3513 = vmatpush1.bf16.xpose.msra.mxu0 0
  %3514 = vmatprep.subr.bf16.mxu0 0
  %3515 = vmatpush1.bf16.xpose.msra.mxu0 0
  %3516 = vmatprep.subr.bf16.mxu0 0
  %3517 = vmatpush1.bf16.xpose.msra.mxu0 0
  %3518 = vmatprep.subr.bf16.mxu0 0
  %3519 = vmatpush1.bf16.xpose.msra.mxu0 0
  %3520 = vmatprep.mubr.bf16.mxu0 0
  %3521 = vmatmul.mubr.bf16.gmra.mrb[0].mxu0 %v3483
  %v3522 = vpop.f32.mrb[0].mxu0
  %v3523 = vadd.f32 0.0, %v3522
  %v3524 = vpop.f32.mrb[0].mxu0
  %v3525 = vpop.f32.mrb[0].mxu0
  %v3526 = vpop.f32.mrb[0].mxu0
  %3527 = vdwg.mxu0
  %3529 = vrot.lane.b32.xlu0 %v1015, 96
  %v3530 = vpop.permute.xlu0 %3529
  %v3532 = vsel %vm1031, %v1015, 0
  %v3535 = vsel %vm1031, %v3530, 0
  %3537 = vmatprep.subr.bf16.mxu0 0
  %3538 = vmatpush1.bf16.xpose.msra.mxu0 %v3535
  %3539 = vmatprep.subr.bf16.mxu0 0
  %3540 = vmatpush1.bf16.xpose.msra.mxu0 0
  %3541 = vmatprep.subr.bf16.mxu0 0
  %3542 = vmatpush1.bf16.xpose.msra.mxu0 0
  %3543 = vmatprep.subr.bf16.mxu0 0
  %3544 = vmatpush1.bf16.xpose.msra.mxu0 0
  %3545 = vmatprep.subr.bf16.mxu0 0
  %3546 = vmatpush1.bf16.xpose.msra.mxu0 0
  %3547 = vmatprep.subr.bf16.mxu0 0
  %3548 = vmatpush1.bf16.xpose.msra.mxu0 0
  %3549 = vmatprep.subr.bf16.mxu0 0
  %3550 = vmatpush1.bf16.xpose.msra.mxu0 0
  %3551 = vmatprep.subr.bf16.mxu0 0
  %3552 = vmatpush1.bf16.xpose.msra.mxu0 0
  %3553 = vmatprep.subr.bf16.mxu0 0
  %3554 = vmatpush1.bf16.xpose.msra.mxu0 0
  %3555 = vmatprep.subr.bf16.mxu0 0
  %3556 = vmatpush1.bf16.xpose.msra.mxu0 0
  %3557 = vmatprep.subr.bf16.mxu0 0
  %3558 = vmatpush1.bf16.xpose.msra.mxu0 0
  %3559 = vmatprep.subr.bf16.mxu0 0
  %3560 = vmatpush1.bf16.xpose.msra.mxu0 0
  %3561 = vmatprep.subr.bf16.mxu0 0
  %3562 = vmatpush1.bf16.xpose.msra.mxu0 0
  %3563 = vmatprep.subr.bf16.mxu0 0
  %3564 = vmatpush1.bf16.xpose.msra.mxu0 0
  %3565 = vmatprep.subr.bf16.mxu0 0
  %3566 = vmatpush1.bf16.xpose.msra.mxu0 0
  %3567 = vmatprep.subr.bf16.mxu0 0
  %3568 = vmatpush1.bf16.xpose.msra.mxu0 0
  %3569 = vmatprep.mubr.bf16.mxu0 0
  %3570 = vmatmul.mubr.bf16.gmra.mrb[0].mxu0 %v3532
  %v3571 = vpop.f32.mrb[0].mxu0
  %v3572 = vadd.f32 0.0, %v3571
  %v3573 = vpop.f32.mrb[0].mxu0
  %v3574 = vpop.f32.mrb[0].mxu0
  %v3575 = vpop.f32.mrb[0].mxu0
  %3576 = vdwg.mxu0
  %3578 = vrot.lane.b32.xlu0 %v1016, 96
  %v3579 = vpop.permute.xlu0 %3578
  %v3581 = vsel %vm1031, %v1016, 0
  %v3584 = vsel %vm1031, %v3579, 0
  %3586 = vmatprep.subr.bf16.mxu0 0
  %3587 = vmatpush1.bf16.xpose.msra.mxu0 %v3584
  %3588 = vmatprep.subr.bf16.mxu0 0
  %3589 = vmatpush1.bf16.xpose.msra.mxu0 0
  %3590 = vmatprep.subr.bf16.mxu0 0
  %3591 = vmatpush1.bf16.xpose.msra.mxu0 0
  %3592 = vmatprep.subr.bf16.mxu0 0
  %3593 = vmatpush1.bf16.xpose.msra.mxu0 0
  %3594 = vmatprep.subr.bf16.mxu0 0
  %3595 = vmatpush1.bf16.xpose.msra.mxu0 0
  %3596 = vmatprep.subr.bf16.mxu0 0
  %3597 = vmatpush1.bf16.xpose.msra.mxu0 0
  %3598 = vmatprep.subr.bf16.mxu0 0
  %3599 = vmatpush1.bf16.xpose.msra.mxu0 0
  %3600 = vmatprep.subr.bf16.mxu0 0
  %3601 = vmatpush1.bf16.xpose.msra.mxu0 0
  %3602 = vmatprep.subr.bf16.mxu0 0
  %3603 = vmatpush1.bf16.xpose.msra.mxu0 0
  %3604 = vmatprep.subr.bf16.mxu0 0
  %3605 = vmatpush1.bf16.xpose.msra.mxu0 0
  %3606 = vmatprep.subr.bf16.mxu0 0
  %3607 = vmatpush1.bf16.xpose.msra.mxu0 0
  %3608 = vmatprep.subr.bf16.mxu0 0
  %3609 = vmatpush1.bf16.xpose.msra.mxu0 0
  %3610 = vmatprep.subr.bf16.mxu0 0
  %3611 = vmatpush1.bf16.xpose.msra.mxu0 0
  %3612 = vmatprep.subr.bf16.mxu0 0
  %3613 = vmatpush1.bf16.xpose.msra.mxu0 0
  %3614 = vmatprep.subr.bf16.mxu0 0
  %3615 = vmatpush1.bf16.xpose.msra.mxu0 0
  %3616 = vmatprep.subr.bf16.mxu0 0
  %3617 = vmatpush1.bf16.xpose.msra.mxu0 0
  %3618 = vmatprep.mubr.bf16.mxu0 0
  %3619 = vmatmul.mubr.bf16.gmra.mrb[0].mxu0 %v3581
  %v3620 = vpop.f32.mrb[0].mxu0
  %v3621 = vadd.f32 0.0, %v3620
  %v3622 = vpop.f32.mrb[0].mxu0
  %v3623 = vpop.f32.mrb[0].mxu0
  %v3624 = vpop.f32.mrb[0].mxu0
  %3625 = vdwg.mxu0
  %3627 = vrot.lane.b32.xlu0 %v1017, 96
  %v3628 = vpop.permute.xlu0 %3627
  %v3630 = vsel %vm1031, %v1017, 0
  %v3633 = vsel %vm1031, %v3628, 0
  %3635 = vmatprep.subr.bf16.mxu0 0
  %3636 = vmatpush1.bf16.xpose.msra.mxu0 %v3633
  %3637 = vmatprep.subr.bf16.mxu0 0
  %3638 = vmatpush1.bf16.xpose.msra.mxu0 0
  %3639 = vmatprep.subr.bf16.mxu0 0
  %3640 = vmatpush1.bf16.xpose.msra.mxu0 0
  %3641 = vmatprep.subr.bf16.mxu0 0
  %3642 = vmatpush1.bf16.xpose.msra.mxu0 0
  %3643 = vmatprep.subr.bf16.mxu0 0
  %3644 = vmatpush1.bf16.xpose.msra.mxu0 0
  %3645 = vmatprep.subr.bf16.mxu0 0
  %3646 = vmatpush1.bf16.xpose.msra.mxu0 0
  %3647 = vmatprep.subr.bf16.mxu0 0
  %3648 = vmatpush1.bf16.xpose.msra.mxu0 0
  %3649 = vmatprep.subr.bf16.mxu0 0
  %3650 = vmatpush1.bf16.xpose.msra.mxu0 0
  %3651 = vmatprep.subr.bf16.mxu0 0
  %3652 = vmatpush1.bf16.xpose.msra.mxu0 0
  %3653 = vmatprep.subr.bf16.mxu0 0
  %3654 = vmatpush1.bf16.xpose.msra.mxu0 0
  %3655 = vmatprep.subr.bf16.mxu0 0
  %3656 = vmatpush1.bf16.xpose.msra.mxu0 0
  %3657 = vmatprep.subr.bf16.mxu0 0
  %3658 = vmatpush1.bf16.xpose.msra.mxu0 0
  %3659 = vmatprep.subr.bf16.mxu0 0
  %3660 = vmatpush1.bf16.xpose.msra.mxu0 0
  %3661 = vmatprep.subr.bf16.mxu0 0
  %3662 = vmatpush1.bf16.xpose.msra.mxu0 0
  %3663 = vmatprep.subr.bf16.mxu0 0
  %3664 = vmatpush1.bf16.xpose.msra.mxu0 0
  %3665 = vmatprep.subr.bf16.mxu0 0
  %3666 = vmatpush1.bf16.xpose.msra.mxu0 0
  %3667 = vmatprep.mubr.bf16.mxu0 0
  %3668 = vmatmul.mubr.bf16.gmra.mrb[0].mxu0 %v3630
  %v3669 = vpop.f32.mrb[0].mxu0
  %v3670 = vadd.f32 0.0, %v3669
  %v3671 = vpop.f32.mrb[0].mxu0
  %v3672 = vpop.f32.mrb[0].mxu0
  %v3673 = vpop.f32.mrb[0].mxu0
  %3674 = vdwg.mxu0
  %3676 = vrot.lane.b32.xlu0 %v1018, 96
  %v3677 = vpop.permute.xlu0 %3676
  %v3679 = vsel %vm1031, %v1018, 0
  %v3682 = vsel %vm1031, %v3677, 0
  %3684 = vmatprep.subr.bf16.mxu0 0
  %3685 = vmatpush1.bf16.xpose.msra.mxu0 %v3682
  %3686 = vmatprep.subr.bf16.mxu0 0
  %3687 = vmatpush1.bf16.xpose.msra.mxu0 0
  %3688 = vmatprep.subr.bf16.mxu0 0
  %3689 = vmatpush1.bf16.xpose.msra.mxu0 0
  %3690 = vmatprep.subr.bf16.mxu0 0
  %3691 = vmatpush1.bf16.xpose.msra.mxu0 0
  %3692 = vmatprep.subr.bf16.mxu0 0
  %3693 = vmatpush1.bf16.xpose.msra.mxu0 0
  %3694 = vmatprep.subr.bf16.mxu0 0
  %3695 = vmatpush1.bf16.xpose.msra.mxu0 0
  %3696 = vmatprep.subr.bf16.mxu0 0
  %3697 = vmatpush1.bf16.xpose.msra.mxu0 0
  %3698 = vmatprep.subr.bf16.mxu0 0
  %3699 = vmatpush1.bf16.xpose.msra.mxu0 0
  %3700 = vmatprep.subr.bf16.mxu0 0
  %3701 = vmatpush1.bf16.xpose.msra.mxu0 0
  %3702 = vmatprep.subr.bf16.mxu0 0
  %3703 = vmatpush1.bf16.xpose.msra.mxu0 0
  %3704 = vmatprep.subr.bf16.mxu0 0
  %3705 = vmatpush1.bf16.xpose.msra.mxu0 0
  %3706 = vmatprep.subr.bf16.mxu0 0
  %3707 = vmatpush1.bf16.xpose.msra.mxu0 0
  %3708 = vmatprep.subr.bf16.mxu0 0
  %3709 = vmatpush1.bf16.xpose.msra.mxu0 0
  %3710 = vmatprep.subr.bf16.mxu0 0
  %3711 = vmatpush1.bf16.xpose.msra.mxu0 0
  %3712 = vmatprep.subr.bf16.mxu0 0
  %3713 = vmatpush1.bf16.xpose.msra.mxu0 0
  %3714 = vmatprep.subr.bf16.mxu0 0
  %3715 = vmatpush1.bf16.xpose.msra.mxu0 0
  %3716 = vmatprep.mubr.bf16.mxu0 0
  %3717 = vmatmul.mubr.bf16.gmra.mrb[0].mxu0 %v3679
  %v3718 = vpop.f32.mrb[0].mxu0
  %v3719 = vadd.f32 0.0, %v3718
  %v3720 = vpop.f32.mrb[0].mxu0
  %v3721 = vpop.f32.mrb[0].mxu0
  %v3722 = vpop.f32.mrb[0].mxu0
  %3723 = vdwg.mxu0
  %3725 = vrot.lane.b32.xlu0 %v1019, 96
  %v3726 = vpop.permute.xlu0 %3725
  %v3728 = vsel %vm1031, %v1019, 0
  %v3731 = vsel %vm1031, %v3726, 0
  %3733 = vmatprep.subr.bf16.mxu0 0
  %3734 = vmatpush1.bf16.xpose.msra.mxu0 %v3731
  %3735 = vmatprep.subr.bf16.mxu0 0
  %3736 = vmatpush1.bf16.xpose.msra.mxu0 0
  %3737 = vmatprep.subr.bf16.mxu0 0
  %3738 = vmatpush1.bf16.xpose.msra.mxu0 0
  %3739 = vmatprep.subr.bf16.mxu0 0
  %3740 = vmatpush1.bf16.xpose.msra.mxu0 0
  %3741 = vmatprep.subr.bf16.mxu0 0
  %3742 = vmatpush1.bf16.xpose.msra.mxu0 0
  %3743 = vmatprep.subr.bf16.mxu0 0
  %3744 = vmatpush1.bf16.xpose.msra.mxu0 0
  %3745 = vmatprep.subr.bf16.mxu0 0
  %3746 = vmatpush1.bf16.xpose.msra.mxu0 0
  %3747 = vmatprep.subr.bf16.mxu0 0
  %3748 = vmatpush1.bf16.xpose.msra.mxu0 0
  %3749 = vmatprep.subr.bf16.mxu0 0
  %3750 = vmatpush1.bf16.xpose.msra.mxu0 0
  %3751 = vmatprep.subr.bf16.mxu0 0
  %3752 = vmatpush1.bf16.xpose.msra.mxu0 0
  %3753 = vmatprep.subr.bf16.mxu0 0
  %3754 = vmatpush1.bf16.xpose.msra.mxu0 0
  %3755 = vmatprep.subr.bf16.mxu0 0
  %3756 = vmatpush1.bf16.xpose.msra.mxu0 0
  %3757 = vmatprep.subr.bf16.mxu0 0
  %3758 = vmatpush1.bf16.xpose.msra.mxu0 0
  %3759 = vmatprep.subr.bf16.mxu0 0
  %3760 = vmatpush1.bf16.xpose.msra.mxu0 0
  %3761 = vmatprep.subr.bf16.mxu0 0
  %3762 = vmatpush1.bf16.xpose.msra.mxu0 0
  %3763 = vmatprep.subr.bf16.mxu0 0
  %3764 = vmatpush1.bf16.xpose.msra.mxu0 0
  %3765 = vmatprep.mubr.bf16.mxu0 0
  %3766 = vmatmul.mubr.bf16.gmra.mrb[0].mxu0 %v3728
  %v3767 = vpop.f32.mrb[0].mxu0
  %v3768 = vadd.f32 0.0, %v3767
  %v3769 = vpop.f32.mrb[0].mxu0
  %v3770 = vpop.f32.mrb[0].mxu0
  %v3771 = vpop.f32.mrb[0].mxu0
  %3772 = vdwg.mxu0
  %3774 = vrot.lane.b32.xlu0 %v1020, 96
  %v3775 = vpop.permute.xlu0 %3774
  %v3777 = vsel %vm1031, %v1020, 0
  %v3780 = vsel %vm1031, %v3775, 0
  %3782 = vmatprep.subr.bf16.mxu0 0
  %3783 = vmatpush1.bf16.xpose.msra.mxu0 %v3780
  %3784 = vmatprep.subr.bf16.mxu0 0
  %3785 = vmatpush1.bf16.xpose.msra.mxu0 0
  %3786 = vmatprep.subr.bf16.mxu0 0
  %3787 = vmatpush1.bf16.xpose.msra.mxu0 0
  %3788 = vmatprep.subr.bf16.mxu0 0
  %3789 = vmatpush1.bf16.xpose.msra.mxu0 0
  %3790 = vmatprep.subr.bf16.mxu0 0
  %3791 = vmatpush1.bf16.xpose.msra.mxu0 0
  %3792 = vmatprep.subr.bf16.mxu0 0
  %3793 = vmatpush1.bf16.xpose.msra.mxu0 0
  %3794 = vmatprep.subr.bf16.mxu0 0
  %3795 = vmatpush1.bf16.xpose.msra.mxu0 0
  %3796 = vmatprep.subr.bf16.mxu0 0
  %3797 = vmatpush1.bf16.xpose.msra.mxu0 0
  %3798 = vmatprep.subr.bf16.mxu0 0
  %3799 = vmatpush1.bf16.xpose.msra.mxu0 0
  %3800 = vmatprep.subr.bf16.mxu0 0
  %3801 = vmatpush1.bf16.xpose.msra.mxu0 0
  %3802 = vmatprep.subr.bf16.mxu0 0
  %3803 = vmatpush1.bf16.xpose.msra.mxu0 0
  %3804 = vmatprep.subr.bf16.mxu0 0
  %3805 = vmatpush1.bf16.xpose.msra.mxu0 0
  %3806 = vmatprep.subr.bf16.mxu0 0
  %3807 = vmatpush1.bf16.xpose.msra.mxu0 0
  %3808 = vmatprep.subr.bf16.mxu0 0
  %3809 = vmatpush1.bf16.xpose.msra.mxu0 0
  %3810 = vmatprep.subr.bf16.mxu0 0
  %3811 = vmatpush1.bf16.xpose.msra.mxu0 0
  %3812 = vmatprep.subr.bf16.mxu0 0
  %3813 = vmatpush1.bf16.xpose.msra.mxu0 0
  %3814 = vmatprep.mubr.bf16.mxu0 0
  %3815 = vmatmul.mubr.bf16.gmra.mrb[0].mxu0 %v3777
  %v3816 = vpop.f32.mrb[0].mxu0
  %v3817 = vadd.f32 0.0, %v3816
  %v3818 = vpop.f32.mrb[0].mxu0
  %v3819 = vpop.f32.mrb[0].mxu0
  %v3820 = vpop.f32.mrb[0].mxu0
  %3821 = vdwg.mxu0
  %3823 = vrot.lane.b32.xlu0 %v1021, 96
  %v3824 = vpop.permute.xlu0 %3823
  %v3826 = vsel %vm1031, %v1021, 0
  %v3829 = vsel %vm1031, %v3824, 0
  %3831 = vmatprep.subr.bf16.mxu0 0
  %3832 = vmatpush1.bf16.xpose.msra.mxu0 %v3829
  %3833 = vmatprep.subr.bf16.mxu0 0
  %3834 = vmatpush1.bf16.xpose.msra.mxu0 0
  %3835 = vmatprep.subr.bf16.mxu0 0
  %3836 = vmatpush1.bf16.xpose.msra.mxu0 0
  %3837 = vmatprep.subr.bf16.mxu0 0
  %3838 = vmatpush1.bf16.xpose.msra.mxu0 0
  %3839 = vmatprep.subr.bf16.mxu0 0
  %3840 = vmatpush1.bf16.xpose.msra.mxu0 0
  %3841 = vmatprep.subr.bf16.mxu0 0
  %3842 = vmatpush1.bf16.xpose.msra.mxu0 0
  %3843 = vmatprep.subr.bf16.mxu0 0
  %3844 = vmatpush1.bf16.xpose.msra.mxu0 0
  %3845 = vmatprep.subr.bf16.mxu0 0
  %3846 = vmatpush1.bf16.xpose.msra.mxu0 0
  %3847 = vmatprep.subr.bf16.mxu0 0
  %3848 = vmatpush1.bf16.xpose.msra.mxu0 0
  %3849 = vmatprep.subr.bf16.mxu0 0
  %3850 = vmatpush1.bf16.xpose.msra.mxu0 0
  %3851 = vmatprep.subr.bf16.mxu0 0
  %3852 = vmatpush1.bf16.xpose.msra.mxu0 0
  %3853 = vmatprep.subr.bf16.mxu0 0
  %3854 = vmatpush1.bf16.xpose.msra.mxu0 0
  %3855 = vmatprep.subr.bf16.mxu0 0
  %3856 = vmatpush1.bf16.xpose.msra.mxu0 0
  %3857 = vmatprep.subr.bf16.mxu0 0
  %3858 = vmatpush1.bf16.xpose.msra.mxu0 0
  %3859 = vmatprep.subr.bf16.mxu0 0
  %3860 = vmatpush1.bf16.xpose.msra.mxu0 0
  %3861 = vmatprep.subr.bf16.mxu0 0
  %3862 = vmatpush1.bf16.xpose.msra.mxu0 0
  %3863 = vmatprep.mubr.bf16.mxu0 0
  %3864 = vmatmul.mubr.bf16.gmra.mrb[0].mxu0 %v3826
  %v3865 = vpop.f32.mrb[0].mxu0
  %v3866 = vadd.f32 0.0, %v3865
  %v3867 = vpop.f32.mrb[0].mxu0
  %v3868 = vpop.f32.mrb[0].mxu0
  %v3869 = vpop.f32.mrb[0].mxu0
  %3870 = vdwg.mxu0
  %3872 = vrot.lane.b32.xlu0 %v1022, 96
  %v3873 = vpop.permute.xlu0 %3872
  %v3875 = vsel %vm1031, %v1022, 0
  %v3878 = vsel %vm1031, %v3873, 0
  %3880 = vmatprep.subr.bf16.mxu0 0
  %3881 = vmatpush1.bf16.xpose.msra.mxu0 %v3878
  %3882 = vmatprep.subr.bf16.mxu0 0
  %3883 = vmatpush1.bf16.xpose.msra.mxu0 0
  %3884 = vmatprep.subr.bf16.mxu0 0
  %3885 = vmatpush1.bf16.xpose.msra.mxu0 0
  %3886 = vmatprep.subr.bf16.mxu0 0
  %3887 = vmatpush1.bf16.xpose.msra.mxu0 0
  %3888 = vmatprep.subr.bf16.mxu0 0
  %3889 = vmatpush1.bf16.xpose.msra.mxu0 0
  %3890 = vmatprep.subr.bf16.mxu0 0
  %3891 = vmatpush1.bf16.xpose.msra.mxu0 0
  %3892 = vmatprep.subr.bf16.mxu0 0
  %3893 = vmatpush1.bf16.xpose.msra.mxu0 0
  %3894 = vmatprep.subr.bf16.mxu0 0
  %3895 = vmatpush1.bf16.xpose.msra.mxu0 0
  %3896 = vmatprep.subr.bf16.mxu0 0
  %3897 = vmatpush1.bf16.xpose.msra.mxu0 0
  %3898 = vmatprep.subr.bf16.mxu0 0
  %3899 = vmatpush1.bf16.xpose.msra.mxu0 0
  %3900 = vmatprep.subr.bf16.mxu0 0
  %3901 = vmatpush1.bf16.xpose.msra.mxu0 0
  %3902 = vmatprep.subr.bf16.mxu0 0
  %3903 = vmatpush1.bf16.xpose.msra.mxu0 0
  %3904 = vmatprep.subr.bf16.mxu0 0
  %3905 = vmatpush1.bf16.xpose.msra.mxu0 0
  %3906 = vmatprep.subr.bf16.mxu0 0
  %3907 = vmatpush1.bf16.xpose.msra.mxu0 0
  %3908 = vmatprep.subr.bf16.mxu0 0
  %3909 = vmatpush1.bf16.xpose.msra.mxu0 0
  %3910 = vmatprep.subr.bf16.mxu0 0
  %3911 = vmatpush1.bf16.xpose.msra.mxu0 0
  %3912 = vmatprep.mubr.bf16.mxu0 0
  %3913 = vmatmul.mubr.bf16.gmra.mrb[0].mxu0 %v3875
  %v3914 = vpop.f32.mrb[0].mxu0
  %v3915 = vadd.f32 0.0, %v3914
  %v3916 = vpop.f32.mrb[0].mxu0
  %v3917 = vpop.f32.mrb[0].mxu0
  %v3918 = vpop.f32.mrb[0].mxu0
  %3919 = vdwg.mxu0
  %3921 = vrot.lane.b32.xlu0 %v1023, 96
  %v3922 = vpop.permute.xlu0 %3921
  %v3924 = vsel %vm1031, %v1023, 0
  %v3927 = vsel %vm1031, %v3922, 0
  %3929 = vmatprep.subr.bf16.mxu0 0
  %3930 = vmatpush1.bf16.xpose.msra.mxu0 %v3927
  %3931 = vmatprep.subr.bf16.mxu0 0
  %3932 = vmatpush1.bf16.xpose.msra.mxu0 0
  %3933 = vmatprep.subr.bf16.mxu0 0
  %3934 = vmatpush1.bf16.xpose.msra.mxu0 0
  %3935 = vmatprep.subr.bf16.mxu0 0
  %3936 = vmatpush1.bf16.xpose.msra.mxu0 0
  %3937 = vmatprep.subr.bf16.mxu0 0
  %3938 = vmatpush1.bf16.xpose.msra.mxu0 0
  %3939 = vmatprep.subr.bf16.mxu0 0
  %3940 = vmatpush1.bf16.xpose.msra.mxu0 0
  %3941 = vmatprep.subr.bf16.mxu0 0
  %3942 = vmatpush1.bf16.xpose.msra.mxu0 0
  %3943 = vmatprep.subr.bf16.mxu0 0
  %3944 = vmatpush1.bf16.xpose.msra.mxu0 0
  %3945 = vmatprep.subr.bf16.mxu0 0
  %3946 = vmatpush1.bf16.xpose.msra.mxu0 0
  %3947 = vmatprep.subr.bf16.mxu0 0
  %3948 = vmatpush1.bf16.xpose.msra.mxu0 0
  %3949 = vmatprep.subr.bf16.mxu0 0
  %3950 = vmatpush1.bf16.xpose.msra.mxu0 0
  %3951 = vmatprep.subr.bf16.mxu0 0
  %3952 = vmatpush1.bf16.xpose.msra.mxu0 0
  %3953 = vmatprep.subr.bf16.mxu0 0
  %3954 = vmatpush1.bf16.xpose.msra.mxu0 0
  %3955 = vmatprep.subr.bf16.mxu0 0
  %3956 = vmatpush1.bf16.xpose.msra.mxu0 0
  %3957 = vmatprep.subr.bf16.mxu0 0
  %3958 = vmatpush1.bf16.xpose.msra.mxu0 0
  %3959 = vmatprep.subr.bf16.mxu0 0
  %3960 = vmatpush1.bf16.xpose.msra.mxu0 0
  %3961 = vmatprep.mubr.bf16.mxu0 0
  %3962 = vmatmul.mubr.bf16.gmra.mrb[0].mxu0 %v3924
  %v3963 = vpop.f32.mrb[0].mxu0
  %v3964 = vadd.f32 0.0, %v3963
  %v3965 = vpop.f32.mrb[0].mxu0
  %v3966 = vpop.f32.mrb[0].mxu0
  %v3967 = vpop.f32.mrb[0].mxu0
  %3968 = vdwg.mxu0
  %3970 = vrot.lane.b32.xlu0 %v1024, 96
  %v3971 = vpop.permute.xlu0 %3970
  %v3973 = vsel %vm1031, %v1024, 0
  %v3976 = vsel %vm1031, %v3971, 0
  %3978 = vmatprep.subr.bf16.mxu0 0
  %3979 = vmatpush1.bf16.xpose.msra.mxu0 %v3976
  %3980 = vmatprep.subr.bf16.mxu0 0
  %3981 = vmatpush1.bf16.xpose.msra.mxu0 0
  %3982 = vmatprep.subr.bf16.mxu0 0
  %3983 = vmatpush1.bf16.xpose.msra.mxu0 0
  %3984 = vmatprep.subr.bf16.mxu0 0
  %3985 = vmatpush1.bf16.xpose.msra.mxu0 0
  %3986 = vmatprep.subr.bf16.mxu0 0
  %3987 = vmatpush1.bf16.xpose.msra.mxu0 0
  %3988 = vmatprep.subr.bf16.mxu0 0
  %3989 = vmatpush1.bf16.xpose.msra.mxu0 0
  %3990 = vmatprep.subr.bf16.mxu0 0
  %3991 = vmatpush1.bf16.xpose.msra.mxu0 0
  %3992 = vmatprep.subr.bf16.mxu0 0
  %3993 = vmatpush1.bf16.xpose.msra.mxu0 0
  %3994 = vmatprep.subr.bf16.mxu0 0
  %3995 = vmatpush1.bf16.xpose.msra.mxu0 0
  %3996 = vmatprep.subr.bf16.mxu0 0
  %3997 = vmatpush1.bf16.xpose.msra.mxu0 0
  %3998 = vmatprep.subr.bf16.mxu0 0
  %3999 = vmatpush1.bf16.xpose.msra.mxu0 0
  %4000 = vmatprep.subr.bf16.mxu0 0
  %4001 = vmatpush1.bf16.xpose.msra.mxu0 0
  %4002 = vmatprep.subr.bf16.mxu0 0
  %4003 = vmatpush1.bf16.xpose.msra.mxu0 0
  %4004 = vmatprep.subr.bf16.mxu0 0
  %4005 = vmatpush1.bf16.xpose.msra.mxu0 0
  %4006 = vmatprep.subr.bf16.mxu0 0
  %4007 = vmatpush1.bf16.xpose.msra.mxu0 0
  %4008 = vmatprep.subr.bf16.mxu0 0
  %4009 = vmatpush1.bf16.xpose.msra.mxu0 0
  %4010 = vmatprep.mubr.bf16.mxu0 0
  %4011 = vmatmul.mubr.bf16.gmra.mrb[0].mxu0 %v3973
  %v4012 = vpop.f32.mrb[0].mxu0
  %v4013 = vadd.f32 0.0, %v4012
  %v4014 = vpop.f32.mrb[0].mxu0
  %v4015 = vpop.f32.mrb[0].mxu0
  %v4016 = vpop.f32.mrb[0].mxu0
  %4017 = vdwg.mxu0
  %4019 = vrot.lane.b32.xlu0 %v1025, 96
  %v4020 = vpop.permute.xlu0 %4019
  %v4022 = vsel %vm1031, %v1025, 0
  %v4025 = vsel %vm1031, %v4020, 0
  %4027 = vmatprep.subr.bf16.mxu0 0
  %4028 = vmatpush1.bf16.xpose.msra.mxu0 %v4025
  %4029 = vmatprep.subr.bf16.mxu0 0
  %4030 = vmatpush1.bf16.xpose.msra.mxu0 0
  %4031 = vmatprep.subr.bf16.mxu0 0
  %4032 = vmatpush1.bf16.xpose.msra.mxu0 0
  %4033 = vmatprep.subr.bf16.mxu0 0
  %4034 = vmatpush1.bf16.xpose.msra.mxu0 0
  %4035 = vmatprep.subr.bf16.mxu0 0
  %4036 = vmatpush1.bf16.xpose.msra.mxu0 0
  %4037 = vmatprep.subr.bf16.mxu0 0
  %4038 = vmatpush1.bf16.xpose.msra.mxu0 0
  %4039 = vmatprep.subr.bf16.mxu0 0
  %4040 = vmatpush1.bf16.xpose.msra.mxu0 0
  %4041 = vmatprep.subr.bf16.mxu0 0
  %4042 = vmatpush1.bf16.xpose.msra.mxu0 0
  %4043 = vmatprep.subr.bf16.mxu0 0
  %4044 = vmatpush1.bf16.xpose.msra.mxu0 0
  %4045 = vmatprep.subr.bf16.mxu0 0
  %4046 = vmatpush1.bf16.xpose.msra.mxu0 0
  %4047 = vmatprep.subr.bf16.mxu0 0
  %4048 = vmatpush1.bf16.xpose.msra.mxu0 0
  %4049 = vmatprep.subr.bf16.mxu0 0
  %4050 = vmatpush1.bf16.xpose.msra.mxu0 0
  %4051 = vmatprep.subr.bf16.mxu0 0
  %4052 = vmatpush1.bf16.xpose.msra.mxu0 0
  %4053 = vmatprep.subr.bf16.mxu0 0
  %4054 = vmatpush1.bf16.xpose.msra.mxu0 0
  %4055 = vmatprep.subr.bf16.mxu0 0
  %4056 = vmatpush1.bf16.xpose.msra.mxu0 0
  %4057 = vmatprep.subr.bf16.mxu0 0
  %4058 = vmatpush1.bf16.xpose.msra.mxu0 0
  %4059 = vmatprep.mubr.bf16.mxu0 0
  %4060 = vmatmul.mubr.bf16.gmra.mrb[0].mxu0 %v4022
  %v4061 = vpop.f32.mrb[0].mxu0
  %v4062 = vadd.f32 0.0, %v4061
  %v4063 = vpop.f32.mrb[0].mxu0
  %v4064 = vpop.f32.mrb[0].mxu0
  %v4065 = vpop.f32.mrb[0].mxu0
  %4066 = vdwg.mxu0
  %4068 = vrot.lane.b32.xlu0 %v1026, 96
  %v4069 = vpop.permute.xlu0 %4068
  %v4071 = vsel %vm1031, %v1026, 0
  %v4074 = vsel %vm1031, %v4069, 0
  %4076 = vmatprep.subr.bf16.mxu0 0
  %4077 = vmatpush1.bf16.xpose.msra.mxu0 %v4074
  %4078 = vmatprep.subr.bf16.mxu0 0
  %4079 = vmatpush1.bf16.xpose.msra.mxu0 0
  %4080 = vmatprep.subr.bf16.mxu0 0
  %4081 = vmatpush1.bf16.xpose.msra.mxu0 0
  %4082 = vmatprep.subr.bf16.mxu0 0
  %4083 = vmatpush1.bf16.xpose.msra.mxu0 0
  %4084 = vmatprep.subr.bf16.mxu0 0
  %4085 = vmatpush1.bf16.xpose.msra.mxu0 0
  %4086 = vmatprep.subr.bf16.mxu0 0
  %4087 = vmatpush1.bf16.xpose.msra.mxu0 0
  %4088 = vmatprep.subr.bf16.mxu0 0
  %4089 = vmatpush1.bf16.xpose.msra.mxu0 0
  %4090 = vmatprep.subr.bf16.mxu0 0
  %4091 = vmatpush1.bf16.xpose.msra.mxu0 0
  %4092 = vmatprep.subr.bf16.mxu0 0
  %4093 = vmatpush1.bf16.xpose.msra.mxu0 0
  %4094 = vmatprep.subr.bf16.mxu0 0
  %4095 = vmatpush1.bf16.xpose.msra.mxu0 0
  %4096 = vmatprep.subr.bf16.mxu0 0
  %4097 = vmatpush1.bf16.xpose.msra.mxu0 0
  %4098 = vmatprep.subr.bf16.mxu0 0
  %4099 = vmatpush1.bf16.xpose.msra.mxu0 0
  %4100 = vmatprep.subr.bf16.mxu0 0
  %4101 = vmatpush1.bf16.xpose.msra.mxu0 0
  %4102 = vmatprep.subr.bf16.mxu0 0
  %4103 = vmatpush1.bf16.xpose.msra.mxu0 0
  %4104 = vmatprep.subr.bf16.mxu0 0
  %4105 = vmatpush1.bf16.xpose.msra.mxu0 0
  %4106 = vmatprep.subr.bf16.mxu0 0
  %4107 = vmatpush1.bf16.xpose.msra.mxu0 0
  %4108 = vmatprep.mubr.bf16.mxu0 0
  %4109 = vmatmul.mubr.bf16.gmra.mrb[0].mxu0 %v4071
  %v4110 = vpop.f32.mrb[0].mxu0
  %v4111 = vadd.f32 0.0, %v4110
  %v4112 = vpop.f32.mrb[0].mxu0
  %v4113 = vpop.f32.mrb[0].mxu0
  %v4114 = vpop.f32.mrb[0].mxu0
  %4115 = vdwg.mxu0
  %4117 = vrot.lane.b32.xlu0 %v1027, 96
  %v4118 = vpop.permute.xlu0 %4117
  %v4120 = vsel %vm1031, %v1027, 0
  %v4123 = vsel %vm1031, %v4118, 0
  %4125 = vmatprep.subr.bf16.mxu0 0
  %4126 = vmatpush1.bf16.xpose.msra.mxu0 %v4123
  %4127 = vmatprep.subr.bf16.mxu0 0
  %4128 = vmatpush1.bf16.xpose.msra.mxu0 0
  %4129 = vmatprep.subr.bf16.mxu0 0
  %4130 = vmatpush1.bf16.xpose.msra.mxu0 0
  %4131 = vmatprep.subr.bf16.mxu0 0
  %4132 = vmatpush1.bf16.xpose.msra.mxu0 0
  %4133 = vmatprep.subr.bf16.mxu0 0
  %4134 = vmatpush1.bf16.xpose.msra.mxu0 0
  %4135 = vmatprep.subr.bf16.mxu0 0
  %4136 = vmatpush1.bf16.xpose.msra.mxu0 0
  %4137 = vmatprep.subr.bf16.mxu0 0
  %4138 = vmatpush1.bf16.xpose.msra.mxu0 0
  %4139 = vmatprep.subr.bf16.mxu0 0
  %4140 = vmatpush1.bf16.xpose.msra.mxu0 0
  %4141 = vmatprep.subr.bf16.mxu0 0
  %4142 = vmatpush1.bf16.xpose.msra.mxu0 0
  %4143 = vmatprep.subr.bf16.mxu0 0
  %4144 = vmatpush1.bf16.xpose.msra.mxu0 0
  %4145 = vmatprep.subr.bf16.mxu0 0
  %4146 = vmatpush1.bf16.xpose.msra.mxu0 0
  %4147 = vmatprep.subr.bf16.mxu0 0
  %4148 = vmatpush1.bf16.xpose.msra.mxu0 0
  %4149 = vmatprep.subr.bf16.mxu0 0
  %4150 = vmatpush1.bf16.xpose.msra.mxu0 0
  %4151 = vmatprep.subr.bf16.mxu0 0
  %4152 = vmatpush1.bf16.xpose.msra.mxu0 0
  %4153 = vmatprep.subr.bf16.mxu0 0
  %4154 = vmatpush1.bf16.xpose.msra.mxu0 0
  %4155 = vmatprep.subr.bf16.mxu0 0
  %4156 = vmatpush1.bf16.xpose.msra.mxu0 0
  %4157 = vmatprep.mubr.bf16.mxu0 0
  %4158 = vmatmul.mubr.bf16.gmra.mrb[0].mxu0 %v4120
  %v4159 = vpop.f32.mrb[0].mxu0
  %v4160 = vadd.f32 0.0, %v4159
  %v4161 = vpop.f32.mrb[0].mxu0
  %v4162 = vpop.f32.mrb[0].mxu0
  %v4163 = vpop.f32.mrb[0].mxu0
  %4164 = vdwg.mxu0
  %v4165 = vmul.f32 %v1073, 0.25
  %v4166 = vmul.f32 %v1122, 0.25
  %v4167 = vmul.f32 %v1171, 0.25
  %v4168 = vmul.f32 %v1220, 0.25
  %v4169 = vmul.f32 %v1269, 0.25
  %v4170 = vmul.f32 %v1318, 0.25
  %v4171 = vmul.f32 %v1367, 0.25
  %v4172 = vmul.f32 %v1416, 0.25
  %v4173 = vmul.f32 %v1465, 0.25
  %v4174 = vmul.f32 %v1514, 0.25
  %v4175 = vmul.f32 %v1563, 0.25
  %v4176 = vmul.f32 %v1612, 0.25
  %v4177 = vmul.f32 %v1661, 0.25
  %v4178 = vmul.f32 %v1710, 0.25
  %v4179 = vmul.f32 %v1759, 0.25
  %v4180 = vmul.f32 %v1808, 0.25
  %v4181 = vmul.f32 %v1857, 0.25
  %v4182 = vmul.f32 %v1906, 0.25
  %v4183 = vmul.f32 %v1955, 0.25
  %v4184 = vmul.f32 %v2004, 0.25
  %v4185 = vmul.f32 %v2053, 0.25
  %v4186 = vmul.f32 %v2102, 0.25
  %v4187 = vmul.f32 %v2151, 0.25
  %v4188 = vmul.f32 %v2200, 0.25
  %v4189 = vmul.f32 %v2249, 0.25
  %v4190 = vmul.f32 %v2298, 0.25
  %v4191 = vmul.f32 %v2347, 0.25
  %v4192 = vmul.f32 %v2396, 0.25
  %v4193 = vmul.f32 %v2445, 0.25
  %v4194 = vmul.f32 %v2494, 0.25
  %v4195 = vmul.f32 %v2543, 0.25
  %v4196 = vmul.f32 %v2592, 0.25
  %v4197 = vmul.f32 %v2641, 0.25
  %v4198 = vmul.f32 %v2690, 0.25
  %v4199 = vmul.f32 %v2739, 0.25
  %v4200 = vmul.f32 %v2788, 0.25
  %v4201 = vmul.f32 %v2837, 0.25
  %v4202 = vmul.f32 %v2886, 0.25
  %v4203 = vmul.f32 %v2935, 0.25
  %v4204 = vmul.f32 %v2984, 0.25
  %v4205 = vmul.f32 %v3033, 0.25
  %v4206 = vmul.f32 %v3082, 0.25
  %v4207 = vmul.f32 %v3131, 0.25
  %v4208 = vmul.f32 %v3180, 0.25
  %v4209 = vmul.f32 %v3229, 0.25
  %v4210 = vmul.f32 %v3278, 0.25
  %v4211 = vmul.f32 %v3327, 0.25
  %v4212 = vmul.f32 %v3376, 0.25
  %v4213 = vmul.f32 %v3425, 0.25
  %v4214 = vmul.f32 %v3474, 0.25
  %v4215 = vmul.f32 %v3523, 0.25
  %v4216 = vmul.f32 %v3572, 0.25
  %v4217 = vmul.f32 %v3621, 0.25
  %v4218 = vmul.f32 %v3670, 0.25
  %v4219 = vmul.f32 %v3719, 0.25
  %v4220 = vmul.f32 %v3768, 0.25
  %v4221 = vmul.f32 %v3817, 0.25
  %v4222 = vmul.f32 %v3866, 0.25
  %v4223 = vmul.f32 %v3915, 0.25
  %v4224 = vmul.f32 %v3964, 0.25
  %v4225 = vmul.f32 %v4013, 0.25
  %v4226 = vmul.f32 %v4062, 0.25
  %v4227 = vmul.f32 %v4111, 0.25
  %v4228 = vmul.f32 %v4160, 0.25
  %v4229 = vlaneseq
  %v4230 = vand.u32 %v4229, 127
  %vm4231 = vcmp.lt.s32.totalorder %v4230, 2
  %v4232 = vsel %vm4231, 0.0, -1e+30
  %v4233 = vadd.f32 %v4165, %v4232
  %v4234 = vadd.f32 %v4166, %v4232
  %v4235 = vadd.f32 %v4167, %v4232
  %v4236 = vadd.f32 %v4168, %v4232
  %v4237 = vadd.f32 %v4169, %v4232
  %v4238 = vadd.f32 %v4170, %v4232
  %v4239 = vadd.f32 %v4171, %v4232
  %v4240 = vadd.f32 %v4172, %v4232
  %v4241 = vadd.f32 %v4173, %v4232
  %v4242 = vadd.f32 %v4174, %v4232
  %v4243 = vadd.f32 %v4175, %v4232
  %v4244 = vadd.f32 %v4176, %v4232
  %v4245 = vadd.f32 %v4177, %v4232
  %v4246 = vadd.f32 %v4178, %v4232
  %v4247 = vadd.f32 %v4179, %v4232
  %v4248 = vadd.f32 %v4180, %v4232
  %v4249 = vadd.f32 %v4181, %v4232
  %v4250 = vadd.f32 %v4182, %v4232
  %v4251 = vadd.f32 %v4183, %v4232
  %v4252 = vadd.f32 %v4184, %v4232
  %v4253 = vadd.f32 %v4185, %v4232
  %v4254 = vadd.f32 %v4186, %v4232
  %v4255 = vadd.f32 %v4187, %v4232
  %v4256 = vadd.f32 %v4188, %v4232
  %v4257 = vadd.f32 %v4189, %v4232
  %v4258 = vadd.f32 %v4190, %v4232
  %v4259 = vadd.f32 %v4191, %v4232
  %v4260 = vadd.f32 %v4192, %v4232
  %v4261 = vadd.f32 %v4193, %v4232
  %v4262 = vadd.f32 %v4194, %v4232
  %v4263 = vadd.f32 %v4195, %v4232
  %v4264 = vadd.f32 %v4196, %v4232
  %v4265 = vadd.f32 %v4197, %v4232
  %v4266 = vadd.f32 %v4198, %v4232
  %v4267 = vadd.f32 %v4199, %v4232
  %v4268 = vadd.f32 %v4200, %v4232
  %v4269 = vadd.f32 %v4201, %v4232
  %v4270 = vadd.f32 %v4202, %v4232
  %v4271 = vadd.f32 %v4203, %v4232
  %v4272 = vadd.f32 %v4204, %v4232
  %v4273 = vadd.f32 %v4205, %v4232
  %v4274 = vadd.f32 %v4206, %v4232
  %v4275 = vadd.f32 %v4207, %v4232
  %v4276 = vadd.f32 %v4208, %v4232
  %v4277 = vadd.f32 %v4209, %v4232
  %v4278 = vadd.f32 %v4210, %v4232
  %v4279 = vadd.f32 %v4211, %v4232
  %v4280 = vadd.f32 %v4212, %v4232
  %v4281 = vadd.f32 %v4213, %v4232
  %v4282 = vadd.f32 %v4214, %v4232
  %v4283 = vadd.f32 %v4215, %v4232
  %v4284 = vadd.f32 %v4216, %v4232
  %v4285 = vadd.f32 %v4217, %v4232
  %v4286 = vadd.f32 %v4218, %v4232
  %v4287 = vadd.f32 %v4219, %v4232
  %v4288 = vadd.f32 %v4220, %v4232
  %v4289 = vadd.f32 %v4221, %v4232
  %v4290 = vadd.f32 %v4222, %v4232
  %v4291 = vadd.f32 %v4223, %v4232
  %v4292 = vadd.f32 %v4224, %v4232
  %v4293 = vadd.f32 %v4225, %v4232
  %v4294 = vadd.f32 %v4226, %v4232
  %v4295 = vadd.f32 %v4227, %v4232
  %v4296 = vadd.f32 %v4228, %v4232
  %vm4297 = vcmask 64512
  %v4298 = vsel %vm4297, %v4233, -inf
  %4299 = vmax.xlane.f32.xlu0 %v4298
  %v4300 = vpop.xlane.xlu0 %4299
  %v4301 = vsel %vm4297, %v4234, -inf
  %4302 = vmax.xlane.f32.xlu0 %v4301
  %v4303 = vpop.xlane.xlu0 %4302
  %v4304 = vsel %vm4297, %v4235, -inf
  %4305 = vmax.xlane.f32.xlu0 %v4304
  %v4306 = vpop.xlane.xlu0 %4305
  %v4307 = vsel %vm4297, %v4236, -inf
  %4308 = vmax.xlane.f32.xlu0 %v4307
  %v4309 = vpop.xlane.xlu0 %4308
  %v4310 = vsel %vm4297, %v4237, -inf
  %4311 = vmax.xlane.f32.xlu0 %v4310
  %v4312 = vpop.xlane.xlu0 %4311
  %v4313 = vsel %vm4297, %v4238, -inf
  %4314 = vmax.xlane.f32.xlu0 %v4313
  %v4315 = vpop.xlane.xlu0 %4314
  %v4316 = vsel %vm4297, %v4239, -inf
  %4317 = vmax.xlane.f32.xlu0 %v4316
  %v4318 = vpop.xlane.xlu0 %4317
  %v4319 = vsel %vm4297, %v4240, -inf
  %4320 = vmax.xlane.f32.xlu0 %v4319
  %v4321 = vpop.xlane.xlu0 %4320
  %v4322 = vsel %vm4297, %v4241, -inf
  %4323 = vmax.xlane.f32.xlu0 %v4322
  %v4324 = vpop.xlane.xlu0 %4323
  %v4325 = vsel %vm4297, %v4242, -inf
  %4326 = vmax.xlane.f32.xlu0 %v4325
  %v4327 = vpop.xlane.xlu0 %4326
  %v4328 = vsel %vm4297, %v4243, -inf
  %4329 = vmax.xlane.f32.xlu0 %v4328
  %v4330 = vpop.xlane.xlu0 %4329
  %v4331 = vsel %vm4297, %v4244, -inf
  %4332 = vmax.xlane.f32.xlu0 %v4331
  %v4333 = vpop.xlane.xlu0 %4332
  %v4334 = vsel %vm4297, %v4245, -inf
  %4335 = vmax.xlane.f32.xlu0 %v4334
  %v4336 = vpop.xlane.xlu0 %4335
  %v4337 = vsel %vm4297, %v4246, -inf
  %4338 = vmax.xlane.f32.xlu0 %v4337
  %v4339 = vpop.xlane.xlu0 %4338
  %v4340 = vsel %vm4297, %v4247, -inf
  %4341 = vmax.xlane.f32.xlu0 %v4340
  %v4342 = vpop.xlane.xlu0 %4341
  %v4343 = vsel %vm4297, %v4248, -inf
  %4344 = vmax.xlane.f32.xlu0 %v4343
  %v4345 = vpop.xlane.xlu0 %4344
  %v4346 = vsel %vm4297, %v4249, -inf
  %4347 = vmax.xlane.f32.xlu0 %v4346
  %v4348 = vpop.xlane.xlu0 %4347
  %v4349 = vsel %vm4297, %v4250, -inf
  %4350 = vmax.xlane.f32.xlu0 %v4349
  %v4351 = vpop.xlane.xlu0 %4350
  %v4352 = vsel %vm4297, %v4251, -inf
  %4353 = vmax.xlane.f32.xlu0 %v4352
  %v4354 = vpop.xlane.xlu0 %4353
  %v4355 = vsel %vm4297, %v4252, -inf
  %4356 = vmax.xlane.f32.xlu0 %v4355
  %v4357 = vpop.xlane.xlu0 %4356
  %v4358 = vsel %vm4297, %v4253, -inf
  %4359 = vmax.xlane.f32.xlu0 %v4358
  %v4360 = vpop.xlane.xlu0 %4359
  %v4361 = vsel %vm4297, %v4254, -inf
  %4362 = vmax.xlane.f32.xlu0 %v4361
  %v4363 = vpop.xlane.xlu0 %4362
  %v4364 = vsel %vm4297, %v4255, -inf
  %4365 = vmax.xlane.f32.xlu0 %v4364
  %v4366 = vpop.xlane.xlu0 %4365
  %v4367 = vsel %vm4297, %v4256, -inf
  %4368 = vmax.xlane.f32.xlu0 %v4367
  %v4369 = vpop.xlane.xlu0 %4368
  %v4370 = vsel %vm4297, %v4257, -inf
  %4371 = vmax.xlane.f32.xlu0 %v4370
  %v4372 = vpop.xlane.xlu0 %4371
  %v4373 = vsel %vm4297, %v4258, -inf
  %4374 = vmax.xlane.f32.xlu0 %v4373
  %v4375 = vpop.xlane.xlu0 %4374
  %v4376 = vsel %vm4297, %v4259, -inf
  %4377 = vmax.xlane.f32.xlu0 %v4376
  %v4378 = vpop.xlane.xlu0 %4377
  %v4379 = vsel %vm4297, %v4260, -inf
  %4380 = vmax.xlane.f32.xlu0 %v4379
  %v4381 = vpop.xlane.xlu0 %4380
  %v4382 = vsel %vm4297, %v4261, -inf
  %4383 = vmax.xlane.f32.xlu0 %v4382
  %v4384 = vpop.xlane.xlu0 %4383
  %v4385 = vsel %vm4297, %v4262, -inf
  %4386 = vmax.xlane.f32.xlu0 %v4385
  %v4387 = vpop.xlane.xlu0 %4386
  %v4388 = vsel %vm4297, %v4263, -inf
  %4389 = vmax.xlane.f32.xlu0 %v4388
  %v4390 = vpop.xlane.xlu0 %4389
  %v4391 = vsel %vm4297, %v4264, -inf
  %4392 = vmax.xlane.f32.xlu0 %v4391
  %v4393 = vpop.xlane.xlu0 %4392
  %v4394 = vsel %vm4297, %v4265, -inf
  %4395 = vmax.xlane.f32.xlu0 %v4394
  %v4396 = vpop.xlane.xlu0 %4395
  %v4397 = vsel %vm4297, %v4266, -inf
  %4398 = vmax.xlane.f32.xlu0 %v4397
  %v4399 = vpop.xlane.xlu0 %4398
  %v4400 = vsel %vm4297, %v4267, -inf
  %4401 = vmax.xlane.f32.xlu0 %v4400
  %v4402 = vpop.xlane.xlu0 %4401
  %v4403 = vsel %vm4297, %v4268, -inf
  %4404 = vmax.xlane.f32.xlu0 %v4403
  %v4405 = vpop.xlane.xlu0 %4404
  %v4406 = vsel %vm4297, %v4269, -inf
  %4407 = vmax.xlane.f32.xlu0 %v4406
  %v4408 = vpop.xlane.xlu0 %4407
  %v4409 = vsel %vm4297, %v4270, -inf
  %4410 = vmax.xlane.f32.xlu0 %v4409
  %v4411 = vpop.xlane.xlu0 %4410
  %v4412 = vsel %vm4297, %v4271, -inf
  %4413 = vmax.xlane.f32.xlu0 %v4412
  %v4414 = vpop.xlane.xlu0 %4413
  %v4415 = vsel %vm4297, %v4272, -inf
  %4416 = vmax.xlane.f32.xlu0 %v4415
  %v4417 = vpop.xlane.xlu0 %4416
  %v4418 = vsel %vm4297, %v4273, -inf
  %4419 = vmax.xlane.f32.xlu0 %v4418
  %v4420 = vpop.xlane.xlu0 %4419
  %v4421 = vsel %vm4297, %v4274, -inf
  %4422 = vmax.xlane.f32.xlu0 %v4421
  %v4423 = vpop.xlane.xlu0 %4422
  %v4424 = vsel %vm4297, %v4275, -inf
  %4425 = vmax.xlane.f32.xlu0 %v4424
  %v4426 = vpop.xlane.xlu0 %4425
  %v4427 = vsel %vm4297, %v4276, -inf
  %4428 = vmax.xlane.f32.xlu0 %v4427
  %v4429 = vpop.xlane.xlu0 %4428
  %v4430 = vsel %vm4297, %v4277, -inf
  %4431 = vmax.xlane.f32.xlu0 %v4430
  %v4432 = vpop.xlane.xlu0 %4431
  %v4433 = vsel %vm4297, %v4278, -inf
  %4434 = vmax.xlane.f32.xlu0 %v4433
  %v4435 = vpop.xlane.xlu0 %4434
  %v4436 = vsel %vm4297, %v4279, -inf
  %4437 = vmax.xlane.f32.xlu0 %v4436
  %v4438 = vpop.xlane.xlu0 %4437
  %v4439 = vsel %vm4297, %v4280, -inf
  %4440 = vmax.xlane.f32.xlu0 %v4439
  %v4441 = vpop.xlane.xlu0 %4440
  %v4442 = vsel %vm4297, %v4281, -inf
  %4443 = vmax.xlane.f32.xlu0 %v4442
  %v4444 = vpop.xlane.xlu0 %4443
  %v4445 = vsel %vm4297, %v4282, -inf
  %4446 = vmax.xlane.f32.xlu0 %v4445
  %v4447 = vpop.xlane.xlu0 %4446
  %v4448 = vsel %vm4297, %v4283, -inf
  %4449 = vmax.xlane.f32.xlu0 %v4448
  %v4450 = vpop.xlane.xlu0 %4449
  %v4451 = vsel %vm4297, %v4284, -inf
  %4452 = vmax.xlane.f32.xlu0 %v4451
  %v4453 = vpop.xlane.xlu0 %4452
  %v4454 = vsel %vm4297, %v4285, -inf
  %4455 = vmax.xlane.f32.xlu0 %v4454
  %v4456 = vpop.xlane.xlu0 %4455
  %v4457 = vsel %vm4297, %v4286, -inf
  %4458 = vmax.xlane.f32.xlu0 %v4457
  %v4459 = vpop.xlane.xlu0 %4458
  %v4460 = vsel %vm4297, %v4287, -inf
  %4461 = vmax.xlane.f32.xlu0 %v4460
  %v4462 = vpop.xlane.xlu0 %4461
  %v4463 = vsel %vm4297, %v4288, -inf
  %4464 = vmax.xlane.f32.xlu0 %v4463
  %v4465 = vpop.xlane.xlu0 %4464
  %v4466 = vsel %vm4297, %v4289, -inf
  %4467 = vmax.xlane.f32.xlu0 %v4466
  %v4468 = vpop.xlane.xlu0 %4467
  %v4469 = vsel %vm4297, %v4290, -inf
  %4470 = vmax.xlane.f32.xlu0 %v4469
  %v4471 = vpop.xlane.xlu0 %4470
  %v4472 = vsel %vm4297, %v4291, -inf
  %4473 = vmax.xlane.f32.xlu0 %v4472
  %v4474 = vpop.xlane.xlu0 %4473
  %v4475 = vsel %vm4297, %v4292, -inf
  %4476 = vmax.xlane.f32.xlu0 %v4475
  %v4477 = vpop.xlane.xlu0 %4476
  %v4478 = vsel %vm4297, %v4293, -inf
  %4479 = vmax.xlane.f32.xlu0 %v4478
  %v4480 = vpop.xlane.xlu0 %4479
  %v4481 = vsel %vm4297, %v4294, -inf
  %4482 = vmax.xlane.f32.xlu0 %v4481
  %v4483 = vpop.xlane.xlu0 %4482
  %v4484 = vsel %vm4297, %v4295, -inf
  %4485 = vmax.xlane.f32.xlu0 %v4484
  %v4486 = vpop.xlane.xlu0 %4485
  %v4487 = vsel %vm4297, %v4296, -inf
  %4488 = vmax.xlane.f32.xlu0 %v4487
  %v4489 = vpop.xlane.xlu0 %4488
  %v4490 = vsub.f32 %v4233, %v4300
  %v4491 = vsub.f32 %v4234, %v4303
  %v4492 = vsub.f32 %v4235, %v4306
  %v4493 = vsub.f32 %v4236, %v4309
  %v4494 = vsub.f32 %v4237, %v4312
  %v4495 = vsub.f32 %v4238, %v4315
  %v4496 = vsub.f32 %v4239, %v4318
  %v4497 = vsub.f32 %v4240, %v4321
  %v4498 = vsub.f32 %v4241, %v4324
  %v4499 = vsub.f32 %v4242, %v4327
  %v4500 = vsub.f32 %v4243, %v4330
  %v4501 = vsub.f32 %v4244, %v4333
  %v4502 = vsub.f32 %v4245, %v4336
  %v4503 = vsub.f32 %v4246, %v4339
  %v4504 = vsub.f32 %v4247, %v4342
  %v4505 = vsub.f32 %v4248, %v4345
  %v4506 = vsub.f32 %v4249, %v4348
  %v4507 = vsub.f32 %v4250, %v4351
  %v4508 = vsub.f32 %v4251, %v4354
  %v4509 = vsub.f32 %v4252, %v4357
  %v4510 = vsub.f32 %v4253, %v4360
  %v4511 = vsub.f32 %v4254, %v4363
  %v4512 = vsub.f32 %v4255, %v4366
  %v4513 = vsub.f32 %v4256, %v4369
  %v4514 = vsub.f32 %v4257, %v4372
  %v4515 = vsub.f32 %v4258, %v4375
  %v4516 = vsub.f32 %v4259, %v4378
  %v4517 = vsub.f32 %v4260, %v4381
  %v4518 = vsub.f32 %v4261, %v4384
  %v4519 = vsub.f32 %v4262, %v4387
  %v4520 = vsub.f32 %v4263, %v4390
  %v4521 = vsub.f32 %v4264, %v4393
  %v4522 = vsub.f32 %v4265, %v4396
  %v4523 = vsub.f32 %v4266, %v4399
  %v4524 = vsub.f32 %v4267, %v4402
  %v4525 = vsub.f32 %v4268, %v4405
  %v4526 = vsub.f32 %v4269, %v4408
  %v4527 = vsub.f32 %v4270, %v4411
  %v4528 = vsub.f32 %v4271, %v4414
  %v4529 = vsub.f32 %v4272, %v4417
  %v4530 = vsub.f32 %v4273, %v4420
  %v4531 = vsub.f32 %v4274, %v4423
  %v4532 = vsub.f32 %v4275, %v4426
  %v4533 = vsub.f32 %v4276, %v4429
  %v4534 = vsub.f32 %v4277, %v4432
  %v4535 = vsub.f32 %v4278, %v4435
  %v4536 = vsub.f32 %v4279, %v4438
  %v4537 = vsub.f32 %v4280, %v4441
  %v4538 = vsub.f32 %v4281, %v4444
  %v4539 = vsub.f32 %v4282, %v4447
  %v4540 = vsub.f32 %v4283, %v4450
  %v4541 = vsub.f32 %v4284, %v4453
  %v4542 = vsub.f32 %v4285, %v4456
  %v4543 = vsub.f32 %v4286, %v4459
  %v4544 = vsub.f32 %v4287, %v4462
  %v4545 = vsub.f32 %v4288, %v4465
  %v4546 = vsub.f32 %v4289, %v4468
  %v4547 = vsub.f32 %v4290, %v4471
  %v4548 = vsub.f32 %v4291, %v4474
  %v4549 = vsub.f32 %v4292, %v4477
  %v4550 = vsub.f32 %v4293, %v4480
  %v4551 = vsub.f32 %v4294, %v4483
  %v4552 = vsub.f32 %v4295, %v4486
  %v4553 = vsub.f32 %v4296, %v4489
  %v4554 = vmul.f32 %v4490, 1.442695
  %v4555 = vpow.pop %v4554
  %v4556 = vmul.f32 %v4491, 1.442695
  %v4557 = vpow.pop %v4556
  %v4558 = vmul.f32 %v4492, 1.442695
  %v4559 = vpow.pop %v4558
  %v4560 = vmul.f32 %v4493, 1.442695
  %v4561 = vpow.pop %v4560
  %v4562 = vmul.f32 %v4494, 1.442695
  %v4563 = vpow.pop %v4562
  %v4564 = vmul.f32 %v4495, 1.442695
  %v4565 = vpow.pop %v4564
  %v4566 = vmul.f32 %v4496, 1.442695
  %v4567 = vpow.pop %v4566
  %v4568 = vmul.f32 %v4497, 1.442695
  %v4569 = vpow.pop %v4568
  %v4570 = vmul.f32 %v4498, 1.442695
  %v4571 = vpow.pop %v4570
  %v4572 = vmul.f32 %v4499, 1.442695
  %v4573 = vpow.pop %v4572
  %v4574 = vmul.f32 %v4500, 1.442695
  %v4575 = vpow.pop %v4574
  %v4576 = vmul.f32 %v4501, 1.442695
  %v4577 = vpow.pop %v4576
  %v4578 = vmul.f32 %v4502, 1.442695
  %v4579 = vpow.pop %v4578
  %v4580 = vmul.f32 %v4503, 1.442695
  %v4581 = vpow.pop %v4580
  %v4582 = vmul.f32 %v4504, 1.442695
  %v4583 = vpow.pop %v4582
  %v4584 = vmul.f32 %v4505, 1.442695
  %v4585 = vpow.pop %v4584
  %v4586 = vmul.f32 %v4506, 1.442695
  %v4587 = vpow.pop %v4586
  %v4588 = vmul.f32 %v4507, 1.442695
  %v4589 = vpow.pop %v4588
  %v4590 = vmul.f32 %v4508, 1.442695
  %v4591 = vpow.pop %v4590
  %v4592 = vmul.f32 %v4509, 1.442695
  %v4593 = vpow.pop %v4592
  %v4594 = vmul.f32 %v4510, 1.442695
  %v4595 = vpow.pop %v4594
  %v4596 = vmul.f32 %v4511, 1.442695
  %v4597 = vpow.pop %v4596
  %v4598 = vmul.f32 %v4512, 1.442695
  %v4599 = vpow.pop %v4598
  %v4600 = vmul.f32 %v4513, 1.442695
  %v4601 = vpow.pop %v4600
  %v4602 = vmul.f32 %v4514, 1.442695
  %v4603 = vpow.pop %v4602
  %v4604 = vmul.f32 %v4515, 1.442695
  %v4605 = vpow.pop %v4604
  %v4606 = vmul.f32 %v4516, 1.442695
  %v4607 = vpow.pop %v4606
  %v4608 = vmul.f32 %v4517, 1.442695
  %v4609 = vpow.pop %v4608
  %v4610 = vmul.f32 %v4518, 1.442695
  %v4611 = vpow.pop %v4610
  %v4612 = vmul.f32 %v4519, 1.442695
  %v4613 = vpow.pop %v4612
  %v4614 = vmul.f32 %v4520, 1.442695
  %v4615 = vpow.pop %v4614
  %v4616 = vmul.f32 %v4521, 1.442695
  %v4617 = vpow.pop %v4616
  %v4618 = vmul.f32 %v4522, 1.442695
  %v4619 = vpow.pop %v4618
  %v4620 = vmul.f32 %v4523, 1.442695
  %v4621 = vpow.pop %v4620
  %v4622 = vmul.f32 %v4524, 1.442695
  %v4623 = vpow.pop %v4622
  %v4624 = vmul.f32 %v4525, 1.442695
  %v4625 = vpow.pop %v4624
  %v4626 = vmul.f32 %v4526, 1.442695
  %v4627 = vpow.pop %v4626
  %v4628 = vmul.f32 %v4527, 1.442695
  %v4629 = vpow.pop %v4628
  %v4630 = vmul.f32 %v4528, 1.442695
  %v4631 = vpow.pop %v4630
  %v4632 = vmul.f32 %v4529, 1.442695
  %v4633 = vpow.pop %v4632
  %v4634 = vmul.f32 %v4530, 1.442695
  %v4635 = vpow.pop %v4634
  %v4636 = vmul.f32 %v4531, 1.442695
  %v4637 = vpow.pop %v4636
  %v4638 = vmul.f32 %v4532, 1.442695
  %v4639 = vpow.pop %v4638
  %v4640 = vmul.f32 %v4533, 1.442695
  %v4641 = vpow.pop %v4640
  %v4642 = vmul.f32 %v4534, 1.442695
  %v4643 = vpow.pop %v4642
  %v4644 = vmul.f32 %v4535, 1.442695
  %v4645 = vpow.pop %v4644
  %v4646 = vmul.f32 %v4536, 1.442695
  %v4647 = vpow.pop %v4646
  %v4648 = vmul.f32 %v4537, 1.442695
  %v4649 = vpow.pop %v4648
  %v4650 = vmul.f32 %v4538, 1.442695
  %v4651 = vpow.pop %v4650
  %v4652 = vmul.f32 %v4539, 1.442695
  %v4653 = vpow.pop %v4652
  %v4654 = vmul.f32 %v4540, 1.442695
  %v4655 = vpow.pop %v4654
  %v4656 = vmul.f32 %v4541, 1.442695
  %v4657 = vpow.pop %v4656
  %v4658 = vmul.f32 %v4542, 1.442695
  %v4659 = vpow.pop %v4658
  %v4660 = vmul.f32 %v4543, 1.442695
  %v4661 = vpow.pop %v4660
  %v4662 = vmul.f32 %v4544, 1.442695
  %v4663 = vpow.pop %v4662
  %v4664 = vmul.f32 %v4545, 1.442695
  %v4665 = vpow.pop %v4664
  %v4666 = vmul.f32 %v4546, 1.442695
  %v4667 = vpow.pop %v4666
  %v4668 = vmul.f32 %v4547, 1.442695
  %v4669 = vpow.pop %v4668
  %v4670 = vmul.f32 %v4548, 1.442695
  %v4671 = vpow.pop %v4670
  %v4672 = vmul.f32 %v4549, 1.442695
  %v4673 = vpow.pop %v4672
  %v4674 = vmul.f32 %v4550, 1.442695
  %v4675 = vpow.pop %v4674
  %v4676 = vmul.f32 %v4551, 1.442695
  %v4677 = vpow.pop %v4676
  %v4678 = vmul.f32 %v4552, 1.442695
  %v4679 = vpow.pop %v4678
  %v4680 = vmul.f32 %v4553, 1.442695
  %v4681 = vpow.pop %v4680
  %v4682 = vsel %vm4297, %v4555, 0.0
  %4683 = vadd.xlane.f32.xlu0 %v4682
  %v4684 = vpop.xlane.xlu0 %4683
  %v4685 = vsel %vm4297, %v4557, 0.0
  %4686 = vadd.xlane.f32.xlu0 %v4685
  %v4687 = vpop.xlane.xlu0 %4686
  %v4688 = vsel %vm4297, %v4559, 0.0
  %4689 = vadd.xlane.f32.xlu0 %v4688
  %v4690 = vpop.xlane.xlu0 %4689
  %v4691 = vsel %vm4297, %v4561, 0.0
  %4692 = vadd.xlane.f32.xlu0 %v4691
  %v4693 = vpop.xlane.xlu0 %4692
  %v4694 = vsel %vm4297, %v4563, 0.0
  %4695 = vadd.xlane.f32.xlu0 %v4694
  %v4696 = vpop.xlane.xlu0 %4695
  %v4697 = vsel %vm4297, %v4565, 0.0
  %4698 = vadd.xlane.f32.xlu0 %v4697
  %v4699 = vpop.xlane.xlu0 %4698
  %v4700 = vsel %vm4297, %v4567, 0.0
  %4701 = vadd.xlane.f32.xlu0 %v4700
  %v4702 = vpop.xlane.xlu0 %4701
  %v4703 = vsel %vm4297, %v4569, 0.0
  %4704 = vadd.xlane.f32.xlu0 %v4703
  %v4705 = vpop.xlane.xlu0 %4704
  %v4706 = vsel %vm4297, %v4571, 0.0
  %4707 = vadd.xlane.f32.xlu0 %v4706
  %v4708 = vpop.xlane.xlu0 %4707
  %v4709 = vsel %vm4297, %v4573, 0.0
  %4710 = vadd.xlane.f32.xlu0 %v4709
  %v4711 = vpop.xlane.xlu0 %4710
  %v4712 = vsel %vm4297, %v4575, 0.0
  %4713 = vadd.xlane.f32.xlu0 %v4712
  %v4714 = vpop.xlane.xlu0 %4713
  %v4715 = vsel %vm4297, %v4577, 0.0
  %4716 = vadd.xlane.f32.xlu0 %v4715
  %v4717 = vpop.xlane.xlu0 %4716
  %v4718 = vsel %vm4297, %v4579, 0.0
  %4719 = vadd.xlane.f32.xlu0 %v4718
  %v4720 = vpop.xlane.xlu0 %4719
  %v4721 = vsel %vm4297, %v4581, 0.0
  %4722 = vadd.xlane.f32.xlu0 %v4721
  %v4723 = vpop.xlane.xlu0 %4722
  %v4724 = vsel %vm4297, %v4583, 0.0
  %4725 = vadd.xlane.f32.xlu0 %v4724
  %v4726 = vpop.xlane.xlu0 %4725
  %v4727 = vsel %vm4297, %v4585, 0.0
  %4728 = vadd.xlane.f32.xlu0 %v4727
  %v4729 = vpop.xlane.xlu0 %4728
  %v4730 = vsel %vm4297, %v4587, 0.0
  %4731 = vadd.xlane.f32.xlu0 %v4730
  %v4732 = vpop.xlane.xlu0 %4731
  %v4733 = vsel %vm4297, %v4589, 0.0
  %4734 = vadd.xlane.f32.xlu0 %v4733
  %v4735 = vpop.xlane.xlu0 %4734
  %v4736 = vsel %vm4297, %v4591, 0.0
  %4737 = vadd.xlane.f32.xlu0 %v4736
  %v4738 = vpop.xlane.xlu0 %4737
  %v4739 = vsel %vm4297, %v4593, 0.0
  %4740 = vadd.xlane.f32.xlu0 %v4739
  %v4741 = vpop.xlane.xlu0 %4740
  %v4742 = vsel %vm4297, %v4595, 0.0
  %4743 = vadd.xlane.f32.xlu0 %v4742
  %v4744 = vpop.xlane.xlu0 %4743
  %v4745 = vsel %vm4297, %v4597, 0.0
  %4746 = vadd.xlane.f32.xlu0 %v4745
  %v4747 = vpop.xlane.xlu0 %4746
  %v4748 = vsel %vm4297, %v4599, 0.0
  %4749 = vadd.xlane.f32.xlu0 %v4748
  %v4750 = vpop.xlane.xlu0 %4749
  %v4751 = vsel %vm4297, %v4601, 0.0
  %4752 = vadd.xlane.f32.xlu0 %v4751
  %v4753 = vpop.xlane.xlu0 %4752
  %v4754 = vsel %vm4297, %v4603, 0.0
  %4755 = vadd.xlane.f32.xlu0 %v4754
  %v4756 = vpop.xlane.xlu0 %4755
  %v4757 = vsel %vm4297, %v4605, 0.0
  %4758 = vadd.xlane.f32.xlu0 %v4757
  %v4759 = vpop.xlane.xlu0 %4758
  %v4760 = vsel %vm4297, %v4607, 0.0
  %4761 = vadd.xlane.f32.xlu0 %v4760
  %v4762 = vpop.xlane.xlu0 %4761
  %v4763 = vsel %vm4297, %v4609, 0.0
  %4764 = vadd.xlane.f32.xlu0 %v4763
  %v4765 = vpop.xlane.xlu0 %4764
  %v4766 = vsel %vm4297, %v4611, 0.0
  %4767 = vadd.xlane.f32.xlu0 %v4766
  %v4768 = vpop.xlane.xlu0 %4767
  %v4769 = vsel %vm4297, %v4613, 0.0
  %4770 = vadd.xlane.f32.xlu0 %v4769
  %v4771 = vpop.xlane.xlu0 %4770
  %v4772 = vsel %vm4297, %v4615, 0.0
  %4773 = vadd.xlane.f32.xlu0 %v4772
  %v4774 = vpop.xlane.xlu0 %4773
  %v4775 = vsel %vm4297, %v4617, 0.0
  %4776 = vadd.xlane.f32.xlu0 %v4775
  %v4777 = vpop.xlane.xlu0 %4776
  %v4778 = vsel %vm4297, %v4619, 0.0
  %4779 = vadd.xlane.f32.xlu0 %v4778
  %v4780 = vpop.xlane.xlu0 %4779
  %v4781 = vsel %vm4297, %v4621, 0.0
  %4782 = vadd.xlane.f32.xlu0 %v4781
  %v4783 = vpop.xlane.xlu0 %4782
  %v4784 = vsel %vm4297, %v4623, 0.0
  %4785 = vadd.xlane.f32.xlu0 %v4784
  %v4786 = vpop.xlane.xlu0 %4785
  %v4787 = vsel %vm4297, %v4625, 0.0
  %4788 = vadd.xlane.f32.xlu0 %v4787
  %v4789 = vpop.xlane.xlu0 %4788
  %v4790 = vsel %vm4297, %v4627, 0.0
  %4791 = vadd.xlane.f32.xlu0 %v4790
  %v4792 = vpop.xlane.xlu0 %4791
  %v4793 = vsel %vm4297, %v4629, 0.0
  %4794 = vadd.xlane.f32.xlu0 %v4793
  %v4795 = vpop.xlane.xlu0 %4794
  %v4796 = vsel %vm4297, %v4631, 0.0
  %4797 = vadd.xlane.f32.xlu0 %v4796
  %v4798 = vpop.xlane.xlu0 %4797
  %v4799 = vsel %vm4297, %v4633, 0.0
  %4800 = vadd.xlane.f32.xlu0 %v4799
  %v4801 = vpop.xlane.xlu0 %4800
  %v4802 = vsel %vm4297, %v4635, 0.0
  %4803 = vadd.xlane.f32.xlu0 %v4802
  %v4804 = vpop.xlane.xlu0 %4803
  %v4805 = vsel %vm4297, %v4637, 0.0
  %4806 = vadd.xlane.f32.xlu0 %v4805
  %v4807 = vpop.xlane.xlu0 %4806
  %v4808 = vsel %vm4297, %v4639, 0.0
  %4809 = vadd.xlane.f32.xlu0 %v4808
  %v4810 = vpop.xlane.xlu0 %4809
  %v4811 = vsel %vm4297, %v4641, 0.0
  %4812 = vadd.xlane.f32.xlu0 %v4811
  %v4813 = vpop.xlane.xlu0 %4812
  %v4814 = vsel %vm4297, %v4643, 0.0
  %4815 = vadd.xlane.f32.xlu0 %v4814
  %v4816 = vpop.xlane.xlu0 %4815
  %v4817 = vsel %vm4297, %v4645, 0.0
  %4818 = vadd.xlane.f32.xlu0 %v4817
  %v4819 = vpop.xlane.xlu0 %4818
  %v4820 = vsel %vm4297, %v4647, 0.0
  %4821 = vadd.xlane.f32.xlu0 %v4820
  %v4822 = vpop.xlane.xlu0 %4821
  %v4823 = vsel %vm4297, %v4649, 0.0
  %4824 = vadd.xlane.f32.xlu0 %v4823
  %v4825 = vpop.xlane.xlu0 %4824
  %v4826 = vsel %vm4297, %v4651, 0.0
  %4827 = vadd.xlane.f32.xlu0 %v4826
  %v4828 = vpop.xlane.xlu0 %4827
  %v4829 = vsel %vm4297, %v4653, 0.0
  %4830 = vadd.xlane.f32.xlu0 %v4829
  %v4831 = vpop.xlane.xlu0 %4830
  %v4832 = vsel %vm4297, %v4655, 0.0
  %4833 = vadd.xlane.f32.xlu0 %v4832
  %v4834 = vpop.xlane.xlu0 %4833
  %v4835 = vsel %vm4297, %v4657, 0.0
  %4836 = vadd.xlane.f32.xlu0 %v4835
  %v4837 = vpop.xlane.xlu0 %4836
  %v4838 = vsel %vm4297, %v4659, 0.0
  %4839 = vadd.xlane.f32.xlu0 %v4838
  %v4840 = vpop.xlane.xlu0 %4839
  %v4841 = vsel %vm4297, %v4661, 0.0
  %4842 = vadd.xlane.f32.xlu0 %v4841
  %v4843 = vpop.xlane.xlu0 %4842
  %v4844 = vsel %vm4297, %v4663, 0.0
  %4845 = vadd.xlane.f32.xlu0 %v4844
  %v4846 = vpop.xlane.xlu0 %4845
  %v4847 = vsel %vm4297, %v4665, 0.0
  %4848 = vadd.xlane.f32.xlu0 %v4847
  %v4849 = vpop.xlane.xlu0 %4848
  %v4850 = vsel %vm4297, %v4667, 0.0
  %4851 = vadd.xlane.f32.xlu0 %v4850
  %v4852 = vpop.xlane.xlu0 %4851
  %v4853 = vsel %vm4297, %v4669, 0.0
  %4854 = vadd.xlane.f32.xlu0 %v4853
  %v4855 = vpop.xlane.xlu0 %4854
  %v4856 = vsel %vm4297, %v4671, 0.0
  %4857 = vadd.xlane.f32.xlu0 %v4856
  %v4858 = vpop.xlane.xlu0 %4857
  %v4859 = vsel %vm4297, %v4673, 0.0
  %4860 = vadd.xlane.f32.xlu0 %v4859
  %v4861 = vpop.xlane.xlu0 %4860
  %v4862 = vsel %vm4297, %v4675, 0.0
  %4863 = vadd.xlane.f32.xlu0 %v4862
  %v4864 = vpop.xlane.xlu0 %4863
  %v4865 = vsel %vm4297, %v4677, 0.0
  %4866 = vadd.xlane.f32.xlu0 %v4865
  %v4867 = vpop.xlane.xlu0 %4866
  %v4868 = vsel %vm4297, %v4679, 0.0
  %4869 = vadd.xlane.f32.xlu0 %v4868
  %v4870 = vpop.xlane.xlu0 %4869
  %v4871 = vsel %vm4297, %v4681, 0.0
  %4872 = vadd.xlane.f32.xlu0 %v4871
  %v4873 = vpop.xlane.xlu0 %4872
  %v4874 = vrcp.pop %v4684
  %v4875 = vrcp.pop %v4687
  %v4876 = vrcp.pop %v4690
  %v4877 = vrcp.pop %v4693
  %v4878 = vrcp.pop %v4696
  %v4879 = vrcp.pop %v4699
  %v4880 = vrcp.pop %v4702
  %v4881 = vrcp.pop %v4705
  %v4882 = vrcp.pop %v4708
  %v4883 = vrcp.pop %v4711
  %v4884 = vrcp.pop %v4714
  %v4885 = vrcp.pop %v4717
  %v4886 = vrcp.pop %v4720
  %v4887 = vrcp.pop %v4723
  %v4888 = vrcp.pop %v4726
  %v4889 = vrcp.pop %v4729
  %v4890 = vrcp.pop %v4732
  %v4891 = vrcp.pop %v4735
  %v4892 = vrcp.pop %v4738
  %v4893 = vrcp.pop %v4741
  %v4894 = vrcp.pop %v4744
  %v4895 = vrcp.pop %v4747
  %v4896 = vrcp.pop %v4750
  %v4897 = vrcp.pop %v4753
  %v4898 = vrcp.pop %v4756
  %v4899 = vrcp.pop %v4759
  %v4900 = vrcp.pop %v4762
  %v4901 = vrcp.pop %v4765
  %v4902 = vrcp.pop %v4768
  %v4903 = vrcp.pop %v4771
  %v4904 = vrcp.pop %v4774
  %v4905 = vrcp.pop %v4777
  %v4906 = vrcp.pop %v4780
  %v4907 = vrcp.pop %v4783
  %v4908 = vrcp.pop %v4786
  %v4909 = vrcp.pop %v4789
  %v4910 = vrcp.pop %v4792
  %v4911 = vrcp.pop %v4795
  %v4912 = vrcp.pop %v4798
  %v4913 = vrcp.pop %v4801
  %v4914 = vrcp.pop %v4804
  %v4915 = vrcp.pop %v4807
  %v4916 = vrcp.pop %v4810
  %v4917 = vrcp.pop %v4813
  %v4918 = vrcp.pop %v4816
  %v4919 = vrcp.pop %v4819
  %v4920 = vrcp.pop %v4822
  %v4921 = vrcp.pop %v4825
  %v4922 = vrcp.pop %v4828
  %v4923 = vrcp.pop %v4831
  %v4924 = vrcp.pop %v4834
  %v4925 = vrcp.pop %v4837
  %v4926 = vrcp.pop %v4840
  %v4927 = vrcp.pop %v4843
  %v4928 = vrcp.pop %v4846
  %v4929 = vrcp.pop %v4849
  %v4930 = vrcp.pop %v4852
  %v4931 = vrcp.pop %v4855
  %v4932 = vrcp.pop %v4858
  %v4933 = vrcp.pop %v4861
  %v4934 = vrcp.pop %v4864
  %v4935 = vrcp.pop %v4867
  %v4936 = vrcp.pop %v4870
  %v4937 = vrcp.pop %v4873
  %v4938 = vmul.f32 %v4555, %v4874
  %v4939 = vmul.f32 %v4557, %v4875
  %v4940 = vmul.f32 %v4559, %v4876
  %v4941 = vmul.f32 %v4561, %v4877
  %v4942 = vmul.f32 %v4563, %v4878
  %v4943 = vmul.f32 %v4565, %v4879
  %v4944 = vmul.f32 %v4567, %v4880
  %v4945 = vmul.f32 %v4569, %v4881
  %v4946 = vmul.f32 %v4571, %v4882
  %v4947 = vmul.f32 %v4573, %v4883
  %v4948 = vmul.f32 %v4575, %v4884
  %v4949 = vmul.f32 %v4577, %v4885
  %v4950 = vmul.f32 %v4579, %v4886
  %v4951 = vmul.f32 %v4581, %v4887
  %v4952 = vmul.f32 %v4583, %v4888
  %v4953 = vmul.f32 %v4585, %v4889
  %v4954 = vmul.f32 %v4587, %v4890
  %v4955 = vmul.f32 %v4589, %v4891
  %v4956 = vmul.f32 %v4591, %v4892
  %v4957 = vmul.f32 %v4593, %v4893
  %v4958 = vmul.f32 %v4595, %v4894
  %v4959 = vmul.f32 %v4597, %v4895
  %v4960 = vmul.f32 %v4599, %v4896
  %v4961 = vmul.f32 %v4601, %v4897
  %v4962 = vmul.f32 %v4603, %v4898
  %v4963 = vmul.f32 %v4605, %v4899
  %v4964 = vmul.f32 %v4607, %v4900
  %v4965 = vmul.f32 %v4609, %v4901
  %v4966 = vmul.f32 %v4611, %v4902
  %v4967 = vmul.f32 %v4613, %v4903
  %v4968 = vmul.f32 %v4615, %v4904
  %v4969 = vmul.f32 %v4617, %v4905
  %v4970 = vmul.f32 %v4619, %v4906
  %v4971 = vmul.f32 %v4621, %v4907
  %v4972 = vmul.f32 %v4623, %v4908
  %v4973 = vmul.f32 %v4625, %v4909
  %v4974 = vmul.f32 %v4627, %v4910
  %v4975 = vmul.f32 %v4629, %v4911
  %v4976 = vmul.f32 %v4631, %v4912
  %v4977 = vmul.f32 %v4633, %v4913
  %v4978 = vmul.f32 %v4635, %v4914
  %v4979 = vmul.f32 %v4637, %v4915
  %v4980 = vmul.f32 %v4639, %v4916
  %v4981 = vmul.f32 %v4641, %v4917
  %v4982 = vmul.f32 %v4643, %v4918
  %v4983 = vmul.f32 %v4645, %v4919
  %v4984 = vmul.f32 %v4647, %v4920
  %v4985 = vmul.f32 %v4649, %v4921
  %v4986 = vmul.f32 %v4651, %v4922
  %v4987 = vmul.f32 %v4653, %v4923
  %v4988 = vmul.f32 %v4655, %v4924
  %v4989 = vmul.f32 %v4657, %v4925
  %v4990 = vmul.f32 %v4659, %v4926
  %v4991 = vmul.f32 %v4661, %v4927
  %v4992 = vmul.f32 %v4663, %v4928
  %v4993 = vmul.f32 %v4665, %v4929
  %v4994 = vmul.f32 %v4667, %v4930
  %v4995 = vmul.f32 %v4669, %v4931
  %v4996 = vmul.f32 %v4671, %v4932
  %v4997 = vmul.f32 %v4673, %v4933
  %v4998 = vmul.f32 %v4675, %v4934
  %v4999 = vmul.f32 %v4677, %v4935
  %v5000 = vmul.f32 %v4679, %v4936
  %v5001 = vmul.f32 %v4681, %v4937
  %v5002 = vpack.c.bf16 %v4938, %v4938
  %v5003 = vpack.c.bf16 %v4939, %v4939
  %v5004 = vpack.c.bf16 %v4940, %v4940
  %v5005 = vpack.c.bf16 %v4941, %v4941
  %v5006 = vpack.c.bf16 %v4942, %v4942
  %v5007 = vpack.c.bf16 %v4943, %v4943
  %v5008 = vpack.c.bf16 %v4944, %v4944
  %v5009 = vpack.c.bf16 %v4945, %v4945
  %v5010 = vpack.c.bf16 %v4946, %v4946
  %v5011 = vpack.c.bf16 %v4947, %v4947
  %v5012 = vpack.c.bf16 %v4948, %v4948
  %v5013 = vpack.c.bf16 %v4949, %v4949
  %v5014 = vpack.c.bf16 %v4950, %v4950
  %v5015 = vpack.c.bf16 %v4951, %v4951
  %v5016 = vpack.c.bf16 %v4952, %v4952
  %v5017 = vpack.c.bf16 %v4953, %v4953
  %v5018 = vpack.c.bf16 %v4954, %v4954
  %v5019 = vpack.c.bf16 %v4955, %v4955
  %v5020 = vpack.c.bf16 %v4956, %v4956
  %v5021 = vpack.c.bf16 %v4957, %v4957
  %v5022 = vpack.c.bf16 %v4958, %v4958
  %v5023 = vpack.c.bf16 %v4959, %v4959
  %v5024 = vpack.c.bf16 %v4960, %v4960
  %v5025 = vpack.c.bf16 %v4961, %v4961
  %v5026 = vpack.c.bf16 %v4962, %v4962
  %v5027 = vpack.c.bf16 %v4963, %v4963
  %v5028 = vpack.c.bf16 %v4964, %v4964
  %v5029 = vpack.c.bf16 %v4965, %v4965
  %v5030 = vpack.c.bf16 %v4966, %v4966
  %v5031 = vpack.c.bf16 %v4967, %v4967
  %v5032 = vpack.c.bf16 %v4968, %v4968
  %v5033 = vpack.c.bf16 %v4969, %v4969
  %v5034 = vpack.c.bf16 %v4970, %v4970
  %v5035 = vpack.c.bf16 %v4971, %v4971
  %v5036 = vpack.c.bf16 %v4972, %v4972
  %v5037 = vpack.c.bf16 %v4973, %v4973
  %v5038 = vpack.c.bf16 %v4974, %v4974
  %v5039 = vpack.c.bf16 %v4975, %v4975
  %v5040 = vpack.c.bf16 %v4976, %v4976
  %v5041 = vpack.c.bf16 %v4977, %v4977
  %v5042 = vpack.c.bf16 %v4978, %v4978
  %v5043 = vpack.c.bf16 %v4979, %v4979
  %v5044 = vpack.c.bf16 %v4980, %v4980
  %v5045 = vpack.c.bf16 %v4981, %v4981
  %v5046 = vpack.c.bf16 %v4982, %v4982
  %v5047 = vpack.c.bf16 %v4983, %v4983
  %v5048 = vpack.c.bf16 %v4984, %v4984
  %v5049 = vpack.c.bf16 %v4985, %v4985
  %v5050 = vpack.c.bf16 %v4986, %v4986
  %v5051 = vpack.c.bf16 %v4987, %v4987
  %v5052 = vpack.c.bf16 %v4988, %v4988
  %v5053 = vpack.c.bf16 %v4989, %v4989
  %v5054 = vpack.c.bf16 %v4990, %v4990
  %v5055 = vpack.c.bf16 %v4991, %v4991
  %v5056 = vpack.c.bf16 %v4992, %v4992
  %v5057 = vpack.c.bf16 %v4993, %v4993
  %v5058 = vpack.c.bf16 %v4994, %v4994
  %v5059 = vpack.c.bf16 %v4995, %v4995
  %v5060 = vpack.c.bf16 %v4996, %v4996
  %v5061 = vpack.c.bf16 %v4997, %v4997
  %v5062 = vpack.c.bf16 %v4998, %v4998
  %v5063 = vpack.c.bf16 %v4999, %v4999
  %v5064 = vpack.c.bf16 %v5000, %v5000
  %v5065 = vpack.c.bf16 %v5001, %v5001
  %5066 = vrot.lane.b32.xlu0 %v964, 64
  %v5067 = vpop.permute.xlu0 %5066
  %v5069 = vsel %vm4297, %v5002, 0
  %vm5071 = vcmask 1043456
  %v5073 = vsel %vm5071, %v5067, 0
  %5075 = vmatprep.subr.bf16.mxu0 0
  %5076 = vmatpush1.bf16.msra.mxu0 %v5073
  %5077 = vmatprep.subr.bf16.mxu0 0
  %5078 = vmatpush1.bf16.msra.mxu0 0
  %5079 = vmatprep.subr.bf16.mxu0 0
  %5080 = vmatpush1.bf16.msra.mxu0 0
  %5081 = vmatprep.subr.bf16.mxu0 0
  %5082 = vmatpush1.bf16.msra.mxu0 0
  %5083 = vmatprep.subr.bf16.mxu0 0
  %5084 = vmatpush1.bf16.msra.mxu0 0
  %5085 = vmatprep.subr.bf16.mxu0 0
  %5086 = vmatpush1.bf16.msra.mxu0 0
  %5087 = vmatprep.subr.bf16.mxu0 0
  %5088 = vmatpush1.bf16.msra.mxu0 0
  %5089 = vmatprep.subr.bf16.mxu0 0
  %5090 = vmatpush1.bf16.msra.mxu0 0
  %5091 = vmatprep.subr.bf16.mxu0 0
  %5092 = vmatpush1.bf16.msra.mxu0 0
  %5093 = vmatprep.subr.bf16.mxu0 0
  %5094 = vmatpush1.bf16.msra.mxu0 0
  %5095 = vmatprep.subr.bf16.mxu0 0
  %5096 = vmatpush1.bf16.msra.mxu0 0
  %5097 = vmatprep.subr.bf16.mxu0 0
  %5098 = vmatpush1.bf16.msra.mxu0 0
  %5099 = vmatprep.subr.bf16.mxu0 0
  %5100 = vmatpush1.bf16.msra.mxu0 0
  %5101 = vmatprep.subr.bf16.mxu0 0
  %5102 = vmatpush1.bf16.msra.mxu0 0
  %5103 = vmatprep.subr.bf16.mxu0 0
  %5104 = vmatpush1.bf16.msra.mxu0 0
  %5105 = vmatprep.subr.bf16.mxu0 0
  %5106 = vmatpush1.bf16.msra.mxu0 0
  %5107 = vmatprep.mubr.bf16.mxu0 0
  %5108 = vmatmul.mubr.bf16.gmra.mrb[0].mxu0 %v5069
  %v5109 = vpop.f32.mrb[0].mxu0
  %v5110 = vadd.f32 0.0, %v5109
  %v5111 = vpop.f32.mrb[0].mxu0
  %v5112 = vpop.f32.mrb[0].mxu0
  %v5113 = vpop.f32.mrb[0].mxu0
  %5114 = vdwg.mxu0
  %5115 = vrot.lane.b32.xlu0 %v965, 64
  %v5116 = vpop.permute.xlu0 %5115
  %v5118 = vsel %vm4297, %v5003, 0
  %v5121 = vsel %vm5071, %v5116, 0
  %5123 = vmatprep.subr.bf16.mxu0 0
  %5124 = vmatpush1.bf16.msra.mxu0 %v5121
  %5125 = vmatprep.subr.bf16.mxu0 0
  %5126 = vmatpush1.bf16.msra.mxu0 0
  %5127 = vmatprep.subr.bf16.mxu0 0
  %5128 = vmatpush1.bf16.msra.mxu0 0
  %5129 = vmatprep.subr.bf16.mxu0 0
  %5130 = vmatpush1.bf16.msra.mxu0 0
  %5131 = vmatprep.subr.bf16.mxu0 0
  %5132 = vmatpush1.bf16.msra.mxu0 0
  %5133 = vmatprep.subr.bf16.mxu0 0
  %5134 = vmatpush1.bf16.msra.mxu0 0
  %5135 = vmatprep.subr.bf16.mxu0 0
  %5136 = vmatpush1.bf16.msra.mxu0 0
  %5137 = vmatprep.subr.bf16.mxu0 0
  %5138 = vmatpush1.bf16.msra.mxu0 0
  %5139 = vmatprep.subr.bf16.mxu0 0
  %5140 = vmatpush1.bf16.msra.mxu0 0
  %5141 = vmatprep.subr.bf16.mxu0 0
  %5142 = vmatpush1.bf16.msra.mxu0 0
  %5143 = vmatprep.subr.bf16.mxu0 0
  %5144 = vmatpush1.bf16.msra.mxu0 0
  %5145 = vmatprep.subr.bf16.mxu0 0
  %5146 = vmatpush1.bf16.msra.mxu0 0
  %5147 = vmatprep.subr.bf16.mxu0 0
  %5148 = vmatpush1.bf16.msra.mxu0 0
  %5149 = vmatprep.subr.bf16.mxu0 0
  %5150 = vmatpush1.bf16.msra.mxu0 0
  %5151 = vmatprep.subr.bf16.mxu0 0
  %5152 = vmatpush1.bf16.msra.mxu0 0
  %5153 = vmatprep.subr.bf16.mxu0 0
  %5154 = vmatpush1.bf16.msra.mxu0 0
  %5155 = vmatprep.mubr.bf16.mxu0 0
  %5156 = vmatmul.mubr.bf16.gmra.mrb[0].mxu0 %v5118
  %v5157 = vpop.f32.mrb[0].mxu0
  %v5158 = vadd.f32 0.0, %v5157
  %v5159 = vpop.f32.mrb[0].mxu0
  %v5160 = vpop.f32.mrb[0].mxu0
  %v5161 = vpop.f32.mrb[0].mxu0
  %5162 = vdwg.mxu0
  %5163 = vrot.lane.b32.xlu0 %v966, 64
  %v5164 = vpop.permute.xlu0 %5163
  %v5166 = vsel %vm4297, %v5004, 0
  %v5169 = vsel %vm5071, %v5164, 0
  %5171 = vmatprep.subr.bf16.mxu0 0
  %5172 = vmatpush1.bf16.msra.mxu0 %v5169
  %5173 = vmatprep.subr.bf16.mxu0 0
  %5174 = vmatpush1.bf16.msra.mxu0 0
  %5175 = vmatprep.subr.bf16.mxu0 0
  %5176 = vmatpush1.bf16.msra.mxu0 0
  %5177 = vmatprep.subr.bf16.mxu0 0
  %5178 = vmatpush1.bf16.msra.mxu0 0
  %5179 = vmatprep.subr.bf16.mxu0 0
  %5180 = vmatpush1.bf16.msra.mxu0 0
  %5181 = vmatprep.subr.bf16.mxu0 0
  %5182 = vmatpush1.bf16.msra.mxu0 0
  %5183 = vmatprep.subr.bf16.mxu0 0
  %5184 = vmatpush1.bf16.msra.mxu0 0
  %5185 = vmatprep.subr.bf16.mxu0 0
  %5186 = vmatpush1.bf16.msra.mxu0 0
  %5187 = vmatprep.subr.bf16.mxu0 0
  %5188 = vmatpush1.bf16.msra.mxu0 0
  %5189 = vmatprep.subr.bf16.mxu0 0
  %5190 = vmatpush1.bf16.msra.mxu0 0
  %5191 = vmatprep.subr.bf16.mxu0 0
  %5192 = vmatpush1.bf16.msra.mxu0 0
  %5193 = vmatprep.subr.bf16.mxu0 0
  %5194 = vmatpush1.bf16.msra.mxu0 0
  %5195 = vmatprep.subr.bf16.mxu0 0
  %5196 = vmatpush1.bf16.msra.mxu0 0
  %5197 = vmatprep.subr.bf16.mxu0 0
  %5198 = vmatpush1.bf16.msra.mxu0 0
  %5199 = vmatprep.subr.bf16.mxu0 0
  %5200 = vmatpush1.bf16.msra.mxu0 0
  %5201 = vmatprep.subr.bf16.mxu0 0
  %5202 = vmatpush1.bf16.msra.mxu0 0
  %5203 = vmatprep.mubr.bf16.mxu0 0
  %5204 = vmatmul.mubr.bf16.gmra.mrb[0].mxu0 %v5166
  %v5205 = vpop.f32.mrb[0].mxu0
  %v5206 = vadd.f32 0.0, %v5205
  %v5207 = vpop.f32.mrb[0].mxu0
  %v5208 = vpop.f32.mrb[0].mxu0
  %v5209 = vpop.f32.mrb[0].mxu0
  %5210 = vdwg.mxu0
  %5211 = vrot.lane.b32.xlu0 %v967, 64
  %v5212 = vpop.permute.xlu0 %5211
  %v5214 = vsel %vm4297, %v5005, 0
  %v5217 = vsel %vm5071, %v5212, 0
  %5219 = vmatprep.subr.bf16.mxu0 0
  %5220 = vmatpush1.bf16.msra.mxu0 %v5217
  %5221 = vmatprep.subr.bf16.mxu0 0
  %5222 = vmatpush1.bf16.msra.mxu0 0
  %5223 = vmatprep.subr.bf16.mxu0 0
  %5224 = vmatpush1.bf16.msra.mxu0 0
  %5225 = vmatprep.subr.bf16.mxu0 0
  %5226 = vmatpush1.bf16.msra.mxu0 0
  %5227 = vmatprep.subr.bf16.mxu0 0
  %5228 = vmatpush1.bf16.msra.mxu0 0
  %5229 = vmatprep.subr.bf16.mxu0 0
  %5230 = vmatpush1.bf16.msra.mxu0 0
  %5231 = vmatprep.subr.bf16.mxu0 0
  %5232 = vmatpush1.bf16.msra.mxu0 0
  %5233 = vmatprep.subr.bf16.mxu0 0
  %5234 = vmatpush1.bf16.msra.mxu0 0
  %5235 = vmatprep.subr.bf16.mxu0 0
  %5236 = vmatpush1.bf16.msra.mxu0 0
  %5237 = vmatprep.subr.bf16.mxu0 0
  %5238 = vmatpush1.bf16.msra.mxu0 0
  %5239 = vmatprep.subr.bf16.mxu0 0
  %5240 = vmatpush1.bf16.msra.mxu0 0
  %5241 = vmatprep.subr.bf16.mxu0 0
  %5242 = vmatpush1.bf16.msra.mxu0 0
  %5243 = vmatprep.subr.bf16.mxu0 0
  %5244 = vmatpush1.bf16.msra.mxu0 0
  %5245 = vmatprep.subr.bf16.mxu0 0
  %5246 = vmatpush1.bf16.msra.mxu0 0
  %5247 = vmatprep.subr.bf16.mxu0 0
  %5248 = vmatpush1.bf16.msra.mxu0 0
  %5249 = vmatprep.subr.bf16.mxu0 0
  %5250 = vmatpush1.bf16.msra.mxu0 0
  %5251 = vmatprep.mubr.bf16.mxu0 0
  %5252 = vmatmul.mubr.bf16.gmra.mrb[0].mxu0 %v5214
  %v5253 = vpop.f32.mrb[0].mxu0
  %v5254 = vadd.f32 0.0, %v5253
  %v5255 = vpop.f32.mrb[0].mxu0
  %v5256 = vpop.f32.mrb[0].mxu0
  %v5257 = vpop.f32.mrb[0].mxu0
  %5258 = vdwg.mxu0
  %5259 = vrot.lane.b32.xlu0 %v968, 64
  %v5260 = vpop.permute.xlu0 %5259
  %v5262 = vsel %vm4297, %v5006, 0
  %v5265 = vsel %vm5071, %v5260, 0
  %5267 = vmatprep.subr.bf16.mxu0 0
  %5268 = vmatpush1.bf16.msra.mxu0 %v5265
  %5269 = vmatprep.subr.bf16.mxu0 0
  %5270 = vmatpush1.bf16.msra.mxu0 0
  %5271 = vmatprep.subr.bf16.mxu0 0
  %5272 = vmatpush1.bf16.msra.mxu0 0
  %5273 = vmatprep.subr.bf16.mxu0 0
  %5274 = vmatpush1.bf16.msra.mxu0 0
  %5275 = vmatprep.subr.bf16.mxu0 0
  %5276 = vmatpush1.bf16.msra.mxu0 0
  %5277 = vmatprep.subr.bf16.mxu0 0
  %5278 = vmatpush1.bf16.msra.mxu0 0
  %5279 = vmatprep.subr.bf16.mxu0 0
  %5280 = vmatpush1.bf16.msra.mxu0 0
  %5281 = vmatprep.subr.bf16.mxu0 0
  %5282 = vmatpush1.bf16.msra.mxu0 0
  %5283 = vmatprep.subr.bf16.mxu0 0
  %5284 = vmatpush1.bf16.msra.mxu0 0
  %5285 = vmatprep.subr.bf16.mxu0 0
  %5286 = vmatpush1.bf16.msra.mxu0 0
  %5287 = vmatprep.subr.bf16.mxu0 0
  %5288 = vmatpush1.bf16.msra.mxu0 0
  %5289 = vmatprep.subr.bf16.mxu0 0
  %5290 = vmatpush1.bf16.msra.mxu0 0
  %5291 = vmatprep.subr.bf16.mxu0 0
  %5292 = vmatpush1.bf16.msra.mxu0 0
  %5293 = vmatprep.subr.bf16.mxu0 0
  %5294 = vmatpush1.bf16.msra.mxu0 0
  %5295 = vmatprep.subr.bf16.mxu0 0
  %5296 = vmatpush1.bf16.msra.mxu0 0
  %5297 = vmatprep.subr.bf16.mxu0 0
  %5298 = vmatpush1.bf16.msra.mxu0 0
  %5299 = vmatprep.mubr.bf16.mxu0 0
  %5300 = vmatmul.mubr.bf16.gmra.mrb[0].mxu0 %v5262
  %v5301 = vpop.f32.mrb[0].mxu0
  %v5302 = vadd.f32 0.0, %v5301
  %v5303 = vpop.f32.mrb[0].mxu0
  %v5304 = vpop.f32.mrb[0].mxu0
  %v5305 = vpop.f32.mrb[0].mxu0
  %5306 = vdwg.mxu0
  %5307 = vrot.lane.b32.xlu0 %v969, 64
  %v5308 = vpop.permute.xlu0 %5307
  %v5310 = vsel %vm4297, %v5007, 0
  %v5313 = vsel %vm5071, %v5308, 0
  %5315 = vmatprep.subr.bf16.mxu0 0
  %5316 = vmatpush1.bf16.msra.mxu0 %v5313
  %5317 = vmatprep.subr.bf16.mxu0 0
  %5318 = vmatpush1.bf16.msra.mxu0 0
  %5319 = vmatprep.subr.bf16.mxu0 0
  %5320 = vmatpush1.bf16.msra.mxu0 0
  %5321 = vmatprep.subr.bf16.mxu0 0
  %5322 = vmatpush1.bf16.msra.mxu0 0
  %5323 = vmatprep.subr.bf16.mxu0 0
  %5324 = vmatpush1.bf16.msra.mxu0 0
  %5325 = vmatprep.subr.bf16.mxu0 0
  %5326 = vmatpush1.bf16.msra.mxu0 0
  %5327 = vmatprep.subr.bf16.mxu0 0
  %5328 = vmatpush1.bf16.msra.mxu0 0
  %5329 = vmatprep.subr.bf16.mxu0 0
  %5330 = vmatpush1.bf16.msra.mxu0 0
  %5331 = vmatprep.subr.bf16.mxu0 0
  %5332 = vmatpush1.bf16.msra.mxu0 0
  %5333 = vmatprep.subr.bf16.mxu0 0
  %5334 = vmatpush1.bf16.msra.mxu0 0
  %5335 = vmatprep.subr.bf16.mxu0 0
  %5336 = vmatpush1.bf16.msra.mxu0 0
  %5337 = vmatprep.subr.bf16.mxu0 0
  %5338 = vmatpush1.bf16.msra.mxu0 0
  %5339 = vmatprep.subr.bf16.mxu0 0
  %5340 = vmatpush1.bf16.msra.mxu0 0
  %5341 = vmatprep.subr.bf16.mxu0 0
  %5342 = vmatpush1.bf16.msra.mxu0 0
  %5343 = vmatprep.subr.bf16.mxu0 0
  %5344 = vmatpush1.bf16.msra.mxu0 0
  %5345 = vmatprep.subr.bf16.mxu0 0
  %5346 = vmatpush1.bf16.msra.mxu0 0
  %5347 = vmatprep.mubr.bf16.mxu0 0
  %5348 = vmatmul.mubr.bf16.gmra.mrb[0].mxu0 %v5310
  %v5349 = vpop.f32.mrb[0].mxu0
  %v5350 = vadd.f32 0.0, %v5349
  %v5351 = vpop.f32.mrb[0].mxu0
  %v5352 = vpop.f32.mrb[0].mxu0
  %v5353 = vpop.f32.mrb[0].mxu0
  %5354 = vdwg.mxu0
  %5355 = vrot.lane.b32.xlu0 %v970, 64
  %v5356 = vpop.permute.xlu0 %5355
  %v5358 = vsel %vm4297, %v5008, 0
  %v5361 = vsel %vm5071, %v5356, 0
  %5363 = vmatprep.subr.bf16.mxu0 0
  %5364 = vmatpush1.bf16.msra.mxu0 %v5361
  %5365 = vmatprep.subr.bf16.mxu0 0
  %5366 = vmatpush1.bf16.msra.mxu0 0
  %5367 = vmatprep.subr.bf16.mxu0 0
  %5368 = vmatpush1.bf16.msra.mxu0 0
  %5369 = vmatprep.subr.bf16.mxu0 0
  %5370 = vmatpush1.bf16.msra.mxu0 0
  %5371 = vmatprep.subr.bf16.mxu0 0
  %5372 = vmatpush1.bf16.msra.mxu0 0
  %5373 = vmatprep.subr.bf16.mxu0 0
  %5374 = vmatpush1.bf16.msra.mxu0 0
  %5375 = vmatprep.subr.bf16.mxu0 0
  %5376 = vmatpush1.bf16.msra.mxu0 0
  %5377 = vmatprep.subr.bf16.mxu0 0
  %5378 = vmatpush1.bf16.msra.mxu0 0
  %5379 = vmatprep.subr.bf16.mxu0 0
  %5380 = vmatpush1.bf16.msra.mxu0 0
  %5381 = vmatprep.subr.bf16.mxu0 0
  %5382 = vmatpush1.bf16.msra.mxu0 0
  %5383 = vmatprep.subr.bf16.mxu0 0
  %5384 = vmatpush1.bf16.msra.mxu0 0
  %5385 = vmatprep.subr.bf16.mxu0 0
  %5386 = vmatpush1.bf16.msra.mxu0 0
  %5387 = vmatprep.subr.bf16.mxu0 0
  %5388 = vmatpush1.bf16.msra.mxu0 0
  %5389 = vmatprep.subr.bf16.mxu0 0
  %5390 = vmatpush1.bf16.msra.mxu0 0
  %5391 = vmatprep.subr.bf16.mxu0 0
  %5392 = vmatpush1.bf16.msra.mxu0 0
  %5393 = vmatprep.subr.bf16.mxu0 0
  %5394 = vmatpush1.bf16.msra.mxu0 0
  %5395 = vmatprep.mubr.bf16.mxu0 0
  %5396 = vmatmul.mubr.bf16.gmra.mrb[0].mxu0 %v5358
  %v5397 = vpop.f32.mrb[0].mxu0
  %v5398 = vadd.f32 0.0, %v5397
  %v5399 = vpop.f32.mrb[0].mxu0
  %v5400 = vpop.f32.mrb[0].mxu0
  %v5401 = vpop.f32.mrb[0].mxu0
  %5402 = vdwg.mxu0
  %5403 = vrot.lane.b32.xlu0 %v971, 64
  %v5404 = vpop.permute.xlu0 %5403
  %v5406 = vsel %vm4297, %v5009, 0
  %v5409 = vsel %vm5071, %v5404, 0
  %5411 = vmatprep.subr.bf16.mxu0 0
  %5412 = vmatpush1.bf16.msra.mxu0 %v5409
  %5413 = vmatprep.subr.bf16.mxu0 0
  %5414 = vmatpush1.bf16.msra.mxu0 0
  %5415 = vmatprep.subr.bf16.mxu0 0
  %5416 = vmatpush1.bf16.msra.mxu0 0
  %5417 = vmatprep.subr.bf16.mxu0 0
  %5418 = vmatpush1.bf16.msra.mxu0 0
  %5419 = vmatprep.subr.bf16.mxu0 0
  %5420 = vmatpush1.bf16.msra.mxu0 0
  %5421 = vmatprep.subr.bf16.mxu0 0
  %5422 = vmatpush1.bf16.msra.mxu0 0
  %5423 = vmatprep.subr.bf16.mxu0 0
  %5424 = vmatpush1.bf16.msra.mxu0 0
  %5425 = vmatprep.subr.bf16.mxu0 0
  %5426 = vmatpush1.bf16.msra.mxu0 0
  %5427 = vmatprep.subr.bf16.mxu0 0
  %5428 = vmatpush1.bf16.msra.mxu0 0
  %5429 = vmatprep.subr.bf16.mxu0 0
  %5430 = vmatpush1.bf16.msra.mxu0 0
  %5431 = vmatprep.subr.bf16.mxu0 0
  %5432 = vmatpush1.bf16.msra.mxu0 0
  %5433 = vmatprep.subr.bf16.mxu0 0
  %5434 = vmatpush1.bf16.msra.mxu0 0
  %5435 = vmatprep.subr.bf16.mxu0 0
  %5436 = vmatpush1.bf16.msra.mxu0 0
  %5437 = vmatprep.subr.bf16.mxu0 0
  %5438 = vmatpush1.bf16.msra.mxu0 0
  %5439 = vmatprep.subr.bf16.mxu0 0
  %5440 = vmatpush1.bf16.msra.mxu0 0
  %5441 = vmatprep.subr.bf16.mxu0 0
  %5442 = vmatpush1.bf16.msra.mxu0 0
  %5443 = vmatprep.mubr.bf16.mxu0 0
  %5444 = vmatmul.mubr.bf16.gmra.mrb[0].mxu0 %v5406
  %v5445 = vpop.f32.mrb[0].mxu0
  %v5446 = vadd.f32 0.0, %v5445
  %v5447 = vpop.f32.mrb[0].mxu0
  %v5448 = vpop.f32.mrb[0].mxu0
  %v5449 = vpop.f32.mrb[0].mxu0
  %5450 = vdwg.mxu0
  %5451 = vrot.lane.b32.xlu0 %v972, 64
  %v5452 = vpop.permute.xlu0 %5451
  %v5454 = vsel %vm4297, %v5010, 0
  %v5457 = vsel %vm5071, %v5452, 0
  %5459 = vmatprep.subr.bf16.mxu0 0
  %5460 = vmatpush1.bf16.msra.mxu0 %v5457
  %5461 = vmatprep.subr.bf16.mxu0 0
  %5462 = vmatpush1.bf16.msra.mxu0 0
  %5463 = vmatprep.subr.bf16.mxu0 0
  %5464 = vmatpush1.bf16.msra.mxu0 0
  %5465 = vmatprep.subr.bf16.mxu0 0
  %5466 = vmatpush1.bf16.msra.mxu0 0
  %5467 = vmatprep.subr.bf16.mxu0 0
  %5468 = vmatpush1.bf16.msra.mxu0 0
  %5469 = vmatprep.subr.bf16.mxu0 0
  %5470 = vmatpush1.bf16.msra.mxu0 0
  %5471 = vmatprep.subr.bf16.mxu0 0
  %5472 = vmatpush1.bf16.msra.mxu0 0
  %5473 = vmatprep.subr.bf16.mxu0 0
  %5474 = vmatpush1.bf16.msra.mxu0 0
  %5475 = vmatprep.subr.bf16.mxu0 0
  %5476 = vmatpush1.bf16.msra.mxu0 0
  %5477 = vmatprep.subr.bf16.mxu0 0
  %5478 = vmatpush1.bf16.msra.mxu0 0
  %5479 = vmatprep.subr.bf16.mxu0 0
  %5480 = vmatpush1.bf16.msra.mxu0 0
  %5481 = vmatprep.subr.bf16.mxu0 0
  %5482 = vmatpush1.bf16.msra.mxu0 0
  %5483 = vmatprep.subr.bf16.mxu0 0
  %5484 = vmatpush1.bf16.msra.mxu0 0
  %5485 = vmatprep.subr.bf16.mxu0 0
  %5486 = vmatpush1.bf16.msra.mxu0 0
  %5487 = vmatprep.subr.bf16.mxu0 0
  %5488 = vmatpush1.bf16.msra.mxu0 0
  %5489 = vmatprep.subr.bf16.mxu0 0
  %5490 = vmatpush1.bf16.msra.mxu0 0
  %5491 = vmatprep.mubr.bf16.mxu0 0
  %5492 = vmatmul.mubr.bf16.gmra.mrb[0].mxu0 %v5454
  %v5493 = vpop.f32.mrb[0].mxu0
  %v5494 = vadd.f32 0.0, %v5493
  %v5495 = vpop.f32.mrb[0].mxu0
  %v5496 = vpop.f32.mrb[0].mxu0
  %v5497 = vpop.f32.mrb[0].mxu0
  %5498 = vdwg.mxu0
  %5499 = vrot.lane.b32.xlu0 %v973, 64
  %v5500 = vpop.permute.xlu0 %5499
  %v5502 = vsel %vm4297, %v5011, 0
  %v5505 = vsel %vm5071, %v5500, 0
  %5507 = vmatprep.subr.bf16.mxu0 0
  %5508 = vmatpush1.bf16.msra.mxu0 %v5505
  %5509 = vmatprep.subr.bf16.mxu0 0
  %5510 = vmatpush1.bf16.msra.mxu0 0
  %5511 = vmatprep.subr.bf16.mxu0 0
  %5512 = vmatpush1.bf16.msra.mxu0 0
  %5513 = vmatprep.subr.bf16.mxu0 0
  %5514 = vmatpush1.bf16.msra.mxu0 0
  %5515 = vmatprep.subr.bf16.mxu0 0
  %5516 = vmatpush1.bf16.msra.mxu0 0
  %5517 = vmatprep.subr.bf16.mxu0 0
  %5518 = vmatpush1.bf16.msra.mxu0 0
  %5519 = vmatprep.subr.bf16.mxu0 0
  %5520 = vmatpush1.bf16.msra.mxu0 0
  %5521 = vmatprep.subr.bf16.mxu0 0
  %5522 = vmatpush1.bf16.msra.mxu0 0
  %5523 = vmatprep.subr.bf16.mxu0 0
  %5524 = vmatpush1.bf16.msra.mxu0 0
  %5525 = vmatprep.subr.bf16.mxu0 0
  %5526 = vmatpush1.bf16.msra.mxu0 0
  %5527 = vmatprep.subr.bf16.mxu0 0
  %5528 = vmatpush1.bf16.msra.mxu0 0
  %5529 = vmatprep.subr.bf16.mxu0 0
  %5530 = vmatpush1.bf16.msra.mxu0 0
  %5531 = vmatprep.subr.bf16.mxu0 0
  %5532 = vmatpush1.bf16.msra.mxu0 0
  %5533 = vmatprep.subr.bf16.mxu0 0
  %5534 = vmatpush1.bf16.msra.mxu0 0
  %5535 = vmatprep.subr.bf16.mxu0 0
  %5536 = vmatpush1.bf16.msra.mxu0 0
  %5537 = vmatprep.subr.bf16.mxu0 0
  %5538 = vmatpush1.bf16.msra.mxu0 0
  %5539 = vmatprep.mubr.bf16.mxu0 0
  %5540 = vmatmul.mubr.bf16.gmra.mrb[0].mxu0 %v5502
  %v5541 = vpop.f32.mrb[0].mxu0
  %v5542 = vadd.f32 0.0, %v5541
  %v5543 = vpop.f32.mrb[0].mxu0
  %v5544 = vpop.f32.mrb[0].mxu0
  %v5545 = vpop.f32.mrb[0].mxu0
  %5546 = vdwg.mxu0
  %5547 = vrot.lane.b32.xlu0 %v974, 64
  %v5548 = vpop.permute.xlu0 %5547
  %v5550 = vsel %vm4297, %v5012, 0
  %v5553 = vsel %vm5071, %v5548, 0
  %5555 = vmatprep.subr.bf16.mxu0 0
  %5556 = vmatpush1.bf16.msra.mxu0 %v5553
  %5557 = vmatprep.subr.bf16.mxu0 0
  %5558 = vmatpush1.bf16.msra.mxu0 0
  %5559 = vmatprep.subr.bf16.mxu0 0
  %5560 = vmatpush1.bf16.msra.mxu0 0
  %5561 = vmatprep.subr.bf16.mxu0 0
  %5562 = vmatpush1.bf16.msra.mxu0 0
  %5563 = vmatprep.subr.bf16.mxu0 0
  %5564 = vmatpush1.bf16.msra.mxu0 0
  %5565 = vmatprep.subr.bf16.mxu0 0
  %5566 = vmatpush1.bf16.msra.mxu0 0
  %5567 = vmatprep.subr.bf16.mxu0 0
  %5568 = vmatpush1.bf16.msra.mxu0 0
  %5569 = vmatprep.subr.bf16.mxu0 0
  %5570 = vmatpush1.bf16.msra.mxu0 0
  %5571 = vmatprep.subr.bf16.mxu0 0
  %5572 = vmatpush1.bf16.msra.mxu0 0
  %5573 = vmatprep.subr.bf16.mxu0 0
  %5574 = vmatpush1.bf16.msra.mxu0 0
  %5575 = vmatprep.subr.bf16.mxu0 0
  %5576 = vmatpush1.bf16.msra.mxu0 0
  %5577 = vmatprep.subr.bf16.mxu0 0
  %5578 = vmatpush1.bf16.msra.mxu0 0
  %5579 = vmatprep.subr.bf16.mxu0 0
  %5580 = vmatpush1.bf16.msra.mxu0 0
  %5581 = vmatprep.subr.bf16.mxu0 0
  %5582 = vmatpush1.bf16.msra.mxu0 0
  %5583 = vmatprep.subr.bf16.mxu0 0
  %5584 = vmatpush1.bf16.msra.mxu0 0
  %5585 = vmatprep.subr.bf16.mxu0 0
  %5586 = vmatpush1.bf16.msra.mxu0 0
  %5587 = vmatprep.mubr.bf16.mxu0 0
  %5588 = vmatmul.mubr.bf16.gmra.mrb[0].mxu0 %v5550
  %v5589 = vpop.f32.mrb[0].mxu0
  %v5590 = vadd.f32 0.0, %v5589
  %v5591 = vpop.f32.mrb[0].mxu0
  %v5592 = vpop.f32.mrb[0].mxu0
  %v5593 = vpop.f32.mrb[0].mxu0
  %5594 = vdwg.mxu0
  %5595 = vrot.lane.b32.xlu0 %v975, 64
  %v5596 = vpop.permute.xlu0 %5595
  %v5598 = vsel %vm4297, %v5013, 0
  %v5601 = vsel %vm5071, %v5596, 0
  %5603 = vmatprep.subr.bf16.mxu0 0
  %5604 = vmatpush1.bf16.msra.mxu0 %v5601
  %5605 = vmatprep.subr.bf16.mxu0 0
  %5606 = vmatpush1.bf16.msra.mxu0 0
  %5607 = vmatprep.subr.bf16.mxu0 0
  %5608 = vmatpush1.bf16.msra.mxu0 0
  %5609 = vmatprep.subr.bf16.mxu0 0
  %5610 = vmatpush1.bf16.msra.mxu0 0
  %5611 = vmatprep.subr.bf16.mxu0 0
  %5612 = vmatpush1.bf16.msra.mxu0 0
  %5613 = vmatprep.subr.bf16.mxu0 0
  %5614 = vmatpush1.bf16.msra.mxu0 0
  %5615 = vmatprep.subr.bf16.mxu0 0
  %5616 = vmatpush1.bf16.msra.mxu0 0
  %5617 = vmatprep.subr.bf16.mxu0 0
  %5618 = vmatpush1.bf16.msra.mxu0 0
  %5619 = vmatprep.subr.bf16.mxu0 0
  %5620 = vmatpush1.bf16.msra.mxu0 0
  %5621 = vmatprep.subr.bf16.mxu0 0
  %5622 = vmatpush1.bf16.msra.mxu0 0
  %5623 = vmatprep.subr.bf16.mxu0 0
  %5624 = vmatpush1.bf16.msra.mxu0 0
  %5625 = vmatprep.subr.bf16.mxu0 0
  %5626 = vmatpush1.bf16.msra.mxu0 0
  %5627 = vmatprep.subr.bf16.mxu0 0
  %5628 = vmatpush1.bf16.msra.mxu0 0
  %5629 = vmatprep.subr.bf16.mxu0 0
  %5630 = vmatpush1.bf16.msra.mxu0 0
  %5631 = vmatprep.subr.bf16.mxu0 0
  %5632 = vmatpush1.bf16.msra.mxu0 0
  %5633 = vmatprep.subr.bf16.mxu0 0
  %5634 = vmatpush1.bf16.msra.mxu0 0
  %5635 = vmatprep.mubr.bf16.mxu0 0
  %5636 = vmatmul.mubr.bf16.gmra.mrb[0].mxu0 %v5598
  %v5637 = vpop.f32.mrb[0].mxu0
  %v5638 = vadd.f32 0.0, %v5637
  %v5639 = vpop.f32.mrb[0].mxu0
  %v5640 = vpop.f32.mrb[0].mxu0
  %v5641 = vpop.f32.mrb[0].mxu0
  %5642 = vdwg.mxu0
  %5643 = vrot.lane.b32.xlu0 %v976, 64
  %v5644 = vpop.permute.xlu0 %5643
  %v5646 = vsel %vm4297, %v5014, 0
  %v5649 = vsel %vm5071, %v5644, 0
  %5651 = vmatprep.subr.bf16.mxu0 0
  %5652 = vmatpush1.bf16.msra.mxu0 %v5649
  %5653 = vmatprep.subr.bf16.mxu0 0
  %5654 = vmatpush1.bf16.msra.mxu0 0
  %5655 = vmatprep.subr.bf16.mxu0 0
  %5656 = vmatpush1.bf16.msra.mxu0 0
  %5657 = vmatprep.subr.bf16.mxu0 0
  %5658 = vmatpush1.bf16.msra.mxu0 0
  %5659 = vmatprep.subr.bf16.mxu0 0
  %5660 = vmatpush1.bf16.msra.mxu0 0
  %5661 = vmatprep.subr.bf16.mxu0 0
  %5662 = vmatpush1.bf16.msra.mxu0 0
  %5663 = vmatprep.subr.bf16.mxu0 0
  %5664 = vmatpush1.bf16.msra.mxu0 0
  %5665 = vmatprep.subr.bf16.mxu0 0
  %5666 = vmatpush1.bf16.msra.mxu0 0
  %5667 = vmatprep.subr.bf16.mxu0 0
  %5668 = vmatpush1.bf16.msra.mxu0 0
  %5669 = vmatprep.subr.bf16.mxu0 0
  %5670 = vmatpush1.bf16.msra.mxu0 0
  %5671 = vmatprep.subr.bf16.mxu0 0
  %5672 = vmatpush1.bf16.msra.mxu0 0
  %5673 = vmatprep.subr.bf16.mxu0 0
  %5674 = vmatpush1.bf16.msra.mxu0 0
  %5675 = vmatprep.subr.bf16.mxu0 0
  %5676 = vmatpush1.bf16.msra.mxu0 0
  %5677 = vmatprep.subr.bf16.mxu0 0
  %5678 = vmatpush1.bf16.msra.mxu0 0
  %5679 = vmatprep.subr.bf16.mxu0 0
  %5680 = vmatpush1.bf16.msra.mxu0 0
  %5681 = vmatprep.subr.bf16.mxu0 0
  %5682 = vmatpush1.bf16.msra.mxu0 0
  %5683 = vmatprep.mubr.bf16.mxu0 0
  %5684 = vmatmul.mubr.bf16.gmra.mrb[0].mxu0 %v5646
  %v5685 = vpop.f32.mrb[0].mxu0
  %v5686 = vadd.f32 0.0, %v5685
  %v5687 = vpop.f32.mrb[0].mxu0
  %v5688 = vpop.f32.mrb[0].mxu0
  %v5689 = vpop.f32.mrb[0].mxu0
  %5690 = vdwg.mxu0
  %5691 = vrot.lane.b32.xlu0 %v977, 64
  %v5692 = vpop.permute.xlu0 %5691
  %v5694 = vsel %vm4297, %v5015, 0
  %v5697 = vsel %vm5071, %v5692, 0
  %5699 = vmatprep.subr.bf16.mxu0 0
  %5700 = vmatpush1.bf16.msra.mxu0 %v5697
  %5701 = vmatprep.subr.bf16.mxu0 0
  %5702 = vmatpush1.bf16.msra.mxu0 0
  %5703 = vmatprep.subr.bf16.mxu0 0
  %5704 = vmatpush1.bf16.msra.mxu0 0
  %5705 = vmatprep.subr.bf16.mxu0 0
  %5706 = vmatpush1.bf16.msra.mxu0 0
  %5707 = vmatprep.subr.bf16.mxu0 0
  %5708 = vmatpush1.bf16.msra.mxu0 0
  %5709 = vmatprep.subr.bf16.mxu0 0
  %5710 = vmatpush1.bf16.msra.mxu0 0
  %5711 = vmatprep.subr.bf16.mxu0 0
  %5712 = vmatpush1.bf16.msra.mxu0 0
  %5713 = vmatprep.subr.bf16.mxu0 0
  %5714 = vmatpush1.bf16.msra.mxu0 0
  %5715 = vmatprep.subr.bf16.mxu0 0
  %5716 = vmatpush1.bf16.msra.mxu0 0
  %5717 = vmatprep.subr.bf16.mxu0 0
  %5718 = vmatpush1.bf16.msra.mxu0 0
  %5719 = vmatprep.subr.bf16.mxu0 0
  %5720 = vmatpush1.bf16.msra.mxu0 0
  %5721 = vmatprep.subr.bf16.mxu0 0
  %5722 = vmatpush1.bf16.msra.mxu0 0
  %5723 = vmatprep.subr.bf16.mxu0 0
  %5724 = vmatpush1.bf16.msra.mxu0 0
  %5725 = vmatprep.subr.bf16.mxu0 0
  %5726 = vmatpush1.bf16.msra.mxu0 0
  %5727 = vmatprep.subr.bf16.mxu0 0
  %5728 = vmatpush1.bf16.msra.mxu0 0
  %5729 = vmatprep.subr.bf16.mxu0 0
  %5730 = vmatpush1.bf16.msra.mxu0 0
  %5731 = vmatprep.mubr.bf16.mxu0 0
  %5732 = vmatmul.mubr.bf16.gmra.mrb[0].mxu0 %v5694
  %v5733 = vpop.f32.mrb[0].mxu0
  %v5734 = vadd.f32 0.0, %v5733
  %v5735 = vpop.f32.mrb[0].mxu0
  %v5736 = vpop.f32.mrb[0].mxu0
  %v5737 = vpop.f32.mrb[0].mxu0
  %5738 = vdwg.mxu0
  %5739 = vrot.lane.b32.xlu0 %v978, 64
  %v5740 = vpop.permute.xlu0 %5739
  %v5742 = vsel %vm4297, %v5016, 0
  %v5745 = vsel %vm5071, %v5740, 0
  %5747 = vmatprep.subr.bf16.mxu0 0
  %5748 = vmatpush1.bf16.msra.mxu0 %v5745
  %5749 = vmatprep.subr.bf16.mxu0 0
  %5750 = vmatpush1.bf16.msra.mxu0 0
  %5751 = vmatprep.subr.bf16.mxu0 0
  %5752 = vmatpush1.bf16.msra.mxu0 0
  %5753 = vmatprep.subr.bf16.mxu0 0
  %5754 = vmatpush1.bf16.msra.mxu0 0
  %5755 = vmatprep.subr.bf16.mxu0 0
  %5756 = vmatpush1.bf16.msra.mxu0 0
  %5757 = vmatprep.subr.bf16.mxu0 0
  %5758 = vmatpush1.bf16.msra.mxu0 0
  %5759 = vmatprep.subr.bf16.mxu0 0
  %5760 = vmatpush1.bf16.msra.mxu0 0
  %5761 = vmatprep.subr.bf16.mxu0 0
  %5762 = vmatpush1.bf16.msra.mxu0 0
  %5763 = vmatprep.subr.bf16.mxu0 0
  %5764 = vmatpush1.bf16.msra.mxu0 0
  %5765 = vmatprep.subr.bf16.mxu0 0
  %5766 = vmatpush1.bf16.msra.mxu0 0
  %5767 = vmatprep.subr.bf16.mxu0 0
  %5768 = vmatpush1.bf16.msra.mxu0 0
  %5769 = vmatprep.subr.bf16.mxu0 0
  %5770 = vmatpush1.bf16.msra.mxu0 0
  %5771 = vmatprep.subr.bf16.mxu0 0
  %5772 = vmatpush1.bf16.msra.mxu0 0
  %5773 = vmatprep.subr.bf16.mxu0 0
  %5774 = vmatpush1.bf16.msra.mxu0 0
  %5775 = vmatprep.subr.bf16.mxu0 0
  %5776 = vmatpush1.bf16.msra.mxu0 0
  %5777 = vmatprep.subr.bf16.mxu0 0
  %5778 = vmatpush1.bf16.msra.mxu0 0
  %5779 = vmatprep.mubr.bf16.mxu0 0
  %5780 = vmatmul.mubr.bf16.gmra.mrb[0].mxu0 %v5742
  %v5781 = vpop.f32.mrb[0].mxu0
  %v5782 = vadd.f32 0.0, %v5781
  %v5783 = vpop.f32.mrb[0].mxu0
  %v5784 = vpop.f32.mrb[0].mxu0
  %v5785 = vpop.f32.mrb[0].mxu0
  %5786 = vdwg.mxu0
  %5787 = vrot.lane.b32.xlu0 %v979, 64
  %v5788 = vpop.permute.xlu0 %5787
  %v5790 = vsel %vm4297, %v5017, 0
  %v5793 = vsel %vm5071, %v5788, 0
  %5795 = vmatprep.subr.bf16.mxu0 0
  %5796 = vmatpush1.bf16.msra.mxu0 %v5793
  %5797 = vmatprep.subr.bf16.mxu0 0
  %5798 = vmatpush1.bf16.msra.mxu0 0
  %5799 = vmatprep.subr.bf16.mxu0 0
  %5800 = vmatpush1.bf16.msra.mxu0 0
  %5801 = vmatprep.subr.bf16.mxu0 0
  %5802 = vmatpush1.bf16.msra.mxu0 0
  %5803 = vmatprep.subr.bf16.mxu0 0
  %5804 = vmatpush1.bf16.msra.mxu0 0
  %5805 = vmatprep.subr.bf16.mxu0 0
  %5806 = vmatpush1.bf16.msra.mxu0 0
  %5807 = vmatprep.subr.bf16.mxu0 0
  %5808 = vmatpush1.bf16.msra.mxu0 0
  %5809 = vmatprep.subr.bf16.mxu0 0
  %5810 = vmatpush1.bf16.msra.mxu0 0
  %5811 = vmatprep.subr.bf16.mxu0 0
  %5812 = vmatpush1.bf16.msra.mxu0 0
  %5813 = vmatprep.subr.bf16.mxu0 0
  %5814 = vmatpush1.bf16.msra.mxu0 0
  %5815 = vmatprep.subr.bf16.mxu0 0
  %5816 = vmatpush1.bf16.msra.mxu0 0
  %5817 = vmatprep.subr.bf16.mxu0 0
  %5818 = vmatpush1.bf16.msra.mxu0 0
  %5819 = vmatprep.subr.bf16.mxu0 0
  %5820 = vmatpush1.bf16.msra.mxu0 0
  %5821 = vmatprep.subr.bf16.mxu0 0
  %5822 = vmatpush1.bf16.msra.mxu0 0
  %5823 = vmatprep.subr.bf16.mxu0 0
  %5824 = vmatpush1.bf16.msra.mxu0 0
  %5825 = vmatprep.subr.bf16.mxu0 0
  %5826 = vmatpush1.bf16.msra.mxu0 0
  %5827 = vmatprep.mubr.bf16.mxu0 0
  %5828 = vmatmul.mubr.bf16.gmra.mrb[0].mxu0 %v5790
  %v5829 = vpop.f32.mrb[0].mxu0
  %v5830 = vadd.f32 0.0, %v5829
  %v5831 = vpop.f32.mrb[0].mxu0
  %v5832 = vpop.f32.mrb[0].mxu0
  %v5833 = vpop.f32.mrb[0].mxu0
  %5834 = vdwg.mxu0
  %5835 = vrot.lane.b32.xlu0 %v980, 64
  %v5836 = vpop.permute.xlu0 %5835
  %v5838 = vsel %vm4297, %v5018, 0
  %v5841 = vsel %vm5071, %v5836, 0
  %5843 = vmatprep.subr.bf16.mxu0 0
  %5844 = vmatpush1.bf16.msra.mxu0 %v5841
  %5845 = vmatprep.subr.bf16.mxu0 0
  %5846 = vmatpush1.bf16.msra.mxu0 0
  %5847 = vmatprep.subr.bf16.mxu0 0
  %5848 = vmatpush1.bf16.msra.mxu0 0
  %5849 = vmatprep.subr.bf16.mxu0 0
  %5850 = vmatpush1.bf16.msra.mxu0 0
  %5851 = vmatprep.subr.bf16.mxu0 0
  %5852 = vmatpush1.bf16.msra.mxu0 0
  %5853 = vmatprep.subr.bf16.mxu0 0
  %5854 = vmatpush1.bf16.msra.mxu0 0
  %5855 = vmatprep.subr.bf16.mxu0 0
  %5856 = vmatpush1.bf16.msra.mxu0 0
  %5857 = vmatprep.subr.bf16.mxu0 0
  %5858 = vmatpush1.bf16.msra.mxu0 0
  %5859 = vmatprep.subr.bf16.mxu0 0
  %5860 = vmatpush1.bf16.msra.mxu0 0
  %5861 = vmatprep.subr.bf16.mxu0 0
  %5862 = vmatpush1.bf16.msra.mxu0 0
  %5863 = vmatprep.subr.bf16.mxu0 0
  %5864 = vmatpush1.bf16.msra.mxu0 0
  %5865 = vmatprep.subr.bf16.mxu0 0
  %5866 = vmatpush1.bf16.msra.mxu0 0
  %5867 = vmatprep.subr.bf16.mxu0 0
  %5868 = vmatpush1.bf16.msra.mxu0 0
  %5869 = vmatprep.subr.bf16.mxu0 0
  %5870 = vmatpush1.bf16.msra.mxu0 0
  %5871 = vmatprep.subr.bf16.mxu0 0
  %5872 = vmatpush1.bf16.msra.mxu0 0
  %5873 = vmatprep.subr.bf16.mxu0 0
  %5874 = vmatpush1.bf16.msra.mxu0 0
  %5875 = vmatprep.mubr.bf16.mxu0 0
  %5876 = vmatmul.mubr.bf16.gmra.mrb[0].mxu0 %v5838
  %v5877 = vpop.f32.mrb[0].mxu0
  %v5878 = vadd.f32 0.0, %v5877
  %v5879 = vpop.f32.mrb[0].mxu0
  %v5880 = vpop.f32.mrb[0].mxu0
  %v5881 = vpop.f32.mrb[0].mxu0
  %5882 = vdwg.mxu0
  %5883 = vrot.lane.b32.xlu0 %v981, 64
  %v5884 = vpop.permute.xlu0 %5883
  %v5886 = vsel %vm4297, %v5019, 0
  %v5889 = vsel %vm5071, %v5884, 0
  %5891 = vmatprep.subr.bf16.mxu0 0
  %5892 = vmatpush1.bf16.msra.mxu0 %v5889
  %5893 = vmatprep.subr.bf16.mxu0 0
  %5894 = vmatpush1.bf16.msra.mxu0 0
  %5895 = vmatprep.subr.bf16.mxu0 0
  %5896 = vmatpush1.bf16.msra.mxu0 0
  %5897 = vmatprep.subr.bf16.mxu0 0
  %5898 = vmatpush1.bf16.msra.mxu0 0
  %5899 = vmatprep.subr.bf16.mxu0 0
  %5900 = vmatpush1.bf16.msra.mxu0 0
  %5901 = vmatprep.subr.bf16.mxu0 0
  %5902 = vmatpush1.bf16.msra.mxu0 0
  %5903 = vmatprep.subr.bf16.mxu0 0
  %5904 = vmatpush1.bf16.msra.mxu0 0
  %5905 = vmatprep.subr.bf16.mxu0 0
  %5906 = vmatpush1.bf16.msra.mxu0 0
  %5907 = vmatprep.subr.bf16.mxu0 0
  %5908 = vmatpush1.bf16.msra.mxu0 0
  %5909 = vmatprep.subr.bf16.mxu0 0
  %5910 = vmatpush1.bf16.msra.mxu0 0
  %5911 = vmatprep.subr.bf16.mxu0 0
  %5912 = vmatpush1.bf16.msra.mxu0 0
  %5913 = vmatprep.subr.bf16.mxu0 0
  %5914 = vmatpush1.bf16.msra.mxu0 0
  %5915 = vmatprep.subr.bf16.mxu0 0
  %5916 = vmatpush1.bf16.msra.mxu0 0
  %5917 = vmatprep.subr.bf16.mxu0 0
  %5918 = vmatpush1.bf16.msra.mxu0 0
  %5919 = vmatprep.subr.bf16.mxu0 0
  %5920 = vmatpush1.bf16.msra.mxu0 0
  %5921 = vmatprep.subr.bf16.mxu0 0
  %5922 = vmatpush1.bf16.msra.mxu0 0
  %5923 = vmatprep.mubr.bf16.mxu0 0
  %5924 = vmatmul.mubr.bf16.gmra.mrb[0].mxu0 %v5886
  %v5925 = vpop.f32.mrb[0].mxu0
  %v5926 = vadd.f32 0.0, %v5925
  %v5927 = vpop.f32.mrb[0].mxu0
  %v5928 = vpop.f32.mrb[0].mxu0
  %v5929 = vpop.f32.mrb[0].mxu0
  %5930 = vdwg.mxu0
  %5931 = vrot.lane.b32.xlu0 %v982, 64
  %v5932 = vpop.permute.xlu0 %5931
  %v5934 = vsel %vm4297, %v5020, 0
  %v5937 = vsel %vm5071, %v5932, 0
  %5939 = vmatprep.subr.bf16.mxu0 0
  %5940 = vmatpush1.bf16.msra.mxu0 %v5937
  %5941 = vmatprep.subr.bf16.mxu0 0
  %5942 = vmatpush1.bf16.msra.mxu0 0
  %5943 = vmatprep.subr.bf16.mxu0 0
  %5944 = vmatpush1.bf16.msra.mxu0 0
  %5945 = vmatprep.subr.bf16.mxu0 0
  %5946 = vmatpush1.bf16.msra.mxu0 0
  %5947 = vmatprep.subr.bf16.mxu0 0
  %5948 = vmatpush1.bf16.msra.mxu0 0
  %5949 = vmatprep.subr.bf16.mxu0 0
  %5950 = vmatpush1.bf16.msra.mxu0 0
  %5951 = vmatprep.subr.bf16.mxu0 0
  %5952 = vmatpush1.bf16.msra.mxu0 0
  %5953 = vmatprep.subr.bf16.mxu0 0
  %5954 = vmatpush1.bf16.msra.mxu0 0
  %5955 = vmatprep.subr.bf16.mxu0 0
  %5956 = vmatpush1.bf16.msra.mxu0 0
  %5957 = vmatprep.subr.bf16.mxu0 0
  %5958 = vmatpush1.bf16.msra.mxu0 0
  %5959 = vmatprep.subr.bf16.mxu0 0
  %5960 = vmatpush1.bf16.msra.mxu0 0
  %5961 = vmatprep.subr.bf16.mxu0 0
  %5962 = vmatpush1.bf16.msra.mxu0 0
  %5963 = vmatprep.subr.bf16.mxu0 0
  %5964 = vmatpush1.bf16.msra.mxu0 0
  %5965 = vmatprep.subr.bf16.mxu0 0
  %5966 = vmatpush1.bf16.msra.mxu0 0
  %5967 = vmatprep.subr.bf16.mxu0 0
  %5968 = vmatpush1.bf16.msra.mxu0 0
  %5969 = vmatprep.subr.bf16.mxu0 0
  %5970 = vmatpush1.bf16.msra.mxu0 0
  %5971 = vmatprep.mubr.bf16.mxu0 0
  %5972 = vmatmul.mubr.bf16.gmra.mrb[0].mxu0 %v5934
  %v5973 = vpop.f32.mrb[0].mxu0
  %v5974 = vadd.f32 0.0, %v5973
  %v5975 = vpop.f32.mrb[0].mxu0
  %v5976 = vpop.f32.mrb[0].mxu0
  %v5977 = vpop.f32.mrb[0].mxu0
  %5978 = vdwg.mxu0
  %5979 = vrot.lane.b32.xlu0 %v983, 64
  %v5980 = vpop.permute.xlu0 %5979
  %v5982 = vsel %vm4297, %v5021, 0
  %v5985 = vsel %vm5071, %v5980, 0
  %5987 = vmatprep.subr.bf16.mxu0 0
  %5988 = vmatpush1.bf16.msra.mxu0 %v5985
  %5989 = vmatprep.subr.bf16.mxu0 0
  %5990 = vmatpush1.bf16.msra.mxu0 0
  %5991 = vmatprep.subr.bf16.mxu0 0
  %5992 = vmatpush1.bf16.msra.mxu0 0
  %5993 = vmatprep.subr.bf16.mxu0 0
  %5994 = vmatpush1.bf16.msra.mxu0 0
  %5995 = vmatprep.subr.bf16.mxu0 0
  %5996 = vmatpush1.bf16.msra.mxu0 0
  %5997 = vmatprep.subr.bf16.mxu0 0
  %5998 = vmatpush1.bf16.msra.mxu0 0
  %5999 = vmatprep.subr.bf16.mxu0 0
  %6000 = vmatpush1.bf16.msra.mxu0 0
  %6001 = vmatprep.subr.bf16.mxu0 0
  %6002 = vmatpush1.bf16.msra.mxu0 0
  %6003 = vmatprep.subr.bf16.mxu0 0
  %6004 = vmatpush1.bf16.msra.mxu0 0
  %6005 = vmatprep.subr.bf16.mxu0 0
  %6006 = vmatpush1.bf16.msra.mxu0 0
  %6007 = vmatprep.subr.bf16.mxu0 0
  %6008 = vmatpush1.bf16.msra.mxu0 0
  %6009 = vmatprep.subr.bf16.mxu0 0
  %6010 = vmatpush1.bf16.msra.mxu0 0
  %6011 = vmatprep.subr.bf16.mxu0 0
  %6012 = vmatpush1.bf16.msra.mxu0 0
  %6013 = vmatprep.subr.bf16.mxu0 0
  %6014 = vmatpush1.bf16.msra.mxu0 0
  %6015 = vmatprep.subr.bf16.mxu0 0
  %6016 = vmatpush1.bf16.msra.mxu0 0
  %6017 = vmatprep.subr.bf16.mxu0 0
  %6018 = vmatpush1.bf16.msra.mxu0 0
  %6019 = vmatprep.mubr.bf16.mxu0 0
  %6020 = vmatmul.mubr.bf16.gmra.mrb[0].mxu0 %v5982
  %v6021 = vpop.f32.mrb[0].mxu0
  %v6022 = vadd.f32 0.0, %v6021
  %v6023 = vpop.f32.mrb[0].mxu0
  %v6024 = vpop.f32.mrb[0].mxu0
  %v6025 = vpop.f32.mrb[0].mxu0
  %6026 = vdwg.mxu0
  %6027 = vrot.lane.b32.xlu0 %v984, 64
  %v6028 = vpop.permute.xlu0 %6027
  %v6030 = vsel %vm4297, %v5022, 0
  %v6033 = vsel %vm5071, %v6028, 0
  %6035 = vmatprep.subr.bf16.mxu0 0
  %6036 = vmatpush1.bf16.msra.mxu0 %v6033
  %6037 = vmatprep.subr.bf16.mxu0 0
  %6038 = vmatpush1.bf16.msra.mxu0 0
  %6039 = vmatprep.subr.bf16.mxu0 0
  %6040 = vmatpush1.bf16.msra.mxu0 0
  %6041 = vmatprep.subr.bf16.mxu0 0
  %6042 = vmatpush1.bf16.msra.mxu0 0
  %6043 = vmatprep.subr.bf16.mxu0 0
  %6044 = vmatpush1.bf16.msra.mxu0 0
  %6045 = vmatprep.subr.bf16.mxu0 0
  %6046 = vmatpush1.bf16.msra.mxu0 0
  %6047 = vmatprep.subr.bf16.mxu0 0
  %6048 = vmatpush1.bf16.msra.mxu0 0
  %6049 = vmatprep.subr.bf16.mxu0 0
  %6050 = vmatpush1.bf16.msra.mxu0 0
  %6051 = vmatprep.subr.bf16.mxu0 0
  %6052 = vmatpush1.bf16.msra.mxu0 0
  %6053 = vmatprep.subr.bf16.mxu0 0
  %6054 = vmatpush1.bf16.msra.mxu0 0
  %6055 = vmatprep.subr.bf16.mxu0 0
  %6056 = vmatpush1.bf16.msra.mxu0 0
  %6057 = vmatprep.subr.bf16.mxu0 0
  %6058 = vmatpush1.bf16.msra.mxu0 0
  %6059 = vmatprep.subr.bf16.mxu0 0
  %6060 = vmatpush1.bf16.msra.mxu0 0
  %6061 = vmatprep.subr.bf16.mxu0 0
  %6062 = vmatpush1.bf16.msra.mxu0 0
  %6063 = vmatprep.subr.bf16.mxu0 0
  %6064 = vmatpush1.bf16.msra.mxu0 0
  %6065 = vmatprep.subr.bf16.mxu0 0
  %6066 = vmatpush1.bf16.msra.mxu0 0
  %6067 = vmatprep.mubr.bf16.mxu0 0
  %6068 = vmatmul.mubr.bf16.gmra.mrb[0].mxu0 %v6030
  %v6069 = vpop.f32.mrb[0].mxu0
  %v6070 = vadd.f32 0.0, %v6069
  %v6071 = vpop.f32.mrb[0].mxu0
  %v6072 = vpop.f32.mrb[0].mxu0
  %v6073 = vpop.f32.mrb[0].mxu0
  %6074 = vdwg.mxu0
  %6075 = vrot.lane.b32.xlu0 %v985, 64
  %v6076 = vpop.permute.xlu0 %6075
  %v6078 = vsel %vm4297, %v5023, 0
  %v6081 = vsel %vm5071, %v6076, 0
  %6083 = vmatprep.subr.bf16.mxu0 0
  %6084 = vmatpush1.bf16.msra.mxu0 %v6081
  %6085 = vmatprep.subr.bf16.mxu0 0
  %6086 = vmatpush1.bf16.msra.mxu0 0
  %6087 = vmatprep.subr.bf16.mxu0 0
  %6088 = vmatpush1.bf16.msra.mxu0 0
  %6089 = vmatprep.subr.bf16.mxu0 0
  %6090 = vmatpush1.bf16.msra.mxu0 0
  %6091 = vmatprep.subr.bf16.mxu0 0
  %6092 = vmatpush1.bf16.msra.mxu0 0
  %6093 = vmatprep.subr.bf16.mxu0 0
  %6094 = vmatpush1.bf16.msra.mxu0 0
  %6095 = vmatprep.subr.bf16.mxu0 0
  %6096 = vmatpush1.bf16.msra.mxu0 0
  %6097 = vmatprep.subr.bf16.mxu0 0
  %6098 = vmatpush1.bf16.msra.mxu0 0
  %6099 = vmatprep.subr.bf16.mxu0 0
  %6100 = vmatpush1.bf16.msra.mxu0 0
  %6101 = vmatprep.subr.bf16.mxu0 0
  %6102 = vmatpush1.bf16.msra.mxu0 0
  %6103 = vmatprep.subr.bf16.mxu0 0
  %6104 = vmatpush1.bf16.msra.mxu0 0
  %6105 = vmatprep.subr.bf16.mxu0 0
  %6106 = vmatpush1.bf16.msra.mxu0 0
  %6107 = vmatprep.subr.bf16.mxu0 0
  %6108 = vmatpush1.bf16.msra.mxu0 0
  %6109 = vmatprep.subr.bf16.mxu0 0
  %6110 = vmatpush1.bf16.msra.mxu0 0
  %6111 = vmatprep.subr.bf16.mxu0 0
  %6112 = vmatpush1.bf16.msra.mxu0 0
  %6113 = vmatprep.subr.bf16.mxu0 0
  %6114 = vmatpush1.bf16.msra.mxu0 0
  %6115 = vmatprep.mubr.bf16.mxu0 0
  %6116 = vmatmul.mubr.bf16.gmra.mrb[0].mxu0 %v6078
  %v6117 = vpop.f32.mrb[0].mxu0
  %v6118 = vadd.f32 0.0, %v6117
  %v6119 = vpop.f32.mrb[0].mxu0
  %v6120 = vpop.f32.mrb[0].mxu0
  %v6121 = vpop.f32.mrb[0].mxu0
  %6122 = vdwg.mxu0
  %6123 = vrot.lane.b32.xlu0 %v986, 64
  %v6124 = vpop.permute.xlu0 %6123
  %v6126 = vsel %vm4297, %v5024, 0
  %v6129 = vsel %vm5071, %v6124, 0
  %6131 = vmatprep.subr.bf16.mxu0 0
  %6132 = vmatpush1.bf16.msra.mxu0 %v6129
  %6133 = vmatprep.subr.bf16.mxu0 0
  %6134 = vmatpush1.bf16.msra.mxu0 0
  %6135 = vmatprep.subr.bf16.mxu0 0
  %6136 = vmatpush1.bf16.msra.mxu0 0
  %6137 = vmatprep.subr.bf16.mxu0 0
  %6138 = vmatpush1.bf16.msra.mxu0 0
  %6139 = vmatprep.subr.bf16.mxu0 0
  %6140 = vmatpush1.bf16.msra.mxu0 0
  %6141 = vmatprep.subr.bf16.mxu0 0
  %6142 = vmatpush1.bf16.msra.mxu0 0
  %6143 = vmatprep.subr.bf16.mxu0 0
  %6144 = vmatpush1.bf16.msra.mxu0 0
  %6145 = vmatprep.subr.bf16.mxu0 0
  %6146 = vmatpush1.bf16.msra.mxu0 0
  %6147 = vmatprep.subr.bf16.mxu0 0
  %6148 = vmatpush1.bf16.msra.mxu0 0
  %6149 = vmatprep.subr.bf16.mxu0 0
  %6150 = vmatpush1.bf16.msra.mxu0 0
  %6151 = vmatprep.subr.bf16.mxu0 0
  %6152 = vmatpush1.bf16.msra.mxu0 0
  %6153 = vmatprep.subr.bf16.mxu0 0
  %6154 = vmatpush1.bf16.msra.mxu0 0
  %6155 = vmatprep.subr.bf16.mxu0 0
  %6156 = vmatpush1.bf16.msra.mxu0 0
  %6157 = vmatprep.subr.bf16.mxu0 0
  %6158 = vmatpush1.bf16.msra.mxu0 0
  %6159 = vmatprep.subr.bf16.mxu0 0
  %6160 = vmatpush1.bf16.msra.mxu0 0
  %6161 = vmatprep.subr.bf16.mxu0 0
  %6162 = vmatpush1.bf16.msra.mxu0 0
  %6163 = vmatprep.mubr.bf16.mxu0 0
  %6164 = vmatmul.mubr.bf16.gmra.mrb[0].mxu0 %v6126
  %v6165 = vpop.f32.mrb[0].mxu0
  %v6166 = vadd.f32 0.0, %v6165
  %v6167 = vpop.f32.mrb[0].mxu0
  %v6168 = vpop.f32.mrb[0].mxu0
  %v6169 = vpop.f32.mrb[0].mxu0
  %6170 = vdwg.mxu0
  %6171 = vrot.lane.b32.xlu0 %v987, 64
  %v6172 = vpop.permute.xlu0 %6171
  %v6174 = vsel %vm4297, %v5025, 0
  %v6177 = vsel %vm5071, %v6172, 0
  %6179 = vmatprep.subr.bf16.mxu0 0
  %6180 = vmatpush1.bf16.msra.mxu0 %v6177
  %6181 = vmatprep.subr.bf16.mxu0 0
  %6182 = vmatpush1.bf16.msra.mxu0 0
  %6183 = vmatprep.subr.bf16.mxu0 0
  %6184 = vmatpush1.bf16.msra.mxu0 0
  %6185 = vmatprep.subr.bf16.mxu0 0
  %6186 = vmatpush1.bf16.msra.mxu0 0
  %6187 = vmatprep.subr.bf16.mxu0 0
  %6188 = vmatpush1.bf16.msra.mxu0 0
  %6189 = vmatprep.subr.bf16.mxu0 0
  %6190 = vmatpush1.bf16.msra.mxu0 0
  %6191 = vmatprep.subr.bf16.mxu0 0
  %6192 = vmatpush1.bf16.msra.mxu0 0
  %6193 = vmatprep.subr.bf16.mxu0 0
  %6194 = vmatpush1.bf16.msra.mxu0 0
  %6195 = vmatprep.subr.bf16.mxu0 0
  %6196 = vmatpush1.bf16.msra.mxu0 0
  %6197 = vmatprep.subr.bf16.mxu0 0
  %6198 = vmatpush1.bf16.msra.mxu0 0
  %6199 = vmatprep.subr.bf16.mxu0 0
  %6200 = vmatpush1.bf16.msra.mxu0 0
  %6201 = vmatprep.subr.bf16.mxu0 0
  %6202 = vmatpush1.bf16.msra.mxu0 0
  %6203 = vmatprep.subr.bf16.mxu0 0
  %6204 = vmatpush1.bf16.msra.mxu0 0
  %6205 = vmatprep.subr.bf16.mxu0 0
  %6206 = vmatpush1.bf16.msra.mxu0 0
  %6207 = vmatprep.subr.bf16.mxu0 0
  %6208 = vmatpush1.bf16.msra.mxu0 0
  %6209 = vmatprep.subr.bf16.mxu0 0
  %6210 = vmatpush1.bf16.msra.mxu0 0
  %6211 = vmatprep.mubr.bf16.mxu0 0
  %6212 = vmatmul.mubr.bf16.gmra.mrb[0].mxu0 %v6174
  %v6213 = vpop.f32.mrb[0].mxu0
  %v6214 = vadd.f32 0.0, %v6213
  %v6215 = vpop.f32.mrb[0].mxu0
  %v6216 = vpop.f32.mrb[0].mxu0
  %v6217 = vpop.f32.mrb[0].mxu0
  %6218 = vdwg.mxu0
  %6219 = vrot.lane.b32.xlu0 %v988, 64
  %v6220 = vpop.permute.xlu0 %6219
  %v6222 = vsel %vm4297, %v5026, 0
  %v6225 = vsel %vm5071, %v6220, 0
  %6227 = vmatprep.subr.bf16.mxu0 0
  %6228 = vmatpush1.bf16.msra.mxu0 %v6225
  %6229 = vmatprep.subr.bf16.mxu0 0
  %6230 = vmatpush1.bf16.msra.mxu0 0
  %6231 = vmatprep.subr.bf16.mxu0 0
  %6232 = vmatpush1.bf16.msra.mxu0 0
  %6233 = vmatprep.subr.bf16.mxu0 0
  %6234 = vmatpush1.bf16.msra.mxu0 0
  %6235 = vmatprep.subr.bf16.mxu0 0
  %6236 = vmatpush1.bf16.msra.mxu0 0
  %6237 = vmatprep.subr.bf16.mxu0 0
  %6238 = vmatpush1.bf16.msra.mxu0 0
  %6239 = vmatprep.subr.bf16.mxu0 0
  %6240 = vmatpush1.bf16.msra.mxu0 0
  %6241 = vmatprep.subr.bf16.mxu0 0
  %6242 = vmatpush1.bf16.msra.mxu0 0
  %6243 = vmatprep.subr.bf16.mxu0 0
  %6244 = vmatpush1.bf16.msra.mxu0 0
  %6245 = vmatprep.subr.bf16.mxu0 0
  %6246 = vmatpush1.bf16.msra.mxu0 0
  %6247 = vmatprep.subr.bf16.mxu0 0
  %6248 = vmatpush1.bf16.msra.mxu0 0
  %6249 = vmatprep.subr.bf16.mxu0 0
  %6250 = vmatpush1.bf16.msra.mxu0 0
  %6251 = vmatprep.subr.bf16.mxu0 0
  %6252 = vmatpush1.bf16.msra.mxu0 0
  %6253 = vmatprep.subr.bf16.mxu0 0
  %6254 = vmatpush1.bf16.msra.mxu0 0
  %6255 = vmatprep.subr.bf16.mxu0 0
  %6256 = vmatpush1.bf16.msra.mxu0 0
  %6257 = vmatprep.subr.bf16.mxu0 0
  %6258 = vmatpush1.bf16.msra.mxu0 0
  %6259 = vmatprep.mubr.bf16.mxu0 0
  %6260 = vmatmul.mubr.bf16.gmra.mrb[0].mxu0 %v6222
  %v6261 = vpop.f32.mrb[0].mxu0
  %v6262 = vadd.f32 0.0, %v6261
  %v6263 = vpop.f32.mrb[0].mxu0
  %v6264 = vpop.f32.mrb[0].mxu0
  %v6265 = vpop.f32.mrb[0].mxu0
  %6266 = vdwg.mxu0
  %6267 = vrot.lane.b32.xlu0 %v989, 64
  %v6268 = vpop.permute.xlu0 %6267
  %v6270 = vsel %vm4297, %v5027, 0
  %v6273 = vsel %vm5071, %v6268, 0
  %6275 = vmatprep.subr.bf16.mxu0 0
  %6276 = vmatpush1.bf16.msra.mxu0 %v6273
  %6277 = vmatprep.subr.bf16.mxu0 0
  %6278 = vmatpush1.bf16.msra.mxu0 0
  %6279 = vmatprep.subr.bf16.mxu0 0
  %6280 = vmatpush1.bf16.msra.mxu0 0
  %6281 = vmatprep.subr.bf16.mxu0 0
  %6282 = vmatpush1.bf16.msra.mxu0 0
  %6283 = vmatprep.subr.bf16.mxu0 0
  %6284 = vmatpush1.bf16.msra.mxu0 0
  %6285 = vmatprep.subr.bf16.mxu0 0
  %6286 = vmatpush1.bf16.msra.mxu0 0
  %6287 = vmatprep.subr.bf16.mxu0 0
  %6288 = vmatpush1.bf16.msra.mxu0 0
  %6289 = vmatprep.subr.bf16.mxu0 0
  %6290 = vmatpush1.bf16.msra.mxu0 0
  %6291 = vmatprep.subr.bf16.mxu0 0
  %6292 = vmatpush1.bf16.msra.mxu0 0
  %6293 = vmatprep.subr.bf16.mxu0 0
  %6294 = vmatpush1.bf16.msra.mxu0 0
  %6295 = vmatprep.subr.bf16.mxu0 0
  %6296 = vmatpush1.bf16.msra.mxu0 0
  %6297 = vmatprep.subr.bf16.mxu0 0
  %6298 = vmatpush1.bf16.msra.mxu0 0
  %6299 = vmatprep.subr.bf16.mxu0 0
  %6300 = vmatpush1.bf16.msra.mxu0 0
  %6301 = vmatprep.subr.bf16.mxu0 0
  %6302 = vmatpush1.bf16.msra.mxu0 0
  %6303 = vmatprep.subr.bf16.mxu0 0
  %6304 = vmatpush1.bf16.msra.mxu0 0
  %6305 = vmatprep.subr.bf16.mxu0 0
  %6306 = vmatpush1.bf16.msra.mxu0 0
  %6307 = vmatprep.mubr.bf16.mxu0 0
  %6308 = vmatmul.mubr.bf16.gmra.mrb[0].mxu0 %v6270
  %v6309 = vpop.f32.mrb[0].mxu0
  %v6310 = vadd.f32 0.0, %v6309
  %v6311 = vpop.f32.mrb[0].mxu0
  %v6312 = vpop.f32.mrb[0].mxu0
  %v6313 = vpop.f32.mrb[0].mxu0
  %6314 = vdwg.mxu0
  %6315 = vrot.lane.b32.xlu0 %v990, 64
  %v6316 = vpop.permute.xlu0 %6315
  %v6318 = vsel %vm4297, %v5028, 0
  %v6321 = vsel %vm5071, %v6316, 0
  %6323 = vmatprep.subr.bf16.mxu0 0
  %6324 = vmatpush1.bf16.msra.mxu0 %v6321
  %6325 = vmatprep.subr.bf16.mxu0 0
  %6326 = vmatpush1.bf16.msra.mxu0 0
  %6327 = vmatprep.subr.bf16.mxu0 0
  %6328 = vmatpush1.bf16.msra.mxu0 0
  %6329 = vmatprep.subr.bf16.mxu0 0
  %6330 = vmatpush1.bf16.msra.mxu0 0
  %6331 = vmatprep.subr.bf16.mxu0 0
  %6332 = vmatpush1.bf16.msra.mxu0 0
  %6333 = vmatprep.subr.bf16.mxu0 0
  %6334 = vmatpush1.bf16.msra.mxu0 0
  %6335 = vmatprep.subr.bf16.mxu0 0
  %6336 = vmatpush1.bf16.msra.mxu0 0
  %6337 = vmatprep.subr.bf16.mxu0 0
  %6338 = vmatpush1.bf16.msra.mxu0 0
  %6339 = vmatprep.subr.bf16.mxu0 0
  %6340 = vmatpush1.bf16.msra.mxu0 0
  %6341 = vmatprep.subr.bf16.mxu0 0
  %6342 = vmatpush1.bf16.msra.mxu0 0
  %6343 = vmatprep.subr.bf16.mxu0 0
  %6344 = vmatpush1.bf16.msra.mxu0 0
  %6345 = vmatprep.subr.bf16.mxu0 0
  %6346 = vmatpush1.bf16.msra.mxu0 0
  %6347 = vmatprep.subr.bf16.mxu0 0
  %6348 = vmatpush1.bf16.msra.mxu0 0
  %6349 = vmatprep.subr.bf16.mxu0 0
  %6350 = vmatpush1.bf16.msra.mxu0 0
  %6351 = vmatprep.subr.bf16.mxu0 0
  %6352 = vmatpush1.bf16.msra.mxu0 0
  %6353 = vmatprep.subr.bf16.mxu0 0
  %6354 = vmatpush1.bf16.msra.mxu0 0
  %6355 = vmatprep.mubr.bf16.mxu0 0
  %6356 = vmatmul.mubr.bf16.gmra.mrb[0].mxu0 %v6318
  %v6357 = vpop.f32.mrb[0].mxu0
  %v6358 = vadd.f32 0.0, %v6357
  %v6359 = vpop.f32.mrb[0].mxu0
  %v6360 = vpop.f32.mrb[0].mxu0
  %v6361 = vpop.f32.mrb[0].mxu0
  %6362 = vdwg.mxu0
  %6363 = vrot.lane.b32.xlu0 %v991, 64
  %v6364 = vpop.permute.xlu0 %6363
  %v6366 = vsel %vm4297, %v5029, 0
  %v6369 = vsel %vm5071, %v6364, 0
  %6371 = vmatprep.subr.bf16.mxu0 0
  %6372 = vmatpush1.bf16.msra.mxu0 %v6369
  %6373 = vmatprep.subr.bf16.mxu0 0
  %6374 = vmatpush1.bf16.msra.mxu0 0
  %6375 = vmatprep.subr.bf16.mxu0 0
  %6376 = vmatpush1.bf16.msra.mxu0 0
  %6377 = vmatprep.subr.bf16.mxu0 0
  %6378 = vmatpush1.bf16.msra.mxu0 0
  %6379 = vmatprep.subr.bf16.mxu0 0
  %6380 = vmatpush1.bf16.msra.mxu0 0
  %6381 = vmatprep.subr.bf16.mxu0 0
  %6382 = vmatpush1.bf16.msra.mxu0 0
  %6383 = vmatprep.subr.bf16.mxu0 0
  %6384 = vmatpush1.bf16.msra.mxu0 0
  %6385 = vmatprep.subr.bf16.mxu0 0
  %6386 = vmatpush1.bf16.msra.mxu0 0
  %6387 = vmatprep.subr.bf16.mxu0 0
  %6388 = vmatpush1.bf16.msra.mxu0 0
  %6389 = vmatprep.subr.bf16.mxu0 0
  %6390 = vmatpush1.bf16.msra.mxu0 0
  %6391 = vmatprep.subr.bf16.mxu0 0
  %6392 = vmatpush1.bf16.msra.mxu0 0
  %6393 = vmatprep.subr.bf16.mxu0 0
  %6394 = vmatpush1.bf16.msra.mxu0 0
  %6395 = vmatprep.subr.bf16.mxu0 0
  %6396 = vmatpush1.bf16.msra.mxu0 0
  %6397 = vmatprep.subr.bf16.mxu0 0
  %6398 = vmatpush1.bf16.msra.mxu0 0
  %6399 = vmatprep.subr.bf16.mxu0 0
  %6400 = vmatpush1.bf16.msra.mxu0 0
  %6401 = vmatprep.subr.bf16.mxu0 0
  %6402 = vmatpush1.bf16.msra.mxu0 0
  %6403 = vmatprep.mubr.bf16.mxu0 0
  %6404 = vmatmul.mubr.bf16.gmra.mrb[0].mxu0 %v6366
  %v6405 = vpop.f32.mrb[0].mxu0
  %v6406 = vadd.f32 0.0, %v6405
  %v6407 = vpop.f32.mrb[0].mxu0
  %v6408 = vpop.f32.mrb[0].mxu0
  %v6409 = vpop.f32.mrb[0].mxu0
  %6410 = vdwg.mxu0
  %6411 = vrot.lane.b32.xlu0 %v992, 64
  %v6412 = vpop.permute.xlu0 %6411
  %v6414 = vsel %vm4297, %v5030, 0
  %v6417 = vsel %vm5071, %v6412, 0
  %6419 = vmatprep.subr.bf16.mxu0 0
  %6420 = vmatpush1.bf16.msra.mxu0 %v6417
  %6421 = vmatprep.subr.bf16.mxu0 0
  %6422 = vmatpush1.bf16.msra.mxu0 0
  %6423 = vmatprep.subr.bf16.mxu0 0
  %6424 = vmatpush1.bf16.msra.mxu0 0
  %6425 = vmatprep.subr.bf16.mxu0 0
  %6426 = vmatpush1.bf16.msra.mxu0 0
  %6427 = vmatprep.subr.bf16.mxu0 0
  %6428 = vmatpush1.bf16.msra.mxu0 0
  %6429 = vmatprep.subr.bf16.mxu0 0
  %6430 = vmatpush1.bf16.msra.mxu0 0
  %6431 = vmatprep.subr.bf16.mxu0 0
  %6432 = vmatpush1.bf16.msra.mxu0 0
  %6433 = vmatprep.subr.bf16.mxu0 0
  %6434 = vmatpush1.bf16.msra.mxu0 0
  %6435 = vmatprep.subr.bf16.mxu0 0
  %6436 = vmatpush1.bf16.msra.mxu0 0
  %6437 = vmatprep.subr.bf16.mxu0 0
  %6438 = vmatpush1.bf16.msra.mxu0 0
  %6439 = vmatprep.subr.bf16.mxu0 0
  %6440 = vmatpush1.bf16.msra.mxu0 0
  %6441 = vmatprep.subr.bf16.mxu0 0
  %6442 = vmatpush1.bf16.msra.mxu0 0
  %6443 = vmatprep.subr.bf16.mxu0 0
  %6444 = vmatpush1.bf16.msra.mxu0 0
  %6445 = vmatprep.subr.bf16.mxu0 0
  %6446 = vmatpush1.bf16.msra.mxu0 0
  %6447 = vmatprep.subr.bf16.mxu0 0
  %6448 = vmatpush1.bf16.msra.mxu0 0
  %6449 = vmatprep.subr.bf16.mxu0 0
  %6450 = vmatpush1.bf16.msra.mxu0 0
  %6451 = vmatprep.mubr.bf16.mxu0 0
  %6452 = vmatmul.mubr.bf16.gmra.mrb[0].mxu0 %v6414
  %v6453 = vpop.f32.mrb[0].mxu0
  %v6454 = vadd.f32 0.0, %v6453
  %v6455 = vpop.f32.mrb[0].mxu0
  %v6456 = vpop.f32.mrb[0].mxu0
  %v6457 = vpop.f32.mrb[0].mxu0
  %6458 = vdwg.mxu0
  %6459 = vrot.lane.b32.xlu0 %v993, 64
  %v6460 = vpop.permute.xlu0 %6459
  %v6462 = vsel %vm4297, %v5031, 0
  %v6465 = vsel %vm5071, %v6460, 0
  %6467 = vmatprep.subr.bf16.mxu0 0
  %6468 = vmatpush1.bf16.msra.mxu0 %v6465
  %6469 = vmatprep.subr.bf16.mxu0 0
  %6470 = vmatpush1.bf16.msra.mxu0 0
  %6471 = vmatprep.subr.bf16.mxu0 0
  %6472 = vmatpush1.bf16.msra.mxu0 0
  %6473 = vmatprep.subr.bf16.mxu0 0
  %6474 = vmatpush1.bf16.msra.mxu0 0
  %6475 = vmatprep.subr.bf16.mxu0 0
  %6476 = vmatpush1.bf16.msra.mxu0 0
  %6477 = vmatprep.subr.bf16.mxu0 0
  %6478 = vmatpush1.bf16.msra.mxu0 0
  %6479 = vmatprep.subr.bf16.mxu0 0
  %6480 = vmatpush1.bf16.msra.mxu0 0
  %6481 = vmatprep.subr.bf16.mxu0 0
  %6482 = vmatpush1.bf16.msra.mxu0 0
  %6483 = vmatprep.subr.bf16.mxu0 0
  %6484 = vmatpush1.bf16.msra.mxu0 0
  %6485 = vmatprep.subr.bf16.mxu0 0
  %6486 = vmatpush1.bf16.msra.mxu0 0
  %6487 = vmatprep.subr.bf16.mxu0 0
  %6488 = vmatpush1.bf16.msra.mxu0 0
  %6489 = vmatprep.subr.bf16.mxu0 0
  %6490 = vmatpush1.bf16.msra.mxu0 0
  %6491 = vmatprep.subr.bf16.mxu0 0
  %6492 = vmatpush1.bf16.msra.mxu0 0
  %6493 = vmatprep.subr.bf16.mxu0 0
  %6494 = vmatpush1.bf16.msra.mxu0 0
  %6495 = vmatprep.subr.bf16.mxu0 0
  %6496 = vmatpush1.bf16.msra.mxu0 0
  %6497 = vmatprep.subr.bf16.mxu0 0
  %6498 = vmatpush1.bf16.msra.mxu0 0
  %6499 = vmatprep.mubr.bf16.mxu0 0
  %6500 = vmatmul.mubr.bf16.gmra.mrb[0].mxu0 %v6462
  %v6501 = vpop.f32.mrb[0].mxu0
  %v6502 = vadd.f32 0.0, %v6501
  %v6503 = vpop.f32.mrb[0].mxu0
  %v6504 = vpop.f32.mrb[0].mxu0
  %v6505 = vpop.f32.mrb[0].mxu0
  %6506 = vdwg.mxu0
  %6507 = vrot.lane.b32.xlu0 %v994, 64
  %v6508 = vpop.permute.xlu0 %6507
  %v6510 = vsel %vm4297, %v5032, 0
  %v6513 = vsel %vm5071, %v6508, 0
  %6515 = vmatprep.subr.bf16.mxu0 0
  %6516 = vmatpush1.bf16.msra.mxu0 %v6513
  %6517 = vmatprep.subr.bf16.mxu0 0
  %6518 = vmatpush1.bf16.msra.mxu0 0
  %6519 = vmatprep.subr.bf16.mxu0 0
  %6520 = vmatpush1.bf16.msra.mxu0 0
  %6521 = vmatprep.subr.bf16.mxu0 0
  %6522 = vmatpush1.bf16.msra.mxu0 0
  %6523 = vmatprep.subr.bf16.mxu0 0
  %6524 = vmatpush1.bf16.msra.mxu0 0
  %6525 = vmatprep.subr.bf16.mxu0 0
  %6526 = vmatpush1.bf16.msra.mxu0 0
  %6527 = vmatprep.subr.bf16.mxu0 0
  %6528 = vmatpush1.bf16.msra.mxu0 0
  %6529 = vmatprep.subr.bf16.mxu0 0
  %6530 = vmatpush1.bf16.msra.mxu0 0
  %6531 = vmatprep.subr.bf16.mxu0 0
  %6532 = vmatpush1.bf16.msra.mxu0 0
  %6533 = vmatprep.subr.bf16.mxu0 0
  %6534 = vmatpush1.bf16.msra.mxu0 0
  %6535 = vmatprep.subr.bf16.mxu0 0
  %6536 = vmatpush1.bf16.msra.mxu0 0
  %6537 = vmatprep.subr.bf16.mxu0 0
  %6538 = vmatpush1.bf16.msra.mxu0 0
  %6539 = vmatprep.subr.bf16.mxu0 0
  %6540 = vmatpush1.bf16.msra.mxu0 0
  %6541 = vmatprep.subr.bf16.mxu0 0
  %6542 = vmatpush1.bf16.msra.mxu0 0
  %6543 = vmatprep.subr.bf16.mxu0 0
  %6544 = vmatpush1.bf16.msra.mxu0 0
  %6545 = vmatprep.subr.bf16.mxu0 0
  %6546 = vmatpush1.bf16.msra.mxu0 0
  %6547 = vmatprep.mubr.bf16.mxu0 0
  %6548 = vmatmul.mubr.bf16.gmra.mrb[0].mxu0 %v6510
  %v6549 = vpop.f32.mrb[0].mxu0
  %v6550 = vadd.f32 0.0, %v6549
  %v6551 = vpop.f32.mrb[0].mxu0
  %v6552 = vpop.f32.mrb[0].mxu0
  %v6553 = vpop.f32.mrb[0].mxu0
  %6554 = vdwg.mxu0
  %6555 = vrot.lane.b32.xlu0 %v995, 64
  %v6556 = vpop.permute.xlu0 %6555
  %v6558 = vsel %vm4297, %v5033, 0
  %v6561 = vsel %vm5071, %v6556, 0
  %6563 = vmatprep.subr.bf16.mxu0 0
  %6564 = vmatpush1.bf16.msra.mxu0 %v6561
  %6565 = vmatprep.subr.bf16.mxu0 0
  %6566 = vmatpush1.bf16.msra.mxu0 0
  %6567 = vmatprep.subr.bf16.mxu0 0
  %6568 = vmatpush1.bf16.msra.mxu0 0
  %6569 = vmatprep.subr.bf16.mxu0 0
  %6570 = vmatpush1.bf16.msra.mxu0 0
  %6571 = vmatprep.subr.bf16.mxu0 0
  %6572 = vmatpush1.bf16.msra.mxu0 0
  %6573 = vmatprep.subr.bf16.mxu0 0
  %6574 = vmatpush1.bf16.msra.mxu0 0
  %6575 = vmatprep.subr.bf16.mxu0 0
  %6576 = vmatpush1.bf16.msra.mxu0 0
  %6577 = vmatprep.subr.bf16.mxu0 0
  %6578 = vmatpush1.bf16.msra.mxu0 0
  %6579 = vmatprep.subr.bf16.mxu0 0
  %6580 = vmatpush1.bf16.msra.mxu0 0
  %6581 = vmatprep.subr.bf16.mxu0 0
  %6582 = vmatpush1.bf16.msra.mxu0 0
  %6583 = vmatprep.subr.bf16.mxu0 0
  %6584 = vmatpush1.bf16.msra.mxu0 0
  %6585 = vmatprep.subr.bf16.mxu0 0
  %6586 = vmatpush1.bf16.msra.mxu0 0
  %6587 = vmatprep.subr.bf16.mxu0 0
  %6588 = vmatpush1.bf16.msra.mxu0 0
  %6589 = vmatprep.subr.bf16.mxu0 0
  %6590 = vmatpush1.bf16.msra.mxu0 0
  %6591 = vmatprep.subr.bf16.mxu0 0
  %6592 = vmatpush1.bf16.msra.mxu0 0
  %6593 = vmatprep.subr.bf16.mxu0 0
  %6594 = vmatpush1.bf16.msra.mxu0 0
  %6595 = vmatprep.mubr.bf16.mxu0 0
  %6596 = vmatmul.mubr.bf16.gmra.mrb[0].mxu0 %v6558
  %v6597 = vpop.f32.mrb[0].mxu0
  %v6598 = vadd.f32 0.0, %v6597
  %v6599 = vpop.f32.mrb[0].mxu0
  %v6600 = vpop.f32.mrb[0].mxu0
  %v6601 = vpop.f32.mrb[0].mxu0
  %6602 = vdwg.mxu0
  %6603 = vrot.lane.b32.xlu0 %v996, 64
  %v6604 = vpop.permute.xlu0 %6603
  %v6606 = vsel %vm4297, %v5034, 0
  %v6609 = vsel %vm5071, %v6604, 0
  %6611 = vmatprep.subr.bf16.mxu0 0
  %6612 = vmatpush1.bf16.msra.mxu0 %v6609
  %6613 = vmatprep.subr.bf16.mxu0 0
  %6614 = vmatpush1.bf16.msra.mxu0 0
  %6615 = vmatprep.subr.bf16.mxu0 0
  %6616 = vmatpush1.bf16.msra.mxu0 0
  %6617 = vmatprep.subr.bf16.mxu0 0
  %6618 = vmatpush1.bf16.msra.mxu0 0
  %6619 = vmatprep.subr.bf16.mxu0 0
  %6620 = vmatpush1.bf16.msra.mxu0 0
  %6621 = vmatprep.subr.bf16.mxu0 0
  %6622 = vmatpush1.bf16.msra.mxu0 0
  %6623 = vmatprep.subr.bf16.mxu0 0
  %6624 = vmatpush1.bf16.msra.mxu0 0
  %6625 = vmatprep.subr.bf16.mxu0 0
  %6626 = vmatpush1.bf16.msra.mxu0 0
  %6627 = vmatprep.subr.bf16.mxu0 0
  %6628 = vmatpush1.bf16.msra.mxu0 0
  %6629 = vmatprep.subr.bf16.mxu0 0
  %6630 = vmatpush1.bf16.msra.mxu0 0
  %6631 = vmatprep.subr.bf16.mxu0 0
  %6632 = vmatpush1.bf16.msra.mxu0 0
  %6633 = vmatprep.subr.bf16.mxu0 0
  %6634 = vmatpush1.bf16.msra.mxu0 0
  %6635 = vmatprep.subr.bf16.mxu0 0
  %6636 = vmatpush1.bf16.msra.mxu0 0
  %6637 = vmatprep.subr.bf16.mxu0 0
  %6638 = vmatpush1.bf16.msra.mxu0 0
  %6639 = vmatprep.subr.bf16.mxu0 0
  %6640 = vmatpush1.bf16.msra.mxu0 0
  %6641 = vmatprep.subr.bf16.mxu0 0
  %6642 = vmatpush1.bf16.msra.mxu0 0
  %6643 = vmatprep.mubr.bf16.mxu0 0
  %6644 = vmatmul.mubr.bf16.gmra.mrb[0].mxu0 %v6606
  %v6645 = vpop.f32.mrb[0].mxu0
  %v6646 = vadd.f32 0.0, %v6645
  %v6647 = vpop.f32.mrb[0].mxu0
  %v6648 = vpop.f32.mrb[0].mxu0
  %v6649 = vpop.f32.mrb[0].mxu0
  %6650 = vdwg.mxu0
  %6651 = vrot.lane.b32.xlu0 %v997, 64
  %v6652 = vpop.permute.xlu0 %6651
  %v6654 = vsel %vm4297, %v5035, 0
  %v6657 = vsel %vm5071, %v6652, 0
  %6659 = vmatprep.subr.bf16.mxu0 0
  %6660 = vmatpush1.bf16.msra.mxu0 %v6657
  %6661 = vmatprep.subr.bf16.mxu0 0
  %6662 = vmatpush1.bf16.msra.mxu0 0
  %6663 = vmatprep.subr.bf16.mxu0 0
  %6664 = vmatpush1.bf16.msra.mxu0 0
  %6665 = vmatprep.subr.bf16.mxu0 0
  %6666 = vmatpush1.bf16.msra.mxu0 0
  %6667 = vmatprep.subr.bf16.mxu0 0
  %6668 = vmatpush1.bf16.msra.mxu0 0
  %6669 = vmatprep.subr.bf16.mxu0 0
  %6670 = vmatpush1.bf16.msra.mxu0 0
  %6671 = vmatprep.subr.bf16.mxu0 0
  %6672 = vmatpush1.bf16.msra.mxu0 0
  %6673 = vmatprep.subr.bf16.mxu0 0
  %6674 = vmatpush1.bf16.msra.mxu0 0
  %6675 = vmatprep.subr.bf16.mxu0 0
  %6676 = vmatpush1.bf16.msra.mxu0 0
  %6677 = vmatprep.subr.bf16.mxu0 0
  %6678 = vmatpush1.bf16.msra.mxu0 0
  %6679 = vmatprep.subr.bf16.mxu0 0
  %6680 = vmatpush1.bf16.msra.mxu0 0
  %6681 = vmatprep.subr.bf16.mxu0 0
  %6682 = vmatpush1.bf16.msra.mxu0 0
  %6683 = vmatprep.subr.bf16.mxu0 0
  %6684 = vmatpush1.bf16.msra.mxu0 0
  %6685 = vmatprep.subr.bf16.mxu0 0
  %6686 = vmatpush1.bf16.msra.mxu0 0
  %6687 = vmatprep.subr.bf16.mxu0 0
  %6688 = vmatpush1.bf16.msra.mxu0 0
  %6689 = vmatprep.subr.bf16.mxu0 0
  %6690 = vmatpush1.bf16.msra.mxu0 0
  %6691 = vmatprep.mubr.bf16.mxu0 0
  %6692 = vmatmul.mubr.bf16.gmra.mrb[0].mxu0 %v6654
  %v6693 = vpop.f32.mrb[0].mxu0
  %v6694 = vadd.f32 0.0, %v6693
  %v6695 = vpop.f32.mrb[0].mxu0
  %v6696 = vpop.f32.mrb[0].mxu0
  %v6697 = vpop.f32.mrb[0].mxu0
  %6698 = vdwg.mxu0
  %6699 = vrot.lane.b32.xlu0 %v998, 64
  %v6700 = vpop.permute.xlu0 %6699
  %v6702 = vsel %vm4297, %v5036, 0
  %v6705 = vsel %vm5071, %v6700, 0
  %6707 = vmatprep.subr.bf16.mxu0 0
  %6708 = vmatpush1.bf16.msra.mxu0 %v6705
  %6709 = vmatprep.subr.bf16.mxu0 0
  %6710 = vmatpush1.bf16.msra.mxu0 0
  %6711 = vmatprep.subr.bf16.mxu0 0
  %6712 = vmatpush1.bf16.msra.mxu0 0
  %6713 = vmatprep.subr.bf16.mxu0 0
  %6714 = vmatpush1.bf16.msra.mxu0 0
  %6715 = vmatprep.subr.bf16.mxu0 0
  %6716 = vmatpush1.bf16.msra.mxu0 0
  %6717 = vmatprep.subr.bf16.mxu0 0
  %6718 = vmatpush1.bf16.msra.mxu0 0
  %6719 = vmatprep.subr.bf16.mxu0 0
  %6720 = vmatpush1.bf16.msra.mxu0 0
  %6721 = vmatprep.subr.bf16.mxu0 0
  %6722 = vmatpush1.bf16.msra.mxu0 0
  %6723 = vmatprep.subr.bf16.mxu0 0
  %6724 = vmatpush1.bf16.msra.mxu0 0
  %6725 = vmatprep.subr.bf16.mxu0 0
  %6726 = vmatpush1.bf16.msra.mxu0 0
  %6727 = vmatprep.subr.bf16.mxu0 0
  %6728 = vmatpush1.bf16.msra.mxu0 0
  %6729 = vmatprep.subr.bf16.mxu0 0
  %6730 = vmatpush1.bf16.msra.mxu0 0
  %6731 = vmatprep.subr.bf16.mxu0 0
  %6732 = vmatpush1.bf16.msra.mxu0 0
  %6733 = vmatprep.subr.bf16.mxu0 0
  %6734 = vmatpush1.bf16.msra.mxu0 0
  %6735 = vmatprep.subr.bf16.mxu0 0
  %6736 = vmatpush1.bf16.msra.mxu0 0
  %6737 = vmatprep.subr.bf16.mxu0 0
  %6738 = vmatpush1.bf16.msra.mxu0 0
  %6739 = vmatprep.mubr.bf16.mxu0 0
  %6740 = vmatmul.mubr.bf16.gmra.mrb[0].mxu0 %v6702
  %v6741 = vpop.f32.mrb[0].mxu0
  %v6742 = vadd.f32 0.0, %v6741
  %v6743 = vpop.f32.mrb[0].mxu0
  %v6744 = vpop.f32.mrb[0].mxu0
  %v6745 = vpop.f32.mrb[0].mxu0
  %6746 = vdwg.mxu0
  %6747 = vrot.lane.b32.xlu0 %v999, 64
  %v6748 = vpop.permute.xlu0 %6747
  %v6750 = vsel %vm4297, %v5037, 0
  %v6753 = vsel %vm5071, %v6748, 0
  %6755 = vmatprep.subr.bf16.mxu0 0
  %6756 = vmatpush1.bf16.msra.mxu0 %v6753
  %6757 = vmatprep.subr.bf16.mxu0 0
  %6758 = vmatpush1.bf16.msra.mxu0 0
  %6759 = vmatprep.subr.bf16.mxu0 0
  %6760 = vmatpush1.bf16.msra.mxu0 0
  %6761 = vmatprep.subr.bf16.mxu0 0
  %6762 = vmatpush1.bf16.msra.mxu0 0
  %6763 = vmatprep.subr.bf16.mxu0 0
  %6764 = vmatpush1.bf16.msra.mxu0 0
  %6765 = vmatprep.subr.bf16.mxu0 0
  %6766 = vmatpush1.bf16.msra.mxu0 0
  %6767 = vmatprep.subr.bf16.mxu0 0
  %6768 = vmatpush1.bf16.msra.mxu0 0
  %6769 = vmatprep.subr.bf16.mxu0 0
  %6770 = vmatpush1.bf16.msra.mxu0 0
  %6771 = vmatprep.subr.bf16.mxu0 0
  %6772 = vmatpush1.bf16.msra.mxu0 0
  %6773 = vmatprep.subr.bf16.mxu0 0
  %6774 = vmatpush1.bf16.msra.mxu0 0
  %6775 = vmatprep.subr.bf16.mxu0 0
  %6776 = vmatpush1.bf16.msra.mxu0 0
  %6777 = vmatprep.subr.bf16.mxu0 0
  %6778 = vmatpush1.bf16.msra.mxu0 0
  %6779 = vmatprep.subr.bf16.mxu0 0
  %6780 = vmatpush1.bf16.msra.mxu0 0
  %6781 = vmatprep.subr.bf16.mxu0 0
  %6782 = vmatpush1.bf16.msra.mxu0 0
  %6783 = vmatprep.subr.bf16.mxu0 0
  %6784 = vmatpush1.bf16.msra.mxu0 0
  %6785 = vmatprep.subr.bf16.mxu0 0
  %6786 = vmatpush1.bf16.msra.mxu0 0
  %6787 = vmatprep.mubr.bf16.mxu0 0
  %6788 = vmatmul.mubr.bf16.gmra.mrb[0].mxu0 %v6750
  %v6789 = vpop.f32.mrb[0].mxu0
  %v6790 = vadd.f32 0.0, %v6789
  %v6791 = vpop.f32.mrb[0].mxu0
  %v6792 = vpop.f32.mrb[0].mxu0
  %v6793 = vpop.f32.mrb[0].mxu0
  %6794 = vdwg.mxu0
  %6795 = vrot.lane.b32.xlu0 %v1000, 64
  %v6796 = vpop.permute.xlu0 %6795
  %v6798 = vsel %vm4297, %v5038, 0
  %v6801 = vsel %vm5071, %v6796, 0
  %6803 = vmatprep.subr.bf16.mxu0 0
  %6804 = vmatpush1.bf16.msra.mxu0 %v6801
  %6805 = vmatprep.subr.bf16.mxu0 0
  %6806 = vmatpush1.bf16.msra.mxu0 0
  %6807 = vmatprep.subr.bf16.mxu0 0
  %6808 = vmatpush1.bf16.msra.mxu0 0
  %6809 = vmatprep.subr.bf16.mxu0 0
  %6810 = vmatpush1.bf16.msra.mxu0 0
  %6811 = vmatprep.subr.bf16.mxu0 0
  %6812 = vmatpush1.bf16.msra.mxu0 0
  %6813 = vmatprep.subr.bf16.mxu0 0
  %6814 = vmatpush1.bf16.msra.mxu0 0
  %6815 = vmatprep.subr.bf16.mxu0 0
  %6816 = vmatpush1.bf16.msra.mxu0 0
  %6817 = vmatprep.subr.bf16.mxu0 0
  %6818 = vmatpush1.bf16.msra.mxu0 0
  %6819 = vmatprep.subr.bf16.mxu0 0
  %6820 = vmatpush1.bf16.msra.mxu0 0
  %6821 = vmatprep.subr.bf16.mxu0 0
  %6822 = vmatpush1.bf16.msra.mxu0 0
  %6823 = vmatprep.subr.bf16.mxu0 0
  %6824 = vmatpush1.bf16.msra.mxu0 0
  %6825 = vmatprep.subr.bf16.mxu0 0
  %6826 = vmatpush1.bf16.msra.mxu0 0
  %6827 = vmatprep.subr.bf16.mxu0 0
  %6828 = vmatpush1.bf16.msra.mxu0 0
  %6829 = vmatprep.subr.bf16.mxu0 0
  %6830 = vmatpush1.bf16.msra.mxu0 0
  %6831 = vmatprep.subr.bf16.mxu0 0
  %6832 = vmatpush1.bf16.msra.mxu0 0
  %6833 = vmatprep.subr.bf16.mxu0 0
  %6834 = vmatpush1.bf16.msra.mxu0 0
  %6835 = vmatprep.mubr.bf16.mxu0 0
  %6836 = vmatmul.mubr.bf16.gmra.mrb[0].mxu0 %v6798
  %v6837 = vpop.f32.mrb[0].mxu0
  %v6838 = vadd.f32 0.0, %v6837
  %v6839 = vpop.f32.mrb[0].mxu0
  %v6840 = vpop.f32.mrb[0].mxu0
  %v6841 = vpop.f32.mrb[0].mxu0
  %6842 = vdwg.mxu0
  %6843 = vrot.lane.b32.xlu0 %v1001, 64
  %v6844 = vpop.permute.xlu0 %6843
  %v6846 = vsel %vm4297, %v5039, 0
  %v6849 = vsel %vm5071, %v6844, 0
  %6851 = vmatprep.subr.bf16.mxu0 0
  %6852 = vmatpush1.bf16.msra.mxu0 %v6849
  %6853 = vmatprep.subr.bf16.mxu0 0
  %6854 = vmatpush1.bf16.msra.mxu0 0
  %6855 = vmatprep.subr.bf16.mxu0 0
  %6856 = vmatpush1.bf16.msra.mxu0 0
  %6857 = vmatprep.subr.bf16.mxu0 0
  %6858 = vmatpush1.bf16.msra.mxu0 0
  %6859 = vmatprep.subr.bf16.mxu0 0
  %6860 = vmatpush1.bf16.msra.mxu0 0
  %6861 = vmatprep.subr.bf16.mxu0 0
  %6862 = vmatpush1.bf16.msra.mxu0 0
  %6863 = vmatprep.subr.bf16.mxu0 0
  %6864 = vmatpush1.bf16.msra.mxu0 0
  %6865 = vmatprep.subr.bf16.mxu0 0
  %6866 = vmatpush1.bf16.msra.mxu0 0
  %6867 = vmatprep.subr.bf16.mxu0 0
  %6868 = vmatpush1.bf16.msra.mxu0 0
  %6869 = vmatprep.subr.bf16.mxu0 0
  %6870 = vmatpush1.bf16.msra.mxu0 0
  %6871 = vmatprep.subr.bf16.mxu0 0
  %6872 = vmatpush1.bf16.msra.mxu0 0
  %6873 = vmatprep.subr.bf16.mxu0 0
  %6874 = vmatpush1.bf16.msra.mxu0 0
  %6875 = vmatprep.subr.bf16.mxu0 0
  %6876 = vmatpush1.bf16.msra.mxu0 0
  %6877 = vmatprep.subr.bf16.mxu0 0
  %6878 = vmatpush1.bf16.msra.mxu0 0
  %6879 = vmatprep.subr.bf16.mxu0 0
  %6880 = vmatpush1.bf16.msra.mxu0 0
  %6881 = vmatprep.subr.bf16.mxu0 0
  %6882 = vmatpush1.bf16.msra.mxu0 0
  %6883 = vmatprep.mubr.bf16.mxu0 0
  %6884 = vmatmul.mubr.bf16.gmra.mrb[0].mxu0 %v6846
  %v6885 = vpop.f32.mrb[0].mxu0
  %v6886 = vadd.f32 0.0, %v6885
  %v6887 = vpop.f32.mrb[0].mxu0
  %v6888 = vpop.f32.mrb[0].mxu0
  %v6889 = vpop.f32.mrb[0].mxu0
  %6890 = vdwg.mxu0
  %6891 = vrot.lane.b32.xlu0 %v1002, 64
  %v6892 = vpop.permute.xlu0 %6891
  %v6894 = vsel %vm4297, %v5040, 0
  %v6897 = vsel %vm5071, %v6892, 0
  %6899 = vmatprep.subr.bf16.mxu0 0
  %6900 = vmatpush1.bf16.msra.mxu0 %v6897
  %6901 = vmatprep.subr.bf16.mxu0 0
  %6902 = vmatpush1.bf16.msra.mxu0 0
  %6903 = vmatprep.subr.bf16.mxu0 0
  %6904 = vmatpush1.bf16.msra.mxu0 0
  %6905 = vmatprep.subr.bf16.mxu0 0
  %6906 = vmatpush1.bf16.msra.mxu0 0
  %6907 = vmatprep.subr.bf16.mxu0 0
  %6908 = vmatpush1.bf16.msra.mxu0 0
  %6909 = vmatprep.subr.bf16.mxu0 0
  %6910 = vmatpush1.bf16.msra.mxu0 0
  %6911 = vmatprep.subr.bf16.mxu0 0
  %6912 = vmatpush1.bf16.msra.mxu0 0
  %6913 = vmatprep.subr.bf16.mxu0 0
  %6914 = vmatpush1.bf16.msra.mxu0 0
  %6915 = vmatprep.subr.bf16.mxu0 0
  %6916 = vmatpush1.bf16.msra.mxu0 0
  %6917 = vmatprep.subr.bf16.mxu0 0
  %6918 = vmatpush1.bf16.msra.mxu0 0
  %6919 = vmatprep.subr.bf16.mxu0 0
  %6920 = vmatpush1.bf16.msra.mxu0 0
  %6921 = vmatprep.subr.bf16.mxu0 0
  %6922 = vmatpush1.bf16.msra.mxu0 0
  %6923 = vmatprep.subr.bf16.mxu0 0
  %6924 = vmatpush1.bf16.msra.mxu0 0
  %6925 = vmatprep.subr.bf16.mxu0 0
  %6926 = vmatpush1.bf16.msra.mxu0 0
  %6927 = vmatprep.subr.bf16.mxu0 0
  %6928 = vmatpush1.bf16.msra.mxu0 0
  %6929 = vmatprep.subr.bf16.mxu0 0
  %6930 = vmatpush1.bf16.msra.mxu0 0
  %6931 = vmatprep.mubr.bf16.mxu0 0
  %6932 = vmatmul.mubr.bf16.gmra.mrb[0].mxu0 %v6894
  %v6933 = vpop.f32.mrb[0].mxu0
  %v6934 = vadd.f32 0.0, %v6933
  %v6935 = vpop.f32.mrb[0].mxu0
  %v6936 = vpop.f32.mrb[0].mxu0
  %v6937 = vpop.f32.mrb[0].mxu0
  %6938 = vdwg.mxu0
  %6939 = vrot.lane.b32.xlu0 %v1003, 64
  %v6940 = vpop.permute.xlu0 %6939
  %v6942 = vsel %vm4297, %v5041, 0
  %v6945 = vsel %vm5071, %v6940, 0
  %6947 = vmatprep.subr.bf16.mxu0 0
  %6948 = vmatpush1.bf16.msra.mxu0 %v6945
  %6949 = vmatprep.subr.bf16.mxu0 0
  %6950 = vmatpush1.bf16.msra.mxu0 0
  %6951 = vmatprep.subr.bf16.mxu0 0
  %6952 = vmatpush1.bf16.msra.mxu0 0
  %6953 = vmatprep.subr.bf16.mxu0 0
  %6954 = vmatpush1.bf16.msra.mxu0 0
  %6955 = vmatprep.subr.bf16.mxu0 0
  %6956 = vmatpush1.bf16.msra.mxu0 0
  %6957 = vmatprep.subr.bf16.mxu0 0
  %6958 = vmatpush1.bf16.msra.mxu0 0
  %6959 = vmatprep.subr.bf16.mxu0 0
  %6960 = vmatpush1.bf16.msra.mxu0 0
  %6961 = vmatprep.subr.bf16.mxu0 0
  %6962 = vmatpush1.bf16.msra.mxu0 0
  %6963 = vmatprep.subr.bf16.mxu0 0
  %6964 = vmatpush1.bf16.msra.mxu0 0
  %6965 = vmatprep.subr.bf16.mxu0 0
  %6966 = vmatpush1.bf16.msra.mxu0 0
  %6967 = vmatprep.subr.bf16.mxu0 0
  %6968 = vmatpush1.bf16.msra.mxu0 0
  %6969 = vmatprep.subr.bf16.mxu0 0
  %6970 = vmatpush1.bf16.msra.mxu0 0
  %6971 = vmatprep.subr.bf16.mxu0 0
  %6972 = vmatpush1.bf16.msra.mxu0 0
  %6973 = vmatprep.subr.bf16.mxu0 0
  %6974 = vmatpush1.bf16.msra.mxu0 0
  %6975 = vmatprep.subr.bf16.mxu0 0
  %6976 = vmatpush1.bf16.msra.mxu0 0
  %6977 = vmatprep.subr.bf16.mxu0 0
  %6978 = vmatpush1.bf16.msra.mxu0 0
  %6979 = vmatprep.mubr.bf16.mxu0 0
  %6980 = vmatmul.mubr.bf16.gmra.mrb[0].mxu0 %v6942
  %v6981 = vpop.f32.mrb[0].mxu0
  %v6982 = vadd.f32 0.0, %v6981
  %v6983 = vpop.f32.mrb[0].mxu0
  %v6984 = vpop.f32.mrb[0].mxu0
  %v6985 = vpop.f32.mrb[0].mxu0
  %6986 = vdwg.mxu0
  %6987 = vrot.lane.b32.xlu0 %v1004, 64
  %v6988 = vpop.permute.xlu0 %6987
  %v6990 = vsel %vm4297, %v5042, 0
  %v6993 = vsel %vm5071, %v6988, 0
  %6995 = vmatprep.subr.bf16.mxu0 0
  %6996 = vmatpush1.bf16.msra.mxu0 %v6993
  %6997 = vmatprep.subr.bf16.mxu0 0
  %6998 = vmatpush1.bf16.msra.mxu0 0
  %6999 = vmatprep.subr.bf16.mxu0 0
  %7000 = vmatpush1.bf16.msra.mxu0 0
  %7001 = vmatprep.subr.bf16.mxu0 0
  %7002 = vmatpush1.bf16.msra.mxu0 0
  %7003 = vmatprep.subr.bf16.mxu0 0
  %7004 = vmatpush1.bf16.msra.mxu0 0
  %7005 = vmatprep.subr.bf16.mxu0 0
  %7006 = vmatpush1.bf16.msra.mxu0 0
  %7007 = vmatprep.subr.bf16.mxu0 0
  %7008 = vmatpush1.bf16.msra.mxu0 0
  %7009 = vmatprep.subr.bf16.mxu0 0
  %7010 = vmatpush1.bf16.msra.mxu0 0
  %7011 = vmatprep.subr.bf16.mxu0 0
  %7012 = vmatpush1.bf16.msra.mxu0 0
  %7013 = vmatprep.subr.bf16.mxu0 0
  %7014 = vmatpush1.bf16.msra.mxu0 0
  %7015 = vmatprep.subr.bf16.mxu0 0
  %7016 = vmatpush1.bf16.msra.mxu0 0
  %7017 = vmatprep.subr.bf16.mxu0 0
  %7018 = vmatpush1.bf16.msra.mxu0 0
  %7019 = vmatprep.subr.bf16.mxu0 0
  %7020 = vmatpush1.bf16.msra.mxu0 0
  %7021 = vmatprep.subr.bf16.mxu0 0
  %7022 = vmatpush1.bf16.msra.mxu0 0
  %7023 = vmatprep.subr.bf16.mxu0 0
  %7024 = vmatpush1.bf16.msra.mxu0 0
  %7025 = vmatprep.subr.bf16.mxu0 0
  %7026 = vmatpush1.bf16.msra.mxu0 0
  %7027 = vmatprep.mubr.bf16.mxu0 0
  %7028 = vmatmul.mubr.bf16.gmra.mrb[0].mxu0 %v6990
  %v7029 = vpop.f32.mrb[0].mxu0
  %v7030 = vadd.f32 0.0, %v7029
  %v7031 = vpop.f32.mrb[0].mxu0
  %v7032 = vpop.f32.mrb[0].mxu0
  %v7033 = vpop.f32.mrb[0].mxu0
  %7034 = vdwg.mxu0
  %7035 = vrot.lane.b32.xlu0 %v1005, 64
  %v7036 = vpop.permute.xlu0 %7035
  %v7038 = vsel %vm4297, %v5043, 0
  %v7041 = vsel %vm5071, %v7036, 0
  %7043 = vmatprep.subr.bf16.mxu0 0
  %7044 = vmatpush1.bf16.msra.mxu0 %v7041
  %7045 = vmatprep.subr.bf16.mxu0 0
  %7046 = vmatpush1.bf16.msra.mxu0 0
  %7047 = vmatprep.subr.bf16.mxu0 0
  %7048 = vmatpush1.bf16.msra.mxu0 0
  %7049 = vmatprep.subr.bf16.mxu0 0
  %7050 = vmatpush1.bf16.msra.mxu0 0
  %7051 = vmatprep.subr.bf16.mxu0 0
  %7052 = vmatpush1.bf16.msra.mxu0 0
  %7053 = vmatprep.subr.bf16.mxu0 0
  %7054 = vmatpush1.bf16.msra.mxu0 0
  %7055 = vmatprep.subr.bf16.mxu0 0
  %7056 = vmatpush1.bf16.msra.mxu0 0
  %7057 = vmatprep.subr.bf16.mxu0 0
  %7058 = vmatpush1.bf16.msra.mxu0 0
  %7059 = vmatprep.subr.bf16.mxu0 0
  %7060 = vmatpush1.bf16.msra.mxu0 0
  %7061 = vmatprep.subr.bf16.mxu0 0
  %7062 = vmatpush1.bf16.msra.mxu0 0
  %7063 = vmatprep.subr.bf16.mxu0 0
  %7064 = vmatpush1.bf16.msra.mxu0 0
  %7065 = vmatprep.subr.bf16.mxu0 0
  %7066 = vmatpush1.bf16.msra.mxu0 0
  %7067 = vmatprep.subr.bf16.mxu0 0
  %7068 = vmatpush1.bf16.msra.mxu0 0
  %7069 = vmatprep.subr.bf16.mxu0 0
  %7070 = vmatpush1.bf16.msra.mxu0 0
  %7071 = vmatprep.subr.bf16.mxu0 0
  %7072 = vmatpush1.bf16.msra.mxu0 0
  %7073 = vmatprep.subr.bf16.mxu0 0
  %7074 = vmatpush1.bf16.msra.mxu0 0
  %7075 = vmatprep.mubr.bf16.mxu0 0
  %7076 = vmatmul.mubr.bf16.gmra.mrb[0].mxu0 %v7038
  %v7077 = vpop.f32.mrb[0].mxu0
  %v7078 = vadd.f32 0.0, %v7077
  %v7079 = vpop.f32.mrb[0].mxu0
  %v7080 = vpop.f32.mrb[0].mxu0
  %v7081 = vpop.f32.mrb[0].mxu0
  %7082 = vdwg.mxu0
  %7083 = vrot.lane.b32.xlu0 %v1006, 64
  %v7084 = vpop.permute.xlu0 %7083
  %v7086 = vsel %vm4297, %v5044, 0
  %v7089 = vsel %vm5071, %v7084, 0
  %7091 = vmatprep.subr.bf16.mxu0 0
  %7092 = vmatpush1.bf16.msra.mxu0 %v7089
  %7093 = vmatprep.subr.bf16.mxu0 0
  %7094 = vmatpush1.bf16.msra.mxu0 0
  %7095 = vmatprep.subr.bf16.mxu0 0
  %7096 = vmatpush1.bf16.msra.mxu0 0
  %7097 = vmatprep.subr.bf16.mxu0 0
  %7098 = vmatpush1.bf16.msra.mxu0 0
  %7099 = vmatprep.subr.bf16.mxu0 0
  %7100 = vmatpush1.bf16.msra.mxu0 0
  %7101 = vmatprep.subr.bf16.mxu0 0
  %7102 = vmatpush1.bf16.msra.mxu0 0
  %7103 = vmatprep.subr.bf16.mxu0 0
  %7104 = vmatpush1.bf16.msra.mxu0 0
  %7105 = vmatprep.subr.bf16.mxu0 0
  %7106 = vmatpush1.bf16.msra.mxu0 0
  %7107 = vmatprep.subr.bf16.mxu0 0
  %7108 = vmatpush1.bf16.msra.mxu0 0
  %7109 = vmatprep.subr.bf16.mxu0 0
  %7110 = vmatpush1.bf16.msra.mxu0 0
  %7111 = vmatprep.subr.bf16.mxu0 0
  %7112 = vmatpush1.bf16.msra.mxu0 0
  %7113 = vmatprep.subr.bf16.mxu0 0
  %7114 = vmatpush1.bf16.msra.mxu0 0
  %7115 = vmatprep.subr.bf16.mxu0 0
  %7116 = vmatpush1.bf16.msra.mxu0 0
  %7117 = vmatprep.subr.bf16.mxu0 0
  %7118 = vmatpush1.bf16.msra.mxu0 0
  %7119 = vmatprep.subr.bf16.mxu0 0
  %7120 = vmatpush1.bf16.msra.mxu0 0
  %7121 = vmatprep.subr.bf16.mxu0 0
  %7122 = vmatpush1.bf16.msra.mxu0 0
  %7123 = vmatprep.mubr.bf16.mxu0 0
  %7124 = vmatmul.mubr.bf16.gmra.mrb[0].mxu0 %v7086
  %v7125 = vpop.f32.mrb[0].mxu0
  %v7126 = vadd.f32 0.0, %v7125
  %v7127 = vpop.f32.mrb[0].mxu0
  %v7128 = vpop.f32.mrb[0].mxu0
  %v7129 = vpop.f32.mrb[0].mxu0
  %7130 = vdwg.mxu0
  %7131 = vrot.lane.b32.xlu0 %v1007, 64
  %v7132 = vpop.permute.xlu0 %7131
  %v7134 = vsel %vm4297, %v5045, 0
  %v7137 = vsel %vm5071, %v7132, 0
  %7139 = vmatprep.subr.bf16.mxu0 0
  %7140 = vmatpush1.bf16.msra.mxu0 %v7137
  %7141 = vmatprep.subr.bf16.mxu0 0
  %7142 = vmatpush1.bf16.msra.mxu0 0
  %7143 = vmatprep.subr.bf16.mxu0 0
  %7144 = vmatpush1.bf16.msra.mxu0 0
  %7145 = vmatprep.subr.bf16.mxu0 0
  %7146 = vmatpush1.bf16.msra.mxu0 0
  %7147 = vmatprep.subr.bf16.mxu0 0
  %7148 = vmatpush1.bf16.msra.mxu0 0
  %7149 = vmatprep.subr.bf16.mxu0 0
  %7150 = vmatpush1.bf16.msra.mxu0 0
  %7151 = vmatprep.subr.bf16.mxu0 0
  %7152 = vmatpush1.bf16.msra.mxu0 0
  %7153 = vmatprep.subr.bf16.mxu0 0
  %7154 = vmatpush1.bf16.msra.mxu0 0
  %7155 = vmatprep.subr.bf16.mxu0 0
  %7156 = vmatpush1.bf16.msra.mxu0 0
  %7157 = vmatprep.subr.bf16.mxu0 0
  %7158 = vmatpush1.bf16.msra.mxu0 0
  %7159 = vmatprep.subr.bf16.mxu0 0
  %7160 = vmatpush1.bf16.msra.mxu0 0
  %7161 = vmatprep.subr.bf16.mxu0 0
  %7162 = vmatpush1.bf16.msra.mxu0 0
  %7163 = vmatprep.subr.bf16.mxu0 0
  %7164 = vmatpush1.bf16.msra.mxu0 0
  %7165 = vmatprep.subr.bf16.mxu0 0
  %7166 = vmatpush1.bf16.msra.mxu0 0
  %7167 = vmatprep.subr.bf16.mxu0 0
  %7168 = vmatpush1.bf16.msra.mxu0 0
  %7169 = vmatprep.subr.bf16.mxu0 0
  %7170 = vmatpush1.bf16.msra.mxu0 0
  %7171 = vmatprep.mubr.bf16.mxu0 0
  %7172 = vmatmul.mubr.bf16.gmra.mrb[0].mxu0 %v7134
  %v7173 = vpop.f32.mrb[0].mxu0
  %v7174 = vadd.f32 0.0, %v7173
  %v7175 = vpop.f32.mrb[0].mxu0
  %v7176 = vpop.f32.mrb[0].mxu0
  %v7177 = vpop.f32.mrb[0].mxu0
  %7178 = vdwg.mxu0
  %7179 = vrot.lane.b32.xlu0 %v1008, 64
  %v7180 = vpop.permute.xlu0 %7179
  %v7182 = vsel %vm4297, %v5046, 0
  %v7185 = vsel %vm5071, %v7180, 0
  %7187 = vmatprep.subr.bf16.mxu0 0
  %7188 = vmatpush1.bf16.msra.mxu0 %v7185
  %7189 = vmatprep.subr.bf16.mxu0 0
  %7190 = vmatpush1.bf16.msra.mxu0 0
  %7191 = vmatprep.subr.bf16.mxu0 0
  %7192 = vmatpush1.bf16.msra.mxu0 0
  %7193 = vmatprep.subr.bf16.mxu0 0
  %7194 = vmatpush1.bf16.msra.mxu0 0
  %7195 = vmatprep.subr.bf16.mxu0 0
  %7196 = vmatpush1.bf16.msra.mxu0 0
  %7197 = vmatprep.subr.bf16.mxu0 0
  %7198 = vmatpush1.bf16.msra.mxu0 0
  %7199 = vmatprep.subr.bf16.mxu0 0
  %7200 = vmatpush1.bf16.msra.mxu0 0
  %7201 = vmatprep.subr.bf16.mxu0 0
  %7202 = vmatpush1.bf16.msra.mxu0 0
  %7203 = vmatprep.subr.bf16.mxu0 0
  %7204 = vmatpush1.bf16.msra.mxu0 0
  %7205 = vmatprep.subr.bf16.mxu0 0
  %7206 = vmatpush1.bf16.msra.mxu0 0
  %7207 = vmatprep.subr.bf16.mxu0 0
  %7208 = vmatpush1.bf16.msra.mxu0 0
  %7209 = vmatprep.subr.bf16.mxu0 0
  %7210 = vmatpush1.bf16.msra.mxu0 0
  %7211 = vmatprep.subr.bf16.mxu0 0
  %7212 = vmatpush1.bf16.msra.mxu0 0
  %7213 = vmatprep.subr.bf16.mxu0 0
  %7214 = vmatpush1.bf16.msra.mxu0 0
  %7215 = vmatprep.subr.bf16.mxu0 0
  %7216 = vmatpush1.bf16.msra.mxu0 0
  %7217 = vmatprep.subr.bf16.mxu0 0
  %7218 = vmatpush1.bf16.msra.mxu0 0
  %7219 = vmatprep.mubr.bf16.mxu0 0
  %7220 = vmatmul.mubr.bf16.gmra.mrb[0].mxu0 %v7182
  %v7221 = vpop.f32.mrb[0].mxu0
  %v7222 = vadd.f32 0.0, %v7221
  %v7223 = vpop.f32.mrb[0].mxu0
  %v7224 = vpop.f32.mrb[0].mxu0
  %v7225 = vpop.f32.mrb[0].mxu0
  %7226 = vdwg.mxu0
  %7227 = vrot.lane.b32.xlu0 %v1009, 64
  %v7228 = vpop.permute.xlu0 %7227
  %v7230 = vsel %vm4297, %v5047, 0
  %v7233 = vsel %vm5071, %v7228, 0
  %7235 = vmatprep.subr.bf16.mxu0 0
  %7236 = vmatpush1.bf16.msra.mxu0 %v7233
  %7237 = vmatprep.subr.bf16.mxu0 0
  %7238 = vmatpush1.bf16.msra.mxu0 0
  %7239 = vmatprep.subr.bf16.mxu0 0
  %7240 = vmatpush1.bf16.msra.mxu0 0
  %7241 = vmatprep.subr.bf16.mxu0 0
  %7242 = vmatpush1.bf16.msra.mxu0 0
  %7243 = vmatprep.subr.bf16.mxu0 0
  %7244 = vmatpush1.bf16.msra.mxu0 0
  %7245 = vmatprep.subr.bf16.mxu0 0
  %7246 = vmatpush1.bf16.msra.mxu0 0
  %7247 = vmatprep.subr.bf16.mxu0 0
  %7248 = vmatpush1.bf16.msra.mxu0 0
  %7249 = vmatprep.subr.bf16.mxu0 0
  %7250 = vmatpush1.bf16.msra.mxu0 0
  %7251 = vmatprep.subr.bf16.mxu0 0
  %7252 = vmatpush1.bf16.msra.mxu0 0
  %7253 = vmatprep.subr.bf16.mxu0 0
  %7254 = vmatpush1.bf16.msra.mxu0 0
  %7255 = vmatprep.subr.bf16.mxu0 0
  %7256 = vmatpush1.bf16.msra.mxu0 0
  %7257 = vmatprep.subr.bf16.mxu0 0
  %7258 = vmatpush1.bf16.msra.mxu0 0
  %7259 = vmatprep.subr.bf16.mxu0 0
  %7260 = vmatpush1.bf16.msra.mxu0 0
  %7261 = vmatprep.subr.bf16.mxu0 0
  %7262 = vmatpush1.bf16.msra.mxu0 0
  %7263 = vmatprep.subr.bf16.mxu0 0
  %7264 = vmatpush1.bf16.msra.mxu0 0
  %7265 = vmatprep.subr.bf16.mxu0 0
  %7266 = vmatpush1.bf16.msra.mxu0 0
  %7267 = vmatprep.mubr.bf16.mxu0 0
  %7268 = vmatmul.mubr.bf16.gmra.mrb[0].mxu0 %v7230
  %v7269 = vpop.f32.mrb[0].mxu0
  %v7270 = vadd.f32 0.0, %v7269
  %v7271 = vpop.f32.mrb[0].mxu0
  %v7272 = vpop.f32.mrb[0].mxu0
  %v7273 = vpop.f32.mrb[0].mxu0
  %7274 = vdwg.mxu0
  %7275 = vrot.lane.b32.xlu0 %v1010, 64
  %v7276 = vpop.permute.xlu0 %7275
  %v7278 = vsel %vm4297, %v5048, 0
  %v7281 = vsel %vm5071, %v7276, 0
  %7283 = vmatprep.subr.bf16.mxu0 0
  %7284 = vmatpush1.bf16.msra.mxu0 %v7281
  %7285 = vmatprep.subr.bf16.mxu0 0
  %7286 = vmatpush1.bf16.msra.mxu0 0
  %7287 = vmatprep.subr.bf16.mxu0 0
  %7288 = vmatpush1.bf16.msra.mxu0 0
  %7289 = vmatprep.subr.bf16.mxu0 0
  %7290 = vmatpush1.bf16.msra.mxu0 0
  %7291 = vmatprep.subr.bf16.mxu0 0
  %7292 = vmatpush1.bf16.msra.mxu0 0
  %7293 = vmatprep.subr.bf16.mxu0 0
  %7294 = vmatpush1.bf16.msra.mxu0 0
  %7295 = vmatprep.subr.bf16.mxu0 0
  %7296 = vmatpush1.bf16.msra.mxu0 0
  %7297 = vmatprep.subr.bf16.mxu0 0
  %7298 = vmatpush1.bf16.msra.mxu0 0
  %7299 = vmatprep.subr.bf16.mxu0 0
  %7300 = vmatpush1.bf16.msra.mxu0 0
  %7301 = vmatprep.subr.bf16.mxu0 0
  %7302 = vmatpush1.bf16.msra.mxu0 0
  %7303 = vmatprep.subr.bf16.mxu0 0
  %7304 = vmatpush1.bf16.msra.mxu0 0
  %7305 = vmatprep.subr.bf16.mxu0 0
  %7306 = vmatpush1.bf16.msra.mxu0 0
  %7307 = vmatprep.subr.bf16.mxu0 0
  %7308 = vmatpush1.bf16.msra.mxu0 0
  %7309 = vmatprep.subr.bf16.mxu0 0
  %7310 = vmatpush1.bf16.msra.mxu0 0
  %7311 = vmatprep.subr.bf16.mxu0 0
  %7312 = vmatpush1.bf16.msra.mxu0 0
  %7313 = vmatprep.subr.bf16.mxu0 0
  %7314 = vmatpush1.bf16.msra.mxu0 0
  %7315 = vmatprep.mubr.bf16.mxu0 0
  %7316 = vmatmul.mubr.bf16.gmra.mrb[0].mxu0 %v7278
  %v7317 = vpop.f32.mrb[0].mxu0
  %v7318 = vadd.f32 0.0, %v7317
  %v7319 = vpop.f32.mrb[0].mxu0
  %v7320 = vpop.f32.mrb[0].mxu0
  %v7321 = vpop.f32.mrb[0].mxu0
  %7322 = vdwg.mxu0
  %7323 = vrot.lane.b32.xlu0 %v1011, 64
  %v7324 = vpop.permute.xlu0 %7323
  %v7326 = vsel %vm4297, %v5049, 0
  %v7329 = vsel %vm5071, %v7324, 0
  %7331 = vmatprep.subr.bf16.mxu0 0
  %7332 = vmatpush1.bf16.msra.mxu0 %v7329
  %7333 = vmatprep.subr.bf16.mxu0 0
  %7334 = vmatpush1.bf16.msra.mxu0 0
  %7335 = vmatprep.subr.bf16.mxu0 0
  %7336 = vmatpush1.bf16.msra.mxu0 0
  %7337 = vmatprep.subr.bf16.mxu0 0
  %7338 = vmatpush1.bf16.msra.mxu0 0
  %7339 = vmatprep.subr.bf16.mxu0 0
  %7340 = vmatpush1.bf16.msra.mxu0 0
  %7341 = vmatprep.subr.bf16.mxu0 0
  %7342 = vmatpush1.bf16.msra.mxu0 0
  %7343 = vmatprep.subr.bf16.mxu0 0
  %7344 = vmatpush1.bf16.msra.mxu0 0
  %7345 = vmatprep.subr.bf16.mxu0 0
  %7346 = vmatpush1.bf16.msra.mxu0 0
  %7347 = vmatprep.subr.bf16.mxu0 0
  %7348 = vmatpush1.bf16.msra.mxu0 0
  %7349 = vmatprep.subr.bf16.mxu0 0
  %7350 = vmatpush1.bf16.msra.mxu0 0
  %7351 = vmatprep.subr.bf16.mxu0 0
  %7352 = vmatpush1.bf16.msra.mxu0 0
  %7353 = vmatprep.subr.bf16.mxu0 0
  %7354 = vmatpush1.bf16.msra.mxu0 0
  %7355 = vmatprep.subr.bf16.mxu0 0
  %7356 = vmatpush1.bf16.msra.mxu0 0
  %7357 = vmatprep.subr.bf16.mxu0 0
  %7358 = vmatpush1.bf16.msra.mxu0 0
  %7359 = vmatprep.subr.bf16.mxu0 0
  %7360 = vmatpush1.bf16.msra.mxu0 0
  %7361 = vmatprep.subr.bf16.mxu0 0
  %7362 = vmatpush1.bf16.msra.mxu0 0
  %7363 = vmatprep.mubr.bf16.mxu0 0
  %7364 = vmatmul.mubr.bf16.gmra.mrb[0].mxu0 %v7326
  %v7365 = vpop.f32.mrb[0].mxu0
  %v7366 = vadd.f32 0.0, %v7365
  %v7367 = vpop.f32.mrb[0].mxu0
  %v7368 = vpop.f32.mrb[0].mxu0
  %v7369 = vpop.f32.mrb[0].mxu0
  %7370 = vdwg.mxu0
  %7371 = vrot.lane.b32.xlu0 %v1012, 64
  %v7372 = vpop.permute.xlu0 %7371
  %v7374 = vsel %vm4297, %v5050, 0
  %v7377 = vsel %vm5071, %v7372, 0
  %7379 = vmatprep.subr.bf16.mxu0 0
  %7380 = vmatpush1.bf16.msra.mxu0 %v7377
  %7381 = vmatprep.subr.bf16.mxu0 0
  %7382 = vmatpush1.bf16.msra.mxu0 0
  %7383 = vmatprep.subr.bf16.mxu0 0
  %7384 = vmatpush1.bf16.msra.mxu0 0
  %7385 = vmatprep.subr.bf16.mxu0 0
  %7386 = vmatpush1.bf16.msra.mxu0 0
  %7387 = vmatprep.subr.bf16.mxu0 0
  %7388 = vmatpush1.bf16.msra.mxu0 0
  %7389 = vmatprep.subr.bf16.mxu0 0
  %7390 = vmatpush1.bf16.msra.mxu0 0
  %7391 = vmatprep.subr.bf16.mxu0 0
  %7392 = vmatpush1.bf16.msra.mxu0 0
  %7393 = vmatprep.subr.bf16.mxu0 0
  %7394 = vmatpush1.bf16.msra.mxu0 0
  %7395 = vmatprep.subr.bf16.mxu0 0
  %7396 = vmatpush1.bf16.msra.mxu0 0
  %7397 = vmatprep.subr.bf16.mxu0 0
  %7398 = vmatpush1.bf16.msra.mxu0 0
  %7399 = vmatprep.subr.bf16.mxu0 0
  %7400 = vmatpush1.bf16.msra.mxu0 0
  %7401 = vmatprep.subr.bf16.mxu0 0
  %7402 = vmatpush1.bf16.msra.mxu0 0
  %7403 = vmatprep.subr.bf16.mxu0 0
  %7404 = vmatpush1.bf16.msra.mxu0 0
  %7405 = vmatprep.subr.bf16.mxu0 0
  %7406 = vmatpush1.bf16.msra.mxu0 0
  %7407 = vmatprep.subr.bf16.mxu0 0
  %7408 = vmatpush1.bf16.msra.mxu0 0
  %7409 = vmatprep.subr.bf16.mxu0 0
  %7410 = vmatpush1.bf16.msra.mxu0 0
  %7411 = vmatprep.mubr.bf16.mxu0 0
  %7412 = vmatmul.mubr.bf16.gmra.mrb[0].mxu0 %v7374
  %v7413 = vpop.f32.mrb[0].mxu0
  %v7414 = vadd.f32 0.0, %v7413
  %v7415 = vpop.f32.mrb[0].mxu0
  %v7416 = vpop.f32.mrb[0].mxu0
  %v7417 = vpop.f32.mrb[0].mxu0
  %7418 = vdwg.mxu0
  %7419 = vrot.lane.b32.xlu0 %v1013, 64
  %v7420 = vpop.permute.xlu0 %7419
  %v7422 = vsel %vm4297, %v5051, 0
  %v7425 = vsel %vm5071, %v7420, 0
  %7427 = vmatprep.subr.bf16.mxu0 0
  %7428 = vmatpush1.bf16.msra.mxu0 %v7425
  %7429 = vmatprep.subr.bf16.mxu0 0
  %7430 = vmatpush1.bf16.msra.mxu0 0
  %7431 = vmatprep.subr.bf16.mxu0 0
  %7432 = vmatpush1.bf16.msra.mxu0 0
  %7433 = vmatprep.subr.bf16.mxu0 0
  %7434 = vmatpush1.bf16.msra.mxu0 0
  %7435 = vmatprep.subr.bf16.mxu0 0
  %7436 = vmatpush1.bf16.msra.mxu0 0
  %7437 = vmatprep.subr.bf16.mxu0 0
  %7438 = vmatpush1.bf16.msra.mxu0 0
  %7439 = vmatprep.subr.bf16.mxu0 0
  %7440 = vmatpush1.bf16.msra.mxu0 0
  %7441 = vmatprep.subr.bf16.mxu0 0
  %7442 = vmatpush1.bf16.msra.mxu0 0
  %7443 = vmatprep.subr.bf16.mxu0 0
  %7444 = vmatpush1.bf16.msra.mxu0 0
  %7445 = vmatprep.subr.bf16.mxu0 0
  %7446 = vmatpush1.bf16.msra.mxu0 0
  %7447 = vmatprep.subr.bf16.mxu0 0
  %7448 = vmatpush1.bf16.msra.mxu0 0
  %7449 = vmatprep.subr.bf16.mxu0 0
  %7450 = vmatpush1.bf16.msra.mxu0 0
  %7451 = vmatprep.subr.bf16.mxu0 0
  %7452 = vmatpush1.bf16.msra.mxu0 0
  %7453 = vmatprep.subr.bf16.mxu0 0
  %7454 = vmatpush1.bf16.msra.mxu0 0
  %7455 = vmatprep.subr.bf16.mxu0 0
  %7456 = vmatpush1.bf16.msra.mxu0 0
  %7457 = vmatprep.subr.bf16.mxu0 0
  %7458 = vmatpush1.bf16.msra.mxu0 0
  %7459 = vmatprep.mubr.bf16.mxu0 0
  %7460 = vmatmul.mubr.bf16.gmra.mrb[0].mxu0 %v7422
  %v7461 = vpop.f32.mrb[0].mxu0
  %v7462 = vadd.f32 0.0, %v7461
  %v7463 = vpop.f32.mrb[0].mxu0
  %v7464 = vpop.f32.mrb[0].mxu0
  %v7465 = vpop.f32.mrb[0].mxu0
  %7466 = vdwg.mxu0
  %7467 = vrot.lane.b32.xlu0 %v1014, 64
  %v7468 = vpop.permute.xlu0 %7467
  %v7470 = vsel %vm4297, %v5052, 0
  %v7473 = vsel %vm5071, %v7468, 0
  %7475 = vmatprep.subr.bf16.mxu0 0
  %7476 = vmatpush1.bf16.msra.mxu0 %v7473
  %7477 = vmatprep.subr.bf16.mxu0 0
  %7478 = vmatpush1.bf16.msra.mxu0 0
  %7479 = vmatprep.subr.bf16.mxu0 0
  %7480 = vmatpush1.bf16.msra.mxu0 0
  %7481 = vmatprep.subr.bf16.mxu0 0
  %7482 = vmatpush1.bf16.msra.mxu0 0
  %7483 = vmatprep.subr.bf16.mxu0 0
  %7484 = vmatpush1.bf16.msra.mxu0 0
  %7485 = vmatprep.subr.bf16.mxu0 0
  %7486 = vmatpush1.bf16.msra.mxu0 0
  %7487 = vmatprep.subr.bf16.mxu0 0
  %7488 = vmatpush1.bf16.msra.mxu0 0
  %7489 = vmatprep.subr.bf16.mxu0 0
  %7490 = vmatpush1.bf16.msra.mxu0 0
  %7491 = vmatprep.subr.bf16.mxu0 0
  %7492 = vmatpush1.bf16.msra.mxu0 0
  %7493 = vmatprep.subr.bf16.mxu0 0
  %7494 = vmatpush1.bf16.msra.mxu0 0
  %7495 = vmatprep.subr.bf16.mxu0 0
  %7496 = vmatpush1.bf16.msra.mxu0 0
  %7497 = vmatprep.subr.bf16.mxu0 0
  %7498 = vmatpush1.bf16.msra.mxu0 0
  %7499 = vmatprep.subr.bf16.mxu0 0
  %7500 = vmatpush1.bf16.msra.mxu0 0
  %7501 = vmatprep.subr.bf16.mxu0 0
  %7502 = vmatpush1.bf16.msra.mxu0 0
  %7503 = vmatprep.subr.bf16.mxu0 0
  %7504 = vmatpush1.bf16.msra.mxu0 0
  %7505 = vmatprep.subr.bf16.mxu0 0
  %7506 = vmatpush1.bf16.msra.mxu0 0
  %7507 = vmatprep.mubr.bf16.mxu0 0
  %7508 = vmatmul.mubr.bf16.gmra.mrb[0].mxu0 %v7470
  %v7509 = vpop.f32.mrb[0].mxu0
  %v7510 = vadd.f32 0.0, %v7509
  %v7511 = vpop.f32.mrb[0].mxu0
  %v7512 = vpop.f32.mrb[0].mxu0
  %v7513 = vpop.f32.mrb[0].mxu0
  %7514 = vdwg.mxu0
  %7515 = vrot.lane.b32.xlu0 %v1015, 64
  %v7516 = vpop.permute.xlu0 %7515
  %v7518 = vsel %vm4297, %v5053, 0
  %v7521 = vsel %vm5071, %v7516, 0
  %7523 = vmatprep.subr.bf16.mxu0 0
  %7524 = vmatpush1.bf16.msra.mxu0 %v7521
  %7525 = vmatprep.subr.bf16.mxu0 0
  %7526 = vmatpush1.bf16.msra.mxu0 0
  %7527 = vmatprep.subr.bf16.mxu0 0
  %7528 = vmatpush1.bf16.msra.mxu0 0
  %7529 = vmatprep.subr.bf16.mxu0 0
  %7530 = vmatpush1.bf16.msra.mxu0 0
  %7531 = vmatprep.subr.bf16.mxu0 0
  %7532 = vmatpush1.bf16.msra.mxu0 0
  %7533 = vmatprep.subr.bf16.mxu0 0
  %7534 = vmatpush1.bf16.msra.mxu0 0
  %7535 = vmatprep.subr.bf16.mxu0 0
  %7536 = vmatpush1.bf16.msra.mxu0 0
  %7537 = vmatprep.subr.bf16.mxu0 0
  %7538 = vmatpush1.bf16.msra.mxu0 0
  %7539 = vmatprep.subr.bf16.mxu0 0
  %7540 = vmatpush1.bf16.msra.mxu0 0
  %7541 = vmatprep.subr.bf16.mxu0 0
  %7542 = vmatpush1.bf16.msra.mxu0 0
  %7543 = vmatprep.subr.bf16.mxu0 0
  %7544 = vmatpush1.bf16.msra.mxu0 0
  %7545 = vmatprep.subr.bf16.mxu0 0
  %7546 = vmatpush1.bf16.msra.mxu0 0
  %7547 = vmatprep.subr.bf16.mxu0 0
  %7548 = vmatpush1.bf16.msra.mxu0 0
  %7549 = vmatprep.subr.bf16.mxu0 0
  %7550 = vmatpush1.bf16.msra.mxu0 0
  %7551 = vmatprep.subr.bf16.mxu0 0
  %7552 = vmatpush1.bf16.msra.mxu0 0
  %7553 = vmatprep.subr.bf16.mxu0 0
  %7554 = vmatpush1.bf16.msra.mxu0 0
  %7555 = vmatprep.mubr.bf16.mxu0 0
  %7556 = vmatmul.mubr.bf16.gmra.mrb[0].mxu0 %v7518
  %v7557 = vpop.f32.mrb[0].mxu0
  %v7558 = vadd.f32 0.0, %v7557
  %v7559 = vpop.f32.mrb[0].mxu0
  %v7560 = vpop.f32.mrb[0].mxu0
  %v7561 = vpop.f32.mrb[0].mxu0
  %7562 = vdwg.mxu0
  %7563 = vrot.lane.b32.xlu0 %v1016, 64
  %v7564 = vpop.permute.xlu0 %7563
  %v7566 = vsel %vm4297, %v5054, 0
  %v7569 = vsel %vm5071, %v7564, 0
  %7571 = vmatprep.subr.bf16.mxu0 0
  %7572 = vmatpush1.bf16.msra.mxu0 %v7569
  %7573 = vmatprep.subr.bf16.mxu0 0
  %7574 = vmatpush1.bf16.msra.mxu0 0
  %7575 = vmatprep.subr.bf16.mxu0 0
  %7576 = vmatpush1.bf16.msra.mxu0 0
  %7577 = vmatprep.subr.bf16.mxu0 0
  %7578 = vmatpush1.bf16.msra.mxu0 0
  %7579 = vmatprep.subr.bf16.mxu0 0
  %7580 = vmatpush1.bf16.msra.mxu0 0
  %7581 = vmatprep.subr.bf16.mxu0 0
  %7582 = vmatpush1.bf16.msra.mxu0 0
  %7583 = vmatprep.subr.bf16.mxu0 0
  %7584 = vmatpush1.bf16.msra.mxu0 0
  %7585 = vmatprep.subr.bf16.mxu0 0
  %7586 = vmatpush1.bf16.msra.mxu0 0
  %7587 = vmatprep.subr.bf16.mxu0 0
  %7588 = vmatpush1.bf16.msra.mxu0 0
  %7589 = vmatprep.subr.bf16.mxu0 0
  %7590 = vmatpush1.bf16.msra.mxu0 0
  %7591 = vmatprep.subr.bf16.mxu0 0
  %7592 = vmatpush1.bf16.msra.mxu0 0
  %7593 = vmatprep.subr.bf16.mxu0 0
  %7594 = vmatpush1.bf16.msra.mxu0 0
  %7595 = vmatprep.subr.bf16.mxu0 0
  %7596 = vmatpush1.bf16.msra.mxu0 0
  %7597 = vmatprep.subr.bf16.mxu0 0
  %7598 = vmatpush1.bf16.msra.mxu0 0
  %7599 = vmatprep.subr.bf16.mxu0 0
  %7600 = vmatpush1.bf16.msra.mxu0 0
  %7601 = vmatprep.subr.bf16.mxu0 0
  %7602 = vmatpush1.bf16.msra.mxu0 0
  %7603 = vmatprep.mubr.bf16.mxu0 0
  %7604 = vmatmul.mubr.bf16.gmra.mrb[0].mxu0 %v7566
  %v7605 = vpop.f32.mrb[0].mxu0
  %v7606 = vadd.f32 0.0, %v7605
  %v7607 = vpop.f32.mrb[0].mxu0
  %v7608 = vpop.f32.mrb[0].mxu0
  %v7609 = vpop.f32.mrb[0].mxu0
  %7610 = vdwg.mxu0
  %7611 = vrot.lane.b32.xlu0 %v1017, 64
  %v7612 = vpop.permute.xlu0 %7611
  %v7614 = vsel %vm4297, %v5055, 0
  %v7617 = vsel %vm5071, %v7612, 0
  %7619 = vmatprep.subr.bf16.mxu0 0
  %7620 = vmatpush1.bf16.msra.mxu0 %v7617
  %7621 = vmatprep.subr.bf16.mxu0 0
  %7622 = vmatpush1.bf16.msra.mxu0 0
  %7623 = vmatprep.subr.bf16.mxu0 0
  %7624 = vmatpush1.bf16.msra.mxu0 0
  %7625 = vmatprep.subr.bf16.mxu0 0
  %7626 = vmatpush1.bf16.msra.mxu0 0
  %7627 = vmatprep.subr.bf16.mxu0 0
  %7628 = vmatpush1.bf16.msra.mxu0 0
  %7629 = vmatprep.subr.bf16.mxu0 0
  %7630 = vmatpush1.bf16.msra.mxu0 0
  %7631 = vmatprep.subr.bf16.mxu0 0
  %7632 = vmatpush1.bf16.msra.mxu0 0
  %7633 = vmatprep.subr.bf16.mxu0 0
  %7634 = vmatpush1.bf16.msra.mxu0 0
  %7635 = vmatprep.subr.bf16.mxu0 0
  %7636 = vmatpush1.bf16.msra.mxu0 0
  %7637 = vmatprep.subr.bf16.mxu0 0
  %7638 = vmatpush1.bf16.msra.mxu0 0
  %7639 = vmatprep.subr.bf16.mxu0 0
  %7640 = vmatpush1.bf16.msra.mxu0 0
  %7641 = vmatprep.subr.bf16.mxu0 0
  %7642 = vmatpush1.bf16.msra.mxu0 0
  %7643 = vmatprep.subr.bf16.mxu0 0
  %7644 = vmatpush1.bf16.msra.mxu0 0
  %7645 = vmatprep.subr.bf16.mxu0 0
  %7646 = vmatpush1.bf16.msra.mxu0 0
  %7647 = vmatprep.subr.bf16.mxu0 0
  %7648 = vmatpush1.bf16.msra.mxu0 0
  %7649 = vmatprep.subr.bf16.mxu0 0
  %7650 = vmatpush1.bf16.msra.mxu0 0
  %7651 = vmatprep.mubr.bf16.mxu0 0
  %7652 = vmatmul.mubr.bf16.gmra.mrb[0].mxu0 %v7614
  %v7653 = vpop.f32.mrb[0].mxu0
  %v7654 = vadd.f32 0.0, %v7653
  %v7655 = vpop.f32.mrb[0].mxu0
  %v7656 = vpop.f32.mrb[0].mxu0
  %v7657 = vpop.f32.mrb[0].mxu0
  %7658 = vdwg.mxu0
  %7659 = vrot.lane.b32.xlu0 %v1018, 64
  %v7660 = vpop.permute.xlu0 %7659
  %v7662 = vsel %vm4297, %v5056, 0
  %v7665 = vsel %vm5071, %v7660, 0
  %7667 = vmatprep.subr.bf16.mxu0 0
  %7668 = vmatpush1.bf16.msra.mxu0 %v7665
  %7669 = vmatprep.subr.bf16.mxu0 0
  %7670 = vmatpush1.bf16.msra.mxu0 0
  %7671 = vmatprep.subr.bf16.mxu0 0
  %7672 = vmatpush1.bf16.msra.mxu0 0
  %7673 = vmatprep.subr.bf16.mxu0 0
  %7674 = vmatpush1.bf16.msra.mxu0 0
  %7675 = vmatprep.subr.bf16.mxu0 0
  %7676 = vmatpush1.bf16.msra.mxu0 0
  %7677 = vmatprep.subr.bf16.mxu0 0
  %7678 = vmatpush1.bf16.msra.mxu0 0
  %7679 = vmatprep.subr.bf16.mxu0 0
  %7680 = vmatpush1.bf16.msra.mxu0 0
  %7681 = vmatprep.subr.bf16.mxu0 0
  %7682 = vmatpush1.bf16.msra.mxu0 0
  %7683 = vmatprep.subr.bf16.mxu0 0
  %7684 = vmatpush1.bf16.msra.mxu0 0
  %7685 = vmatprep.subr.bf16.mxu0 0
  %7686 = vmatpush1.bf16.msra.mxu0 0
  %7687 = vmatprep.subr.bf16.mxu0 0
  %7688 = vmatpush1.bf16.msra.mxu0 0
  %7689 = vmatprep.subr.bf16.mxu0 0
  %7690 = vmatpush1.bf16.msra.mxu0 0
  %7691 = vmatprep.subr.bf16.mxu0 0
  %7692 = vmatpush1.bf16.msra.mxu0 0
  %7693 = vmatprep.subr.bf16.mxu0 0
  %7694 = vmatpush1.bf16.msra.mxu0 0
  %7695 = vmatprep.subr.bf16.mxu0 0
  %7696 = vmatpush1.bf16.msra.mxu0 0
  %7697 = vmatprep.subr.bf16.mxu0 0
  %7698 = vmatpush1.bf16.msra.mxu0 0
  %7699 = vmatprep.mubr.bf16.mxu0 0
  %7700 = vmatmul.mubr.bf16.gmra.mrb[0].mxu0 %v7662
  %v7701 = vpop.f32.mrb[0].mxu0
  %v7702 = vadd.f32 0.0, %v7701
  %v7703 = vpop.f32.mrb[0].mxu0
  %v7704 = vpop.f32.mrb[0].mxu0
  %v7705 = vpop.f32.mrb[0].mxu0
  %7706 = vdwg.mxu0
  %7707 = vrot.lane.b32.xlu0 %v1019, 64
  %v7708 = vpop.permute.xlu0 %7707
  %v7710 = vsel %vm4297, %v5057, 0
  %v7713 = vsel %vm5071, %v7708, 0
  %7715 = vmatprep.subr.bf16.mxu0 0
  %7716 = vmatpush1.bf16.msra.mxu0 %v7713
  %7717 = vmatprep.subr.bf16.mxu0 0
  %7718 = vmatpush1.bf16.msra.mxu0 0
  %7719 = vmatprep.subr.bf16.mxu0 0
  %7720 = vmatpush1.bf16.msra.mxu0 0
  %7721 = vmatprep.subr.bf16.mxu0 0
  %7722 = vmatpush1.bf16.msra.mxu0 0
  %7723 = vmatprep.subr.bf16.mxu0 0
  %7724 = vmatpush1.bf16.msra.mxu0 0
  %7725 = vmatprep.subr.bf16.mxu0 0
  %7726 = vmatpush1.bf16.msra.mxu0 0
  %7727 = vmatprep.subr.bf16.mxu0 0
  %7728 = vmatpush1.bf16.msra.mxu0 0
  %7729 = vmatprep.subr.bf16.mxu0 0
  %7730 = vmatpush1.bf16.msra.mxu0 0
  %7731 = vmatprep.subr.bf16.mxu0 0
  %7732 = vmatpush1.bf16.msra.mxu0 0
  %7733 = vmatprep.subr.bf16.mxu0 0
  %7734 = vmatpush1.bf16.msra.mxu0 0
  %7735 = vmatprep.subr.bf16.mxu0 0
  %7736 = vmatpush1.bf16.msra.mxu0 0
  %7737 = vmatprep.subr.bf16.mxu0 0
  %7738 = vmatpush1.bf16.msra.mxu0 0
  %7739 = vmatprep.subr.bf16.mxu0 0
  %7740 = vmatpush1.bf16.msra.mxu0 0
  %7741 = vmatprep.subr.bf16.mxu0 0
  %7742 = vmatpush1.bf16.msra.mxu0 0
  %7743 = vmatprep.subr.bf16.mxu0 0
  %7744 = vmatpush1.bf16.msra.mxu0 0
  %7745 = vmatprep.subr.bf16.mxu0 0
  %7746 = vmatpush1.bf16.msra.mxu0 0
  %7747 = vmatprep.mubr.bf16.mxu0 0
  %7748 = vmatmul.mubr.bf16.gmra.mrb[0].mxu0 %v7710
  %v7749 = vpop.f32.mrb[0].mxu0
  %v7750 = vadd.f32 0.0, %v7749
  %v7751 = vpop.f32.mrb[0].mxu0
  %v7752 = vpop.f32.mrb[0].mxu0
  %v7753 = vpop.f32.mrb[0].mxu0
  %7754 = vdwg.mxu0
  %7755 = vrot.lane.b32.xlu0 %v1020, 64
  %v7756 = vpop.permute.xlu0 %7755
  %v7758 = vsel %vm4297, %v5058, 0
  %v7761 = vsel %vm5071, %v7756, 0
  %7763 = vmatprep.subr.bf16.mxu0 0
  %7764 = vmatpush1.bf16.msra.mxu0 %v7761
  %7765 = vmatprep.subr.bf16.mxu0 0
  %7766 = vmatpush1.bf16.msra.mxu0 0
  %7767 = vmatprep.subr.bf16.mxu0 0
  %7768 = vmatpush1.bf16.msra.mxu0 0
  %7769 = vmatprep.subr.bf16.mxu0 0
  %7770 = vmatpush1.bf16.msra.mxu0 0
  %7771 = vmatprep.subr.bf16.mxu0 0
  %7772 = vmatpush1.bf16.msra.mxu0 0
  %7773 = vmatprep.subr.bf16.mxu0 0
  %7774 = vmatpush1.bf16.msra.mxu0 0
  %7775 = vmatprep.subr.bf16.mxu0 0
  %7776 = vmatpush1.bf16.msra.mxu0 0
  %7777 = vmatprep.subr.bf16.mxu0 0
  %7778 = vmatpush1.bf16.msra.mxu0 0
  %7779 = vmatprep.subr.bf16.mxu0 0
  %7780 = vmatpush1.bf16.msra.mxu0 0
  %7781 = vmatprep.subr.bf16.mxu0 0
  %7782 = vmatpush1.bf16.msra.mxu0 0
  %7783 = vmatprep.subr.bf16.mxu0 0
  %7784 = vmatpush1.bf16.msra.mxu0 0
  %7785 = vmatprep.subr.bf16.mxu0 0
  %7786 = vmatpush1.bf16.msra.mxu0 0
  %7787 = vmatprep.subr.bf16.mxu0 0
  %7788 = vmatpush1.bf16.msra.mxu0 0
  %7789 = vmatprep.subr.bf16.mxu0 0
  %7790 = vmatpush1.bf16.msra.mxu0 0
  %7791 = vmatprep.subr.bf16.mxu0 0
  %7792 = vmatpush1.bf16.msra.mxu0 0
  %7793 = vmatprep.subr.bf16.mxu0 0
  %7794 = vmatpush1.bf16.msra.mxu0 0
  %7795 = vmatprep.mubr.bf16.mxu0 0
  %7796 = vmatmul.mubr.bf16.gmra.mrb[0].mxu0 %v7758
  %v7797 = vpop.f32.mrb[0].mxu0
  %v7798 = vadd.f32 0.0, %v7797
  %v7799 = vpop.f32.mrb[0].mxu0
  %v7800 = vpop.f32.mrb[0].mxu0
  %v7801 = vpop.f32.mrb[0].mxu0
  %7802 = vdwg.mxu0
  %7803 = vrot.lane.b32.xlu0 %v1021, 64
  %v7804 = vpop.permute.xlu0 %7803
  %v7806 = vsel %vm4297, %v5059, 0
  %v7809 = vsel %vm5071, %v7804, 0
  %7811 = vmatprep.subr.bf16.mxu0 0
  %7812 = vmatpush1.bf16.msra.mxu0 %v7809
  %7813 = vmatprep.subr.bf16.mxu0 0
  %7814 = vmatpush1.bf16.msra.mxu0 0
  %7815 = vmatprep.subr.bf16.mxu0 0
  %7816 = vmatpush1.bf16.msra.mxu0 0
  %7817 = vmatprep.subr.bf16.mxu0 0
  %7818 = vmatpush1.bf16.msra.mxu0 0
  %7819 = vmatprep.subr.bf16.mxu0 0
  %7820 = vmatpush1.bf16.msra.mxu0 0
  %7821 = vmatprep.subr.bf16.mxu0 0
  %7822 = vmatpush1.bf16.msra.mxu0 0
  %7823 = vmatprep.subr.bf16.mxu0 0
  %7824 = vmatpush1.bf16.msra.mxu0 0
  %7825 = vmatprep.subr.bf16.mxu0 0
  %7826 = vmatpush1.bf16.msra.mxu0 0
  %7827 = vmatprep.subr.bf16.mxu0 0
  %7828 = vmatpush1.bf16.msra.mxu0 0
  %7829 = vmatprep.subr.bf16.mxu0 0
  %7830 = vmatpush1.bf16.msra.mxu0 0
  %7831 = vmatprep.subr.bf16.mxu0 0
  %7832 = vmatpush1.bf16.msra.mxu0 0
  %7833 = vmatprep.subr.bf16.mxu0 0
  %7834 = vmatpush1.bf16.msra.mxu0 0
  %7835 = vmatprep.subr.bf16.mxu0 0
  %7836 = vmatpush1.bf16.msra.mxu0 0
  %7837 = vmatprep.subr.bf16.mxu0 0
  %7838 = vmatpush1.bf16.msra.mxu0 0
  %7839 = vmatprep.subr.bf16.mxu0 0
  %7840 = vmatpush1.bf16.msra.mxu0 0
  %7841 = vmatprep.subr.bf16.mxu0 0
  %7842 = vmatpush1.bf16.msra.mxu0 0
  %7843 = vmatprep.mubr.bf16.mxu0 0
  %7844 = vmatmul.mubr.bf16.gmra.mrb[0].mxu0 %v7806
  %v7845 = vpop.f32.mrb[0].mxu0
  %v7846 = vadd.f32 0.0, %v7845
  %v7847 = vpop.f32.mrb[0].mxu0
  %v7848 = vpop.f32.mrb[0].mxu0
  %v7849 = vpop.f32.mrb[0].mxu0
  %7850 = vdwg.mxu0
  %7851 = vrot.lane.b32.xlu0 %v1022, 64
  %v7852 = vpop.permute.xlu0 %7851
  %v7854 = vsel %vm4297, %v5060, 0
  %v7857 = vsel %vm5071, %v7852, 0
  %7859 = vmatprep.subr.bf16.mxu0 0
  %7860 = vmatpush1.bf16.msra.mxu0 %v7857
  %7861 = vmatprep.subr.bf16.mxu0 0
  %7862 = vmatpush1.bf16.msra.mxu0 0
  %7863 = vmatprep.subr.bf16.mxu0 0
  %7864 = vmatpush1.bf16.msra.mxu0 0
  %7865 = vmatprep.subr.bf16.mxu0 0
  %7866 = vmatpush1.bf16.msra.mxu0 0
  %7867 = vmatprep.subr.bf16.mxu0 0
  %7868 = vmatpush1.bf16.msra.mxu0 0
  %7869 = vmatprep.subr.bf16.mxu0 0
  %7870 = vmatpush1.bf16.msra.mxu0 0
  %7871 = vmatprep.subr.bf16.mxu0 0
  %7872 = vmatpush1.bf16.msra.mxu0 0
  %7873 = vmatprep.subr.bf16.mxu0 0
  %7874 = vmatpush1.bf16.msra.mxu0 0
  %7875 = vmatprep.subr.bf16.mxu0 0
  %7876 = vmatpush1.bf16.msra.mxu0 0
  %7877 = vmatprep.subr.bf16.mxu0 0
  %7878 = vmatpush1.bf16.msra.mxu0 0
  %7879 = vmatprep.subr.bf16.mxu0 0
  %7880 = vmatpush1.bf16.msra.mxu0 0
  %7881 = vmatprep.subr.bf16.mxu0 0
  %7882 = vmatpush1.bf16.msra.mxu0 0
  %7883 = vmatprep.subr.bf16.mxu0 0
  %7884 = vmatpush1.bf16.msra.mxu0 0
  %7885 = vmatprep.subr.bf16.mxu0 0
  %7886 = vmatpush1.bf16.msra.mxu0 0
  %7887 = vmatprep.subr.bf16.mxu0 0
  %7888 = vmatpush1.bf16.msra.mxu0 0
  %7889 = vmatprep.subr.bf16.mxu0 0
  %7890 = vmatpush1.bf16.msra.mxu0 0
  %7891 = vmatprep.mubr.bf16.mxu0 0
  %7892 = vmatmul.mubr.bf16.gmra.mrb[0].mxu0 %v7854
  %v7893 = vpop.f32.mrb[0].mxu0
  %v7894 = vadd.f32 0.0, %v7893
  %v7895 = vpop.f32.mrb[0].mxu0
  %v7896 = vpop.f32.mrb[0].mxu0
  %v7897 = vpop.f32.mrb[0].mxu0
  %7898 = vdwg.mxu0
  %7899 = vrot.lane.b32.xlu0 %v1023, 64
  %v7900 = vpop.permute.xlu0 %7899
  %v7902 = vsel %vm4297, %v5061, 0
  %v7905 = vsel %vm5071, %v7900, 0
  %7907 = vmatprep.subr.bf16.mxu0 0
  %7908 = vmatpush1.bf16.msra.mxu0 %v7905
  %7909 = vmatprep.subr.bf16.mxu0 0
  %7910 = vmatpush1.bf16.msra.mxu0 0
  %7911 = vmatprep.subr.bf16.mxu0 0
  %7912 = vmatpush1.bf16.msra.mxu0 0
  %7913 = vmatprep.subr.bf16.mxu0 0
  %7914 = vmatpush1.bf16.msra.mxu0 0
  %7915 = vmatprep.subr.bf16.mxu0 0
  %7916 = vmatpush1.bf16.msra.mxu0 0
  %7917 = vmatprep.subr.bf16.mxu0 0
  %7918 = vmatpush1.bf16.msra.mxu0 0
  %7919 = vmatprep.subr.bf16.mxu0 0
  %7920 = vmatpush1.bf16.msra.mxu0 0
  %7921 = vmatprep.subr.bf16.mxu0 0
  %7922 = vmatpush1.bf16.msra.mxu0 0
  %7923 = vmatprep.subr.bf16.mxu0 0
  %7924 = vmatpush1.bf16.msra.mxu0 0
  %7925 = vmatprep.subr.bf16.mxu0 0
  %7926 = vmatpush1.bf16.msra.mxu0 0
  %7927 = vmatprep.subr.bf16.mxu0 0
  %7928 = vmatpush1.bf16.msra.mxu0 0
  %7929 = vmatprep.subr.bf16.mxu0 0
  %7930 = vmatpush1.bf16.msra.mxu0 0
  %7931 = vmatprep.subr.bf16.mxu0 0
  %7932 = vmatpush1.bf16.msra.mxu0 0
  %7933 = vmatprep.subr.bf16.mxu0 0
  %7934 = vmatpush1.bf16.msra.mxu0 0
  %7935 = vmatprep.subr.bf16.mxu0 0
  %7936 = vmatpush1.bf16.msra.mxu0 0
  %7937 = vmatprep.subr.bf16.mxu0 0
  %7938 = vmatpush1.bf16.msra.mxu0 0
  %7939 = vmatprep.mubr.bf16.mxu0 0
  %7940 = vmatmul.mubr.bf16.gmra.mrb[0].mxu0 %v7902
  %v7941 = vpop.f32.mrb[0].mxu0
  %v7942 = vadd.f32 0.0, %v7941
  %v7943 = vpop.f32.mrb[0].mxu0
  %v7944 = vpop.f32.mrb[0].mxu0
  %v7945 = vpop.f32.mrb[0].mxu0
  %7946 = vdwg.mxu0
  %7947 = vrot.lane.b32.xlu0 %v1024, 64
  %v7948 = vpop.permute.xlu0 %7947
  %v7950 = vsel %vm4297, %v5062, 0
  %v7953 = vsel %vm5071, %v7948, 0
  %7955 = vmatprep.subr.bf16.mxu0 0
  %7956 = vmatpush1.bf16.msra.mxu0 %v7953
  %7957 = vmatprep.subr.bf16.mxu0 0
  %7958 = vmatpush1.bf16.msra.mxu0 0
  %7959 = vmatprep.subr.bf16.mxu0 0
  %7960 = vmatpush1.bf16.msra.mxu0 0
  %7961 = vmatprep.subr.bf16.mxu0 0
  %7962 = vmatpush1.bf16.msra.mxu0 0
  %7963 = vmatprep.subr.bf16.mxu0 0
  %7964 = vmatpush1.bf16.msra.mxu0 0
  %7965 = vmatprep.subr.bf16.mxu0 0
  %7966 = vmatpush1.bf16.msra.mxu0 0
  %7967 = vmatprep.subr.bf16.mxu0 0
  %7968 = vmatpush1.bf16.msra.mxu0 0
  %7969 = vmatprep.subr.bf16.mxu0 0
  %7970 = vmatpush1.bf16.msra.mxu0 0
  %7971 = vmatprep.subr.bf16.mxu0 0
  %7972 = vmatpush1.bf16.msra.mxu0 0
  %7973 = vmatprep.subr.bf16.mxu0 0
  %7974 = vmatpush1.bf16.msra.mxu0 0
  %7975 = vmatprep.subr.bf16.mxu0 0
  %7976 = vmatpush1.bf16.msra.mxu0 0
  %7977 = vmatprep.subr.bf16.mxu0 0
  %7978 = vmatpush1.bf16.msra.mxu0 0
  %7979 = vmatprep.subr.bf16.mxu0 0
  %7980 = vmatpush1.bf16.msra.mxu0 0
  %7981 = vmatprep.subr.bf16.mxu0 0
  %7982 = vmatpush1.bf16.msra.mxu0 0
  %7983 = vmatprep.subr.bf16.mxu0 0
  %7984 = vmatpush1.bf16.msra.mxu0 0
  %7985 = vmatprep.subr.bf16.mxu0 0
  %7986 = vmatpush1.bf16.msra.mxu0 0
  %7987 = vmatprep.mubr.bf16.mxu0 0
  %7988 = vmatmul.mubr.bf16.gmra.mrb[0].mxu0 %v7950
  %v7989 = vpop.f32.mrb[0].mxu0
  %v7990 = vadd.f32 0.0, %v7989
  %v7991 = vpop.f32.mrb[0].mxu0
  %v7992 = vpop.f32.mrb[0].mxu0
  %v7993 = vpop.f32.mrb[0].mxu0
  %7994 = vdwg.mxu0
  %7995 = vrot.lane.b32.xlu0 %v1025, 64
  %v7996 = vpop.permute.xlu0 %7995
  %v7998 = vsel %vm4297, %v5063, 0
  %v8001 = vsel %vm5071, %v7996, 0
  %8003 = vmatprep.subr.bf16.mxu0 0
  %8004 = vmatpush1.bf16.msra.mxu0 %v8001
  %8005 = vmatprep.subr.bf16.mxu0 0
  %8006 = vmatpush1.bf16.msra.mxu0 0
  %8007 = vmatprep.subr.bf16.mxu0 0
  %8008 = vmatpush1.bf16.msra.mxu0 0
  %8009 = vmatprep.subr.bf16.mxu0 0
  %8010 = vmatpush1.bf16.msra.mxu0 0
  %8011 = vmatprep.subr.bf16.mxu0 0
  %8012 = vmatpush1.bf16.msra.mxu0 0
  %8013 = vmatprep.subr.bf16.mxu0 0
  %8014 = vmatpush1.bf16.msra.mxu0 0
  %8015 = vmatprep.subr.bf16.mxu0 0
  %8016 = vmatpush1.bf16.msra.mxu0 0
  %8017 = vmatprep.subr.bf16.mxu0 0
  %8018 = vmatpush1.bf16.msra.mxu0 0
  %8019 = vmatprep.subr.bf16.mxu0 0
  %8020 = vmatpush1.bf16.msra.mxu0 0
  %8021 = vmatprep.subr.bf16.mxu0 0
  %8022 = vmatpush1.bf16.msra.mxu0 0
  %8023 = vmatprep.subr.bf16.mxu0 0
  %8024 = vmatpush1.bf16.msra.mxu0 0
  %8025 = vmatprep.subr.bf16.mxu0 0
  %8026 = vmatpush1.bf16.msra.mxu0 0
  %8027 = vmatprep.subr.bf16.mxu0 0
  %8028 = vmatpush1.bf16.msra.mxu0 0
  %8029 = vmatprep.subr.bf16.mxu0 0
  %8030 = vmatpush1.bf16.msra.mxu0 0
  %8031 = vmatprep.subr.bf16.mxu0 0
  %8032 = vmatpush1.bf16.msra.mxu0 0
  %8033 = vmatprep.subr.bf16.mxu0 0
  %8034 = vmatpush1.bf16.msra.mxu0 0
  %8035 = vmatprep.mubr.bf16.mxu0 0
  %8036 = vmatmul.mubr.bf16.gmra.mrb[0].mxu0 %v7998
  %v8037 = vpop.f32.mrb[0].mxu0
  %v8038 = vadd.f32 0.0, %v8037
  %v8039 = vpop.f32.mrb[0].mxu0
  %v8040 = vpop.f32.mrb[0].mxu0
  %v8041 = vpop.f32.mrb[0].mxu0
  %8042 = vdwg.mxu0
  %8043 = vrot.lane.b32.xlu0 %v1026, 64
  %v8044 = vpop.permute.xlu0 %8043
  %v8046 = vsel %vm4297, %v5064, 0
  %v8049 = vsel %vm5071, %v8044, 0
  %8051 = vmatprep.subr.bf16.mxu0 0
  %8052 = vmatpush1.bf16.msra.mxu0 %v8049
  %8053 = vmatprep.subr.bf16.mxu0 0
  %8054 = vmatpush1.bf16.msra.mxu0 0
  %8055 = vmatprep.subr.bf16.mxu0 0
  %8056 = vmatpush1.bf16.msra.mxu0 0
  %8057 = vmatprep.subr.bf16.mxu0 0
  %8058 = vmatpush1.bf16.msra.mxu0 0
  %8059 = vmatprep.subr.bf16.mxu0 0
  %8060 = vmatpush1.bf16.msra.mxu0 0
  %8061 = vmatprep.subr.bf16.mxu0 0
  %8062 = vmatpush1.bf16.msra.mxu0 0
  %8063 = vmatprep.subr.bf16.mxu0 0
  %8064 = vmatpush1.bf16.msra.mxu0 0
  %8065 = vmatprep.subr.bf16.mxu0 0
  %8066 = vmatpush1.bf16.msra.mxu0 0
  %8067 = vmatprep.subr.bf16.mxu0 0
  %8068 = vmatpush1.bf16.msra.mxu0 0
  %8069 = vmatprep.subr.bf16.mxu0 0
  %8070 = vmatpush1.bf16.msra.mxu0 0
  %8071 = vmatprep.subr.bf16.mxu0 0
  %8072 = vmatpush1.bf16.msra.mxu0 0
  %8073 = vmatprep.subr.bf16.mxu0 0
  %8074 = vmatpush1.bf16.msra.mxu0 0
  %8075 = vmatprep.subr.bf16.mxu0 0
  %8076 = vmatpush1.bf16.msra.mxu0 0
  %8077 = vmatprep.subr.bf16.mxu0 0
  %8078 = vmatpush1.bf16.msra.mxu0 0
  %8079 = vmatprep.subr.bf16.mxu0 0
  %8080 = vmatpush1.bf16.msra.mxu0 0
  %8081 = vmatprep.subr.bf16.mxu0 0
  %8082 = vmatpush1.bf16.msra.mxu0 0
  %8083 = vmatprep.mubr.bf16.mxu0 0
  %8084 = vmatmul.mubr.bf16.gmra.mrb[0].mxu0 %v8046
  %v8085 = vpop.f32.mrb[0].mxu0
  %v8086 = vadd.f32 0.0, %v8085
  %v8087 = vpop.f32.mrb[0].mxu0
  %v8088 = vpop.f32.mrb[0].mxu0
  %v8089 = vpop.f32.mrb[0].mxu0
  %8090 = vdwg.mxu0
  %8091 = vrot.lane.b32.xlu0 %v1027, 64
  %v8092 = vpop.permute.xlu0 %8091
  %v8094 = vsel %vm4297, %v5065, 0
  %v8097 = vsel %vm5071, %v8092, 0
  %8099 = vmatprep.subr.bf16.mxu0 0
  %8100 = vmatpush1.bf16.msra.mxu0 %v8097
  %8101 = vmatprep.subr.bf16.mxu0 0
  %8102 = vmatpush1.bf16.msra.mxu0 0
  %8103 = vmatprep.subr.bf16.mxu0 0
  %8104 = vmatpush1.bf16.msra.mxu0 0
  %8105 = vmatprep.subr.bf16.mxu0 0
  %8106 = vmatpush1.bf16.msra.mxu0 0
  %8107 = vmatprep.subr.bf16.mxu0 0
  %8108 = vmatpush1.bf16.msra.mxu0 0
  %8109 = vmatprep.subr.bf16.mxu0 0
  %8110 = vmatpush1.bf16.msra.mxu0 0
  %8111 = vmatprep.subr.bf16.mxu0 0
  %8112 = vmatpush1.bf16.msra.mxu0 0
  %8113 = vmatprep.subr.bf16.mxu0 0
  %8114 = vmatpush1.bf16.msra.mxu0 0
  %8115 = vmatprep.subr.bf16.mxu0 0
  %8116 = vmatpush1.bf16.msra.mxu0 0
  %8117 = vmatprep.subr.bf16.mxu0 0
  %8118 = vmatpush1.bf16.msra.mxu0 0
  %8119 = vmatprep.subr.bf16.mxu0 0
  %8120 = vmatpush1.bf16.msra.mxu0 0
  %8121 = vmatprep.subr.bf16.mxu0 0
  %8122 = vmatpush1.bf16.msra.mxu0 0
  %8123 = vmatprep.subr.bf16.mxu0 0
  %8124 = vmatpush1.bf16.msra.mxu0 0
  %8125 = vmatprep.subr.bf16.mxu0 0
  %8126 = vmatpush1.bf16.msra.mxu0 0
  %8127 = vmatprep.subr.bf16.mxu0 0
  %8128 = vmatpush1.bf16.msra.mxu0 0
  %8129 = vmatprep.subr.bf16.mxu0 0
  %8130 = vmatpush1.bf16.msra.mxu0 0
  %8131 = vmatprep.mubr.bf16.mxu0 0
  %8132 = vmatmul.mubr.bf16.gmra.mrb[0].mxu0 %v8094
  %v8133 = vpop.f32.mrb[0].mxu0
  %v8134 = vadd.f32 0.0, %v8133
  %v8135 = vpop.f32.mrb[0].mxu0
  %v8136 = vpop.f32.mrb[0].mxu0
  %v8137 = vpop.f32.mrb[0].mxu0
  %8138 = vdwg.mxu0
  %8171 = vrot.lane.b32.xlu0 %v6646, 16
  %v8172 = vpop.permute.xlu0 %8171
  %8173 = vrot.lane.b32.xlu0 %v6694, 16
  %v8174 = vpop.permute.xlu0 %8173
  %8175 = vrot.lane.b32.xlu0 %v6742, 16
  %v8176 = vpop.permute.xlu0 %8175
  %8177 = vrot.lane.b32.xlu0 %v6790, 16
  %v8178 = vpop.permute.xlu0 %8177
  %8179 = vrot.lane.b32.xlu0 %v6838, 16
  %v8180 = vpop.permute.xlu0 %8179
  %8181 = vrot.lane.b32.xlu0 %v6886, 16
  %v8182 = vpop.permute.xlu0 %8181
  %8183 = vrot.lane.b32.xlu0 %v6934, 16
  %v8184 = vpop.permute.xlu0 %8183
  %8185 = vrot.lane.b32.xlu0 %v6982, 16
  %v8186 = vpop.permute.xlu0 %8185
  %8187 = vrot.lane.b32.xlu0 %v7030, 16
  %v8188 = vpop.permute.xlu0 %8187
  %8189 = vrot.lane.b32.xlu0 %v7078, 16
  %v8190 = vpop.permute.xlu0 %8189
  %8191 = vrot.lane.b32.xlu0 %v7126, 16
  %v8192 = vpop.permute.xlu0 %8191
  %8193 = vrot.lane.b32.xlu0 %v7174, 16
  %v8194 = vpop.permute.xlu0 %8193
  %8195 = vrot.lane.b32.xlu0 %v7222, 16
  %v8196 = vpop.permute.xlu0 %8195
  %8197 = vrot.lane.b32.xlu0 %v7270, 16
  %v8198 = vpop.permute.xlu0 %8197
  %8199 = vrot.lane.b32.xlu0 %v7318, 16
  %v8200 = vpop.permute.xlu0 %8199
  %8201 = vrot.lane.b32.xlu0 %v7366, 16
  %v8202 = vpop.permute.xlu0 %8201
  %8203 = vrot.lane.b32.xlu0 %v7414, 16
  %v8204 = vpop.permute.xlu0 %8203
  %8205 = vrot.lane.b32.xlu0 %v7462, 16
  %v8206 = vpop.permute.xlu0 %8205
  %8207 = vrot.lane.b32.xlu0 %v7510, 16
  %v8208 = vpop.permute.xlu0 %8207
  %8209 = vrot.lane.b32.xlu0 %v7558, 16
  %v8210 = vpop.permute.xlu0 %8209
  %8211 = vrot.lane.b32.xlu0 %v7606, 16
  %v8212 = vpop.permute.xlu0 %8211
  %8213 = vrot.lane.b32.xlu0 %v7654, 16
  %v8214 = vpop.permute.xlu0 %8213
  %8215 = vrot.lane.b32.xlu0 %v7702, 16
  %v8216 = vpop.permute.xlu0 %8215
  %8217 = vrot.lane.b32.xlu0 %v7750, 16
  %v8218 = vpop.permute.xlu0 %8217
  %8219 = vrot.lane.b32.xlu0 %v7798, 16
  %v8220 = vpop.permute.xlu0 %8219
  %8221 = vrot.lane.b32.xlu0 %v7846, 16
  %v8222 = vpop.permute.xlu0 %8221
  %8223 = vrot.lane.b32.xlu0 %v7894, 16
  %v8224 = vpop.permute.xlu0 %8223
  %8225 = vrot.lane.b32.xlu0 %v7942, 16
  %v8226 = vpop.permute.xlu0 %8225
  %8227 = vrot.lane.b32.xlu0 %v7990, 16
  %v8228 = vpop.permute.xlu0 %8227
  %8229 = vrot.lane.b32.xlu0 %v8038, 16
  %v8230 = vpop.permute.xlu0 %8229
  %8231 = vrot.lane.b32.xlu0 %v8086, 16
  %v8232 = vpop.permute.xlu0 %8231
  %8233 = vrot.lane.b32.xlu0 %v8134, 16
  %v8234 = vpop.permute.xlu0 %8233
  %v8267 = vsel %vm1031, %v5110, %v8172
  %v8268 = vsel %vm1031, %v5158, %v8174
  %v8269 = vsel %vm1031, %v5206, %v8176
  %v8270 = vsel %vm1031, %v5254, %v8178
  %v8271 = vsel %vm1031, %v5302, %v8180
  %v8272 = vsel %vm1031, %v5350, %v8182
  %v8273 = vsel %vm1031, %v5398, %v8184
  %v8274 = vsel %vm1031, %v5446, %v8186
  %v8275 = vsel %vm1031, %v5494, %v8188
  %v8276 = vsel %vm1031, %v5542, %v8190
  %v8277 = vsel %vm1031, %v5590, %v8192
  %v8278 = vsel %vm1031, %v5638, %v8194
  %v8279 = vsel %vm1031, %v5686, %v8196
  %v8280 = vsel %vm1031, %v5734, %v8198
  %v8281 = vsel %vm1031, %v5782, %v8200
  %v8282 = vsel %vm1031, %v5830, %v8202
  %v8283 = vsel %vm1031, %v5878, %v8204
  %v8284 = vsel %vm1031, %v5926, %v8206
  %v8285 = vsel %vm1031, %v5974, %v8208
  %v8286 = vsel %vm1031, %v6022, %v8210
  %v8287 = vsel %vm1031, %v6070, %v8212
  %v8288 = vsel %vm1031, %v6118, %v8214
  %v8289 = vsel %vm1031, %v6166, %v8216
  %v8290 = vsel %vm1031, %v6214, %v8218
  %v8291 = vsel %vm1031, %v6262, %v8220
  %v8292 = vsel %vm1031, %v6310, %v8222
  %v8293 = vsel %vm1031, %v6358, %v8224
  %v8294 = vsel %vm1031, %v6406, %v8226
  %v8295 = vsel %vm1031, %v6454, %v8228
  %v8296 = vsel %vm1031, %v6502, %v8230
  %v8297 = vsel %vm1031, %v6550, %v8232
  %v8298 = vsel %vm1031, %v6598, %v8234
  %v8299 = vpack.c.bf16 %v8268, %v8267
  %v8300 = vpack.c.bf16 %v8270, %v8269
  %v8301 = vpack.c.bf16 %v8272, %v8271
  %v8302 = vpack.c.bf16 %v8274, %v8273
  %v8303 = vpack.c.bf16 %v8276, %v8275
  %v8304 = vpack.c.bf16 %v8278, %v8277
  %v8305 = vpack.c.bf16 %v8280, %v8279
  %v8306 = vpack.c.bf16 %v8282, %v8281
  %v8307 = vpack.c.bf16 %v8284, %v8283
  %v8308 = vpack.c.bf16 %v8286, %v8285
  %v8309 = vpack.c.bf16 %v8288, %v8287
  %v8310 = vpack.c.bf16 %v8290, %v8289
  %v8311 = vpack.c.bf16 %v8292, %v8291
  %v8312 = vpack.c.bf16 %v8294, %v8293
  %v8313 = vpack.c.bf16 %v8296, %v8295
  %v8314 = vpack.c.bf16 %v8298, %v8297
  %v8316 = vlaneseq
  %v8317 = vshrl.u32 %v8316, 7
  %v8318 = vsub.s32 0, %v8317
  %v8319 = vrot.slane %v598, %v8318
  %v8325 = vunpack.c.l.b16 %v594
  %v8326 = vunpack.c.l.b16 %v595
  %v8327 = vunpack.c.l.b16 %v596
  %v8328 = vunpack.c.l.b16 %v597
  %v8329 = vpack.c.b16 %v8326, %v8325
  %v8330 = vpack.c.b16 %v8328, %v8327
  %v8334 = vsel %vm96, %v8299, 0
  %v8337 = vsel %vm96, %v8300, 0
  %v8340 = vsel %vm96, %v8301, 0
  %v8343 = vsel %vm96, %v8302, 0
  %v8346 = vsel %vm96, %v8303, 0
  %v8349 = vsel %vm96, %v8304, 0
  %v8352 = vsel %vm96, %v8305, 0
  %v8355 = vsel %vm96, %v8306, 0
  %v8358 = vsel %vm96, %v8307, 0
  %v8361 = vsel %vm96, %v8308, 0
  %v8364 = vsel %vm96, %v8309, 0
  %v8367 = vsel %vm96, %v8310, 0
  %v8370 = vsel %vm96, %v8311, 0
  %v8373 = vsel %vm96, %v8312, 0
  %v8376 = vsel %vm96, %v8313, 0
  %v8379 = vsel %vm96, %v8314, 0
  %8381 = vmatprep.subr.bf16.mxu0 0
  %8382 = vmatpush1.bf16.msra.mxu0 %v8329
  %8383 = vmatprep.subr.bf16.mxu0 0
  %8384 = vmatpush1.bf16.msra.mxu0 %v8330
  %8385 = vmatprep.subr.bf16.mxu0 0
  %8386 = vmatpush1.bf16.msra.mxu0 0
  %8387 = vmatprep.subr.bf16.mxu0 0
  %8388 = vmatpush1.bf16.msra.mxu0 0
  %8389 = vmatprep.subr.bf16.mxu0 0
  %8390 = vmatpush1.bf16.msra.mxu0 0
  %8391 = vmatprep.subr.bf16.mxu0 0
  %8392 = vmatpush1.bf16.msra.mxu0 0
  %8393 = vmatprep.subr.bf16.mxu0 0
  %8394 = vmatpush1.bf16.msra.mxu0 0
  %8395 = vmatprep.subr.bf16.mxu0 0
  %8396 = vmatpush1.bf16.msra.mxu0 0
  %8397 = vmatprep.subr.bf16.mxu0 0
  %8398 = vmatpush1.bf16.msra.mxu0 0
  %8399 = vmatprep.subr.bf16.mxu0 0
  %8400 = vmatpush1.bf16.msra.mxu0 0
  %8401 = vmatprep.subr.bf16.mxu0 0
  %8402 = vmatpush1.bf16.msra.mxu0 0
  %8403 = vmatprep.subr.bf16.mxu0 0
  %8404 = vmatpush1.bf16.msra.mxu0 0
  %8405 = vmatprep.subr.bf16.mxu0 0
  %8406 = vmatpush1.bf16.msra.mxu0 0
  %8407 = vmatprep.subr.bf16.mxu0 0
  %8408 = vmatpush1.bf16.msra.mxu0 0
  %8409 = vmatprep.subr.bf16.mxu0 0
  %8410 = vmatpush1.bf16.msra.mxu0 0
  %8411 = vmatprep.subr.bf16.mxu0 0
  %8412 = vmatpush1.bf16.msra.mxu0 0
  %8413 = vmatprep.mubr.bf16.mxu0 0
  %8414 = vmatmul.mubr.bf16.gmra.mrb[0].mxu0 %v8334
  %v8415 = vpop.f32.mrb[0].mxu0
  %v8416 = vadd.f32 %v8319, %v8415
  %v8417 = vpop.f32.mrb[0].mxu0
  %v8418 = vpop.f32.mrb[0].mxu0
  %v8419 = vadd.f32 %v8319, %v8418
  %v8420 = vpop.f32.mrb[0].mxu0
  %8421 = vmatprep.mubr.bf16.mxu0 0
  %8422 = vmatmul.mubr.bf16.gmra.mrb[0].mxu0 %v8337
  %v8423 = vpop.f32.mrb[0].mxu0
  %v8424 = vadd.f32 %v8319, %v8423
  %v8425 = vpop.f32.mrb[0].mxu0
  %v8426 = vpop.f32.mrb[0].mxu0
  %v8427 = vadd.f32 %v8319, %v8426
  %v8428 = vpop.f32.mrb[0].mxu0
  %8429 = vmatprep.mubr.bf16.mxu0 0
  %8430 = vmatmul.mubr.bf16.gmra.mrb[0].mxu0 %v8340
  %v8431 = vpop.f32.mrb[0].mxu0
  %v8432 = vadd.f32 %v8319, %v8431
  %v8433 = vpop.f32.mrb[0].mxu0
  %v8434 = vpop.f32.mrb[0].mxu0
  %v8435 = vadd.f32 %v8319, %v8434
  %v8436 = vpop.f32.mrb[0].mxu0
  %8437 = vmatprep.mubr.bf16.mxu0 0
  %8438 = vmatmul.mubr.bf16.gmra.mrb[0].mxu0 %v8343
  %v8439 = vpop.f32.mrb[0].mxu0
  %v8440 = vadd.f32 %v8319, %v8439
  %v8441 = vpop.f32.mrb[0].mxu0
  %v8442 = vpop.f32.mrb[0].mxu0
  %v8443 = vadd.f32 %v8319, %v8442
  %v8444 = vpop.f32.mrb[0].mxu0
  %8445 = vmatprep.mubr.bf16.mxu0 0
  %8446 = vmatmul.mubr.bf16.gmra.mrb[0].mxu0 %v8346
  %v8447 = vpop.f32.mrb[0].mxu0
  %v8448 = vadd.f32 %v8319, %v8447
  %v8449 = vpop.f32.mrb[0].mxu0
  %v8450 = vpop.f32.mrb[0].mxu0
  %v8451 = vadd.f32 %v8319, %v8450
  %v8452 = vpop.f32.mrb[0].mxu0
  %8453 = vmatprep.mubr.bf16.mxu0 0
  %8454 = vmatmul.mubr.bf16.gmra.mrb[0].mxu0 %v8349
  %v8455 = vpop.f32.mrb[0].mxu0
  %v8456 = vadd.f32 %v8319, %v8455
  %v8457 = vpop.f32.mrb[0].mxu0
  %v8458 = vpop.f32.mrb[0].mxu0
  %v8459 = vadd.f32 %v8319, %v8458
  %v8460 = vpop.f32.mrb[0].mxu0
  %8461 = vmatprep.mubr.bf16.mxu0 0
  %8462 = vmatmul.mubr.bf16.gmra.mrb[0].mxu0 %v8352
  %v8463 = vpop.f32.mrb[0].mxu0
  %v8464 = vadd.f32 %v8319, %v8463
  %v8465 = vpop.f32.mrb[0].mxu0
  %v8466 = vpop.f32.mrb[0].mxu0
  %v8467 = vadd.f32 %v8319, %v8466
  %v8468 = vpop.f32.mrb[0].mxu0
  %8469 = vmatprep.mubr.bf16.mxu0 0
  %8470 = vmatmul.mubr.bf16.gmra.mrb[0].mxu0 %v8355
  %v8471 = vpop.f32.mrb[0].mxu0
  %v8472 = vadd.f32 %v8319, %v8471
  %v8473 = vpop.f32.mrb[0].mxu0
  %v8474 = vpop.f32.mrb[0].mxu0
  %v8475 = vadd.f32 %v8319, %v8474
  %v8476 = vpop.f32.mrb[0].mxu0
  %8477 = vmatprep.mubr.bf16.mxu0 0
  %8478 = vmatmul.mubr.bf16.gmra.mrb[0].mxu0 %v8358
  %v8479 = vpop.f32.mrb[0].mxu0
  %v8480 = vadd.f32 %v8319, %v8479
  %v8481 = vpop.f32.mrb[0].mxu0
  %v8482 = vpop.f32.mrb[0].mxu0
  %v8483 = vadd.f32 %v8319, %v8482
  %v8484 = vpop.f32.mrb[0].mxu0
  %8485 = vmatprep.mubr.bf16.mxu0 0
  %8486 = vmatmul.mubr.bf16.gmra.mrb[0].mxu0 %v8361
  %v8487 = vpop.f32.mrb[0].mxu0
  %v8488 = vadd.f32 %v8319, %v8487
  %v8489 = vpop.f32.mrb[0].mxu0
  %v8490 = vpop.f32.mrb[0].mxu0
  %v8491 = vadd.f32 %v8319, %v8490
  %v8492 = vpop.f32.mrb[0].mxu0
  %8493 = vmatprep.mubr.bf16.mxu0 0
  %8494 = vmatmul.mubr.bf16.gmra.mrb[0].mxu0 %v8364
  %v8495 = vpop.f32.mrb[0].mxu0
  %v8496 = vadd.f32 %v8319, %v8495
  %v8497 = vpop.f32.mrb[0].mxu0
  %v8498 = vpop.f32.mrb[0].mxu0
  %v8499 = vadd.f32 %v8319, %v8498
  %v8500 = vpop.f32.mrb[0].mxu0
  %8501 = vmatprep.mubr.bf16.mxu0 0
  %8502 = vmatmul.mubr.bf16.gmra.mrb[0].mxu0 %v8367
  %v8503 = vpop.f32.mrb[0].mxu0
  %v8504 = vadd.f32 %v8319, %v8503
  %v8505 = vpop.f32.mrb[0].mxu0
  %v8506 = vpop.f32.mrb[0].mxu0
  %v8507 = vadd.f32 %v8319, %v8506
  %v8508 = vpop.f32.mrb[0].mxu0
  %8509 = vmatprep.mubr.bf16.mxu0 0
  %8510 = vmatmul.mubr.bf16.gmra.mrb[0].mxu0 %v8370
  %v8511 = vpop.f32.mrb[0].mxu0
  %v8512 = vadd.f32 %v8319, %v8511
  %v8513 = vpop.f32.mrb[0].mxu0
  %v8514 = vpop.f32.mrb[0].mxu0
  %v8515 = vadd.f32 %v8319, %v8514
  %v8516 = vpop.f32.mrb[0].mxu0
  %8517 = vmatprep.mubr.bf16.mxu0 0
  %8518 = vmatmul.mubr.bf16.gmra.mrb[0].mxu0 %v8373
  %v8519 = vpop.f32.mrb[0].mxu0
  %v8520 = vadd.f32 %v8319, %v8519
  %v8521 = vpop.f32.mrb[0].mxu0
  %v8522 = vpop.f32.mrb[0].mxu0
  %v8523 = vadd.f32 %v8319, %v8522
  %v8524 = vpop.f32.mrb[0].mxu0
  %8525 = vmatprep.mubr.bf16.mxu0 0
  %8526 = vmatmul.mubr.bf16.gmra.mrb[0].mxu0 %v8376
  %v8527 = vpop.f32.mrb[0].mxu0
  %v8528 = vadd.f32 %v8319, %v8527
  %v8529 = vpop.f32.mrb[0].mxu0
  %v8530 = vpop.f32.mrb[0].mxu0
  %v8531 = vadd.f32 %v8319, %v8530
  %v8532 = vpop.f32.mrb[0].mxu0
  %8533 = vmatprep.mubr.bf16.mxu0 0
  %8534 = vmatmul.mubr.bf16.gmra.mrb[0].mxu0 %v8379
  %v8535 = vpop.f32.mrb[0].mxu0
  %v8536 = vadd.f32 %v8319, %v8535
  %v8537 = vpop.f32.mrb[0].mxu0
  %v8538 = vpop.f32.mrb[0].mxu0
  %v8539 = vadd.f32 %v8319, %v8538
  %v8540 = vpop.f32.mrb[0].mxu0
  %8541 = vdwg.mxu0
  %v8542 = vpack.c.bf16 %v8419, %v8416
  %v8543 = vpack.c.bf16 %v8427, %v8424
  %v8544 = vpack.c.bf16 %v8435, %v8432
  %v8545 = vpack.c.bf16 %v8443, %v8440
  %v8546 = vpack.c.bf16 %v8451, %v8448
  %v8547 = vpack.c.bf16 %v8459, %v8456
  %v8548 = vpack.c.bf16 %v8467, %v8464
  %v8549 = vpack.c.bf16 %v8475, %v8472
  %v8550 = vpack.c.bf16 %v8483, %v8480
  %v8551 = vpack.c.bf16 %v8491, %v8488
  %v8552 = vpack.c.bf16 %v8499, %v8496
  %v8553 = vpack.c.bf16 %v8507, %v8504
  %v8554 = vpack.c.bf16 %v8515, %v8512
  %v8555 = vpack.c.bf16 %v8523, %v8520
  %v8556 = vpack.c.bf16 %v8531, %v8528
  %v8557 = vpack.c.bf16 %v8539, %v8536
  %v8558 = vld [vmem:[%s6] sm:$0xf]
  %v8559 = vld [vmem:[%s6 + $0x4] sm:$0xf]
  %v8560 = vld [vmem:[%s6 + $0x8] sm:$0xf]
  %v8561 = vld [vmem:[%s6 + $0xc] sm:$0xf]
  %v8562 = vld [vmem:[%s7] sm:$0x1]
  %v8564 = vlaneseq
  %v8565 = vshrl.u32 %v8564, 7
  %v8566 = vsub.s32 0, %v8565
  %v8567 = vrot.slane %v8562, %v8566
  %v8573 = vunpack.c.l.b16 %v8558
  %v8574 = vunpack.c.l.b16 %v8559
  %v8575 = vunpack.c.l.b16 %v8560
  %v8576 = vunpack.c.l.b16 %v8561
  %v8577 = vpack.c.b16 %v8574, %v8573
  %v8578 = vpack.c.b16 %v8576, %v8575
  %v8582 = vsel %vm96, %v8542, 0
  %v8585 = vsel %vm96, %v8543, 0
  %v8588 = vsel %vm96, %v8544, 0
  %v8591 = vsel %vm96, %v8545, 0
  %v8594 = vsel %vm96, %v8546, 0
  %v8597 = vsel %vm96, %v8547, 0
  %v8600 = vsel %vm96, %v8548, 0
  %v8603 = vsel %vm96, %v8549, 0
  %v8606 = vsel %vm96, %v8550, 0
  %v8609 = vsel %vm96, %v8551, 0
  %v8612 = vsel %vm96, %v8552, 0
  %v8615 = vsel %vm96, %v8553, 0
  %v8618 = vsel %vm96, %v8554, 0
  %v8621 = vsel %vm96, %v8555, 0
  %v8624 = vsel %vm96, %v8556, 0
  %v8627 = vsel %vm96, %v8557, 0
  %8629 = vmatprep.subr.bf16.mxu0 0
  %8630 = vmatpush1.bf16.msra.mxu0 %v8577
  %8631 = vmatprep.subr.bf16.mxu0 0
  %8632 = vmatpush1.bf16.msra.mxu0 %v8578
  %8633 = vmatprep.subr.bf16.mxu0 0
  %8634 = vmatpush1.bf16.msra.mxu0 0
  %8635 = vmatprep.subr.bf16.mxu0 0
  %8636 = vmatpush1.bf16.msra.mxu0 0
  %8637 = vmatprep.subr.bf16.mxu0 0
  %8638 = vmatpush1.bf16.msra.mxu0 0
  %8639 = vmatprep.subr.bf16.mxu0 0
  %8640 = vmatpush1.bf16.msra.mxu0 0
  %8641 = vmatprep.subr.bf16.mxu0 0
  %8642 = vmatpush1.bf16.msra.mxu0 0
  %8643 = vmatprep.subr.bf16.mxu0 0
  %8644 = vmatpush1.bf16.msra.mxu0 0
  %8645 = vmatprep.subr.bf16.mxu0 0
  %8646 = vmatpush1.bf16.msra.mxu0 0
  %8647 = vmatprep.subr.bf16.mxu0 0
  %8648 = vmatpush1.bf16.msra.mxu0 0
  %8649 = vmatprep.subr.bf16.mxu0 0
  %8650 = vmatpush1.bf16.msra.mxu0 0
  %8651 = vmatprep.subr.bf16.mxu0 0
  %8652 = vmatpush1.bf16.msra.mxu0 0
  %8653 = vmatprep.subr.bf16.mxu0 0
  %8654 = vmatpush1.bf16.msra.mxu0 0
  %8655 = vmatprep.subr.bf16.mxu0 0
  %8656 = vmatpush1.bf16.msra.mxu0 0
  %8657 = vmatprep.subr.bf16.mxu0 0
  %8658 = vmatpush1.bf16.msra.mxu0 0
  %8659 = vmatprep.subr.bf16.mxu0 0
  %8660 = vmatpush1.bf16.msra.mxu0 0
  %8661 = vmatprep.mubr.bf16.mxu0 0
  %8662 = vmatmul.mubr.bf16.gmra.mrb[0].mxu0 %v8582
  %v8663 = vpop.f32.mrb[0].mxu0
  %v8664 = vadd.f32 %v8567, %v8663
  %v8665 = vpop.f32.mrb[0].mxu0
  %v8666 = vpop.f32.mrb[0].mxu0
  %v8667 = vadd.f32 %v8567, %v8666
  %v8668 = vpop.f32.mrb[0].mxu0
  %8669 = vmatprep.mubr.bf16.mxu0 0
  %8670 = vmatmul.mubr.bf16.gmra.mrb[0].mxu0 %v8585
  %v8671 = vpop.f32.mrb[0].mxu0
  %v8672 = vadd.f32 %v8567, %v8671
  %v8673 = vpop.f32.mrb[0].mxu0
  %v8674 = vpop.f32.mrb[0].mxu0
  %v8675 = vadd.f32 %v8567, %v8674
  %v8676 = vpop.f32.mrb[0].mxu0
  %8677 = vmatprep.mubr.bf16.mxu0 0
  %8678 = vmatmul.mubr.bf16.gmra.mrb[0].mxu0 %v8588
  %v8679 = vpop.f32.mrb[0].mxu0
  %v8680 = vadd.f32 %v8567, %v8679
  %v8681 = vpop.f32.mrb[0].mxu0
  %v8682 = vpop.f32.mrb[0].mxu0
  %v8683 = vadd.f32 %v8567, %v8682
  %v8684 = vpop.f32.mrb[0].mxu0
  %8685 = vmatprep.mubr.bf16.mxu0 0
  %8686 = vmatmul.mubr.bf16.gmra.mrb[0].mxu0 %v8591
  %v8687 = vpop.f32.mrb[0].mxu0
  %v8688 = vadd.f32 %v8567, %v8687
  %v8689 = vpop.f32.mrb[0].mxu0
  %v8690 = vpop.f32.mrb[0].mxu0
  %v8691 = vadd.f32 %v8567, %v8690
  %v8692 = vpop.f32.mrb[0].mxu0
  %8693 = vmatprep.mubr.bf16.mxu0 0
  %8694 = vmatmul.mubr.bf16.gmra.mrb[0].mxu0 %v8594
  %v8695 = vpop.f32.mrb[0].mxu0
  %v8696 = vadd.f32 %v8567, %v8695
  %v8697 = vpop.f32.mrb[0].mxu0
  %v8698 = vpop.f32.mrb[0].mxu0
  %v8699 = vadd.f32 %v8567, %v8698
  %v8700 = vpop.f32.mrb[0].mxu0
  %8701 = vmatprep.mubr.bf16.mxu0 0
  %8702 = vmatmul.mubr.bf16.gmra.mrb[0].mxu0 %v8597
  %v8703 = vpop.f32.mrb[0].mxu0
  %v8704 = vadd.f32 %v8567, %v8703
  %v8705 = vpop.f32.mrb[0].mxu0
  %v8706 = vpop.f32.mrb[0].mxu0
  %v8707 = vadd.f32 %v8567, %v8706
  %v8708 = vpop.f32.mrb[0].mxu0
  %8709 = vmatprep.mubr.bf16.mxu0 0
  %8710 = vmatmul.mubr.bf16.gmra.mrb[0].mxu0 %v8600
  %v8711 = vpop.f32.mrb[0].mxu0
  %v8712 = vadd.f32 %v8567, %v8711
  %v8713 = vpop.f32.mrb[0].mxu0
  %v8714 = vpop.f32.mrb[0].mxu0
  %v8715 = vadd.f32 %v8567, %v8714
  %v8716 = vpop.f32.mrb[0].mxu0
  %8717 = vmatprep.mubr.bf16.mxu0 0
  %8718 = vmatmul.mubr.bf16.gmra.mrb[0].mxu0 %v8603
  %v8719 = vpop.f32.mrb[0].mxu0
  %v8720 = vadd.f32 %v8567, %v8719
  %v8721 = vpop.f32.mrb[0].mxu0
  %v8722 = vpop.f32.mrb[0].mxu0
  %v8723 = vadd.f32 %v8567, %v8722
  %v8724 = vpop.f32.mrb[0].mxu0
  %8725 = vmatprep.mubr.bf16.mxu0 0
  %8726 = vmatmul.mubr.bf16.gmra.mrb[0].mxu0 %v8606
  %v8727 = vpop.f32.mrb[0].mxu0
  %v8728 = vadd.f32 %v8567, %v8727
  %v8729 = vpop.f32.mrb[0].mxu0
  %v8730 = vpop.f32.mrb[0].mxu0
  %v8731 = vadd.f32 %v8567, %v8730
  %v8732 = vpop.f32.mrb[0].mxu0
  %8733 = vmatprep.mubr.bf16.mxu0 0
  %8734 = vmatmul.mubr.bf16.gmra.mrb[0].mxu0 %v8609
  %v8735 = vpop.f32.mrb[0].mxu0
  %v8736 = vadd.f32 %v8567, %v8735
  %v8737 = vpop.f32.mrb[0].mxu0
  %v8738 = vpop.f32.mrb[0].mxu0
  %v8739 = vadd.f32 %v8567, %v8738
  %v8740 = vpop.f32.mrb[0].mxu0
  %8741 = vmatprep.mubr.bf16.mxu0 0
  %8742 = vmatmul.mubr.bf16.gmra.mrb[0].mxu0 %v8612
  %v8743 = vpop.f32.mrb[0].mxu0
  %v8744 = vadd.f32 %v8567, %v8743
  %v8745 = vpop.f32.mrb[0].mxu0
  %v8746 = vpop.f32.mrb[0].mxu0
  %v8747 = vadd.f32 %v8567, %v8746
  %v8748 = vpop.f32.mrb[0].mxu0
  %8749 = vmatprep.mubr.bf16.mxu0 0
  %8750 = vmatmul.mubr.bf16.gmra.mrb[0].mxu0 %v8615
  %v8751 = vpop.f32.mrb[0].mxu0
  %v8752 = vadd.f32 %v8567, %v8751
  %v8753 = vpop.f32.mrb[0].mxu0
  %v8754 = vpop.f32.mrb[0].mxu0
  %v8755 = vadd.f32 %v8567, %v8754
  %v8756 = vpop.f32.mrb[0].mxu0
  %8757 = vmatprep.mubr.bf16.mxu0 0
  %8758 = vmatmul.mubr.bf16.gmra.mrb[0].mxu0 %v8618
  %v8759 = vpop.f32.mrb[0].mxu0
  %v8760 = vadd.f32 %v8567, %v8759
  %v8761 = vpop.f32.mrb[0].mxu0
  %v8762 = vpop.f32.mrb[0].mxu0
  %v8763 = vadd.f32 %v8567, %v8762
  %v8764 = vpop.f32.mrb[0].mxu0
  %8765 = vmatprep.mubr.bf16.mxu0 0
  %8766 = vmatmul.mubr.bf16.gmra.mrb[0].mxu0 %v8621
  %v8767 = vpop.f32.mrb[0].mxu0
  %v8768 = vadd.f32 %v8567, %v8767
  %v8769 = vpop.f32.mrb[0].mxu0
  %v8770 = vpop.f32.mrb[0].mxu0
  %v8771 = vadd.f32 %v8567, %v8770
  %v8772 = vpop.f32.mrb[0].mxu0
  %8773 = vmatprep.mubr.bf16.mxu0 0
  %8774 = vmatmul.mubr.bf16.gmra.mrb[0].mxu0 %v8624
  %v8775 = vpop.f32.mrb[0].mxu0
  %v8776 = vadd.f32 %v8567, %v8775
  %v8777 = vpop.f32.mrb[0].mxu0
  %v8778 = vpop.f32.mrb[0].mxu0
  %v8779 = vadd.f32 %v8567, %v8778
  %v8780 = vpop.f32.mrb[0].mxu0
  %8781 = vmatprep.mubr.bf16.mxu0 0
  %8782 = vmatmul.mubr.bf16.gmra.mrb[0].mxu0 %v8627
  %v8783 = vpop.f32.mrb[0].mxu0
  %v8784 = vadd.f32 %v8567, %v8783
  %v8785 = vpop.f32.mrb[0].mxu0
  %v8786 = vpop.f32.mrb[0].mxu0
  %v8787 = vadd.f32 %v8567, %v8786
  %v8788 = vpop.f32.mrb[0].mxu0
  %8789 = vdwg.mxu0
  %v8790 = vpack.c.bf16 %v8667, %v8664
  %v8791 = vpack.c.bf16 %v8675, %v8672
  %v8792 = vpack.c.bf16 %v8683, %v8680
  %v8793 = vpack.c.bf16 %v8691, %v8688
  %v8794 = vpack.c.bf16 %v8699, %v8696
  %v8795 = vpack.c.bf16 %v8707, %v8704
  %v8796 = vpack.c.bf16 %v8715, %v8712
  %v8797 = vpack.c.bf16 %v8723, %v8720
  %v8798 = vpack.c.bf16 %v8731, %v8728
  %v8799 = vpack.c.bf16 %v8739, %v8736
  %v8800 = vpack.c.bf16 %v8747, %v8744
  %v8801 = vpack.c.bf16 %v8755, %v8752
  %v8802 = vpack.c.bf16 %v8763, %v8760
  %v8803 = vpack.c.bf16 %v8771, %v8768
  %v8804 = vpack.c.bf16 %v8779, %v8776
  %v8805 = vpack.c.bf16 %v8787, %v8784
  %v8822 = vunpack.c.l.b16 %v8790
  %v8823 = vunpack.c.h.b16 %v8790
  %v8824 = vunpack.c.l.b16 %v8791
  %v8825 = vunpack.c.h.b16 %v8791
  %v8826 = vunpack.c.l.b16 %v8792
  %v8827 = vunpack.c.h.b16 %v8792
  %v8828 = vunpack.c.l.b16 %v8793
  %v8829 = vunpack.c.h.b16 %v8793
  %v8830 = vunpack.c.l.b16 %v8794
  %v8831 = vunpack.c.h.b16 %v8794
  %v8832 = vunpack.c.l.b16 %v8795
  %v8833 = vunpack.c.h.b16 %v8795
  %v8834 = vunpack.c.l.b16 %v8796
  %v8835 = vunpack.c.h.b16 %v8796
  %v8836 = vunpack.c.l.b16 %v8797
  %v8837 = vunpack.c.h.b16 %v8797
  %v8838 = vunpack.c.l.b16 %v8798
  %v8839 = vunpack.c.h.b16 %v8798
  %v8840 = vunpack.c.l.b16 %v8799
  %v8841 = vunpack.c.h.b16 %v8799
  %v8842 = vunpack.c.l.b16 %v8800
  %v8843 = vunpack.c.h.b16 %v8800
  %v8844 = vunpack.c.l.b16 %v8801
  %v8845 = vunpack.c.h.b16 %v8801
  %v8846 = vunpack.c.l.b16 %v8802
  %v8847 = vunpack.c.h.b16 %v8802
  %v8848 = vunpack.c.l.b16 %v8803
  %v8849 = vunpack.c.h.b16 %v8803
  %v8850 = vunpack.c.l.b16 %v8804
  %v8851 = vunpack.c.h.b16 %v8804
  %v8852 = vunpack.c.l.b16 %v8805
  %v8853 = vunpack.c.h.b16 %v8805
  %v8854 = vpack.c.b16 %v8822, %v8822
  %v8855 = vpack.c.b16 %v8823, %v8823
  %v8856 = vpack.c.b16 %v8824, %v8824
  %v8857 = vpack.c.b16 %v8825, %v8825
  %v8858 = vpack.c.b16 %v8826, %v8826
  %v8859 = vpack.c.b16 %v8827, %v8827
  %v8860 = vpack.c.b16 %v8828, %v8828
  %v8861 = vpack.c.b16 %v8829, %v8829
  %v8862 = vpack.c.b16 %v8830, %v8830
  %v8863 = vpack.c.b16 %v8831, %v8831
  %v8864 = vpack.c.b16 %v8832, %v8832
  %v8865 = vpack.c.b16 %v8833, %v8833
  %v8866 = vpack.c.b16 %v8834, %v8834
  %v8867 = vpack.c.b16 %v8835, %v8835
  %v8868 = vpack.c.b16 %v8836, %v8836
  %v8869 = vpack.c.b16 %v8837, %v8837
  %v8870 = vpack.c.b16 %v8838, %v8838
  %v8871 = vpack.c.b16 %v8839, %v8839
  %v8872 = vpack.c.b16 %v8840, %v8840
  %v8873 = vpack.c.b16 %v8841, %v8841
  %v8874 = vpack.c.b16 %v8842, %v8842
  %v8875 = vpack.c.b16 %v8843, %v8843
  %v8876 = vpack.c.b16 %v8844, %v8844
  %v8877 = vpack.c.b16 %v8845, %v8845
  %v8878 = vpack.c.b16 %v8846, %v8846
  %v8879 = vpack.c.b16 %v8847, %v8847
  %v8880 = vpack.c.b16 %v8848, %v8848
  %v8881 = vpack.c.b16 %v8849, %v8849
  %v8882 = vpack.c.b16 %v8850, %v8850
  %v8883 = vpack.c.b16 %v8851, %v8851
  %v8884 = vpack.c.b16 %v8852, %v8852
  %v8885 = vpack.c.b16 %v8853, %v8853
  %vm8918 = vcmask 257024
  %8919 = vst.msk [vmem:[%s8] sm:$0xf] %vm8918, %v8854
  %8920 = vst.msk [vmem:[%s8 + $0x4] sm:$0xf] %vm8918, %v8855
  %8921 = vst.msk [vmem:[%s8 + $0x8] sm:$0xf] %vm8918, %v8856
  %8922 = vst.msk [vmem:[%s8 + $0xc] sm:$0xf] %vm8918, %v8857
  %8923 = vst.msk [vmem:[%s8 + $0x10] sm:$0xf] %vm8918, %v8858
  %8924 = vst.msk [vmem:[%s8 + $0x14] sm:$0xf] %vm8918, %v8859
  %8925 = vst.msk [vmem:[%s8 + $0x18] sm:$0xf] %vm8918, %v8860
  %8926 = vst.msk [vmem:[%s8 + $0x1c] sm:$0xf] %vm8918, %v8861
  %8927 = vst.msk [vmem:[%s8 + $0x20] sm:$0xf] %vm8918, %v8862
  %8928 = vst.msk [vmem:[%s8 + $0x24] sm:$0xf] %vm8918, %v8863
  %8929 = vst.msk [vmem:[%s8 + $0x28] sm:$0xf] %vm8918, %v8864
  %8930 = vst.msk [vmem:[%s8 + $0x2c] sm:$0xf] %vm8918, %v8865
  %8931 = vst.msk [vmem:[%s8 + $0x30] sm:$0xf] %vm8918, %v8866
  %8932 = vst.msk [vmem:[%s8 + $0x34] sm:$0xf] %vm8918, %v8867
  %8933 = vst.msk [vmem:[%s8 + $0x38] sm:$0xf] %vm8918, %v8868
  %8934 = vst.msk [vmem:[%s8 + $0x3c] sm:$0xf] %vm8918, %v8869
  %8935 = vst.msk [vmem:[%s8 + $0x40] sm:$0xf] %vm8918, %v8870
  %8936 = vst.msk [vmem:[%s8 + $0x44] sm:$0xf] %vm8918, %v8871
  %8937 = vst.msk [vmem:[%s8 + $0x48] sm:$0xf] %vm8918, %v8872
  %8938 = vst.msk [vmem:[%s8 + $0x4c] sm:$0xf] %vm8918, %v8873
  %8939 = vst.msk [vmem:[%s8 + $0x50] sm:$0xf] %vm8918, %v8874
  %8940 = vst.msk [vmem:[%s8 + $0x54] sm:$0xf] %vm8918, %v8875
  %8941 = vst.msk [vmem:[%s8 + $0x58] sm:$0xf] %vm8918, %v8876
  %8942 = vst.msk [vmem:[%s8 + $0x5c] sm:$0xf] %vm8918, %v8877
  %8943 = vst.msk [vmem:[%s8 + $0x60] sm:$0xf] %vm8918, %v8878
  %8944 = vst.msk [vmem:[%s8 + $0x64] sm:$0xf] %vm8918, %v8879
  %8945 = vst.msk [vmem:[%s8 + $0x68] sm:$0xf] %vm8918, %v8880
  %8946 = vst.msk [vmem:[%s8 + $0x6c] sm:$0xf] %vm8918, %v8881
  %8947 = vst.msk [vmem:[%s8 + $0x70] sm:$0xf] %vm8918, %v8882
  %8948 = vst.msk [vmem:[%s8 + $0x74] sm:$0xf] %vm8918, %v8883
  %8949 = vst.msk [vmem:[%s8 + $0x78] sm:$0xf] %vm8918, %v8884
  %8950 = vst.msk [vmem:[%s8 + $0x7c] sm:$0xf] %vm8918, %v8885
  // Predicated region
  $region34: #{factorized_attention_block.2} parent=0 // pred_check
    _
  $region35: #{factorized_attention_block.2} parent=0 // pred_check_branch
    %8952 = sbr.rel (0) target = $region37
  $region36: #{factorized_attention_block.2} parent=0 // pred_region
    _
  $region37: #{factorized_attention_block.2} parent=0 // pred_fallthru
    _
  // Predicated region
  $region38: #{factorized_attention_block.2} parent=0 // pred_check
    _
  $region39: #{factorized_attention_block.2} parent=0 // pred_check_branch
    %8954 = sbr.rel (0) target = $region41
  $region40: #{factorized_attention_block.2} parent=0 // pred_region
    _
  $region41: #{factorized_attention_block.2} parent=0 // pred_fallthru
    _

</llo_original>
